<compile_context>
chip_gen: v7x
topology: tpu7x:2x2x1
jax: 0.10.0
libtpu: 0.0.40
codegen_flags: <defaults>
</compile_context>

<pallas_src>
import math
from functools import partial

import jax
import jax.numpy as jnp
import numpy as np
from jax.experimental import pallas as pl
from jax.experimental.pallas import tpu as pltpu


def _gelu(x):
    # TODO(synk): PyTorch nn.GELU default is the exact erf formulation; the tanh
    # approximation is used here since erf has no guaranteed Mosaic lowering.
    return jax.nn.gelu(x, approximate=True)


# ---------------------------------------------------------------------------
# Pallas kernel: one grid step == one batch element, everything fused:
#   synthetic two-way attention -> token mean -> hypernet MLP ->
#   fused 2x ConvTranspose2d upscaling (tap-stacked matmuls) + grouped LayerNorm
#   + GELU -> hyper contraction written as a lane-dense (16, HW) tile.
# ---------------------------------------------------------------------------
def _decoder_kernel(img_ref, pe_ref, tok_ref,
                    wq_ref, wkv_ref, wq2_ref, wkv2_ref,
                    w1s_ref, c1b_ref, lnw_ref, lnb_ref, gmat_ref,
                    w2bd_ref, c2b_ref,
                    m1w_ref, m1b_ref, m2w_ref, m2b_ref, m3wt_ref, m3bt_ref,
                    smask_ref,
                    out_ref, *, num_mask_tokens):
    f32 = jnp.float32
    bf16 = jnp.bfloat16

    def bdot(a, b):                       # a @ b, bf16 operands, f32 accumulation
        return jnp.dot(a.astype(bf16), b.astype(bf16), preferred_element_type=f32)

    def bdot_t(a, b):                     # a @ b.T (contract last dims), bf16 ops
        return jax.lax.dot_general(a.astype(bf16), b.astype(bf16),
                                   (((1,), (1,)), ((), ())),
                                   preferred_element_type=f32)

    img = img_ref[...]                    # (HW, C)
    pe = pe_ref[...]                      # (HW, C)
    tok = tok_ref[...]                    # (N, C)
    C = img.shape[-1]
    scale = 1.0 / math.sqrt(C)

    # ---- synthetic two-way transformer (tokens <-> image) ----
    k_in = img + pe
    q = bdot(tok, wq_ref[...])                                   # (N, C)
    kv = bdot(k_in, wkv_ref[...])                                # (HW, 2C) fused k/v
    k, v = kv[:, :C], kv[:, C:]
    attn = jax.nn.softmax(bdot_t(q, k) * scale, axis=-1)         # (N, HW)
    hs = tok + bdot(attn, v)                                     # (N, C)

    q2 = bdot(k_in, wq2_ref[...])                                # (HW, C)
    k2v2 = bdot(hs, wkv2_ref[...])                               # (N, 2C) fused k2/v2
    k2, v2 = k2v2[:, :C], k2v2[:, C:]
    attn2 = jax.nn.softmax(bdot_t(q2, k2) * scale, axis=-1)      # (HW, N)
    src = img + bdot(attn2, v2)                                  # (HW, C)

    # ---- hypernetwork MLP on the mean mask token (tiny 1-row matmuls) ----
    mask_tok = jnp.mean(hs[:num_mask_tokens, :], axis=0, keepdims=True)   # (1, C)
    h1 = jnp.maximum(bdot(mask_tok, m1w_ref[...]) + m1b_ref[...], 0.0)
    h2 = jnp.maximum(bdot(h1, m2w_ref[...]) + m2b_ref[...], 0.0)
    # last MLP layer is pre-tiled to (C, 16*C8) so hyper64[l] == hyper[l % C8]
    hyper64 = bdot(h2, m3wt_ref[...]) + m3bt_ref[...]            # (1, 16*C8)

    # ---- fused output upscaling ----
    # deconv-1, all 4 taps at once: column block t1 = [t1*C4 : (t1+1)*C4]
    y = bdot(src, w1s_ref[...]) + c1b_ref[...]                   # (HW, 4*C4)
    # grouped LayerNorm2d over each tap's C4 channels; exact-f32 statistics
    # via two small matmuls against the group-averaging matrix (no XLU reduce).
    mu = jnp.dot(y, gmat_ref[...], precision=jax.lax.Precision.HIGHEST,
                 preferred_element_type=f32)
    d = y - mu
    var = jnp.dot(d * d, gmat_ref[...], precision=jax.lax.Precision.HIGHEST,
                  preferred_element_type=f32)
    y = d * jax.lax.rsqrt(var + 1e-6) * lnw_ref[...] + lnb_ref[...]
    y = _gelu(y)
    # deconv-2, all 16 tap pairs at once (block-diagonal weight):
    # column l = t1*(4*C8) + t2*C8 + c8
    z = _gelu(bdot(y, w2bd_ref[...]) + c2b_ref[...])             # (HW, 16*C8)
    # final hyper contraction: select + weight the C8 lanes of each tap pair,
    # written transposed so the output tile is lane-dense (16, HW).
    h_sel = smask_ref[...] * hyper64                             # (16, 16*C8)
    out_ref[...] = bdot_t(h_sel, z)                              # (16, HW)


# ---------------------------------------------------------------------------
# glue: PositionEmbeddingRandom (tiny, grid-based; computed in plain JAX)
# ---------------------------------------------------------------------------
def _position_embedding_random(h, w, gaussian_matrix):
    grid = jnp.ones((h, w), jnp.float32)
    y_embed = (jnp.cumsum(grid, axis=0) - 0.5) / h
    x_embed = (jnp.cumsum(grid, axis=1) - 0.5) / w
    coords = jnp.stack([x_embed, y_embed], axis=-1)          # (h, w, 2)
    coords = 2.0 * coords - 1.0
    coords = coords @ gaussian_matrix                        # (h, w, C//2)
    coords = 2.0 * jnp.pi * coords
    pe = jnp.concatenate([jnp.sin(coords), jnp.cos(coords)], axis=-1)  # (h, w, C)
    return pe.reshape(h * w, -1)                             # (HW, C)


# ---------------------------------------------------------------------------
# wrapper
# ---------------------------------------------------------------------------
def conditioned_mask_decoder(image_embeddings, condition_embeddings, params):
    B, C, H, W = image_embeddings.shape
    HW = H * W
    C4, C8 = C // 4, C // 8
    T2 = 16                                # 4 deconv-1 taps x 4 deconv-2 taps
    L = params["mask_tokens"].shape[0]
    bf16 = jnp.bfloat16

    pe = _position_embedding_random(H, W, params["pe_gaussian"])           # (HW, C)
    img_flat = image_embeddings.reshape(B, C, HW).transpose(0, 2, 1)       # (B, HW, C)
    output_tokens = jnp.broadcast_to(params["mask_tokens"][None], (B, L, C))
    tokens = jnp.concatenate([output_tokens, condition_embeddings], axis=1)  # (B, N, C)
    N = tokens.shape[1]

    # ---- packed / fused weights (built once in the wrapper) ----
    wkv = jnp.concatenate([params["wk"], params["wv"]], axis=1)            # (C, 2C)
    wkv2 = jnp.concatenate([params["wk2"], params["wv2"]], axis=1)         # (C, 2C)
    w1s = jnp.transpose(params["c1w"], (1, 0, 2)).reshape(C, 4 * C4)       # deconv-1 taps stacked
    c2s = jnp.transpose(params["c2w"], (1, 0, 2)).reshape(C4, 4 * C8)      # deconv-2 taps stacked
    w2bd = jnp.kron(jnp.eye(4, dtype=jnp.float32), c2s)                    # (4*C4, 16*C8) block-diag
    c1b_t = jnp.tile(params["c1b"], (1, 4))                                # (1, 4*C4)
    lnw_t = jnp.tile(params["lnw"], (1, 4))
    lnb_t = jnp.tile(params["lnb"], (1, 4))
    c2b_t = jnp.tile(params["c2b"], (1, T2))                               # (1, 16*C8)
    m3w_t = jnp.tile(params["m3w"], (1, T2))                               # (C, 16*C8)
    m3b_t = jnp.tile(params["m3b"], (1, T2))                               # (1, 16*C8)
    # group-averaging matrix for the per-tap LayerNorm2d statistics
    gidx = np.arange(4 * C4) // C4
    gmat = jnp.asarray((gidx[:, None] == gidx[None, :]).astype(np.float32) / C4)
    # selection mask: output channel c = t1*4 + t2 picks z columns [c*C8:(c+1)*C8]
    smask = jnp.asarray((np.arange(T2 * C8) // C8 == np.arange(T2)[:, None])
                        .astype(np.float32))                               # (16, 16*C8)

    weights = [
        params["wq"].astype(bf16), wkv.astype(bf16),
        params["wq2"].astype(bf16), wkv2.astype(bf16),
        w1s.astype(bf16), c1b_t, lnw_t, lnb_t, gmat,
        w2bd.astype(bf16), c2b_t,
        params["m1w"].astype(bf16), params["m1b"],
        params["m2w"].astype(bf16), params["m2b"],
        m3w_t.astype(bf16), m3b_t,
        smask,
    ]

    def full_spec(a):
        nd = a.ndim
        return pl.BlockSpec(a.shape, lambda b, _nd=nd: (0,) * _nd)

    in_specs = [
        pl.BlockSpec((None, HW, C), lambda b: (b, 0, 0)),   # image (per-batch block)
        pl.BlockSpec((HW, C), lambda b: (0, 0)),            # positional encoding
        pl.BlockSpec((None, N, C), lambda b: (b, 0, 0)),    # tokens (per-batch block)
    ] + [full_spec(w) for w in weights]

    # lane-dense output: (16 tap-pair channels, HW) per batch element
    out_spec = pl.BlockSpec((None, T2, HW), lambda b: (b, 0, 0))

    kernel = partial(_decoder_kernel, num_mask_tokens=L)
    out = pl.pallas_call(
        kernel,
        out_shape=jax.ShapeDtypeStruct((B, T2, HW), jnp.float32),
        grid_spec=pltpu.PrefetchScalarGridSpec(
            num_scalar_prefetch=0,
            grid=(B,),
            in_specs=in_specs,
            out_specs=out_spec,
        ),
        compiler_params=pltpu.CompilerParams(dimension_semantics=("parallel",)),
    )(img_flat, pe, tokens, *weights)

    # glue: re-interleave the 16 deconv tap pairs back into spatial NCHW layout.
    # out[b, ki*8+kj*4+ki2*2+kj2, i*W+j] == mask[b, 4i+2ki+ki2, 4j+2kj+kj2]
    m = out.reshape(B, 2, 2, 2, 2, H, W)          # (b, ki, kj, ki2, kj2, i, j)
    m = m.transpose(0, 5, 1, 3, 6, 2, 4)          # (b, i, ki, ki2, j, kj, kj2)
    masks = m.reshape(B, 1, 4 * H, 4 * W)
    return masks


# ---------------------------------------------------------------------------
# pure-JAX reference (independent spatial path for the deconvs); matmuls use
# bf16 operands with f32 accumulation, matching the kernel's precision.
# ---------------------------------------------------------------------------
def _bf(x):
    return x.astype(jnp.bfloat16)


def _deconv2x2_ref(x_nchw, taps, bias):
    # PyTorch ConvTranspose2d(kernel=2, stride=2); taps: (4, Cin, Cout), t = ki*2+kj
    B, Ci, H, W = x_nchw.shape
    Co = taps.shape[-1]
    xf = x_nchw.reshape(B, Ci, H * W).transpose(0, 2, 1)                  # (B, HW, Ci)
    y = jnp.einsum("bpc,tcd->bptd", _bf(xf), _bf(taps),
                   preferred_element_type=jnp.float32)
    y = y + bias.reshape(1, 1, 1, Co)                                     # (B, HW, 4, Co)
    y = y.reshape(B, H, W, 2, 2, Co).transpose(0, 5, 1, 3, 2, 4)          # (B,Co,H,ki,W,kj)
    return y.reshape(B, Co, 2 * H, 2 * W)


def reference(image_embeddings, condition_embeddings, params):
    f32 = jnp.float32
    B, C, H, W = image_embeddings.shape
    HW = H * W
    L = params["mask_tokens"].shape[0]
    pe = _position_embedding_random(H, W, params["pe_gaussian"])
    img = image_embeddings.reshape(B, C, HW).transpose(0, 2, 1)
    tok = jnp.concatenate(
        [jnp.broadcast_to(params["mask_tokens"][None], (B, L, C)), condition_embeddings],
        axis=1)
    scale = 1.0 / math.sqrt(C)

    def mm(a, b):
        return jnp.einsum("...nc,cd->...nd", _bf(a), _bf(b), preferred_element_type=f32)

    k_in = img + pe[None]
    q, k, v = mm(tok, params["wq"]), mm(k_in, params["wk"]), mm(k_in, params["wv"])
    attn = jax.nn.softmax(
        jnp.einsum("bnc,bmc->bnm", _bf(q), _bf(k), preferred_element_type=f32) * scale,
        axis=-1)
    hs = tok + jnp.einsum("bnm,bmc->bnc", _bf(attn), _bf(v), preferred_element_type=f32)
    q2, k2, v2 = mm(k_in, params["wq2"]), mm(hs, params["wk2"]), mm(hs, params["wv2"])
    attn2 = jax.nn.softmax(
        jnp.einsum("bmc,bnc->bmn", _bf(q2), _bf(k2), preferred_element_type=f32) * scale,
        axis=-1)
    src = img + jnp.einsum("bmn,bnc->bmc", _bf(attn2), _bf(v2), preferred_element_type=f32)

    mask_tok = jnp.mean(hs[:, :L, :], axis=1, keepdims=True)              # (B, 1, C)
    h1 = jax.nn.relu(mm(mask_tok, params["m1w"]) + params["m1b"])
    h2 = jax.nn.relu(mm(h1, params["m2w"]) + params["m2b"])
    hyper = mm(h2, params["m3w"]) + params["m3b"]                         # (B, 1, C8)

    src_img = src.transpose(0, 2, 1).reshape(B, C, H, W)
    up1 = _deconv2x2_ref(src_img, params["c1w"], params["c1b"].reshape(-1))
    mu = up1.mean(axis=1, keepdims=True)
    var = ((up1 - mu) ** 2).mean(axis=1, keepdims=True)
    up1 = (up1 - mu) / jnp.sqrt(var + 1e-6)
    up1 = params["lnw"].reshape(1, -1, 1, 1) * up1 + params["lnb"].reshape(1, -1, 1, 1)
    up1 = _gelu(up1)
    up2 = _gelu(_deconv2x2_ref(up1, params["c2w"], params["c2b"].reshape(-1)))
    b, c, h4, w4 = up2.shape
    masks = jnp.einsum("bic,bcp->bip", _bf(hyper), _bf(up2.reshape(b, c, h4 * w4)),
                       preferred_element_type=f32)
    return masks.reshape(b, 1, h4, w4)


# ---------------------------------------------------------------------------
# deterministic synthetic parameters
# ---------------------------------------------------------------------------
def init_params(key, C, L):
    C4, C8 = C // 4, C // 8
    ks = jax.random.split(key, 18)

    def n(k, shape, s=0.05):
        return s * jax.random.normal(k, shape, jnp.float32)

    params = dict(
        pe_gaussian=jax.random.normal(ks[0], (2, C // 2), jnp.float32),
        mask_tokens=jax.random.normal(ks[1], (L, C), jnp.float32),
        wq=n(ks[2], (C, C)), wk=n(ks[3], (C, C)), wv=n(ks[4], (C, C)),
        wq2=n(ks[5], (C, C)), wk2=n(ks[6], (C, C)), wv2=n(ks[7], (C, C)),
        c1b=n(ks[9], (1, C4)),
        lnw=jnp.ones((1, C4), jnp.float32),
        lnb=jnp.zeros((1, C4), jnp.float32),
        c2b=n(ks[11], (1, C8)),
        m1w=n(ks[12], (C, C)), m1b=n(ks[13], (1, C)),
        m2w=n(ks[14], (C, C)), m2b=n(ks[15], (1, C)),
        m3w=n(ks[16], (C, C8), 0.2), m3b=n(ks[17], (1, C8), 0.5),
    )
    # ConvTranspose2d weights, PyTorch layout (Cin, Cout, 2, 2) -> per-tap (4, Cin, Cout)
    w1 = n(ks[8], (C, C4, 2, 2), 0.1)
    params["c1w"] = jnp.transpose(w1, (2, 3, 0, 1)).reshape(4, C, C4)
    w2 = n(ks[10], (C4, C8, 2, 2), 0.2)
    params["c2w"] = jnp.transpose(w2, (2, 3, 0, 1)).reshape(4, C4, C8)
    return params


if __name__ == "__main__":
    key = jax.random.PRNGKey(0)
    B, C, H, W = 2, 32, 16, 16        # transformer_dim=32, image_embedding_size=(16,16)
    L, N_cond = 8, 8                  # learnable_token_num=8, 8 condition tokens

    k_params, k_img, k_cond = jax.random.split(key, 3)
    params = init_params(k_params, C, L)
    image_embeddings = jax.random.normal(k_img, (B, C, H, W), jnp.float32)
    condition_embeddings = jax.random.normal(k_cond, (B, N_cond, C), jnp.float32)

    masks = conditioned_mask_decoder(image_embeddings, condition_embeddings, params)
    masks = jax.block_until_ready(masks)

    assert masks.shape == (B, 1, 4 * H, 4 * W), masks.shape
    assert bool(jnp.all(jnp.isfinite(masks)))

    ref = reference(image_embeddings, condition_embeddings, params)
    np.testing.assert_allclose(np.asarray(masks), np.asarray(ref), rtol=5e-3, atol=5e-3)

    print("KERNEL_OK")
</pallas_src>

<mosaic_0001>
module attributes {stable_mosaic.version = 11 : i64} {
  func.func @_decoder_kernel(%arg0: i32, %arg1: memref<1x256x32xf32, #tpu.memory_space<vmem>>, %arg2: memref<256x32xf32, #tpu.memory_space<vmem>>, %arg3: memref<1x16x32xf32, #tpu.memory_space<vmem>>, %arg4: memref<32x32xbf16, #tpu.memory_space<vmem>>, %arg5: memref<32x64xbf16, #tpu.memory_space<vmem>>, %arg6: memref<32x32xbf16, #tpu.memory_space<vmem>>, %arg7: memref<32x64xbf16, #tpu.memory_space<vmem>>, %arg8: memref<32x32xbf16, #tpu.memory_space<vmem>>, %arg9: memref<1x32xf32, #tpu.memory_space<vmem>>, %arg10: memref<1x32xf32, #tpu.memory_space<vmem>>, %arg11: memref<1x32xf32, #tpu.memory_space<vmem>>, %arg12: memref<32x32xf32, #tpu.memory_space<vmem>>, %arg13: memref<32x64xbf16, #tpu.memory_space<vmem>>, %arg14: memref<1x64xf32, #tpu.memory_space<vmem>>, %arg15: memref<32x32xbf16, #tpu.memory_space<vmem>>, %arg16: memref<1x32xf32, #tpu.memory_space<vmem>>, %arg17: memref<32x32xbf16, #tpu.memory_space<vmem>>, %arg18: memref<1x32xf32, #tpu.memory_space<vmem>>, %arg19: memref<32x64xbf16, #tpu.memory_space<vmem>>, %arg20: memref<1x64xf32, #tpu.memory_space<vmem>>, %arg21: memref<16x64xf32, #tpu.memory_space<vmem>>, %arg22: memref<1x16x256xf32, #tpu.memory_space<vmem>>) attributes {dimension_semantics = [#tpu.dimension_semantics<parallel>], iteration_bounds = array<i64: 2>, scalar_prefetch = 0 : i64, scratch_operands = 0 : i64, tpu.core_type = #tpu.core_type<tc>, window_params = [{transform_indices = @transform_0, window_bounds = array<i64: 1, 256, 32>}, {pipeline_mode = #tpu.pipeline_mode<synchronous>, transform_indices = @transform_1, window_bounds = array<i64: 256, 32>}, {transform_indices = @transform_2, window_bounds = array<i64: 1, 16, 32>}, {pipeline_mode = #tpu.pipeline_mode<synchronous>, transform_indices = @transform_3, window_bounds = array<i64: 32, 32>}, {pipeline_mode = #tpu.pipeline_mode<synchronous>, transform_indices = @transform_4, window_bounds = array<i64: 32, 64>}, {pipeline_mode = #tpu.pipeline_mode<synchronous>, transform_indices = @transform_5, window_bounds = array<i64: 32, 32>}, {pipeline_mode = #tpu.pipeline_mode<synchronous>, transform_indices = @transform_6, window_bounds = array<i64: 32, 64>}, {pipeline_mode = #tpu.pipeline_mode<synchronous>, transform_indices = @transform_7, window_bounds = array<i64: 32, 32>}, {pipeline_mode = #tpu.pipeline_mode<synchronous>, transform_indices = @transform_8, window_bounds = array<i64: 1, 32>}, {pipeline_mode = #tpu.pipeline_mode<synchronous>, transform_indices = @transform_9, window_bounds = array<i64: 1, 32>}, {pipeline_mode = #tpu.pipeline_mode<synchronous>, transform_indices = @transform_10, window_bounds = array<i64: 1, 32>}, {pipeline_mode = #tpu.pipeline_mode<synchronous>, transform_indices = @transform_11, window_bounds = array<i64: 32, 32>}, {pipeline_mode = #tpu.pipeline_mode<synchronous>, transform_indices = @transform_12, window_bounds = array<i64: 32, 64>}, {pipeline_mode = #tpu.pipeline_mode<synchronous>, transform_indices = @transform_13, window_bounds = array<i64: 1, 64>}, {pipeline_mode = #tpu.pipeline_mode<synchronous>, transform_indices = @transform_14, window_bounds = array<i64: 32, 32>}, {pipeline_mode = #tpu.pipeline_mode<synchronous>, transform_indices = @transform_15, window_bounds = array<i64: 1, 32>}, {pipeline_mode = #tpu.pipeline_mode<synchronous>, transform_indices = @transform_16, window_bounds = array<i64: 32, 32>}, {pipeline_mode = #tpu.pipeline_mode<synchronous>, transform_indices = @transform_17, window_bounds = array<i64: 1, 32>}, {pipeline_mode = #tpu.pipeline_mode<synchronous>, transform_indices = @transform_18, window_bounds = array<i64: 32, 64>}, {pipeline_mode = #tpu.pipeline_mode<synchronous>, transform_indices = @transform_19, window_bounds = array<i64: 1, 64>}, {pipeline_mode = #tpu.pipeline_mode<synchronous>, transform_indices = @transform_20, window_bounds = array<i64: 16, 64>}, {transform_indices = @transform_21, window_bounds = array<i64: 1, 16, 256>}]} {
    %c0 = arith.constant 0 : index
    %c0_0 = arith.constant 0 : index
    %c0_1 = arith.constant 0 : index
    %0 = vector.load %arg1[%c0, %c0_0, %c0_1] : memref<1x256x32xf32, #tpu.memory_space<vmem>>, vector<1x256x32xf32>
    %1 = vector.shape_cast %0 : vector<1x256x32xf32> to vector<256x32xf32>
    %c0_2 = arith.constant 0 : index
    %c0_3 = arith.constant 0 : index
    %2 = vector.load %arg2[%c0_2, %c0_3] : memref<256x32xf32, #tpu.memory_space<vmem>>, vector<256x32xf32>
    %c0_4 = arith.constant 0 : index
    %c0_5 = arith.constant 0 : index
    %c0_6 = arith.constant 0 : index
    %3 = vector.load %arg3[%c0_4, %c0_5, %c0_6] : memref<1x16x32xf32, #tpu.memory_space<vmem>>, vector<1x16x32xf32>
    %4 = vector.shape_cast %3 : vector<1x16x32xf32> to vector<16x32xf32>
    %5 = arith.addf %1, %2 : vector<256x32xf32>
    %c0_7 = arith.constant 0 : index
    %c0_8 = arith.constant 0 : index
    %6 = vector.load %arg4[%c0_7, %c0_8] : memref<32x32xbf16, #tpu.memory_space<vmem>>, vector<32x32xbf16>
    %7 = arith.truncf %4 : vector<16x32xf32> to vector<16x32xbf16>
    %cst = arith.constant dense<0.000000e+00> : vector<16x32xf32>
    %8 = tpu.matmul %7, %6, %cst {dimension_numbers = #tpu.dot_dimension_numbers<[1], [0], [0], [1], [0, 0, 1, 1], [], []>} : vector<16x32xbf16>, vector<32x32xbf16>, vector<16x32xf32> -> vector<16x32xf32>
    %c0_9 = arith.constant 0 : index
    %c0_10 = arith.constant 0 : index
    %9 = vector.load %arg5[%c0_9, %c0_10] : memref<32x64xbf16, #tpu.memory_space<vmem>>, vector<32x64xbf16>
    %10 = arith.truncf %5 : vector<256x32xf32> to vector<256x32xbf16>
    %cst_11 = arith.constant dense<0.000000e+00> : vector<256x64xf32>
    %11 = tpu.matmul %10, %9, %cst_11 {dimension_numbers = #tpu.dot_dimension_numbers<[1], [0], [0], [1], [0, 0, 1, 1], [], []>} : vector<256x32xbf16>, vector<32x64xbf16>, vector<256x64xf32> -> vector<256x64xf32>
    %12 = vector.extract_strided_slice %11 {offsets = [0, 0], sizes = [256, 32], strides = [1, 1]} : vector<256x64xf32> to vector<256x32xf32>
    %13 = vector.extract_strided_slice %11 {offsets = [0, 32], sizes = [256, 32], strides = [1, 1]} : vector<256x64xf32> to vector<256x32xf32>
    %14 = arith.truncf %8 : vector<16x32xf32> to vector<16x32xbf16>
    %15 = arith.truncf %12 : vector<256x32xf32> to vector<256x32xbf16>
    %cst_12 = arith.constant dense<0.000000e+00> : vector<16x256xf32>
    %16 = tpu.matmul %14, %15, %cst_12 {dimension_numbers = #tpu.dot_dimension_numbers<[1], [1], [0], [0], [0, 0, 1, 0], [], []>} : vector<16x32xbf16>, vector<256x32xbf16>, vector<16x256xf32> -> vector<16x256xf32>
    %cst_13 = arith.constant 0.176776692 : f32
    %17 = vector.broadcast %cst_13 : f32 to vector<16x256xf32>
    %18 = arith.mulf %16, %17 : vector<16x256xf32>
    %cst_14 = arith.constant dense<0xFF800000> : vector<16xf32>
    %19 = vector.multi_reduction <maximumf>, %18, %cst_14 [1] : vector<16x256xf32> to vector<16xf32>
    %cst_15 = arith.constant 0xFF800000 : f32
    %20 = vector.broadcast %cst_15 : f32 to vector<16xf32>
    %21 = arith.maximumf %20, %19 : vector<16xf32>
    %22 = vector.shape_cast %21 : vector<16xf32> to vector<16x1xf32>
    %23 = vector.broadcast %22 : vector<16x1xf32> to vector<16x256xf32>
    %24 = arith.subf %18, %23 : vector<16x256xf32>
    %25 = math.exp %24 : vector<16x256xf32>
    %cst_16 = arith.constant dense<0.000000e+00> : vector<16xf32>
    %26 = vector.multi_reduction <add>, %25, %cst_16 [1] : vector<16x256xf32> to vector<16xf32>
    %27 = vector.shape_cast %26 : vector<16xf32> to vector<16x1xf32>
    %28 = vector.broadcast %27 : vector<16x1xf32> to vector<16x256xf32>
    %29 = arith.divf %25, %28 : vector<16x256xf32>
    %30 = arith.truncf %29 : vector<16x256xf32> to vector<16x256xbf16>
    %31 = arith.truncf %13 : vector<256x32xf32> to vector<256x32xbf16>
    %cst_17 = arith.constant dense<0.000000e+00> : vector<16x32xf32>
    %32 = tpu.matmul %30, %31, %cst_17 {dimension_numbers = #tpu.dot_dimension_numbers<[1], [0], [0], [1], [0, 0, 1, 1], [], []>} : vector<16x256xbf16>, vector<256x32xbf16>, vector<16x32xf32> -> vector<16x32xf32>
    %33 = arith.addf %4, %32 : vector<16x32xf32>
    %c0_18 = arith.constant 0 : index
    %c0_19 = arith.constant 0 : index
    %34 = vector.load %arg6[%c0_18, %c0_19] : memref<32x32xbf16, #tpu.memory_space<vmem>>, vector<32x32xbf16>
    %35 = arith.truncf %5 : vector<256x32xf32> to vector<256x32xbf16>
    %cst_20 = arith.constant dense<0.000000e+00> : vector<256x32xf32>
    %36 = tpu.matmul %35, %34, %cst_20 {dimension_numbers = #tpu.dot_dimension_numbers<[1], [0], [0], [1], [0, 0, 1, 1], [], []>} : vector<256x32xbf16>, vector<32x32xbf16>, vector<256x32xf32> -> vector<256x32xf32>
    %c0_21 = arith.constant 0 : index
    %c0_22 = arith.constant 0 : index
    %37 = vector.load %arg7[%c0_21, %c0_22] : memref<32x64xbf16, #tpu.memory_space<vmem>>, vector<32x64xbf16>
    %38 = arith.truncf %33 : vector<16x32xf32> to vector<16x32xbf16>
    %cst_23 = arith.constant dense<0.000000e+00> : vector<16x64xf32>
    %39 = tpu.matmul %38, %37, %cst_23 {dimension_numbers = #tpu.dot_dimension_numbers<[1], [0], [0], [1], [0, 0, 1, 1], [], []>} : vector<16x32xbf16>, vector<32x64xbf16>, vector<16x64xf32> -> vector<16x64xf32>
    %40 = vector.extract_strided_slice %39 {offsets = [0, 0], sizes = [16, 32], strides = [1, 1]} : vector<16x64xf32> to vector<16x32xf32>
    %41 = vector.extract_strided_slice %39 {offsets = [0, 32], sizes = [16, 32], strides = [1, 1]} : vector<16x64xf32> to vector<16x32xf32>
    %42 = arith.truncf %36 : vector<256x32xf32> to vector<256x32xbf16>
    %43 = arith.truncf %40 : vector<16x32xf32> to vector<16x32xbf16>
    %cst_24 = arith.constant dense<0.000000e+00> : vector<256x16xf32>
    %44 = tpu.matmul %42, %43, %cst_24 {dimension_numbers = #tpu.dot_dimension_numbers<[1], [1], [0], [0], [0, 0, 1, 0], [], []>} : vector<256x32xbf16>, vector<16x32xbf16>, vector<256x16xf32> -> vector<256x16xf32>
    %cst_25 = arith.constant 0.176776692 : f32
    %45 = vector.broadcast %cst_25 : f32 to vector<256x16xf32>
    %46 = arith.mulf %44, %45 : vector<256x16xf32>
    %cst_26 = arith.constant dense<0xFF800000> : vector<256xf32>
    %47 = vector.multi_reduction <maximumf>, %46, %cst_26 [1] : vector<256x16xf32> to vector<256xf32>
    %cst_27 = arith.constant 0xFF800000 : f32
    %48 = vector.broadcast %cst_27 : f32 to vector<256xf32>
    %49 = arith.maximumf %48, %47 : vector<256xf32>
    %50 = vector.shape_cast %49 : vector<256xf32> to vector<256x1xf32>
    %51 = vector.broadcast %50 : vector<256x1xf32> to vector<256x16xf32>
    %52 = arith.subf %46, %51 : vector<256x16xf32>
    %53 = math.exp %52 : vector<256x16xf32>
    %cst_28 = arith.constant dense<0.000000e+00> : vector<256xf32>
    %54 = vector.multi_reduction <add>, %53, %cst_28 [1] : vector<256x16xf32> to vector<256xf32>
    %55 = vector.shape_cast %54 : vector<256xf32> to vector<256x1xf32>
    %56 = vector.broadcast %55 : vector<256x1xf32> to vector<256x16xf32>
    %57 = arith.divf %53, %56 : vector<256x16xf32>
    %58 = arith.truncf %57 : vector<256x16xf32> to vector<256x16xbf16>
    %59 = arith.truncf %41 : vector<16x32xf32> to vector<16x32xbf16>
    %cst_29 = arith.constant dense<0.000000e+00> : vector<256x32xf32>
    %60 = tpu.matmul %58, %59, %cst_29 {dimension_numbers = #tpu.dot_dimension_numbers<[1], [0], [0], [1], [0, 0, 1, 1], [], []>} : vector<256x16xbf16>, vector<16x32xbf16>, vector<256x32xf32> -> vector<256x32xf32>
    %61 = arith.addf %1, %60 : vector<256x32xf32>
    %62 = vector.extract_strided_slice %33 {offsets = [0, 0], sizes = [8, 32], strides = [1, 1]} : vector<16x32xf32> to vector<8x32xf32>
    %cst_30 = arith.constant dense<0.000000e+00> : vector<32xf32>
    %63 = vector.multi_reduction <add>, %62, %cst_30 [0] : vector<8x32xf32> to vector<32xf32>
    %64 = vector.shape_cast %63 : vector<32xf32> to vector<1x32xf32>
    %cst_31 = arith.constant 8.000000e+00 : f32
    %65 = vector.broadcast %cst_31 : f32 to vector<1x32xf32>
    %66 = arith.divf %64, %65 : vector<1x32xf32>
    %c0_32 = arith.constant 0 : index
    %c0_33 = arith.constant 0 : index
    %67 = vector.load %arg15[%c0_32, %c0_33] : memref<32x32xbf16, #tpu.memory_space<vmem>>, vector<32x32xbf16>
    %68 = arith.truncf %66 : vector<1x32xf32> to vector<1x32xbf16>
    %cst_34 = arith.constant dense<0.000000e+00> : vector<1x32xf32>
    %69 = tpu.matmul %68, %67, %cst_34 {dimension_numbers = #tpu.dot_dimension_numbers<[1], [0], [0], [1], [0, 0, 1, 1], [], []>} : vector<1x32xbf16>, vector<32x32xbf16>, vector<1x32xf32> -> vector<1x32xf32>
    %c0_35 = arith.constant 0 : index
    %c0_36 = arith.constant 0 : index
    %70 = vector.load %arg16[%c0_35, %c0_36] : memref<1x32xf32, #tpu.memory_space<vmem>>, vector<1x32xf32>
    %71 = arith.addf %69, %70 : vector<1x32xf32>
    %cst_37 = arith.constant 0.000000e+00 : f32
    %72 = vector.broadcast %cst_37 : f32 to vector<1x32xf32>
    %73 = arith.maximumf %71, %72 : vector<1x32xf32>
    %c0_38 = arith.constant 0 : index
    %c0_39 = arith.constant 0 : index
    %74 = vector.load %arg17[%c0_38, %c0_39] : memref<32x32xbf16, #tpu.memory_space<vmem>>, vector<32x32xbf16>
    %75 = arith.truncf %73 : vector<1x32xf32> to vector<1x32xbf16>
    %cst_40 = arith.constant dense<0.000000e+00> : vector<1x32xf32>
    %76 = tpu.matmul %75, %74, %cst_40 {dimension_numbers = #tpu.dot_dimension_numbers<[1], [0], [0], [1], [0, 0, 1, 1], [], []>} : vector<1x32xbf16>, vector<32x32xbf16>, vector<1x32xf32> -> vector<1x32xf32>
    %c0_41 = arith.constant 0 : index
    %c0_42 = arith.constant 0 : index
    %77 = vector.load %arg18[%c0_41, %c0_42] : memref<1x32xf32, #tpu.memory_space<vmem>>, vector<1x32xf32>
    %78 = arith.addf %76, %77 : vector<1x32xf32>
    %cst_43 = arith.constant 0.000000e+00 : f32
    %79 = vector.broadcast %cst_43 : f32 to vector<1x32xf32>
    %80 = arith.maximumf %78, %79 : vector<1x32xf32>
    %c0_44 = arith.constant 0 : index
    %c0_45 = arith.constant 0 : index
    %81 = vector.load %arg19[%c0_44, %c0_45] : memref<32x64xbf16, #tpu.memory_space<vmem>>, vector<32x64xbf16>
    %82 = arith.truncf %80 : vector<1x32xf32> to vector<1x32xbf16>
    %cst_46 = arith.constant dense<0.000000e+00> : vector<1x64xf32>
    %83 = tpu.matmul %82, %81, %cst_46 {dimension_numbers = #tpu.dot_dimension_numbers<[1], [0], [0], [1], [0, 0, 1, 1], [], []>} : vector<1x32xbf16>, vector<32x64xbf16>, vector<1x64xf32> -> vector<1x64xf32>
    %c0_47 = arith.constant 0 : index
    %c0_48 = arith.constant 0 : index
    %84 = vector.load %arg20[%c0_47, %c0_48] : memref<1x64xf32, #tpu.memory_space<vmem>>, vector<1x64xf32>
    %85 = arith.addf %83, %84 : vector<1x64xf32>
    %c0_49 = arith.constant 0 : index
    %c0_50 = arith.constant 0 : index
    %86 = vector.load %arg8[%c0_49, %c0_50] : memref<32x32xbf16, #tpu.memory_space<vmem>>, vector<32x32xbf16>
    %87 = arith.truncf %61 : vector<256x32xf32> to vector<256x32xbf16>
    %cst_51 = arith.constant dense<0.000000e+00> : vector<256x32xf32>
    %88 = tpu.matmul %87, %86, %cst_51 {dimension_numbers = #tpu.dot_dimension_numbers<[1], [0], [0], [1], [0, 0, 1, 1], [], []>} : vector<256x32xbf16>, vector<32x32xbf16>, vector<256x32xf32> -> vector<256x32xf32>
    %c0_52 = arith.constant 0 : index
    %c0_53 = arith.constant 0 : index
    %89 = vector.load %arg9[%c0_52, %c0_53] : memref<1x32xf32, #tpu.memory_space<vmem>>, vector<1x32xf32>
    %90 = vector.broadcast %89 : vector<1x32xf32> to vector<256x32xf32>
    %91 = arith.addf %88, %90 : vector<256x32xf32>
    %c0_54 = arith.constant 0 : index
    %c0_55 = arith.constant 0 : index
    %92 = vector.load %arg12[%c0_54, %c0_55] : memref<32x32xf32, #tpu.memory_space<vmem>>, vector<32x32xf32>
    %cst_56 = arith.constant dense<0.000000e+00> : vector<256x32xf32>
    %93 = tpu.matmul %91, %92, %cst_56 {dimension_numbers = #tpu.dot_dimension_numbers<[1], [0], [0], [1], [0, 0, 1, 1], [], []>, precision = #tpu.contract_precision<fp32>} : vector<256x32xf32>, vector<32x32xf32>, vector<256x32xf32> -> vector<256x32xf32>
    %94 = arith.subf %91, %93 : vector<256x32xf32>
    %95 = arith.mulf %94, %94 : vector<256x32xf32>
    %c0_57 = arith.constant 0 : index
    %c0_58 = arith.constant 0 : index
    %96 = vector.load %arg12[%c0_57, %c0_58] : memref<32x32xf32, #tpu.memory_space<vmem>>, vector<32x32xf32>
    %cst_59 = arith.constant dense<0.000000e+00> : vector<256x32xf32>
    %97 = tpu.matmul %95, %96, %cst_59 {dimension_numbers = #tpu.dot_dimension_numbers<[1], [0], [0], [1], [0, 0, 1, 1], [], []>, precision = #tpu.contract_precision<fp32>} : vector<256x32xf32>, vector<32x32xf32>, vector<256x32xf32> -> vector<256x32xf32>
    %cst_60 = arith.constant 9.99999997E-7 : f32
    %98 = vector.broadcast %cst_60 : f32 to vector<256x32xf32>
    %99 = arith.addf %97, %98 : vector<256x32xf32>
    %100 = math.rsqrt %99 : vector<256x32xf32>
    %101 = arith.mulf %94, %100 : vector<256x32xf32>
    %c0_61 = arith.constant 0 : index
    %c0_62 = arith.constant 0 : index
    %102 = vector.load %arg10[%c0_61, %c0_62] : memref<1x32xf32, #tpu.memory_space<vmem>>, vector<1x32xf32>
    %103 = vector.broadcast %102 : vector<1x32xf32> to vector<256x32xf32>
    %104 = arith.mulf %101, %103 : vector<256x32xf32>
    %c0_63 = arith.constant 0 : index
    %c0_64 = arith.constant 0 : index
    %105 = vector.load %arg11[%c0_63, %c0_64] : memref<1x32xf32, #tpu.memory_space<vmem>>, vector<1x32xf32>
    %106 = vector.broadcast %105 : vector<1x32xf32> to vector<256x32xf32>
    %107 = arith.addf %104, %106 : vector<256x32xf32>
    %108 = arith.mulf %107, %107 : vector<256x32xf32>
    %109 = arith.mulf %107, %108 : vector<256x32xf32>
    %cst_65 = arith.constant 4.471500e-02 : f32
    %110 = vector.broadcast %cst_65 : f32 to vector<256x32xf32>
    %111 = arith.mulf %110, %109 : vector<256x32xf32>
    %112 = arith.addf %107, %111 : vector<256x32xf32>
    %cst_66 = arith.constant 0.797884583 : f32
    %113 = vector.broadcast %cst_66 : f32 to vector<256x32xf32>
    %114 = arith.mulf %113, %112 : vector<256x32xf32>
    %115 = math.tanh %114 : vector<256x32xf32>
    %cst_67 = arith.constant 1.000000e+00 : f32
    %116 = vector.broadcast %cst_67 : f32 to vector<256x32xf32>
    %117 = arith.addf %116, %115 : vector<256x32xf32>
    %cst_68 = arith.constant 5.000000e-01 : f32
    %118 = vector.broadcast %cst_68 : f32 to vector<256x32xf32>
    %119 = arith.mulf %118, %117 : vector<256x32xf32>
    %120 = arith.mulf %107, %119 : vector<256x32xf32>
    %c0_69 = arith.constant 0 : index
    %c0_70 = arith.constant 0 : index
    %121 = vector.load %arg13[%c0_69, %c0_70] : memref<32x64xbf16, #tpu.memory_space<vmem>>, vector<32x64xbf16>
    %122 = arith.truncf %120 : vector<256x32xf32> to vector<256x32xbf16>
    %cst_71 = arith.constant dense<0.000000e+00> : vector<256x64xf32>
    %123 = tpu.matmul %122, %121, %cst_71 {dimension_numbers = #tpu.dot_dimension_numbers<[1], [0], [0], [1], [0, 0, 1, 1], [], []>} : vector<256x32xbf16>, vector<32x64xbf16>, vector<256x64xf32> -> vector<256x64xf32>
    %c0_72 = arith.constant 0 : index
    %c0_73 = arith.constant 0 : index
    %124 = vector.load %arg14[%c0_72, %c0_73] : memref<1x64xf32, #tpu.memory_space<vmem>>, vector<1x64xf32>
    %125 = vector.broadcast %124 : vector<1x64xf32> to vector<256x64xf32>
    %126 = arith.addf %123, %125 : vector<256x64xf32>
    %127 = arith.mulf %126, %126 : vector<256x64xf32>
    %128 = arith.mulf %126, %127 : vector<256x64xf32>
    %cst_74 = arith.constant 4.471500e-02 : f32
    %129 = vector.broadcast %cst_74 : f32 to vector<256x64xf32>
    %130 = arith.mulf %129, %128 : vector<256x64xf32>
    %131 = arith.addf %126, %130 : vector<256x64xf32>
    %cst_75 = arith.constant 0.797884583 : f32
    %132 = vector.broadcast %cst_75 : f32 to vector<256x64xf32>
    %133 = arith.mulf %132, %131 : vector<256x64xf32>
    %134 = math.tanh %133 : vector<256x64xf32>
    %cst_76 = arith.constant 1.000000e+00 : f32
    %135 = vector.broadcast %cst_76 : f32 to vector<256x64xf32>
    %136 = arith.addf %135, %134 : vector<256x64xf32>
    %cst_77 = arith.constant 5.000000e-01 : f32
    %137 = vector.broadcast %cst_77 : f32 to vector<256x64xf32>
    %138 = arith.mulf %137, %136 : vector<256x64xf32>
    %139 = arith.mulf %126, %138 : vector<256x64xf32>
    %c0_78 = arith.constant 0 : index
    %c0_79 = arith.constant 0 : index
    %140 = vector.load %arg21[%c0_78, %c0_79] : memref<16x64xf32, #tpu.memory_space<vmem>>, vector<16x64xf32>
    %141 = vector.broadcast %85 : vector<1x64xf32> to vector<16x64xf32>
    %142 = arith.mulf %140, %141 : vector<16x64xf32>
    %143 = arith.truncf %142 : vector<16x64xf32> to vector<16x64xbf16>
    %144 = arith.truncf %139 : vector<256x64xf32> to vector<256x64xbf16>
    %cst_80 = arith.constant dense<0.000000e+00> : vector<16x256xf32>
    %145 = tpu.matmul %143, %144, %cst_80 {dimension_numbers = #tpu.dot_dimension_numbers<[1], [1], [0], [0], [0, 0, 1, 0], [], []>} : vector<16x64xbf16>, vector<256x64xbf16>, vector<16x256xf32> -> vector<16x256xf32>
    %c0_81 = arith.constant 0 : index
    %c0_82 = arith.constant 0 : index
    %c0_83 = arith.constant 0 : index
    %146 = vector.load %arg22[%c0_81, %c0_82, %c0_83] : memref<1x16x256xf32, #tpu.memory_space<vmem>>, vector<1x16x256xf32>
    %147 = vector.shape_cast %146 : vector<1x16x256xf32> to vector<16x256xf32>
    %148 = vector.shape_cast %145 : vector<16x256xf32> to vector<1x16x256xf32>
    tpu.vector_store %arg22[%c0_81, %c0_82, %c0_83], %148 {strides = array<i32>} : memref<1x16x256xf32, #tpu.memory_space<vmem>>, vector<1x16x256xf32>,
    return
  }
  func.func @transform_0(%arg0: i32) -> (i32, i32, i32) {
    %c0_i32 = arith.constant 0 : i32
    %c0_i32_0 = arith.constant 0 : i32
    %c0_i32_1 = arith.constant 0 : i32
    return %arg0, %c0_i32, %c0_i32_0 : i32, i32, i32
  }
  func.func @transform_1(%arg0: i32) -> (i32, i32) {
    %c0_i32 = arith.constant 0 : i32
    %c0_i32_0 = arith.constant 0 : i32
    %c0_i32_1 = arith.constant 0 : i32
    return %c0_i32, %c0_i32_0 : i32, i32
  }
  func.func @transform_2(%arg0: i32) -> (i32, i32, i32) {
    %c0_i32 = arith.constant 0 : i32
    %c0_i32_0 = arith.constant 0 : i32
    %c0_i32_1 = arith.constant 0 : i32
    return %arg0, %c0_i32, %c0_i32_0 : i32, i32, i32
  }
  func.func @transform_3(%arg0: i32) -> (i32, i32) {
    %c0_i32 = arith.constant 0 : i32
    %c0_i32_0 = arith.constant 0 : i32
    %c0_i32_1 = arith.constant 0 : i32
    return %c0_i32, %c0_i32_0 : i32, i32
  }
  func.func @transform_4(%arg0: i32) -> (i32, i32) {
    %c0_i32 = arith.constant 0 : i32
    %c0_i32_0 = arith.constant 0 : i32
    %c0_i32_1 = arith.constant 0 : i32
    return %c0_i32, %c0_i32_0 : i32, i32
  }
  func.func @transform_5(%arg0: i32) -> (i32, i32) {
    %c0_i32 = arith.constant 0 : i32
    %c0_i32_0 = arith.constant 0 : i32
    %c0_i32_1 = arith.constant 0 : i32
    return %c0_i32, %c0_i32_0 : i32, i32
  }
  func.func @transform_6(%arg0: i32) -> (i32, i32) {
    %c0_i32 = arith.constant 0 : i32
    %c0_i32_0 = arith.constant 0 : i32
    %c0_i32_1 = arith.constant 0 : i32
    return %c0_i32, %c0_i32_0 : i32, i32
  }
  func.func @transform_7(%arg0: i32) -> (i32, i32) {
    %c0_i32 = arith.constant 0 : i32
    %c0_i32_0 = arith.constant 0 : i32
    %c0_i32_1 = arith.constant 0 : i32
    return %c0_i32, %c0_i32_0 : i32, i32
  }
  func.func @transform_8(%arg0: i32) -> (i32, i32) {
    %c0_i32 = arith.constant 0 : i32
    %c0_i32_0 = arith.constant 0 : i32
    %c0_i32_1 = arith.constant 0 : i32
    return %c0_i32, %c0_i32_0 : i32, i32
  }
  func.func @transform_9(%arg0: i32) -> (i32, i32) {
    %c0_i32 = arith.constant 0 : i32
    %c0_i32_0 = arith.constant 0 : i32
    %c0_i32_1 = arith.constant 0 : i32
    return %c0_i32, %c0_i32_0 : i32, i32
  }
  func.func @transform_10(%arg0: i32) -> (i32, i32) {
    %c0_i32 = arith.constant 0 : i32
    %c0_i32_0 = arith.constant 0 : i32
    %c0_i32_1 = arith.constant 0 : i32
    return %c0_i32, %c0_i32_0 : i32, i32
  }
  func.func @transform_11(%arg0: i32) -> (i32, i32) {
    %c0_i32 = arith.constant 0 : i32
    %c0_i32_0 = arith.constant 0 : i32
    %c0_i32_1 = arith.constant 0 : i32
    return %c0_i32, %c0_i32_0 : i32, i32
  }
  func.func @transform_12(%arg0: i32) -> (i32, i32) {
    %c0_i32 = arith.constant 0 : i32
    %c0_i32_0 = arith.constant 0 : i32
    %c0_i32_1 = arith.constant 0 : i32
    return %c0_i32, %c0_i32_0 : i32, i32
  }
  func.func @transform_13(%arg0: i32) -> (i32, i32) {
    %c0_i32 = arith.constant 0 : i32
    %c0_i32_0 = arith.constant 0 : i32
    %c0_i32_1 = arith.constant 0 : i32
    return %c0_i32, %c0_i32_0 : i32, i32
  }
  func.func @transform_14(%arg0: i32) -> (i32, i32) {
    %c0_i32 = arith.constant 0 : i32
    %c0_i32_0 = arith.constant 0 : i32
    %c0_i32_1 = arith.constant 0 : i32
    return %c0_i32, %c0_i32_0 : i32, i32
  }
  func.func @transform_15(%arg0: i32) -> (i32, i32) {
    %c0_i32 = arith.constant 0 : i32
    %c0_i32_0 = arith.constant 0 : i32
    %c0_i32_1 = arith.constant 0 : i32
    return %c0_i32, %c0_i32_0 : i32, i32
  }
  func.func @transform_16(%arg0: i32) -> (i32, i32) {
    %c0_i32 = arith.constant 0 : i32
    %c0_i32_0 = arith.constant 0 : i32
    %c0_i32_1 = arith.constant 0 : i32
    return %c0_i32, %c0_i32_0 : i32, i32
  }
  func.func @transform_17(%arg0: i32) -> (i32, i32) {
    %c0_i32 = arith.constant 0 : i32
    %c0_i32_0 = arith.constant 0 : i32
    %c0_i32_1 = arith.constant 0 : i32
    return %c0_i32, %c0_i32_0 : i32, i32
  }
  func.func @transform_18(%arg0: i32) -> (i32, i32) {
    %c0_i32 = arith.constant 0 : i32
    %c0_i32_0 = arith.constant 0 : i32
    %c0_i32_1 = arith.constant 0 : i32
    return %c0_i32, %c0_i32_0 : i32, i32
  }
  func.func @transform_19(%arg0: i32) -> (i32, i32) {
    %c0_i32 = arith.constant 0 : i32
    %c0_i32_0 = arith.constant 0 : i32
    %c0_i32_1 = arith.constant 0 : i32
    return %c0_i32, %c0_i32_0 : i32, i32
  }
  func.func @transform_20(%arg0: i32) -> (i32, i32) {
    %c0_i32 = arith.constant 0 : i32
    %c0_i32_0 = arith.constant 0 : i32
    %c0_i32_1 = arith.constant 0 : i32
    return %c0_i32, %c0_i32_0 : i32, i32
  }
  func.func @transform_21(%arg0: i32) -> (i32, i32, i32) {
    %c0_i32 = arith.constant 0 : i32
    %c0_i32_0 = arith.constant 0 : i32
    %c0_i32_1 = arith.constant 0 : i32
    return %arg0, %c0_i32, %c0_i32_0 : i32, i32, i32
  }
}

</mosaic_0001>

<llo_original>
// kernel: tpu_custom_call.1
$region0: #{tpu_custom_call.1}
  #allocation0 [shape = 'u32[]', space=smem, size = 0x4, offset = 0x4, fixed_abs, tag = 'smem constant byte address 0x4 - core index']
  #allocation1 [shape = 'u32[144,128]{1,0:T(1,128)}', space=vmem, size = 0x12000, scoped, tag = 'internal scratch']
  %s0 = inlined_call_operand.vmem [shape: f32[2,256,32], index: 0, kind: input, shape index: {}]
  %s1 = inlined_call_operand.vmem [shape: f32[256,32], index: 1, kind: input, shape index: {}]
  %s2 = inlined_call_operand.vmem [shape: f32[2,16,32], index: 2, kind: input, shape index: {}]
  %s3 = inlined_call_operand.vmem [shape: bf16[32,32], index: 3, kind: input, shape index: {}]
  %s4 = inlined_call_operand.vmem [shape: bf16[32,64], index: 4, kind: input, shape index: {}]
  %s5 = inlined_call_operand.vmem [shape: bf16[32,32], index: 5, kind: input, shape index: {}]
  %s6 = inlined_call_operand.vmem [shape: bf16[32,64], index: 6, kind: input, shape index: {}]
  %s7 = inlined_call_operand.vmem [shape: bf16[32,32], index: 7, kind: input, shape index: {}]
  %s8 = inlined_call_operand.vmem [shape: f32[1,32], index: 8, kind: input, shape index: {}]
  %s9 = inlined_call_operand.vmem [shape: f32[1,32], index: 9, kind: input, shape index: {}]
  %s10 = inlined_call_operand.vmem [shape: f32[1,32], index: 10, kind: input, shape index: {}]
  %s11 = inlined_call_operand.vmem [shape: f32[32,32], index: 11, kind: input, shape index: {}]
  %s12 = inlined_call_operand.vmem [shape: bf16[32,64], index: 12, kind: input, shape index: {}]
  %s13 = inlined_call_operand.vmem [shape: f32[1,64], index: 13, kind: input, shape index: {}]
  %s14 = inlined_call_operand.vmem [shape: bf16[32,32], index: 14, kind: input, shape index: {}]
  %s15 = inlined_call_operand.vmem [shape: f32[1,32], index: 15, kind: input, shape index: {}]
  %s16 = inlined_call_operand.vmem [shape: bf16[32,32], index: 16, kind: input, shape index: {}]
  %s17 = inlined_call_operand.vmem [shape: f32[1,32], index: 17, kind: input, shape index: {}]
  %s18 = inlined_call_operand.vmem [shape: bf16[32,64], index: 18, kind: input, shape index: {}]
  %s19 = inlined_call_operand.vmem [shape: f32[1,64], index: 19, kind: input, shape index: {}]
  %s20 = inlined_call_operand.vmem [shape: f32[16,64], index: 20, kind: input, shape index: {}]
  %s21 = inlined_call_operand.hbm [shape: f32[2,16,256], index: 21, kind: output, shape index: {}]
  %s22 = sld [smem:[#allocation0]]
  $region117: #{tpu_custom_call.1} parent=0
    _
  %s24 = ssub.s32 1, %s22
  %s25 = scalar_select 0, %s24, %s22
  $region1: #{tpu_custom_call.1} parent=0
    #allocation2 [shape = 'u8[32768]{0}', space=vmem, size = 0x8000, scoped, tag = 'output window, operand 0']
    #allocation3 [shape = 's32[2]{0}', space=sflag, size = 0x8, scoped, tag = 'scoped memory for tpu_custom_call.1']
    %26 = vsyncpa [#allocation3], 0
    %s27 = scalar_lea.sflag [#allocation3], 1
    %28 = vsyncpa %s27, 0
    loop: start=0, step=1, limit=4
    $region2: #{tpu_custom_call.1} parent=1 // loop_pre_header
      _
    $region3: #{tpu_custom_call.1} parent=1 // loop_header
      %s30 = sphi 0, %s34
      %p31 = scmp.ge.s32.totalorder %s30, 4
      %s40 = sphi 0, %s42
      %s43 = sphi 0, %s40
      %s44 = sphi 0, %s43
      %s60 = sphi 0, %s44
      %s64 = sphi 0, %s64
      %s66 = sphi 0, %s64
      %s67 = sphi 0, %s66
      %s81 = sphi 0, %s67
      %s87 = sphi 0, %s89
      %s90 = sphi 0, %s87
      %s91 = sphi 0, %s90
      %s107 = sphi 0, %s91
      %s111 = sphi 0, %s111
      %s113 = sphi 0, %s111
      %s114 = sphi 0, %s113
      %s128 = sphi 0, %s114
      %s132 = sphi 0, %s132
      %s134 = sphi 0, %s132
      %s135 = sphi 0, %s134
      %s149 = sphi 0, %s135
      %s153 = sphi 0, %s153
      %s155 = sphi 0, %s153
      %s156 = sphi 0, %s155
      %s170 = sphi 0, %s156
      %s174 = sphi 0, %s174
      %s176 = sphi 0, %s174
      %s177 = sphi 0, %s176
      %s191 = sphi 0, %s177
      %s195 = sphi 0, %s195
      %s197 = sphi 0, %s195
      %s198 = sphi 0, %s197
      %s212 = sphi 0, %s198
      %s216 = sphi 0, %s216
      %s218 = sphi 0, %s216
      %s219 = sphi 0, %s218
      %s233 = sphi 0, %s219
      %s237 = sphi 0, %s237
      %s239 = sphi 0, %s237
      %s240 = sphi 0, %s239
      %s254 = sphi 0, %s240
      %s258 = sphi 0, %s258
      %s260 = sphi 0, %s258
      %s261 = sphi 0, %s260
      %s275 = sphi 0, %s261
      %s279 = sphi 0, %s279
      %s281 = sphi 0, %s279
      %s282 = sphi 0, %s281
      %s296 = sphi 0, %s282
      %s300 = sphi 0, %s300
      %s302 = sphi 0, %s300
      %s303 = sphi 0, %s302
      %s317 = sphi 0, %s303
      %s321 = sphi 0, %s321
      %s323 = sphi 0, %s321
      %s324 = sphi 0, %s323
      %s338 = sphi 0, %s324
      %s342 = sphi 0, %s342
      %s344 = sphi 0, %s342
      %s345 = sphi 0, %s344
      %s359 = sphi 0, %s345
      %s363 = sphi 0, %s363
      %s365 = sphi 0, %s363
      %s366 = sphi 0, %s365
      %s380 = sphi 0, %s366
      %s384 = sphi 0, %s384
      %s386 = sphi 0, %s384
      %s387 = sphi 0, %s386
      %s401 = sphi 0, %s387
      %s405 = sphi 0, %s405
      %s407 = sphi 0, %s405
      %s408 = sphi 0, %s407
      %s422 = sphi 0, %s408
      %s426 = sphi 0, %s426
      %s428 = sphi 0, %s426
      %s429 = sphi 0, %s428
      %s443 = sphi 0, %s429
      %s447 = sphi 0, %s447
      %s449 = sphi 0, %s447
      %s450 = sphi 0, %s449
      %s464 = sphi 0, %s450
      %s468 = sphi 0, %s468
      %s470 = sphi 0, %s468
      %s471 = sphi 0, %s470
      %s485 = sphi 0, %s471
      %s491 = sphi 0, %s493
      %s494 = sphi 0, %s491
      %s495 = sphi 0, %s494
      %s511 = sphi 0, %s495
    $region4: #{tpu_custom_call.1} parent=1 // loop_header_branch
      %33 = sbr.rel (%p31) target = $region8
    $region5: #{tpu_custom_call.1} parent=1 // loop_body
      %s35 = ssub.s32 %s30, 1
      %s36 = ssub.s32 %s30, 2
      %s37 = sadd.s32 %s30, 1
      %s38 = ssub.s32 %s30, %s37
      %p39 = scmp.eq.s32.totalorder %s38, 0
      %s41 = sadd.s32 %s40, 1
      %s42 = scalar_select %p39, %s40, %s41
      %p45 = pneg %p39
      %p46 = scmp.eq.s32.totalorder %s30, 1
      %p47 = por %p45, %p46
      %p48 = scmp.ne.s32.totalorder %s40, %s43
      %p49 = scmp.eq.s32.totalorder %s30, 0
      %p50 = por %p48, %p49
      %p51 = scmp.ne.s32.totalorder %s40, %s43
      %p52 = scmp.eq.s32.totalorder %s35, 1
      %p53 = por %p51, %p52
      %p54 = scmp.ne.s32.totalorder %s43, %s44
      %p55 = scmp.eq.s32.totalorder %s35, 0
      %p56 = por %p54, %p55
      %p57 = scmp.ne.s32.totalorder %s43, %s44
      %p58 = scmp.eq.s32.totalorder %s36, 1
      %p59 = por %p57, %p58
      %p61 = scmp.ne.s32.totalorder %s44, %s60
      %p62 = scmp.eq.s32.totalorder %s36, 0
      %p63 = por %p61, %p62
      %s65 = sadd.s32 %s64, 1
      %p68 = scmp.eq.s32.totalorder %s30, 1
      %p69 = scmp.ne.s32.totalorder %s64, %s66
      %p70 = scmp.eq.s32.totalorder %s30, 0
      %p71 = por %p69, %p70
      %p72 = scmp.ne.s32.totalorder %s64, %s66
      %p73 = scmp.eq.s32.totalorder %s35, 1
      %p74 = por %p72, %p73
      %p75 = scmp.ne.s32.totalorder %s66, %s67
      %p76 = scmp.eq.s32.totalorder %s35, 0
      %p77 = por %p75, %p76
      %p78 = scmp.ne.s32.totalorder %s66, %s67
      %p79 = scmp.eq.s32.totalorder %s36, 1
      %p80 = por %p78, %p79
      %p82 = scmp.ne.s32.totalorder %s67, %s81
      %p83 = scmp.eq.s32.totalorder %s36, 0
      %p84 = por %p82, %p83
      %s85 = ssub.s32 %s30, %s37
      %p86 = scmp.eq.s32.totalorder %s85, 0
      %s88 = sadd.s32 %s87, 1
      %s89 = scalar_select %p86, %s87, %s88
      %p92 = pneg %p86
      %p93 = scmp.eq.s32.totalorder %s30, 1
      %p94 = por %p92, %p93
      %p95 = scmp.ne.s32.totalorder %s87, %s90
      %p96 = scmp.eq.s32.totalorder %s30, 0
      %p97 = por %p95, %p96
      %p98 = scmp.ne.s32.totalorder %s87, %s90
      %p99 = scmp.eq.s32.totalorder %s35, 1
      %p100 = por %p98, %p99
      %p101 = scmp.ne.s32.totalorder %s90, %s91
      %p102 = scmp.eq.s32.totalorder %s35, 0
      %p103 = por %p101, %p102
      %p104 = scmp.ne.s32.totalorder %s90, %s91
      %p105 = scmp.eq.s32.totalorder %s36, 1
      %p106 = por %p104, %p105
      %p108 = scmp.ne.s32.totalorder %s91, %s107
      %p109 = scmp.eq.s32.totalorder %s36, 0
      %p110 = por %p108, %p109
      %s112 = sadd.s32 %s111, 1
      %p115 = scmp.eq.s32.totalorder %s30, 1
      %p116 = scmp.ne.s32.totalorder %s111, %s113
      %p117 = scmp.eq.s32.totalorder %s30, 0
      %p118 = por %p116, %p117
      %p119 = scmp.ne.s32.totalorder %s111, %s113
      %p120 = scmp.eq.s32.totalorder %s35, 1
      %p121 = por %p119, %p120
      %p122 = scmp.ne.s32.totalorder %s113, %s114
      %p123 = scmp.eq.s32.totalorder %s35, 0
      %p124 = por %p122, %p123
      %p125 = scmp.ne.s32.totalorder %s113, %s114
      %p126 = scmp.eq.s32.totalorder %s36, 1
      %p127 = por %p125, %p126
      %p129 = scmp.ne.s32.totalorder %s114, %s128
      %p130 = scmp.eq.s32.totalorder %s36, 0
      %p131 = por %p129, %p130
      %s133 = sadd.s32 %s132, 1
      %p136 = scmp.eq.s32.totalorder %s30, 1
      %p137 = scmp.ne.s32.totalorder %s132, %s134
      %p138 = scmp.eq.s32.totalorder %s30, 0
      %p139 = por %p137, %p138
      %p140 = scmp.ne.s32.totalorder %s132, %s134
      %p141 = scmp.eq.s32.totalorder %s35, 1
      %p142 = por %p140, %p141
      %p143 = scmp.ne.s32.totalorder %s134, %s135
      %p144 = scmp.eq.s32.totalorder %s35, 0
      %p145 = por %p143, %p144
      %p146 = scmp.ne.s32.totalorder %s134, %s135
      %p147 = scmp.eq.s32.totalorder %s36, 1
      %p148 = por %p146, %p147
      %p150 = scmp.ne.s32.totalorder %s135, %s149
      %p151 = scmp.eq.s32.totalorder %s36, 0
      %p152 = por %p150, %p151
      %s154 = sadd.s32 %s153, 1
      %p157 = scmp.eq.s32.totalorder %s30, 1
      %p158 = scmp.ne.s32.totalorder %s153, %s155
      %p159 = scmp.eq.s32.totalorder %s30, 0
      %p160 = por %p158, %p159
      %p161 = scmp.ne.s32.totalorder %s153, %s155
      %p162 = scmp.eq.s32.totalorder %s35, 1
      %p163 = por %p161, %p162
      %p164 = scmp.ne.s32.totalorder %s155, %s156
      %p165 = scmp.eq.s32.totalorder %s35, 0
      %p166 = por %p164, %p165
      %p167 = scmp.ne.s32.totalorder %s155, %s156
      %p168 = scmp.eq.s32.totalorder %s36, 1
      %p169 = por %p167, %p168
      %p171 = scmp.ne.s32.totalorder %s156, %s170
      %p172 = scmp.eq.s32.totalorder %s36, 0
      %p173 = por %p171, %p172
      %s175 = sadd.s32 %s174, 1
      %p178 = scmp.eq.s32.totalorder %s30, 1
      %p179 = scmp.ne.s32.totalorder %s174, %s176
      %p180 = scmp.eq.s32.totalorder %s30, 0
      %p181 = por %p179, %p180
      %p182 = scmp.ne.s32.totalorder %s174, %s176
      %p183 = scmp.eq.s32.totalorder %s35, 1
      %p184 = por %p182, %p183
      %p185 = scmp.ne.s32.totalorder %s176, %s177
      %p186 = scmp.eq.s32.totalorder %s35, 0
      %p187 = por %p185, %p186
      %p188 = scmp.ne.s32.totalorder %s176, %s177
      %p189 = scmp.eq.s32.totalorder %s36, 1
      %p190 = por %p188, %p189
      %p192 = scmp.ne.s32.totalorder %s177, %s191
      %p193 = scmp.eq.s32.totalorder %s36, 0
      %p194 = por %p192, %p193
      %s196 = sadd.s32 %s195, 1
      %p199 = scmp.eq.s32.totalorder %s30, 1
      %p200 = scmp.ne.s32.totalorder %s195, %s197
      %p201 = scmp.eq.s32.totalorder %s30, 0
      %p202 = por %p200, %p201
      %p203 = scmp.ne.s32.totalorder %s195, %s197
      %p204 = scmp.eq.s32.totalorder %s35, 1
      %p205 = por %p203, %p204
      %p206 = scmp.ne.s32.totalorder %s197, %s198
      %p207 = scmp.eq.s32.totalorder %s35, 0
      %p208 = por %p206, %p207
      %p209 = scmp.ne.s32.totalorder %s197, %s198
      %p210 = scmp.eq.s32.totalorder %s36, 1
      %p211 = por %p209, %p210
      %p213 = scmp.ne.s32.totalorder %s198, %s212
      %p214 = scmp.eq.s32.totalorder %s36, 0
      %p215 = por %p213, %p214
      %s217 = sadd.s32 %s216, 1
      %p220 = scmp.eq.s32.totalorder %s30, 1
      %p221 = scmp.ne.s32.totalorder %s216, %s218
      %p222 = scmp.eq.s32.totalorder %s30, 0
      %p223 = por %p221, %p222
      %p224 = scmp.ne.s32.totalorder %s216, %s218
      %p225 = scmp.eq.s32.totalorder %s35, 1
      %p226 = por %p224, %p225
      %p227 = scmp.ne.s32.totalorder %s218, %s219
      %p228 = scmp.eq.s32.totalorder %s35, 0
      %p229 = por %p227, %p228
      %p230 = scmp.ne.s32.totalorder %s218, %s219
      %p231 = scmp.eq.s32.totalorder %s36, 1
      %p232 = por %p230, %p231
      %p234 = scmp.ne.s32.totalorder %s219, %s233
      %p235 = scmp.eq.s32.totalorder %s36, 0
      %p236 = por %p234, %p235
      %s238 = sadd.s32 %s237, 1
      %p241 = scmp.eq.s32.totalorder %s30, 1
      %p242 = scmp.ne.s32.totalorder %s237, %s239
      %p243 = scmp.eq.s32.totalorder %s30, 0
      %p244 = por %p242, %p243
      %p245 = scmp.ne.s32.totalorder %s237, %s239
      %p246 = scmp.eq.s32.totalorder %s35, 1
      %p247 = por %p245, %p246
      %p248 = scmp.ne.s32.totalorder %s239, %s240
      %p249 = scmp.eq.s32.totalorder %s35, 0
      %p250 = por %p248, %p249
      %p251 = scmp.ne.s32.totalorder %s239, %s240
      %p252 = scmp.eq.s32.totalorder %s36, 1
      %p253 = por %p251, %p252
      %p255 = scmp.ne.s32.totalorder %s240, %s254
      %p256 = scmp.eq.s32.totalorder %s36, 0
      %p257 = por %p255, %p256
      %s259 = sadd.s32 %s258, 1
      %p262 = scmp.eq.s32.totalorder %s30, 1
      %p263 = scmp.ne.s32.totalorder %s258, %s260
      %p264 = scmp.eq.s32.totalorder %s30, 0
      %p265 = por %p263, %p264
      %p266 = scmp.ne.s32.totalorder %s258, %s260
      %p267 = scmp.eq.s32.totalorder %s35, 1
      %p268 = por %p266, %p267
      %p269 = scmp.ne.s32.totalorder %s260, %s261
      %p270 = scmp.eq.s32.totalorder %s35, 0
      %p271 = por %p269, %p270
      %p272 = scmp.ne.s32.totalorder %s260, %s261
      %p273 = scmp.eq.s32.totalorder %s36, 1
      %p274 = por %p272, %p273
      %p276 = scmp.ne.s32.totalorder %s261, %s275
      %p277 = scmp.eq.s32.totalorder %s36, 0
      %p278 = por %p276, %p277
      %s280 = sadd.s32 %s279, 1
      %p283 = scmp.eq.s32.totalorder %s30, 1
      %p284 = scmp.ne.s32.totalorder %s279, %s281
      %p285 = scmp.eq.s32.totalorder %s30, 0
      %p286 = por %p284, %p285
      %p287 = scmp.ne.s32.totalorder %s279, %s281
      %p288 = scmp.eq.s32.totalorder %s35, 1
      %p289 = por %p287, %p288
      %p290 = scmp.ne.s32.totalorder %s281, %s282
      %p291 = scmp.eq.s32.totalorder %s35, 0
      %p292 = por %p290, %p291
      %p293 = scmp.ne.s32.totalorder %s281, %s282
      %p294 = scmp.eq.s32.totalorder %s36, 1
      %p295 = por %p293, %p294
      %p297 = scmp.ne.s32.totalorder %s282, %s296
      %p298 = scmp.eq.s32.totalorder %s36, 0
      %p299 = por %p297, %p298
      %s301 = sadd.s32 %s300, 1
      %p304 = scmp.eq.s32.totalorder %s30, 1
      %p305 = scmp.ne.s32.totalorder %s300, %s302
      %p306 = scmp.eq.s32.totalorder %s30, 0
      %p307 = por %p305, %p306
      %p308 = scmp.ne.s32.totalorder %s300, %s302
      %p309 = scmp.eq.s32.totalorder %s35, 1
      %p310 = por %p308, %p309
      %p311 = scmp.ne.s32.totalorder %s302, %s303
      %p312 = scmp.eq.s32.totalorder %s35, 0
      %p313 = por %p311, %p312
      %p314 = scmp.ne.s32.totalorder %s302, %s303
      %p315 = scmp.eq.s32.totalorder %s36, 1
      %p316 = por %p314, %p315
      %p318 = scmp.ne.s32.totalorder %s303, %s317
      %p319 = scmp.eq.s32.totalorder %s36, 0
      %p320 = por %p318, %p319
      %s322 = sadd.s32 %s321, 1
      %p325 = scmp.eq.s32.totalorder %s30, 1
      %p326 = scmp.ne.s32.totalorder %s321, %s323
      %p327 = scmp.eq.s32.totalorder %s30, 0
      %p328 = por %p326, %p327
      %p329 = scmp.ne.s32.totalorder %s321, %s323
      %p330 = scmp.eq.s32.totalorder %s35, 1
      %p331 = por %p329, %p330
      %p332 = scmp.ne.s32.totalorder %s323, %s324
      %p333 = scmp.eq.s32.totalorder %s35, 0
      %p334 = por %p332, %p333
      %p335 = scmp.ne.s32.totalorder %s323, %s324
      %p336 = scmp.eq.s32.totalorder %s36, 1
      %p337 = por %p335, %p336
      %p339 = scmp.ne.s32.totalorder %s324, %s338
      %p340 = scmp.eq.s32.totalorder %s36, 0
      %p341 = por %p339, %p340
      %s343 = sadd.s32 %s342, 1
      %p346 = scmp.eq.s32.totalorder %s30, 1
      %p347 = scmp.ne.s32.totalorder %s342, %s344
      %p348 = scmp.eq.s32.totalorder %s30, 0
      %p349 = por %p347, %p348
      %p350 = scmp.ne.s32.totalorder %s342, %s344
      %p351 = scmp.eq.s32.totalorder %s35, 1
      %p352 = por %p350, %p351
      %p353 = scmp.ne.s32.totalorder %s344, %s345
      %p354 = scmp.eq.s32.totalorder %s35, 0
      %p355 = por %p353, %p354
      %p356 = scmp.ne.s32.totalorder %s344, %s345
      %p357 = scmp.eq.s32.totalorder %s36, 1
      %p358 = por %p356, %p357
      %p360 = scmp.ne.s32.totalorder %s345, %s359
      %p361 = scmp.eq.s32.totalorder %s36, 0
      %p362 = por %p360, %p361
      %s364 = sadd.s32 %s363, 1
      %p367 = scmp.eq.s32.totalorder %s30, 1
      %p368 = scmp.ne.s32.totalorder %s363, %s365
      %p369 = scmp.eq.s32.totalorder %s30, 0
      %p370 = por %p368, %p369
      %p371 = scmp.ne.s32.totalorder %s363, %s365
      %p372 = scmp.eq.s32.totalorder %s35, 1
      %p373 = por %p371, %p372
      %p374 = scmp.ne.s32.totalorder %s365, %s366
      %p375 = scmp.eq.s32.totalorder %s35, 0
      %p376 = por %p374, %p375
      %p377 = scmp.ne.s32.totalorder %s365, %s366
      %p378 = scmp.eq.s32.totalorder %s36, 1
      %p379 = por %p377, %p378
      %p381 = scmp.ne.s32.totalorder %s366, %s380
      %p382 = scmp.eq.s32.totalorder %s36, 0
      %p383 = por %p381, %p382
      %s385 = sadd.s32 %s384, 1
      %p388 = scmp.eq.s32.totalorder %s30, 1
      %p389 = scmp.ne.s32.totalorder %s384, %s386
      %p390 = scmp.eq.s32.totalorder %s30, 0
      %p391 = por %p389, %p390
      %p392 = scmp.ne.s32.totalorder %s384, %s386
      %p393 = scmp.eq.s32.totalorder %s35, 1
      %p394 = por %p392, %p393
      %p395 = scmp.ne.s32.totalorder %s386, %s387
      %p396 = scmp.eq.s32.totalorder %s35, 0
      %p397 = por %p395, %p396
      %p398 = scmp.ne.s32.totalorder %s386, %s387
      %p399 = scmp.eq.s32.totalorder %s36, 1
      %p400 = por %p398, %p399
      %p402 = scmp.ne.s32.totalorder %s387, %s401
      %p403 = scmp.eq.s32.totalorder %s36, 0
      %p404 = por %p402, %p403
      %s406 = sadd.s32 %s405, 1
      %p409 = scmp.eq.s32.totalorder %s30, 1
      %p410 = scmp.ne.s32.totalorder %s405, %s407
      %p411 = scmp.eq.s32.totalorder %s30, 0
      %p412 = por %p410, %p411
      %p413 = scmp.ne.s32.totalorder %s405, %s407
      %p414 = scmp.eq.s32.totalorder %s35, 1
      %p415 = por %p413, %p414
      %p416 = scmp.ne.s32.totalorder %s407, %s408
      %p417 = scmp.eq.s32.totalorder %s35, 0
      %p418 = por %p416, %p417
      %p419 = scmp.ne.s32.totalorder %s407, %s408
      %p420 = scmp.eq.s32.totalorder %s36, 1
      %p421 = por %p419, %p420
      %p423 = scmp.ne.s32.totalorder %s408, %s422
      %p424 = scmp.eq.s32.totalorder %s36, 0
      %p425 = por %p423, %p424
      %s427 = sadd.s32 %s426, 1
      %p430 = scmp.eq.s32.totalorder %s30, 1
      %p431 = scmp.ne.s32.totalorder %s426, %s428
      %p432 = scmp.eq.s32.totalorder %s30, 0
      %p433 = por %p431, %p432
      %p434 = scmp.ne.s32.totalorder %s426, %s428
      %p435 = scmp.eq.s32.totalorder %s35, 1
      %p436 = por %p434, %p435
      %p437 = scmp.ne.s32.totalorder %s428, %s429
      %p438 = scmp.eq.s32.totalorder %s35, 0
      %p439 = por %p437, %p438
      %p440 = scmp.ne.s32.totalorder %s428, %s429
      %p441 = scmp.eq.s32.totalorder %s36, 1
      %p442 = por %p440, %p441
      %p444 = scmp.ne.s32.totalorder %s429, %s443
      %p445 = scmp.eq.s32.totalorder %s36, 0
      %p446 = por %p444, %p445
      %s448 = sadd.s32 %s447, 1
      %p451 = scmp.eq.s32.totalorder %s30, 1
      %p452 = scmp.ne.s32.totalorder %s447, %s449
      %p453 = scmp.eq.s32.totalorder %s30, 0
      %p454 = por %p452, %p453
      %p455 = scmp.ne.s32.totalorder %s447, %s449
      %p456 = scmp.eq.s32.totalorder %s35, 1
      %p457 = por %p455, %p456
      %p458 = scmp.ne.s32.totalorder %s449, %s450
      %p459 = scmp.eq.s32.totalorder %s35, 0
      %p460 = por %p458, %p459
      %p461 = scmp.ne.s32.totalorder %s449, %s450
      %p462 = scmp.eq.s32.totalorder %s36, 1
      %p463 = por %p461, %p462
      %p465 = scmp.ne.s32.totalorder %s450, %s464
      %p466 = scmp.eq.s32.totalorder %s36, 0
      %p467 = por %p465, %p466
      %s469 = sadd.s32 %s468, 1
      %p472 = scmp.eq.s32.totalorder %s30, 1
      %p473 = scmp.ne.s32.totalorder %s468, %s470
      %p474 = scmp.eq.s32.totalorder %s30, 0
      %p475 = por %p473, %p474
      %p476 = scmp.ne.s32.totalorder %s468, %s470
      %p477 = scmp.eq.s32.totalorder %s35, 1
      %p478 = por %p476, %p477
      %p479 = scmp.ne.s32.totalorder %s470, %s471
      %p480 = scmp.eq.s32.totalorder %s35, 0
      %p481 = por %p479, %p480
      %p482 = scmp.ne.s32.totalorder %s470, %s471
      %p483 = scmp.eq.s32.totalorder %s36, 1
      %p484 = por %p482, %p483
      %p486 = scmp.ne.s32.totalorder %s471, %s485
      %p487 = scmp.eq.s32.totalorder %s36, 0
      %p488 = por %p486, %p487
      %s489 = ssub.s32 %s30, %s37
      %p490 = scmp.eq.s32.totalorder %s489, 0
      %s492 = sadd.s32 %s491, 1
      %s493 = scalar_select %p490, %s491, %s492
      %p496 = pneg %p490
      %p497 = scmp.eq.s32.totalorder %s30, 1
      %p498 = por %p496, %p497
      %p499 = scmp.ne.s32.totalorder %s491, %s494
      %p500 = scmp.eq.s32.totalorder %s30, 0
      %p501 = por %p499, %p500
      %p502 = scmp.ne.s32.totalorder %s491, %s494
      %p503 = scmp.eq.s32.totalorder %s35, 1
      %p504 = por %p502, %p503
      %p505 = scmp.ne.s32.totalorder %s494, %s495
      %p506 = scmp.eq.s32.totalorder %s35, 0
      %p507 = por %p505, %p506
      %p508 = scmp.ne.s32.totalorder %s494, %s495
      %p509 = scmp.eq.s32.totalorder %s36, 1
      %p510 = por %p508, %p509
      %p512 = scmp.ne.s32.totalorder %s495, %s511
      %p513 = scmp.eq.s32.totalorder %s36, 0
      %p514 = por %p512, %p513
      %p515 = scmp.le.s32.totalorder 1, %s30
      %p516 = scmp.lt.s32.totalorder %s30, 3
      %p517 = pnand %p515, %p516
      %p518 = pneg %p517
      // Predicated region
      $region9: #{tpu_custom_call.1} parent=5 // pred_check
        _
      $region10: #{tpu_custom_call.1} parent=5 // pred_check_branch
        %520 = sbr.rel (%p517) target = $region12
      $region11: #{tpu_custom_call.1} parent=5 // pred_region
        %s521 = ssub.s32 %s30, 1
        // Predicated region
        $region13: #{tpu_custom_call.1} parent=11 // pred_check
          %p522 = pneg %p77
        $region14: #{tpu_custom_call.1} parent=11 // pred_check_branch
          %524 = sbr.rel (%p522) target = $region16
        $region15: #{tpu_custom_call.1} parent=11 // pred_region
          _
        $region16: #{tpu_custom_call.1} parent=11 // pred_fallthru
          _
        // Predicated region
        $region17: #{tpu_custom_call.1} parent=11 // pred_check
          %p525 = pneg %p124
        $region18: #{tpu_custom_call.1} parent=11 // pred_check_branch
          %527 = sbr.rel (%p525) target = $region20
        $region19: #{tpu_custom_call.1} parent=11 // pred_region
          _
        $region20: #{tpu_custom_call.1} parent=11 // pred_fallthru
          _
        // Predicated region
        $region21: #{tpu_custom_call.1} parent=11 // pred_check
          %p528 = pneg %p145
        $region22: #{tpu_custom_call.1} parent=11 // pred_check_branch
          %530 = sbr.rel (%p528) target = $region24
        $region23: #{tpu_custom_call.1} parent=11 // pred_region
          _
        $region24: #{tpu_custom_call.1} parent=11 // pred_fallthru
          _
        // Predicated region
        $region25: #{tpu_custom_call.1} parent=11 // pred_check
          %p531 = pneg %p166
        $region26: #{tpu_custom_call.1} parent=11 // pred_check_branch
          %533 = sbr.rel (%p531) target = $region28
        $region27: #{tpu_custom_call.1} parent=11 // pred_region
          _
        $region28: #{tpu_custom_call.1} parent=11 // pred_fallthru
          _
        // Predicated region
        $region29: #{tpu_custom_call.1} parent=11 // pred_check
          %p534 = pneg %p187
        $region30: #{tpu_custom_call.1} parent=11 // pred_check_branch
          %536 = sbr.rel (%p534) target = $region32
        $region31: #{tpu_custom_call.1} parent=11 // pred_region
          _
        $region32: #{tpu_custom_call.1} parent=11 // pred_fallthru
          _
        // Predicated region
        $region33: #{tpu_custom_call.1} parent=11 // pred_check
          %p537 = pneg %p208
        $region34: #{tpu_custom_call.1} parent=11 // pred_check_branch
          %539 = sbr.rel (%p537) target = $region36
        $region35: #{tpu_custom_call.1} parent=11 // pred_region
          _
        $region36: #{tpu_custom_call.1} parent=11 // pred_fallthru
          _
        // Predicated region
        $region37: #{tpu_custom_call.1} parent=11 // pred_check
          %p540 = pneg %p229
        $region38: #{tpu_custom_call.1} parent=11 // pred_check_branch
          %542 = sbr.rel (%p540) target = $region40
        $region39: #{tpu_custom_call.1} parent=11 // pred_region
          _
        $region40: #{tpu_custom_call.1} parent=11 // pred_fallthru
          _
        // Predicated region
        $region41: #{tpu_custom_call.1} parent=11 // pred_check
          %p543 = pneg %p250
        $region42: #{tpu_custom_call.1} parent=11 // pred_check_branch
          %545 = sbr.rel (%p543) target = $region44
        $region43: #{tpu_custom_call.1} parent=11 // pred_region
          _
        $region44: #{tpu_custom_call.1} parent=11 // pred_fallthru
          _
        // Predicated region
        $region45: #{tpu_custom_call.1} parent=11 // pred_check
          %p546 = pneg %p271
        $region46: #{tpu_custom_call.1} parent=11 // pred_check_branch
          %548 = sbr.rel (%p546) target = $region48
        $region47: #{tpu_custom_call.1} parent=11 // pred_region
          _
        $region48: #{tpu_custom_call.1} parent=11 // pred_fallthru
          _
        // Predicated region
        $region49: #{tpu_custom_call.1} parent=11 // pred_check
          %p549 = pneg %p292
        $region50: #{tpu_custom_call.1} parent=11 // pred_check_branch
          %551 = sbr.rel (%p549) target = $region52
        $region51: #{tpu_custom_call.1} parent=11 // pred_region
          _
        $region52: #{tpu_custom_call.1} parent=11 // pred_fallthru
          _
        // Predicated region
        $region53: #{tpu_custom_call.1} parent=11 // pred_check
          %p552 = pneg %p313
        $region54: #{tpu_custom_call.1} parent=11 // pred_check_branch
          %554 = sbr.rel (%p552) target = $region56
        $region55: #{tpu_custom_call.1} parent=11 // pred_region
          _
        $region56: #{tpu_custom_call.1} parent=11 // pred_fallthru
          _
        // Predicated region
        $region57: #{tpu_custom_call.1} parent=11 // pred_check
          %p555 = pneg %p334
        $region58: #{tpu_custom_call.1} parent=11 // pred_check_branch
          %557 = sbr.rel (%p555) target = $region60
        $region59: #{tpu_custom_call.1} parent=11 // pred_region
          _
        $region60: #{tpu_custom_call.1} parent=11 // pred_fallthru
          _
        // Predicated region
        $region61: #{tpu_custom_call.1} parent=11 // pred_check
          %p558 = pneg %p355
        $region62: #{tpu_custom_call.1} parent=11 // pred_check_branch
          %560 = sbr.rel (%p558) target = $region64
        $region63: #{tpu_custom_call.1} parent=11 // pred_region
          _
        $region64: #{tpu_custom_call.1} parent=11 // pred_fallthru
          _
        // Predicated region
        $region65: #{tpu_custom_call.1} parent=11 // pred_check
          %p561 = pneg %p376
        $region66: #{tpu_custom_call.1} parent=11 // pred_check_branch
          %563 = sbr.rel (%p561) target = $region68
        $region67: #{tpu_custom_call.1} parent=11 // pred_region
          _
        $region68: #{tpu_custom_call.1} parent=11 // pred_fallthru
          _
        // Predicated region
        $region69: #{tpu_custom_call.1} parent=11 // pred_check
          %p564 = pneg %p397
        $region70: #{tpu_custom_call.1} parent=11 // pred_check_branch
          %566 = sbr.rel (%p564) target = $region72
        $region71: #{tpu_custom_call.1} parent=11 // pred_region
          _
        $region72: #{tpu_custom_call.1} parent=11 // pred_fallthru
          _
        // Predicated region
        $region73: #{tpu_custom_call.1} parent=11 // pred_check
          %p567 = pneg %p418
        $region74: #{tpu_custom_call.1} parent=11 // pred_check_branch
          %569 = sbr.rel (%p567) target = $region76
        $region75: #{tpu_custom_call.1} parent=11 // pred_region
          _
        $region76: #{tpu_custom_call.1} parent=11 // pred_fallthru
          _
        // Predicated region
        $region77: #{tpu_custom_call.1} parent=11 // pred_check
          %p570 = pneg %p439
        $region78: #{tpu_custom_call.1} parent=11 // pred_check_branch
          %572 = sbr.rel (%p570) target = $region80
        $region79: #{tpu_custom_call.1} parent=11 // pred_region
          _
        $region80: #{tpu_custom_call.1} parent=11 // pred_fallthru
          _
        // Predicated region
        $region81: #{tpu_custom_call.1} parent=11 // pred_check
          %p573 = pneg %p460
        $region82: #{tpu_custom_call.1} parent=11 // pred_check_branch
          %575 = sbr.rel (%p573) target = $region84
        $region83: #{tpu_custom_call.1} parent=11 // pred_region
          _
        $region84: #{tpu_custom_call.1} parent=11 // pred_fallthru
          _
        // Predicated region
        $region85: #{tpu_custom_call.1} parent=11 // pred_check
          %p576 = pneg %p481
        $region86: #{tpu_custom_call.1} parent=11 // pred_check_branch
          %578 = sbr.rel (%p576) target = $region88
        $region87: #{tpu_custom_call.1} parent=11 // pred_region
          _
        $region88: #{tpu_custom_call.1} parent=11 // pred_fallthru
          _
      $region12: #{tpu_custom_call.1} parent=5 // pred_fallthru
        _
      %p579 = scmp.lt.s32.totalorder %s30, 2
      // Predicated region
      $region89: #{tpu_custom_call.1} parent=5 // pred_check
        %p580 = pneg %p579
      $region90: #{tpu_custom_call.1} parent=5 // pred_check_branch
        %582 = sbr.rel (%p580) target = $region92
      $region91: #{tpu_custom_call.1} parent=5 // pred_region
        // Predicated region
        $region93: #{tpu_custom_call.1} parent=91 // pred_check
          %p583 = pneg %p50
        $region94: #{tpu_custom_call.1} parent=91 // pred_check_branch
          %585 = sbr.rel (%p583) target = $region96
        $region95: #{tpu_custom_call.1} parent=91 // pred_region
          %p586 = scmp.lt.s32.totalorder %s30, 1
          %s587 = scalar_select %p586, %s30, 1
          %s588 = smul.addr %s587, 32
          %s589 = smul.addr %s588, 8
          %s590 = scalar_lea.vmem %s0, %s589
        $region96: #{tpu_custom_call.1} parent=91 // pred_fallthru
          _
        // Predicated region
        $region97: #{tpu_custom_call.1} parent=91 // pred_check
          %p591 = pneg %p97
        $region98: #{tpu_custom_call.1} parent=91 // pred_check_branch
          %593 = sbr.rel (%p591) target = $region100
        $region99: #{tpu_custom_call.1} parent=91 // pred_region
          %p594 = scmp.lt.s32.totalorder %s30, 1
          %s595 = scalar_select %p594, %s30, 1
          %s596 = smul.addr %s595, 2
          %s597 = smul.addr %s596, 8
          %s598 = scalar_lea.vmem %s2, %s597
        $region100: #{tpu_custom_call.1} parent=91 // pred_fallthru
          _
      $region92: #{tpu_custom_call.1} parent=5 // pred_fallthru
        _
      %p599 = scmp.le.s32.totalorder 1, %s30
      %p600 = scmp.lt.s32.totalorder %s30, 3
      %p601 = pnand %p599, %p600
      %p602 = pneg %p601
      // Predicated region
      $region101: #{tpu_custom_call.1} parent=5 // pred_check
        _
      $region102: #{tpu_custom_call.1} parent=5 // pred_check_branch
        %604 = sbr.rel (%p601) target = $region104
      $region103: #{tpu_custom_call.1} parent=5 // pred_region
        %s605 = ssub.s32 %s30, 1
        %p606 = scmp.lt.s32.totalorder %s35, 1
        %s607 = scalar_select %p606, %s35, 1
        %s608 = smul.addr %s607, 32
        %s609 = smul.addr %s608, 8
        %s610 = scalar_lea.vmem %s0, %s609
        %p611 = pneg %p56
        %p612 = pneg %p53
        %p613 = pneg %p77
        %p614 = pneg %p74
        %p615 = scmp.lt.s32.totalorder %s35, 1
        %s616 = scalar_select %p615, %s35, 1
        %s617 = smul.addr %s616, 2
        %s618 = smul.addr %s617, 8
        %s619 = scalar_lea.vmem %s2, %s618
        %p620 = pneg %p103
        %p621 = pneg %p100
        %p622 = pneg %p124
        %p623 = pneg %p121
        %p624 = pneg %p145
        %p625 = pneg %p142
        %p626 = pneg %p166
        %p627 = pneg %p163
        %p628 = pneg %p187
        %p629 = pneg %p184
        %p630 = pneg %p208
        %p631 = pneg %p205
        %p632 = pneg %p229
        %p633 = pneg %p226
        %p634 = pneg %p250
        %p635 = pneg %p247
        %p636 = pneg %p271
        %p637 = pneg %p268
        %p638 = pneg %p292
        %p639 = pneg %p289
        %p640 = pneg %p313
        %p641 = pneg %p310
        %p642 = pneg %p334
        %p643 = pneg %p331
        %p644 = pneg %p355
        %p645 = pneg %p352
        %p646 = pneg %p376
        %p647 = pneg %p373
        %p648 = pneg %p397
        %p649 = pneg %p394
        %p650 = pneg %p418
        %p651 = pneg %p415
        %p652 = pneg %p439
        %p653 = pneg %p436
        %p654 = pneg %p460
        %p655 = pneg %p457
        %p656 = pneg %p481
        %p657 = pneg %p478
        %p658 = pneg %p507
        %p659 = pneg %p504
        %s660 = sand.u32 %s494, 1
        %s661 = scalar_lea.sflag [#allocation3], %s660
        %s662 = sand.u32 %s494, 1
        %s663 = smul.addr %s662, 32
        %s664 = scalar_lea.vmem [#allocation2], %s663
        %p665 = scmp.lt.s32.totalorder %s35, 1
        %s666 = scalar_select %p665, %s35, 1
        %s667 = smul.addr %s666, 32
        %s668 = smul.addr %s667, 8
        %s669 = scalar_lea.vmem %s0, %s668
        %p670 = scmp.lt.s32.totalorder %s35, 1
        %s671 = scalar_select %p670, %s35, 1
        %s672 = smul.addr %s671, 2
        %s673 = smul.addr %s672, 8
        %s674 = scalar_lea.vmem %s2, %s673
        %v676 = vld [vmem:[%s669] sm:$0xff]
        %v677 = vld [vmem:[%s669 + $0x8] sm:$0xff]
        %v678 = vld [vmem:[%s669 + $0x10] sm:$0xff]
        %v679 = vld [vmem:[%s669 + $0x18] sm:$0xff]
        %v680 = vld [vmem:[%s669 + $0x20] sm:$0xff]
        %v681 = vld [vmem:[%s669 + $0x28] sm:$0xff]
        %v682 = vld [vmem:[%s669 + $0x30] sm:$0xff]
        %v683 = vld [vmem:[%s669 + $0x38] sm:$0xff]
        %v684 = vld [vmem:[%s669 + $0x40] sm:$0xff]
        %v685 = vld [vmem:[%s669 + $0x48] sm:$0xff]
        %v686 = vld [vmem:[%s669 + $0x50] sm:$0xff]
        %v687 = vld [vmem:[%s669 + $0x58] sm:$0xff]
        %v688 = vld [vmem:[%s669 + $0x60] sm:$0xff]
        %v689 = vld [vmem:[%s669 + $0x68] sm:$0xff]
        %v690 = vld [vmem:[%s669 + $0x70] sm:$0xff]
        %v691 = vld [vmem:[%s669 + $0x78] sm:$0xff]
        %v692 = vld [vmem:[%s669 + $0x80] sm:$0xff]
        %v693 = vld [vmem:[%s669 + $0x88] sm:$0xff]
        %v694 = vld [vmem:[%s669 + $0x90] sm:$0xff]
        %v695 = vld [vmem:[%s669 + $0x98] sm:$0xff]
        %v696 = vld [vmem:[%s669 + $0xa0] sm:$0xff]
        %v697 = vld [vmem:[%s669 + $0xa8] sm:$0xff]
        %v698 = vld [vmem:[%s669 + $0xb0] sm:$0xff]
        %v699 = vld [vmem:[%s669 + $0xb8] sm:$0xff]
        %v700 = vld [vmem:[%s669 + $0xc0] sm:$0xff]
        %v701 = vld [vmem:[%s669 + $0xc8] sm:$0xff]
        %v702 = vld [vmem:[%s669 + $0xd0] sm:$0xff]
        %v703 = vld [vmem:[%s669 + $0xd8] sm:$0xff]
        %v704 = vld [vmem:[%s669 + $0xe0] sm:$0xff]
        %v705 = vld [vmem:[%s669 + $0xe8] sm:$0xff]
        %v706 = vld [vmem:[%s669 + $0xf0] sm:$0xff]
        %v707 = vld [vmem:[%s669 + $0xf8] sm:$0xff]
        %v708 = vld [vmem:[%s1] sm:$0xff]
        %v709 = vld [vmem:[%s1 + $0x8] sm:$0xff]
        %v710 = vld [vmem:[%s1 + $0x10] sm:$0xff]
        %v711 = vld [vmem:[%s1 + $0x18] sm:$0xff]
        %v712 = vld [vmem:[%s1 + $0x20] sm:$0xff]
        %v713 = vld [vmem:[%s1 + $0x28] sm:$0xff]
        %v714 = vld [vmem:[%s1 + $0x30] sm:$0xff]
        %v715 = vld [vmem:[%s1 + $0x38] sm:$0xff]
        %v716 = vld [vmem:[%s1 + $0x40] sm:$0xff]
        %v717 = vld [vmem:[%s1 + $0x48] sm:$0xff]
        %v718 = vld [vmem:[%s1 + $0x50] sm:$0xff]
        %v719 = vld [vmem:[%s1 + $0x58] sm:$0xff]
        %v720 = vld [vmem:[%s1 + $0x60] sm:$0xff]
        %v721 = vld [vmem:[%s1 + $0x68] sm:$0xff]
        %v722 = vld [vmem:[%s1 + $0x70] sm:$0xff]
        %v723 = vld [vmem:[%s1 + $0x78] sm:$0xff]
        %v724 = vld [vmem:[%s1 + $0x80] sm:$0xff]
        %v725 = vld [vmem:[%s1 + $0x88] sm:$0xff]
        %v726 = vld [vmem:[%s1 + $0x90] sm:$0xff]
        %v727 = vld [vmem:[%s1 + $0x98] sm:$0xff]
        %v728 = vld [vmem:[%s1 + $0xa0] sm:$0xff]
        %v729 = vld [vmem:[%s1 + $0xa8] sm:$0xff]
        %v730 = vld [vmem:[%s1 + $0xb0] sm:$0xff]
        %v731 = vld [vmem:[%s1 + $0xb8] sm:$0xff]
        %v732 = vld [vmem:[%s1 + $0xc0] sm:$0xff]
        %v733 = vld [vmem:[%s1 + $0xc8] sm:$0xff]
        %v734 = vld [vmem:[%s1 + $0xd0] sm:$0xff]
        %v735 = vld [vmem:[%s1 + $0xd8] sm:$0xff]
        %v736 = vld [vmem:[%s1 + $0xe0] sm:$0xff]
        %v737 = vld [vmem:[%s1 + $0xe8] sm:$0xff]
        %v738 = vld [vmem:[%s1 + $0xf0] sm:$0xff]
        %v739 = vld [vmem:[%s1 + $0xf8] sm:$0xff]
        %v740 = vld [vmem:[%s674] sm:$0xff]
        %v741 = vld [vmem:[%s674 + $0x8] sm:$0xff]
        %v742 = vadd.f32 %v676, %v708
        %v743 = vadd.f32 %v677, %v709
        %v744 = vadd.f32 %v678, %v710
        %v745 = vadd.f32 %v679, %v711
        %v746 = vadd.f32 %v680, %v712
        %v747 = vadd.f32 %v681, %v713
        %v748 = vadd.f32 %v682, %v714
        %v749 = vadd.f32 %v683, %v715
        %v750 = vadd.f32 %v684, %v716
        %v751 = vadd.f32 %v685, %v717
        %v752 = vadd.f32 %v686, %v718
        %v753 = vadd.f32 %v687, %v719
        %v754 = vadd.f32 %v688, %v720
        %v755 = vadd.f32 %v689, %v721
        %v756 = vadd.f32 %v690, %v722
        %v757 = vadd.f32 %v691, %v723
        %v758 = vadd.f32 %v692, %v724
        %v759 = vadd.f32 %v693, %v725
        %v760 = vadd.f32 %v694, %v726
        %v761 = vadd.f32 %v695, %v727
        %v762 = vadd.f32 %v696, %v728
        %v763 = vadd.f32 %v697, %v729
        %v764 = vadd.f32 %v698, %v730
        %v765 = vadd.f32 %v699, %v731
        %v766 = vadd.f32 %v700, %v732
        %v767 = vadd.f32 %v701, %v733
        %v768 = vadd.f32 %v702, %v734
        %v769 = vadd.f32 %v703, %v735
        %v770 = vadd.f32 %v704, %v736
        %v771 = vadd.f32 %v705, %v737
        %v772 = vadd.f32 %v706, %v738
        %v773 = vadd.f32 %v707, %v739
        %v774 = vld [vmem:[%s3] sm:$0xf]
        %v775 = vld [vmem:[%s3 + $0x4] sm:$0xf]
        %v776 = vld [vmem:[%s3 + $0x8] sm:$0xf]
        %v777 = vld [vmem:[%s3 + $0xc] sm:$0xf]
        %v778 = vpack.c.bf16 %v741, %v740
        %v783 = vunpack.c.l.b16 %v774
        %v784 = vunpack.c.l.b16 %v775
        %v785 = vunpack.c.l.b16 %v776
        %v786 = vunpack.c.l.b16 %v777
        %v787 = vpack.c.b16 %v784, %v783
        %v788 = vpack.c.b16 %v786, %v785
        %vm791 = vcmask 261120
        %v793 = vsel %vm791, %v778, 0
        %795 = vmatprep.subr.bf16.mxu0 0
        %796 = vmatpush1.bf16.msra.mxu0 %v787
        %797 = vmatprep.subr.bf16.mxu0 0
        %798 = vmatpush1.bf16.msra.mxu0 %v788
        %799 = vmatprep.subr.bf16.mxu0 0
        %800 = vmatpush1.bf16.msra.mxu0 0
        %801 = vmatprep.subr.bf16.mxu0 0
        %802 = vmatpush1.bf16.msra.mxu0 0
        %803 = vmatprep.subr.bf16.mxu0 0
        %804 = vmatpush1.bf16.msra.mxu0 0
        %805 = vmatprep.subr.bf16.mxu0 0
        %806 = vmatpush1.bf16.msra.mxu0 0
        %807 = vmatprep.subr.bf16.mxu0 0
        %808 = vmatpush1.bf16.msra.mxu0 0
        %809 = vmatprep.subr.bf16.mxu0 0
        %810 = vmatpush1.bf16.msra.mxu0 0
        %811 = vmatprep.subr.bf16.mxu0 0
        %812 = vmatpush1.bf16.msra.mxu0 0
        %813 = vmatprep.subr.bf16.mxu0 0
        %814 = vmatpush1.bf16.msra.mxu0 0
        %815 = vmatprep.subr.bf16.mxu0 0
        %816 = vmatpush1.bf16.msra.mxu0 0
        %817 = vmatprep.subr.bf16.mxu0 0
        %818 = vmatpush1.bf16.msra.mxu0 0
        %819 = vmatprep.subr.bf16.mxu0 0
        %820 = vmatpush1.bf16.msra.mxu0 0
        %821 = vmatprep.subr.bf16.mxu0 0
        %822 = vmatpush1.bf16.msra.mxu0 0
        %823 = vmatprep.subr.bf16.mxu0 0
        %824 = vmatpush1.bf16.msra.mxu0 0
        %825 = vmatprep.subr.bf16.mxu0 0
        %826 = vmatpush1.bf16.msra.mxu0 0
        %827 = vmatprep.mubr.bf16.mxu0 0
        %828 = vmatmul.mubr.bf16.gmra.mrb[0].mxu0 %v793
        %v829 = vpop.f32.mrb[0].mxu0
        %v830 = vadd.f32 0.0, %v829
        %v831 = vpop.f32.mrb[0].mxu0
        %v832 = vpop.f32.mrb[0].mxu0
        %v833 = vadd.f32 0.0, %v832
        %v834 = vpop.f32.mrb[0].mxu0
        %835 = vdwg.mxu0
        %v836 = vld [vmem:[%s4] sm:$0xf]
        %v837 = vld [vmem:[%s4 + $0x4] sm:$0xf]
        %v838 = vld [vmem:[%s4 + $0x8] sm:$0xf]
        %v839 = vld [vmem:[%s4 + $0xc] sm:$0xf]
        %v840 = vpack.c.bf16 %v743, %v742
        %v841 = vpack.c.bf16 %v745, %v744
        %v842 = vpack.c.bf16 %v747, %v746
        %v843 = vpack.c.bf16 %v749, %v748
        %v844 = vpack.c.bf16 %v751, %v750
        %v845 = vpack.c.bf16 %v753, %v752
        %v846 = vpack.c.bf16 %v755, %v754
        %v847 = vpack.c.bf16 %v757, %v756
        %v848 = vpack.c.bf16 %v759, %v758
        %v849 = vpack.c.bf16 %v761, %v760
        %v850 = vpack.c.bf16 %v763, %v762
        %v851 = vpack.c.bf16 %v765, %v764
        %v852 = vpack.c.bf16 %v767, %v766
        %v853 = vpack.c.bf16 %v769, %v768
        %v854 = vpack.c.bf16 %v771, %v770
        %v855 = vpack.c.bf16 %v773, %v772
        %v860 = vunpack.c.l.b16 %v836
        %v861 = vunpack.c.l.b16 %v837
        %v862 = vunpack.c.l.b16 %v838
        %v863 = vunpack.c.l.b16 %v839
        %v864 = vpack.c.b16 %v861, %v860
        %v865 = vpack.c.b16 %v863, %v862
        %v869 = vsel %vm791, %v840, 0
        %v872 = vsel %vm791, %v841, 0
        %v875 = vsel %vm791, %v842, 0
        %v878 = vsel %vm791, %v843, 0
        %v881 = vsel %vm791, %v844, 0
        %v884 = vsel %vm791, %v845, 0
        %v887 = vsel %vm791, %v846, 0
        %v890 = vsel %vm791, %v847, 0
        %v893 = vsel %vm791, %v848, 0
        %v896 = vsel %vm791, %v849, 0
        %v899 = vsel %vm791, %v850, 0
        %v902 = vsel %vm791, %v851, 0
        %v905 = vsel %vm791, %v852, 0
        %v908 = vsel %vm791, %v853, 0
        %v911 = vsel %vm791, %v854, 0
        %v914 = vsel %vm791, %v855, 0
        %916 = vmatprep.subr.bf16.mxu0 0
        %917 = vmatpush1.bf16.msra.mxu0 %v864
        %918 = vmatprep.subr.bf16.mxu0 0
        %919 = vmatpush1.bf16.msra.mxu0 %v865
        %920 = vmatprep.subr.bf16.mxu0 0
        %921 = vmatpush1.bf16.msra.mxu0 0
        %922 = vmatprep.subr.bf16.mxu0 0
        %923 = vmatpush1.bf16.msra.mxu0 0
        %924 = vmatprep.subr.bf16.mxu0 0
        %925 = vmatpush1.bf16.msra.mxu0 0
        %926 = vmatprep.subr.bf16.mxu0 0
        %927 = vmatpush1.bf16.msra.mxu0 0
        %928 = vmatprep.subr.bf16.mxu0 0
        %929 = vmatpush1.bf16.msra.mxu0 0
        %930 = vmatprep.subr.bf16.mxu0 0
        %931 = vmatpush1.bf16.msra.mxu0 0
        %932 = vmatprep.subr.bf16.mxu0 0
        %933 = vmatpush1.bf16.msra.mxu0 0
        %934 = vmatprep.subr.bf16.mxu0 0
        %935 = vmatpush1.bf16.msra.mxu0 0
        %936 = vmatprep.subr.bf16.mxu0 0
        %937 = vmatpush1.bf16.msra.mxu0 0
        %938 = vmatprep.subr.bf16.mxu0 0
        %939 = vmatpush1.bf16.msra.mxu0 0
        %940 = vmatprep.subr.bf16.mxu0 0
        %941 = vmatpush1.bf16.msra.mxu0 0
        %942 = vmatprep.subr.bf16.mxu0 0
        %943 = vmatpush1.bf16.msra.mxu0 0
        %944 = vmatprep.subr.bf16.mxu0 0
        %945 = vmatpush1.bf16.msra.mxu0 0
        %946 = vmatprep.subr.bf16.mxu0 0
        %947 = vmatpush1.bf16.msra.mxu0 0
        %948 = vmatprep.mubr.bf16.mxu0 0
        %949 = vmatmul.mubr.bf16.gmra.mrb[0].mxu0 %v869
        %v950 = vpop.f32.mrb[0].mxu0
        %v951 = vadd.f32 0.0, %v950
        %v952 = vpop.f32.mrb[0].mxu0
        %v953 = vpop.f32.mrb[0].mxu0
        %v954 = vadd.f32 0.0, %v953
        %v955 = vpop.f32.mrb[0].mxu0
        %956 = vmatprep.mubr.bf16.mxu0 0
        %957 = vmatmul.mubr.bf16.gmra.mrb[0].mxu0 %v872
        %v958 = vpop.f32.mrb[0].mxu0
        %v959 = vadd.f32 0.0, %v958
        %v960 = vpop.f32.mrb[0].mxu0
        %v961 = vpop.f32.mrb[0].mxu0
        %v962 = vadd.f32 0.0, %v961
        %v963 = vpop.f32.mrb[0].mxu0
        %964 = vmatprep.mubr.bf16.mxu0 0
        %965 = vmatmul.mubr.bf16.gmra.mrb[0].mxu0 %v875
        %v966 = vpop.f32.mrb[0].mxu0
        %v967 = vadd.f32 0.0, %v966
        %v968 = vpop.f32.mrb[0].mxu0
        %v969 = vpop.f32.mrb[0].mxu0
        %v970 = vadd.f32 0.0, %v969
        %v971 = vpop.f32.mrb[0].mxu0
        %972 = vmatprep.mubr.bf16.mxu0 0
        %973 = vmatmul.mubr.bf16.gmra.mrb[0].mxu0 %v878
        %v974 = vpop.f32.mrb[0].mxu0
        %v975 = vadd.f32 0.0, %v974
        %v976 = vpop.f32.mrb[0].mxu0
        %v977 = vpop.f32.mrb[0].mxu0
        %v978 = vadd.f32 0.0, %v977
        %v979 = vpop.f32.mrb[0].mxu0
        %980 = vmatprep.mubr.bf16.mxu0 0
        %981 = vmatmul.mubr.bf16.gmra.mrb[0].mxu0 %v881
        %v982 = vpop.f32.mrb[0].mxu0
        %v983 = vadd.f32 0.0, %v982
        %v984 = vpop.f32.mrb[0].mxu0
        %v985 = vpop.f32.mrb[0].mxu0
        %v986 = vadd.f32 0.0, %v985
        %v987 = vpop.f32.mrb[0].mxu0
        %988 = vmatprep.mubr.bf16.mxu0 0
        %989 = vmatmul.mubr.bf16.gmra.mrb[0].mxu0 %v884
        %v990 = vpop.f32.mrb[0].mxu0
        %v991 = vadd.f32 0.0, %v990
        %v992 = vpop.f32.mrb[0].mxu0
        %v993 = vpop.f32.mrb[0].mxu0
        %v994 = vadd.f32 0.0, %v993
        %v995 = vpop.f32.mrb[0].mxu0
        %996 = vmatprep.mubr.bf16.mxu0 0
        %997 = vmatmul.mubr.bf16.gmra.mrb[0].mxu0 %v887
        %v998 = vpop.f32.mrb[0].mxu0
        %v999 = vadd.f32 0.0, %v998
        %v1000 = vpop.f32.mrb[0].mxu0
        %v1001 = vpop.f32.mrb[0].mxu0
        %v1002 = vadd.f32 0.0, %v1001
        %v1003 = vpop.f32.mrb[0].mxu0
        %1004 = vmatprep.mubr.bf16.mxu0 0
        %1005 = vmatmul.mubr.bf16.gmra.mrb[0].mxu0 %v890
        %v1006 = vpop.f32.mrb[0].mxu0
        %v1007 = vadd.f32 0.0, %v1006
        %v1008 = vpop.f32.mrb[0].mxu0
        %v1009 = vpop.f32.mrb[0].mxu0
        %v1010 = vadd.f32 0.0, %v1009
        %v1011 = vpop.f32.mrb[0].mxu0
        %1012 = vmatprep.mubr.bf16.mxu0 0
        %1013 = vmatmul.mubr.bf16.gmra.mrb[0].mxu0 %v893
        %v1014 = vpop.f32.mrb[0].mxu0
        %v1015 = vadd.f32 0.0, %v1014
        %v1016 = vpop.f32.mrb[0].mxu0
        %v1017 = vpop.f32.mrb[0].mxu0
        %v1018 = vadd.f32 0.0, %v1017
        %v1019 = vpop.f32.mrb[0].mxu0
        %1020 = vmatprep.mubr.bf16.mxu0 0
        %1021 = vmatmul.mubr.bf16.gmra.mrb[0].mxu0 %v896
        %v1022 = vpop.f32.mrb[0].mxu0
        %v1023 = vadd.f32 0.0, %v1022
        %v1024 = vpop.f32.mrb[0].mxu0
        %v1025 = vpop.f32.mrb[0].mxu0
        %v1026 = vadd.f32 0.0, %v1025
        %v1027 = vpop.f32.mrb[0].mxu0
        %1028 = vmatprep.mubr.bf16.mxu0 0
        %1029 = vmatmul.mubr.bf16.gmra.mrb[0].mxu0 %v899
        %v1030 = vpop.f32.mrb[0].mxu0
        %v1031 = vadd.f32 0.0, %v1030
        %v1032 = vpop.f32.mrb[0].mxu0
        %v1033 = vpop.f32.mrb[0].mxu0
        %v1034 = vadd.f32 0.0, %v1033
        %v1035 = vpop.f32.mrb[0].mxu0
        %1036 = vmatprep.mubr.bf16.mxu0 0
        %1037 = vmatmul.mubr.bf16.gmra.mrb[0].mxu0 %v902
        %v1038 = vpop.f32.mrb[0].mxu0
        %v1039 = vadd.f32 0.0, %v1038
        %v1040 = vpop.f32.mrb[0].mxu0
        %v1041 = vpop.f32.mrb[0].mxu0
        %v1042 = vadd.f32 0.0, %v1041
        %v1043 = vpop.f32.mrb[0].mxu0
        %1044 = vmatprep.mubr.bf16.mxu0 0
        %1045 = vmatmul.mubr.bf16.gmra.mrb[0].mxu0 %v905
        %v1046 = vpop.f32.mrb[0].mxu0
        %v1047 = vadd.f32 0.0, %v1046
        %v1048 = vpop.f32.mrb[0].mxu0
        %v1049 = vpop.f32.mrb[0].mxu0
        %v1050 = vadd.f32 0.0, %v1049
        %v1051 = vpop.f32.mrb[0].mxu0
        %1052 = vmatprep.mubr.bf16.mxu0 0
        %1053 = vmatmul.mubr.bf16.gmra.mrb[0].mxu0 %v908
        %v1054 = vpop.f32.mrb[0].mxu0
        %v1055 = vadd.f32 0.0, %v1054
        %v1056 = vpop.f32.mrb[0].mxu0
        %v1057 = vpop.f32.mrb[0].mxu0
        %v1058 = vadd.f32 0.0, %v1057
        %v1059 = vpop.f32.mrb[0].mxu0
        %1060 = vmatprep.mubr.bf16.mxu0 0
        %1061 = vmatmul.mubr.bf16.gmra.mrb[0].mxu0 %v911
        %v1062 = vpop.f32.mrb[0].mxu0
        %v1063 = vadd.f32 0.0, %v1062
        %v1064 = vpop.f32.mrb[0].mxu0
        %v1065 = vpop.f32.mrb[0].mxu0
        %v1066 = vadd.f32 0.0, %v1065
        %v1067 = vpop.f32.mrb[0].mxu0
        %1068 = vmatprep.mubr.bf16.mxu0 0
        %1069 = vmatmul.mubr.bf16.gmra.mrb[0].mxu0 %v914
        %v1070 = vpop.f32.mrb[0].mxu0
        %v1071 = vadd.f32 0.0, %v1070
        %v1072 = vpop.f32.mrb[0].mxu0
        %v1073 = vpop.f32.mrb[0].mxu0
        %v1074 = vadd.f32 0.0, %v1073
        %v1075 = vpop.f32.mrb[0].mxu0
        %1076 = vdwg.mxu0
        %v1077 = vpack.c.bf16 %v833, %v830
        %v1078 = vpack.c.bf16 %v954, %v951
        %v1079 = vpack.c.bf16 %v962, %v959
        %v1080 = vpack.c.bf16 %v970, %v967
        %v1081 = vpack.c.bf16 %v978, %v975
        %v1082 = vpack.c.bf16 %v986, %v983
        %v1083 = vpack.c.bf16 %v994, %v991
        %v1084 = vpack.c.bf16 %v1002, %v999
        %v1085 = vpack.c.bf16 %v1010, %v1007
        %v1086 = vpack.c.bf16 %v1018, %v1015
        %v1087 = vpack.c.bf16 %v1026, %v1023
        %v1088 = vpack.c.bf16 %v1034, %v1031
        %v1089 = vpack.c.bf16 %v1042, %v1039
        %v1090 = vpack.c.bf16 %v1050, %v1047
        %v1091 = vpack.c.bf16 %v1058, %v1055
        %v1092 = vpack.c.bf16 %v1066, %v1063
        %v1093 = vpack.c.bf16 %v1074, %v1071
        %v1095 = vsel %vm791, %v1077, 0
        %v1098 = vsel %vm791, %v1078, 0
        %v1101 = vsel %vm791, %v1079, 0
        %v1104 = vsel %vm791, %v1080, 0
        %v1107 = vsel %vm791, %v1081, 0
        %v1110 = vsel %vm791, %v1082, 0
        %v1113 = vsel %vm791, %v1083, 0
        %v1116 = vsel %vm791, %v1084, 0
        %v1119 = vsel %vm791, %v1085, 0
        %v1122 = vsel %vm791, %v1086, 0
        %v1125 = vsel %vm791, %v1087, 0
        %v1128 = vsel %vm791, %v1088, 0
        %v1131 = vsel %vm791, %v1089, 0
        %v1134 = vsel %vm791, %v1090, 0
        %v1137 = vsel %vm791, %v1091, 0
        %v1140 = vsel %vm791, %v1092, 0
        %v1143 = vsel %vm791, %v1093, 0
        %1145 = vmatprep.subr.bf16.mxu0 0
        %1146 = vmatpush1.bf16.xpose.msra.mxu0 %v1098
        %1147 = vmatprep.subr.bf16.mxu0 0
        %1148 = vmatpush1.bf16.xpose.msra.mxu0 %v1101
        %1149 = vmatprep.subr.bf16.mxu0 0
        %1150 = vmatpush1.bf16.xpose.msra.mxu0 %v1104
        %1151 = vmatprep.subr.bf16.mxu0 0
        %1152 = vmatpush1.bf16.xpose.msra.mxu0 %v1107
        %1153 = vmatprep.subr.bf16.mxu0 0
        %1154 = vmatpush1.bf16.xpose.msra.mxu0 %v1110
        %1155 = vmatprep.subr.bf16.mxu0 0
        %1156 = vmatpush1.bf16.xpose.msra.mxu0 %v1113
        %1157 = vmatprep.subr.bf16.mxu0 0
        %1158 = vmatpush1.bf16.xpose.msra.mxu0 %v1116
        %1159 = vmatprep.subr.bf16.mxu0 0
        %1160 = vmatpush1.bf16.xpose.msra.mxu0 %v1119
        %1161 = vmatprep.subr.bf16.mxu0 0
        %1162 = vmatpush1.bf16.xpose.msra.mxu0 %v1122
        %1163 = vmatprep.subr.bf16.mxu0 0
        %1164 = vmatpush1.bf16.xpose.msra.mxu0 %v1125
        %1165 = vmatprep.subr.bf16.mxu0 0
        %1166 = vmatpush1.bf16.xpose.msra.mxu0 %v1128
        %1167 = vmatprep.subr.bf16.mxu0 0
        %1168 = vmatpush1.bf16.xpose.msra.mxu0 %v1131
        %1169 = vmatprep.subr.bf16.mxu0 0
        %1170 = vmatpush1.bf16.xpose.msra.mxu0 %v1134
        %1171 = vmatprep.subr.bf16.mxu0 0
        %1172 = vmatpush1.bf16.xpose.msra.mxu0 %v1137
        %1173 = vmatprep.subr.bf16.mxu0 0
        %1174 = vmatpush1.bf16.xpose.msra.mxu0 %v1140
        %1175 = vmatprep.subr.bf16.mxu0 0
        %1176 = vmatpush1.bf16.xpose.msra.mxu0 %v1143
        %1177 = vmatprep.mubr.bf16.mxu0 0
        %1178 = vmatmul.mubr.bf16.gmra.mrb[0].mxu0 %v1095
        %v1179 = vpop.f32.mrb[0].mxu0
        %v1180 = vadd.f32 0.0, %v1179
        %v1181 = vpop.f32.mrb[0].mxu0
        %v1182 = vadd.f32 0.0, %v1181
        %v1183 = vpop.f32.mrb[0].mxu0
        %v1184 = vadd.f32 0.0, %v1183
        %v1185 = vpop.f32.mrb[0].mxu0
        %v1186 = vadd.f32 0.0, %v1185
        %1187 = vdwg.mxu0
        %v1188 = vmul.f32 %v1180, 0.17677669
        %v1189 = vmul.f32 %v1182, 0.17677669
        %v1190 = vmul.f32 %v1184, 0.17677669
        %v1191 = vmul.f32 %v1186, 0.17677669
        %v1192 = vmax.f32 %v1188, %v1189
        %1193 = vmax.xlane.f32.xlu0 %v1192
        %v1194 = vpop.xlane.xlu0 %1193
        %v1195 = vmax.f32 %v1190, %v1191
        %1196 = vmax.xlane.f32.xlu0 %v1195
        %v1197 = vpop.xlane.xlu0 %1196
        %v1198 = vsub.f32 %v1188, %v1194
        %v1199 = vsub.f32 %v1189, %v1194
        %v1200 = vsub.f32 %v1190, %v1197
        %v1201 = vsub.f32 %v1191, %v1197
        %v1202 = vmul.f32 %v1198, 1.442695
        %v1203 = vpow.pop %v1202
        %v1204 = vmul.f32 %v1199, 1.442695
        %v1205 = vpow.pop %v1204
        %v1206 = vmul.f32 %v1200, 1.442695
        %v1207 = vpow.pop %v1206
        %v1208 = vmul.f32 %v1201, 1.442695
        %v1209 = vpow.pop %v1208
        %v1210 = vadd.f32 %v1203, %v1205
        %1211 = vadd.xlane.f32.xlu0 %v1210
        %v1212 = vpop.xlane.xlu0 %1211
        %v1213 = vadd.f32 %v1207, %v1209
        %1214 = vadd.xlane.f32.xlu0 %v1213
        %v1215 = vpop.xlane.xlu0 %1214
        %v1216 = vrcp.pop %v1212
        %v1217 = vmul.f32 %v1203, %v1216
        %v1218 = vmul.f32 %v1205, %v1216
        %v1219 = vrcp.pop %v1215
        %v1220 = vmul.f32 %v1207, %v1219
        %v1221 = vmul.f32 %v1209, %v1219
        %v1222 = vpack.c.bf16 %v1220, %v1217
        %v1223 = vpack.c.bf16 %v1221, %v1218
        %1240 = vrot.lane.b32.xlu0 %v1078, 96
        %v1241 = vpop.permute.xlu0 %1240
        %1242 = vrot.lane.b32.xlu0 %v1079, 96
        %v1243 = vpop.permute.xlu0 %1242
        %1244 = vrot.lane.b32.xlu0 %v1080, 96
        %v1245 = vpop.permute.xlu0 %1244
        %1246 = vrot.lane.b32.xlu0 %v1081, 96
        %v1247 = vpop.permute.xlu0 %1246
        %1248 = vrot.lane.b32.xlu0 %v1082, 96
        %v1249 = vpop.permute.xlu0 %1248
        %1250 = vrot.lane.b32.xlu0 %v1083, 96
        %v1251 = vpop.permute.xlu0 %1250
        %1252 = vrot.lane.b32.xlu0 %v1084, 96
        %v1253 = vpop.permute.xlu0 %1252
        %1254 = vrot.lane.b32.xlu0 %v1085, 96
        %v1255 = vpop.permute.xlu0 %1254
        %1256 = vrot.lane.b32.xlu0 %v1086, 96
        %v1257 = vpop.permute.xlu0 %1256
        %1258 = vrot.lane.b32.xlu0 %v1087, 96
        %v1259 = vpop.permute.xlu0 %1258
        %1260 = vrot.lane.b32.xlu0 %v1088, 96
        %v1261 = vpop.permute.xlu0 %1260
        %1262 = vrot.lane.b32.xlu0 %v1089, 96
        %v1263 = vpop.permute.xlu0 %1262
        %1264 = vrot.lane.b32.xlu0 %v1090, 96
        %v1265 = vpop.permute.xlu0 %1264
        %1266 = vrot.lane.b32.xlu0 %v1091, 96
        %v1267 = vpop.permute.xlu0 %1266
        %1268 = vrot.lane.b32.xlu0 %v1092, 96
        %v1269 = vpop.permute.xlu0 %1268
        %1270 = vrot.lane.b32.xlu0 %v1093, 96
        %v1271 = vpop.permute.xlu0 %1270
        %1288 = vmatprep.subr.bf16.mxu0 0
        %1289 = vmatpush1.bf16.msra.mxu0 %v1241
        %1290 = vmatprep.subr.bf16.mxu0 0
        %1291 = vmatpush1.bf16.msra.mxu0 %v1243
        %1292 = vmatprep.subr.bf16.mxu0 0
        %1293 = vmatpush1.bf16.msra.mxu0 %v1245
        %1294 = vmatprep.subr.bf16.mxu0 0
        %1295 = vmatpush1.bf16.msra.mxu0 %v1247
        %1296 = vmatprep.subr.bf16.mxu0 0
        %1297 = vmatpush1.bf16.msra.mxu0 %v1249
        %1298 = vmatprep.subr.bf16.mxu0 0
        %1299 = vmatpush1.bf16.msra.mxu0 %v1251
        %1300 = vmatprep.subr.bf16.mxu0 0
        %1301 = vmatpush1.bf16.msra.mxu0 %v1253
        %1302 = vmatprep.subr.bf16.mxu0 0
        %1303 = vmatpush1.bf16.msra.mxu0 %v1255
        %1304 = vmatprep.subr.bf16.mxu0 0
        %1305 = vmatpush1.bf16.msra.mxu0 %v1257
        %1306 = vmatprep.subr.bf16.mxu0 0
        %1307 = vmatpush1.bf16.msra.mxu0 %v1259
        %1308 = vmatprep.subr.bf16.mxu0 0
        %1309 = vmatpush1.bf16.msra.mxu0 %v1261
        %1310 = vmatprep.subr.bf16.mxu0 0
        %1311 = vmatpush1.bf16.msra.mxu0 %v1263
        %1312 = vmatprep.subr.bf16.mxu0 0
        %1313 = vmatpush1.bf16.msra.mxu0 %v1265
        %1314 = vmatprep.subr.bf16.mxu0 0
        %1315 = vmatpush1.bf16.msra.mxu0 %v1267
        %1316 = vmatprep.subr.bf16.mxu0 0
        %1317 = vmatpush1.bf16.msra.mxu0 %v1269
        %1318 = vmatprep.subr.bf16.mxu0 0
        %1319 = vmatpush1.bf16.msra.mxu0 %v1271
        %1320 = vmatprep.mubr.bf16.mxu0 %v1223
        %1321 = vmatmul.mubr.bf16.gmra.mrb[0].mxu0 %v1222
        %v1322 = vpop.f32.mrb[0].mxu0
        %v1323 = vadd.f32 0.0, %v1322
        %v1324 = vpop.f32.mrb[0].mxu0
        %v1325 = vpop.f32.mrb[0].mxu0
        %v1326 = vadd.f32 0.0, %v1325
        %v1327 = vpop.f32.mrb[0].mxu0
        %1328 = vdwg.mxu0
        %v1329 = vadd.f32 %v740, %v1323
        %v1330 = vadd.f32 %v741, %v1326
        %v1331 = vld [vmem:[%s5] sm:$0xf]
        %v1332 = vld [vmem:[%s5 + $0x4] sm:$0xf]
        %v1333 = vld [vmem:[%s5 + $0x8] sm:$0xf]
        %v1334 = vld [vmem:[%s5 + $0xc] sm:$0xf]
        %v1339 = vunpack.c.l.b16 %v1331
        %v1340 = vunpack.c.l.b16 %v1332
        %v1341 = vunpack.c.l.b16 %v1333
        %v1342 = vunpack.c.l.b16 %v1334
        %v1343 = vpack.c.b16 %v1340, %v1339
        %v1344 = vpack.c.b16 %v1342, %v1341
        %1347 = vmatprep.subr.bf16.mxu0 0
        %1348 = vmatpush1.bf16.msra.mxu0 %v1343
        %1349 = vmatprep.subr.bf16.mxu0 0
        %1350 = vmatpush1.bf16.msra.mxu0 %v1344
        %1351 = vmatprep.subr.bf16.mxu0 0
        %1352 = vmatpush1.bf16.msra.mxu0 0
        %1353 = vmatprep.subr.bf16.mxu0 0
        %1354 = vmatpush1.bf16.msra.mxu0 0
        %1355 = vmatprep.subr.bf16.mxu0 0
        %1356 = vmatpush1.bf16.msra.mxu0 0
        %1357 = vmatprep.subr.bf16.mxu0 0
        %1358 = vmatpush1.bf16.msra.mxu0 0
        %1359 = vmatprep.subr.bf16.mxu0 0
        %1360 = vmatpush1.bf16.msra.mxu0 0
        %1361 = vmatprep.subr.bf16.mxu0 0
        %1362 = vmatpush1.bf16.msra.mxu0 0
        %1363 = vmatprep.subr.bf16.mxu0 0
        %1364 = vmatpush1.bf16.msra.mxu0 0
        %1365 = vmatprep.subr.bf16.mxu0 0
        %1366 = vmatpush1.bf16.msra.mxu0 0
        %1367 = vmatprep.subr.bf16.mxu0 0
        %1368 = vmatpush1.bf16.msra.mxu0 0
        %1369 = vmatprep.subr.bf16.mxu0 0
        %1370 = vmatpush1.bf16.msra.mxu0 0
        %1371 = vmatprep.subr.bf16.mxu0 0
        %1372 = vmatpush1.bf16.msra.mxu0 0
        %1373 = vmatprep.subr.bf16.mxu0 0
        %1374 = vmatpush1.bf16.msra.mxu0 0
        %1375 = vmatprep.subr.bf16.mxu0 0
        %1376 = vmatpush1.bf16.msra.mxu0 0
        %1377 = vmatprep.subr.bf16.mxu0 0
        %1378 = vmatpush1.bf16.msra.mxu0 0
        %1379 = vmatprep.mubr.bf16.mxu0 0
        %1380 = vmatmul.mubr.bf16.gmra.mrb[0].mxu0 %v869
        %v1381 = vpop.f32.mrb[0].mxu0
        %v1382 = vadd.f32 0.0, %v1381
        %v1383 = vpop.f32.mrb[0].mxu0
        %v1384 = vpop.f32.mrb[0].mxu0
        %v1385 = vadd.f32 0.0, %v1384
        %v1386 = vpop.f32.mrb[0].mxu0
        %1387 = vmatprep.mubr.bf16.mxu0 0
        %1388 = vmatmul.mubr.bf16.gmra.mrb[0].mxu0 %v872
        %v1389 = vpop.f32.mrb[0].mxu0
        %v1390 = vadd.f32 0.0, %v1389
        %v1391 = vpop.f32.mrb[0].mxu0
        %v1392 = vpop.f32.mrb[0].mxu0
        %v1393 = vadd.f32 0.0, %v1392
        %v1394 = vpop.f32.mrb[0].mxu0
        %1395 = vmatprep.mubr.bf16.mxu0 0
        %1396 = vmatmul.mubr.bf16.gmra.mrb[0].mxu0 %v875
        %v1397 = vpop.f32.mrb[0].mxu0
        %v1398 = vadd.f32 0.0, %v1397
        %v1399 = vpop.f32.mrb[0].mxu0
        %v1400 = vpop.f32.mrb[0].mxu0
        %v1401 = vadd.f32 0.0, %v1400
        %v1402 = vpop.f32.mrb[0].mxu0
        %1403 = vmatprep.mubr.bf16.mxu0 0
        %1404 = vmatmul.mubr.bf16.gmra.mrb[0].mxu0 %v878
        %v1405 = vpop.f32.mrb[0].mxu0
        %v1406 = vadd.f32 0.0, %v1405
        %v1407 = vpop.f32.mrb[0].mxu0
        %v1408 = vpop.f32.mrb[0].mxu0
        %v1409 = vadd.f32 0.0, %v1408
        %v1410 = vpop.f32.mrb[0].mxu0
        %1411 = vmatprep.mubr.bf16.mxu0 0
        %1412 = vmatmul.mubr.bf16.gmra.mrb[0].mxu0 %v881
        %v1413 = vpop.f32.mrb[0].mxu0
        %v1414 = vadd.f32 0.0, %v1413
        %v1415 = vpop.f32.mrb[0].mxu0
        %v1416 = vpop.f32.mrb[0].mxu0
        %v1417 = vadd.f32 0.0, %v1416
        %v1418 = vpop.f32.mrb[0].mxu0
        %1419 = vmatprep.mubr.bf16.mxu0 0
        %1420 = vmatmul.mubr.bf16.gmra.mrb[0].mxu0 %v884
        %v1421 = vpop.f32.mrb[0].mxu0
        %v1422 = vadd.f32 0.0, %v1421
        %v1423 = vpop.f32.mrb[0].mxu0
        %v1424 = vpop.f32.mrb[0].mxu0
        %v1425 = vadd.f32 0.0, %v1424
        %v1426 = vpop.f32.mrb[0].mxu0
        %1427 = vmatprep.mubr.bf16.mxu0 0
        %1428 = vmatmul.mubr.bf16.gmra.mrb[0].mxu0 %v887
        %v1429 = vpop.f32.mrb[0].mxu0
        %v1430 = vadd.f32 0.0, %v1429
        %v1431 = vpop.f32.mrb[0].mxu0
        %v1432 = vpop.f32.mrb[0].mxu0
        %v1433 = vadd.f32 0.0, %v1432
        %v1434 = vpop.f32.mrb[0].mxu0
        %1435 = vmatprep.mubr.bf16.mxu0 0
        %1436 = vmatmul.mubr.bf16.gmra.mrb[0].mxu0 %v890
        %v1437 = vpop.f32.mrb[0].mxu0
        %v1438 = vadd.f32 0.0, %v1437
        %v1439 = vpop.f32.mrb[0].mxu0
        %v1440 = vpop.f32.mrb[0].mxu0
        %v1441 = vadd.f32 0.0, %v1440
        %v1442 = vpop.f32.mrb[0].mxu0
        %1443 = vmatprep.mubr.bf16.mxu0 0
        %1444 = vmatmul.mubr.bf16.gmra.mrb[0].mxu0 %v893
        %v1445 = vpop.f32.mrb[0].mxu0
        %v1446 = vadd.f32 0.0, %v1445
        %v1447 = vpop.f32.mrb[0].mxu0
        %v1448 = vpop.f32.mrb[0].mxu0
        %v1449 = vadd.f32 0.0, %v1448
        %v1450 = vpop.f32.mrb[0].mxu0
        %1451 = vmatprep.mubr.bf16.mxu0 0
        %1452 = vmatmul.mubr.bf16.gmra.mrb[0].mxu0 %v896
        %v1453 = vpop.f32.mrb[0].mxu0
        %v1454 = vadd.f32 0.0, %v1453
        %v1455 = vpop.f32.mrb[0].mxu0
        %v1456 = vpop.f32.mrb[0].mxu0
        %v1457 = vadd.f32 0.0, %v1456
        %v1458 = vpop.f32.mrb[0].mxu0
        %1459 = vmatprep.mubr.bf16.mxu0 0
        %1460 = vmatmul.mubr.bf16.gmra.mrb[0].mxu0 %v899
        %v1461 = vpop.f32.mrb[0].mxu0
        %v1462 = vadd.f32 0.0, %v1461
        %v1463 = vpop.f32.mrb[0].mxu0
        %v1464 = vpop.f32.mrb[0].mxu0
        %v1465 = vadd.f32 0.0, %v1464
        %v1466 = vpop.f32.mrb[0].mxu0
        %1467 = vmatprep.mubr.bf16.mxu0 0
        %1468 = vmatmul.mubr.bf16.gmra.mrb[0].mxu0 %v902
        %v1469 = vpop.f32.mrb[0].mxu0
        %v1470 = vadd.f32 0.0, %v1469
        %v1471 = vpop.f32.mrb[0].mxu0
        %v1472 = vpop.f32.mrb[0].mxu0
        %v1473 = vadd.f32 0.0, %v1472
        %v1474 = vpop.f32.mrb[0].mxu0
        %1475 = vmatprep.mubr.bf16.mxu0 0
        %1476 = vmatmul.mubr.bf16.gmra.mrb[0].mxu0 %v905
        %v1477 = vpop.f32.mrb[0].mxu0
        %v1478 = vadd.f32 0.0, %v1477
        %v1479 = vpop.f32.mrb[0].mxu0
        %v1480 = vpop.f32.mrb[0].mxu0
        %v1481 = vadd.f32 0.0, %v1480
        %v1482 = vpop.f32.mrb[0].mxu0
        %1483 = vmatprep.mubr.bf16.mxu0 0
        %1484 = vmatmul.mubr.bf16.gmra.mrb[0].mxu0 %v908
        %v1485 = vpop.f32.mrb[0].mxu0
        %v1486 = vadd.f32 0.0, %v1485
        %v1487 = vpop.f32.mrb[0].mxu0
        %v1488 = vpop.f32.mrb[0].mxu0
        %v1489 = vadd.f32 0.0, %v1488
        %v1490 = vpop.f32.mrb[0].mxu0
        %1491 = vmatprep.mubr.bf16.mxu0 0
        %1492 = vmatmul.mubr.bf16.gmra.mrb[0].mxu0 %v911
        %v1493 = vpop.f32.mrb[0].mxu0
        %v1494 = vadd.f32 0.0, %v1493
        %v1495 = vpop.f32.mrb[0].mxu0
        %v1496 = vpop.f32.mrb[0].mxu0
        %v1497 = vadd.f32 0.0, %v1496
        %v1498 = vpop.f32.mrb[0].mxu0
        %1499 = vmatprep.mubr.bf16.mxu0 0
        %1500 = vmatmul.mubr.bf16.gmra.mrb[0].mxu0 %v914
        %v1501 = vpop.f32.mrb[0].mxu0
        %v1502 = vadd.f32 0.0, %v1501
        %v1503 = vpop.f32.mrb[0].mxu0
        %v1504 = vpop.f32.mrb[0].mxu0
        %v1505 = vadd.f32 0.0, %v1504
        %v1506 = vpop.f32.mrb[0].mxu0
        %1507 = vdwg.mxu0
        %v1508 = vld [vmem:[%s6] sm:$0xf]
        %v1509 = vld [vmem:[%s6 + $0x4] sm:$0xf]
        %v1510 = vld [vmem:[%s6 + $0x8] sm:$0xf]
        %v1511 = vld [vmem:[%s6 + $0xc] sm:$0xf]
        %v1512 = vpack.c.bf16 %v1330, %v1329
        %v1517 = vunpack.c.l.b16 %v1508
        %v1518 = vunpack.c.l.b16 %v1509
        %v1519 = vunpack.c.l.b16 %v1510
        %v1520 = vunpack.c.l.b16 %v1511
        %v1521 = vpack.c.b16 %v1518, %v1517
        %v1522 = vpack.c.b16 %v1520, %v1519
        %v1526 = vsel %vm791, %v1512, 0
        %1528 = vmatprep.subr.bf16.mxu0 0
        %1529 = vmatpush1.bf16.msra.mxu0 %v1521
        %1530 = vmatprep.subr.bf16.mxu0 0
        %1531 = vmatpush1.bf16.msra.mxu0 %v1522
        %1532 = vmatprep.subr.bf16.mxu0 0
        %1533 = vmatpush1.bf16.msra.mxu0 0
        %1534 = vmatprep.subr.bf16.mxu0 0
        %1535 = vmatpush1.bf16.msra.mxu0 0
        %1536 = vmatprep.subr.bf16.mxu0 0
        %1537 = vmatpush1.bf16.msra.mxu0 0
        %1538 = vmatprep.subr.bf16.mxu0 0
        %1539 = vmatpush1.bf16.msra.mxu0 0
        %1540 = vmatprep.subr.bf16.mxu0 0
        %1541 = vmatpush1.bf16.msra.mxu0 0
        %1542 = vmatprep.subr.bf16.mxu0 0
        %1543 = vmatpush1.bf16.msra.mxu0 0
        %1544 = vmatprep.subr.bf16.mxu0 0
        %1545 = vmatpush1.bf16.msra.mxu0 0
        %1546 = vmatprep.subr.bf16.mxu0 0
        %1547 = vmatpush1.bf16.msra.mxu0 0
        %1548 = vmatprep.subr.bf16.mxu0 0
        %1549 = vmatpush1.bf16.msra.mxu0 0
        %1550 = vmatprep.subr.bf16.mxu0 0
        %1551 = vmatpush1.bf16.msra.mxu0 0
        %1552 = vmatprep.subr.bf16.mxu0 0
        %1553 = vmatpush1.bf16.msra.mxu0 0
        %1554 = vmatprep.subr.bf16.mxu0 0
        %1555 = vmatpush1.bf16.msra.mxu0 0
        %1556 = vmatprep.subr.bf16.mxu0 0
        %1557 = vmatpush1.bf16.msra.mxu0 0
        %1558 = vmatprep.subr.bf16.mxu0 0
        %1559 = vmatpush1.bf16.msra.mxu0 0
        %1560 = vmatprep.mubr.bf16.mxu0 0
        %1561 = vmatmul.mubr.bf16.gmra.mrb[0].mxu0 %v1526
        %v1562 = vpop.f32.mrb[0].mxu0
        %v1563 = vadd.f32 0.0, %v1562
        %v1564 = vpop.f32.mrb[0].mxu0
        %v1565 = vpop.f32.mrb[0].mxu0
        %v1566 = vadd.f32 0.0, %v1565
        %v1567 = vpop.f32.mrb[0].mxu0
        %1568 = vdwg.mxu0
        %v1569 = vpack.c.bf16 %v1385, %v1382
        %v1570 = vpack.c.bf16 %v1393, %v1390
        %v1571 = vpack.c.bf16 %v1401, %v1398
        %v1572 = vpack.c.bf16 %v1409, %v1406
        %v1573 = vpack.c.bf16 %v1417, %v1414
        %v1574 = vpack.c.bf16 %v1425, %v1422
        %v1575 = vpack.c.bf16 %v1433, %v1430
        %v1576 = vpack.c.bf16 %v1441, %v1438
        %v1577 = vpack.c.bf16 %v1449, %v1446
        %v1578 = vpack.c.bf16 %v1457, %v1454
        %v1579 = vpack.c.bf16 %v1465, %v1462
        %v1580 = vpack.c.bf16 %v1473, %v1470
        %v1581 = vpack.c.bf16 %v1481, %v1478
        %v1582 = vpack.c.bf16 %v1489, %v1486
        %v1583 = vpack.c.bf16 %v1497, %v1494
        %v1584 = vpack.c.bf16 %v1505, %v1502
        %v1585 = vpack.c.bf16 %v1566, %v1563
        %v1587 = vsel %vm791, %v1569, 0
        %v1590 = vsel %vm791, %v1570, 0
        %v1593 = vsel %vm791, %v1571, 0
        %v1596 = vsel %vm791, %v1572, 0
        %v1599 = vsel %vm791, %v1573, 0
        %v1602 = vsel %vm791, %v1574, 0
        %v1605 = vsel %vm791, %v1575, 0
        %v1608 = vsel %vm791, %v1576, 0
        %v1611 = vsel %vm791, %v1577, 0
        %v1614 = vsel %vm791, %v1578, 0
        %v1617 = vsel %vm791, %v1579, 0
        %v1620 = vsel %vm791, %v1580, 0
        %v1623 = vsel %vm791, %v1581, 0
        %v1626 = vsel %vm791, %v1582, 0
        %v1629 = vsel %vm791, %v1583, 0
        %v1632 = vsel %vm791, %v1584, 0
        %v1635 = vsel %vm791, %v1585, 0
        %1637 = vmatprep.subr.bf16.mxu0 0
        %1638 = vmatpush1.bf16.xpose.msra.mxu0 %v1635
        %1639 = vmatprep.subr.bf16.mxu0 0
        %1640 = vmatpush1.bf16.xpose.msra.mxu0 0
        %1641 = vmatprep.subr.bf16.mxu0 0
        %1642 = vmatpush1.bf16.xpose.msra.mxu0 0
        %1643 = vmatprep.subr.bf16.mxu0 0
        %1644 = vmatpush1.bf16.xpose.msra.mxu0 0
        %1645 = vmatprep.subr.bf16.mxu0 0
        %1646 = vmatpush1.bf16.xpose.msra.mxu0 0
        %1647 = vmatprep.subr.bf16.mxu0 0
        %1648 = vmatpush1.bf16.xpose.msra.mxu0 0
        %1649 = vmatprep.subr.bf16.mxu0 0
        %1650 = vmatpush1.bf16.xpose.msra.mxu0 0
        %1651 = vmatprep.subr.bf16.mxu0 0
        %1652 = vmatpush1.bf16.xpose.msra.mxu0 0
        %1653 = vmatprep.subr.bf16.mxu0 0
        %1654 = vmatpush1.bf16.xpose.msra.mxu0 0
        %1655 = vmatprep.subr.bf16.mxu0 0
        %1656 = vmatpush1.bf16.xpose.msra.mxu0 0
        %1657 = vmatprep.subr.bf16.mxu0 0
        %1658 = vmatpush1.bf16.xpose.msra.mxu0 0
        %1659 = vmatprep.subr.bf16.mxu0 0
        %1660 = vmatpush1.bf16.xpose.msra.mxu0 0
        %1661 = vmatprep.subr.bf16.mxu0 0
        %1662 = vmatpush1.bf16.xpose.msra.mxu0 0
        %1663 = vmatprep.subr.bf16.mxu0 0
        %1664 = vmatpush1.bf16.xpose.msra.mxu0 0
        %1665 = vmatprep.subr.bf16.mxu0 0
        %1666 = vmatpush1.bf16.xpose.msra.mxu0 0
        %1667 = vmatprep.subr.bf16.mxu0 0
        %1668 = vmatpush1.bf16.xpose.msra.mxu0 0
        %1669 = vmatprep.mubr.bf16.mxu0 0
        %1670 = vmatmul.mubr.bf16.gmra.mrb[0].mxu0 %v1587
        %v1671 = vpop.f32.mrb[0].mxu0
        %v1672 = vadd.f32 0.0, %v1671
        %v1673 = vpop.f32.mrb[0].mxu0
        %v1674 = vpop.f32.mrb[0].mxu0
        %v1675 = vadd.f32 0.0, %v1674
        %v1676 = vpop.f32.mrb[0].mxu0
        %1677 = vmatprep.mubr.bf16.mxu0 0
        %1678 = vmatmul.mubr.bf16.gmra.mrb[0].mxu0 %v1590
        %v1679 = vpop.f32.mrb[0].mxu0
        %v1680 = vadd.f32 0.0, %v1679
        %v1681 = vpop.f32.mrb[0].mxu0
        %v1682 = vpop.f32.mrb[0].mxu0
        %v1683 = vadd.f32 0.0, %v1682
        %v1684 = vpop.f32.mrb[0].mxu0
        %1685 = vmatprep.mubr.bf16.mxu0 0
        %1686 = vmatmul.mubr.bf16.gmra.mrb[0].mxu0 %v1593
        %v1687 = vpop.f32.mrb[0].mxu0
        %v1688 = vadd.f32 0.0, %v1687
        %v1689 = vpop.f32.mrb[0].mxu0
        %v1690 = vpop.f32.mrb[0].mxu0
        %v1691 = vadd.f32 0.0, %v1690
        %v1692 = vpop.f32.mrb[0].mxu0
        %1693 = vmatprep.mubr.bf16.mxu0 0
        %1694 = vmatmul.mubr.bf16.gmra.mrb[0].mxu0 %v1596
        %v1695 = vpop.f32.mrb[0].mxu0
        %v1696 = vadd.f32 0.0, %v1695
        %v1697 = vpop.f32.mrb[0].mxu0
        %v1698 = vpop.f32.mrb[0].mxu0
        %v1699 = vadd.f32 0.0, %v1698
        %v1700 = vpop.f32.mrb[0].mxu0
        %1701 = vmatprep.mubr.bf16.mxu0 0
        %1702 = vmatmul.mubr.bf16.gmra.mrb[0].mxu0 %v1599
        %v1703 = vpop.f32.mrb[0].mxu0
        %v1704 = vadd.f32 0.0, %v1703
        %v1705 = vpop.f32.mrb[0].mxu0
        %v1706 = vpop.f32.mrb[0].mxu0
        %v1707 = vadd.f32 0.0, %v1706
        %v1708 = vpop.f32.mrb[0].mxu0
        %1709 = vmatprep.mubr.bf16.mxu0 0
        %1710 = vmatmul.mubr.bf16.gmra.mrb[0].mxu0 %v1602
        %v1711 = vpop.f32.mrb[0].mxu0
        %v1712 = vadd.f32 0.0, %v1711
        %v1713 = vpop.f32.mrb[0].mxu0
        %v1714 = vpop.f32.mrb[0].mxu0
        %v1715 = vadd.f32 0.0, %v1714
        %v1716 = vpop.f32.mrb[0].mxu0
        %1717 = vmatprep.mubr.bf16.mxu0 0
        %1718 = vmatmul.mubr.bf16.gmra.mrb[0].mxu0 %v1605
        %v1719 = vpop.f32.mrb[0].mxu0
        %v1720 = vadd.f32 0.0, %v1719
        %v1721 = vpop.f32.mrb[0].mxu0
        %v1722 = vpop.f32.mrb[0].mxu0
        %v1723 = vadd.f32 0.0, %v1722
        %v1724 = vpop.f32.mrb[0].mxu0
        %1725 = vmatprep.mubr.bf16.mxu0 0
        %1726 = vmatmul.mubr.bf16.gmra.mrb[0].mxu0 %v1608
        %v1727 = vpop.f32.mrb[0].mxu0
        %v1728 = vadd.f32 0.0, %v1727
        %v1729 = vpop.f32.mrb[0].mxu0
        %v1730 = vpop.f32.mrb[0].mxu0
        %v1731 = vadd.f32 0.0, %v1730
        %v1732 = vpop.f32.mrb[0].mxu0
        %1733 = vmatprep.mubr.bf16.mxu0 0
        %1734 = vmatmul.mubr.bf16.gmra.mrb[0].mxu0 %v1611
        %v1735 = vpop.f32.mrb[0].mxu0
        %v1736 = vadd.f32 0.0, %v1735
        %v1737 = vpop.f32.mrb[0].mxu0
        %v1738 = vpop.f32.mrb[0].mxu0
        %v1739 = vadd.f32 0.0, %v1738
        %v1740 = vpop.f32.mrb[0].mxu0
        %1741 = vmatprep.mubr.bf16.mxu0 0
        %1742 = vmatmul.mubr.bf16.gmra.mrb[0].mxu0 %v1614
        %v1743 = vpop.f32.mrb[0].mxu0
        %v1744 = vadd.f32 0.0, %v1743
        %v1745 = vpop.f32.mrb[0].mxu0
        %v1746 = vpop.f32.mrb[0].mxu0
        %v1747 = vadd.f32 0.0, %v1746
        %v1748 = vpop.f32.mrb[0].mxu0
        %1749 = vmatprep.mubr.bf16.mxu0 0
        %1750 = vmatmul.mubr.bf16.gmra.mrb[0].mxu0 %v1617
        %v1751 = vpop.f32.mrb[0].mxu0
        %v1752 = vadd.f32 0.0, %v1751
        %v1753 = vpop.f32.mrb[0].mxu0
        %v1754 = vpop.f32.mrb[0].mxu0
        %v1755 = vadd.f32 0.0, %v1754
        %v1756 = vpop.f32.mrb[0].mxu0
        %1757 = vmatprep.mubr.bf16.mxu0 0
        %1758 = vmatmul.mubr.bf16.gmra.mrb[0].mxu0 %v1620
        %v1759 = vpop.f32.mrb[0].mxu0
        %v1760 = vadd.f32 0.0, %v1759
        %v1761 = vpop.f32.mrb[0].mxu0
        %v1762 = vpop.f32.mrb[0].mxu0
        %v1763 = vadd.f32 0.0, %v1762
        %v1764 = vpop.f32.mrb[0].mxu0
        %1765 = vmatprep.mubr.bf16.mxu0 0
        %1766 = vmatmul.mubr.bf16.gmra.mrb[0].mxu0 %v1623
        %v1767 = vpop.f32.mrb[0].mxu0
        %v1768 = vadd.f32 0.0, %v1767
        %v1769 = vpop.f32.mrb[0].mxu0
        %v1770 = vpop.f32.mrb[0].mxu0
        %v1771 = vadd.f32 0.0, %v1770
        %v1772 = vpop.f32.mrb[0].mxu0
        %1773 = vmatprep.mubr.bf16.mxu0 0
        %1774 = vmatmul.mubr.bf16.gmra.mrb[0].mxu0 %v1626
        %v1775 = vpop.f32.mrb[0].mxu0
        %v1776 = vadd.f32 0.0, %v1775
        %v1777 = vpop.f32.mrb[0].mxu0
        %v1778 = vpop.f32.mrb[0].mxu0
        %v1779 = vadd.f32 0.0, %v1778
        %v1780 = vpop.f32.mrb[0].mxu0
        %1781 = vmatprep.mubr.bf16.mxu0 0
        %1782 = vmatmul.mubr.bf16.gmra.mrb[0].mxu0 %v1629
        %v1783 = vpop.f32.mrb[0].mxu0
        %v1784 = vadd.f32 0.0, %v1783
        %v1785 = vpop.f32.mrb[0].mxu0
        %v1786 = vpop.f32.mrb[0].mxu0
        %v1787 = vadd.f32 0.0, %v1786
        %v1788 = vpop.f32.mrb[0].mxu0
        %1789 = vmatprep.mubr.bf16.mxu0 0
        %1790 = vmatmul.mubr.bf16.gmra.mrb[0].mxu0 %v1632
        %v1791 = vpop.f32.mrb[0].mxu0
        %v1792 = vadd.f32 0.0, %v1791
        %v1793 = vpop.f32.mrb[0].mxu0
        %v1794 = vpop.f32.mrb[0].mxu0
        %v1795 = vadd.f32 0.0, %v1794
        %v1796 = vpop.f32.mrb[0].mxu0
        %1797 = vdwg.mxu0
        %v1798 = vmul.f32 %v1672, 0.17677669
        %v1799 = vmul.f32 %v1675, 0.17677669
        %v1800 = vmul.f32 %v1680, 0.17677669
        %v1801 = vmul.f32 %v1683, 0.17677669
        %v1802 = vmul.f32 %v1688, 0.17677669
        %v1803 = vmul.f32 %v1691, 0.17677669
        %v1804 = vmul.f32 %v1696, 0.17677669
        %v1805 = vmul.f32 %v1699, 0.17677669
        %v1806 = vmul.f32 %v1704, 0.17677669
        %v1807 = vmul.f32 %v1707, 0.17677669
        %v1808 = vmul.f32 %v1712, 0.17677669
        %v1809 = vmul.f32 %v1715, 0.17677669
        %v1810 = vmul.f32 %v1720, 0.17677669
        %v1811 = vmul.f32 %v1723, 0.17677669
        %v1812 = vmul.f32 %v1728, 0.17677669
        %v1813 = vmul.f32 %v1731, 0.17677669
        %v1814 = vmul.f32 %v1736, 0.17677669
        %v1815 = vmul.f32 %v1739, 0.17677669
        %v1816 = vmul.f32 %v1744, 0.17677669
        %v1817 = vmul.f32 %v1747, 0.17677669
        %v1818 = vmul.f32 %v1752, 0.17677669
        %v1819 = vmul.f32 %v1755, 0.17677669
        %v1820 = vmul.f32 %v1760, 0.17677669
        %v1821 = vmul.f32 %v1763, 0.17677669
        %v1822 = vmul.f32 %v1768, 0.17677669
        %v1823 = vmul.f32 %v1771, 0.17677669
        %v1824 = vmul.f32 %v1776, 0.17677669
        %v1825 = vmul.f32 %v1779, 0.17677669
        %v1826 = vmul.f32 %v1784, 0.17677669
        %v1827 = vmul.f32 %v1787, 0.17677669
        %v1828 = vmul.f32 %v1792, 0.17677669
        %v1829 = vmul.f32 %v1795, 0.17677669
        %vm1830 = vcmask 130048
        %v1831 = vsel %vm1830, %v1798, -inf
        %1832 = vmax.xlane.f32.xlu0 %v1831
        %v1833 = vpop.xlane.xlu0 %1832
        %v1834 = vsel %vm1830, %v1799, -inf
        %1835 = vmax.xlane.f32.xlu0 %v1834
        %v1836 = vpop.xlane.xlu0 %1835
        %v1837 = vsel %vm1830, %v1800, -inf
        %1838 = vmax.xlane.f32.xlu0 %v1837
        %v1839 = vpop.xlane.xlu0 %1838
        %v1840 = vsel %vm1830, %v1801, -inf
        %1841 = vmax.xlane.f32.xlu0 %v1840
        %v1842 = vpop.xlane.xlu0 %1841
        %v1843 = vsel %vm1830, %v1802, -inf
        %1844 = vmax.xlane.f32.xlu0 %v1843
        %v1845 = vpop.xlane.xlu0 %1844
        %v1846 = vsel %vm1830, %v1803, -inf
        %1847 = vmax.xlane.f32.xlu0 %v1846
        %v1848 = vpop.xlane.xlu0 %1847
        %v1849 = vsel %vm1830, %v1804, -inf
        %1850 = vmax.xlane.f32.xlu0 %v1849
        %v1851 = vpop.xlane.xlu0 %1850
        %v1852 = vsel %vm1830, %v1805, -inf
        %1853 = vmax.xlane.f32.xlu0 %v1852
        %v1854 = vpop.xlane.xlu0 %1853
        %v1855 = vsel %vm1830, %v1806, -inf
        %1856 = vmax.xlane.f32.xlu0 %v1855
        %v1857 = vpop.xlane.xlu0 %1856
        %v1858 = vsel %vm1830, %v1807, -inf
        %1859 = vmax.xlane.f32.xlu0 %v1858
        %v1860 = vpop.xlane.xlu0 %1859
        %v1861 = vsel %vm1830, %v1808, -inf
        %1862 = vmax.xlane.f32.xlu0 %v1861
        %v1863 = vpop.xlane.xlu0 %1862
        %v1864 = vsel %vm1830, %v1809, -inf
        %1865 = vmax.xlane.f32.xlu0 %v1864
        %v1866 = vpop.xlane.xlu0 %1865
        %v1867 = vsel %vm1830, %v1810, -inf
        %1868 = vmax.xlane.f32.xlu0 %v1867
        %v1869 = vpop.xlane.xlu0 %1868
        %v1870 = vsel %vm1830, %v1811, -inf
        %1871 = vmax.xlane.f32.xlu0 %v1870
        %v1872 = vpop.xlane.xlu0 %1871
        %v1873 = vsel %vm1830, %v1812, -inf
        %1874 = vmax.xlane.f32.xlu0 %v1873
        %v1875 = vpop.xlane.xlu0 %1874
        %v1876 = vsel %vm1830, %v1813, -inf
        %1877 = vmax.xlane.f32.xlu0 %v1876
        %v1878 = vpop.xlane.xlu0 %1877
        %v1879 = vsel %vm1830, %v1814, -inf
        %1880 = vmax.xlane.f32.xlu0 %v1879
        %v1881 = vpop.xlane.xlu0 %1880
        %v1882 = vsel %vm1830, %v1815, -inf
        %1883 = vmax.xlane.f32.xlu0 %v1882
        %v1884 = vpop.xlane.xlu0 %1883
        %v1885 = vsel %vm1830, %v1816, -inf
        %1886 = vmax.xlane.f32.xlu0 %v1885
        %v1887 = vpop.xlane.xlu0 %1886
        %v1888 = vsel %vm1830, %v1817, -inf
        %1889 = vmax.xlane.f32.xlu0 %v1888
        %v1890 = vpop.xlane.xlu0 %1889
        %v1891 = vsel %vm1830, %v1818, -inf
        %1892 = vmax.xlane.f32.xlu0 %v1891
        %v1893 = vpop.xlane.xlu0 %1892
        %v1894 = vsel %vm1830, %v1819, -inf
        %1895 = vmax.xlane.f32.xlu0 %v1894
        %v1896 = vpop.xlane.xlu0 %1895
        %v1897 = vsel %vm1830, %v1820, -inf
        %1898 = vmax.xlane.f32.xlu0 %v1897
        %v1899 = vpop.xlane.xlu0 %1898
        %v1900 = vsel %vm1830, %v1821, -inf
        %1901 = vmax.xlane.f32.xlu0 %v1900
        %v1902 = vpop.xlane.xlu0 %1901
        %v1903 = vsel %vm1830, %v1822, -inf
        %1904 = vmax.xlane.f32.xlu0 %v1903
        %v1905 = vpop.xlane.xlu0 %1904
        %v1906 = vsel %vm1830, %v1823, -inf
        %1907 = vmax.xlane.f32.xlu0 %v1906
        %v1908 = vpop.xlane.xlu0 %1907
        %v1909 = vsel %vm1830, %v1824, -inf
        %1910 = vmax.xlane.f32.xlu0 %v1909
        %v1911 = vpop.xlane.xlu0 %1910
        %v1912 = vsel %vm1830, %v1825, -inf
        %1913 = vmax.xlane.f32.xlu0 %v1912
        %v1914 = vpop.xlane.xlu0 %1913
        %v1915 = vsel %vm1830, %v1826, -inf
        %1916 = vmax.xlane.f32.xlu0 %v1915
        %v1917 = vpop.xlane.xlu0 %1916
        %v1918 = vsel %vm1830, %v1827, -inf
        %1919 = vmax.xlane.f32.xlu0 %v1918
        %v1920 = vpop.xlane.xlu0 %1919
        %v1921 = vsel %vm1830, %v1828, -inf
        %1922 = vmax.xlane.f32.xlu0 %v1921
        %v1923 = vpop.xlane.xlu0 %1922
        %v1924 = vsel %vm1830, %v1829, -inf
        %1925 = vmax.xlane.f32.xlu0 %v1924
        %v1926 = vpop.xlane.xlu0 %1925
        %v1927 = vsub.f32 %v1798, %v1833
        %v1928 = vsub.f32 %v1799, %v1836
        %v1929 = vsub.f32 %v1800, %v1839
        %v1930 = vsub.f32 %v1801, %v1842
        %v1931 = vsub.f32 %v1802, %v1845
        %v1932 = vsub.f32 %v1803, %v1848
        %v1933 = vsub.f32 %v1804, %v1851
        %v1934 = vsub.f32 %v1805, %v1854
        %v1935 = vsub.f32 %v1806, %v1857
        %v1936 = vsub.f32 %v1807, %v1860
        %v1937 = vsub.f32 %v1808, %v1863
        %v1938 = vsub.f32 %v1809, %v1866
        %v1939 = vsub.f32 %v1810, %v1869
        %v1940 = vsub.f32 %v1811, %v1872
        %v1941 = vsub.f32 %v1812, %v1875
        %v1942 = vsub.f32 %v1813, %v1878
        %v1943 = vsub.f32 %v1814, %v1881
        %v1944 = vsub.f32 %v1815, %v1884
        %v1945 = vsub.f32 %v1816, %v1887
        %v1946 = vsub.f32 %v1817, %v1890
        %v1947 = vsub.f32 %v1818, %v1893
        %v1948 = vsub.f32 %v1819, %v1896
        %v1949 = vsub.f32 %v1820, %v1899
        %v1950 = vsub.f32 %v1821, %v1902
        %v1951 = vsub.f32 %v1822, %v1905
        %v1952 = vsub.f32 %v1823, %v1908
        %v1953 = vsub.f32 %v1824, %v1911
        %v1954 = vsub.f32 %v1825, %v1914
        %v1955 = vsub.f32 %v1826, %v1917
        %v1956 = vsub.f32 %v1827, %v1920
        %v1957 = vsub.f32 %v1828, %v1923
        %v1958 = vsub.f32 %v1829, %v1926
        %v1959 = vmul.f32 %v1927, 1.442695
        %v1960 = vpow.pop %v1959
        %v1961 = vmul.f32 %v1928, 1.442695
        %v1962 = vpow.pop %v1961
        %v1963 = vmul.f32 %v1929, 1.442695
        %v1964 = vpow.pop %v1963
        %v1965 = vmul.f32 %v1930, 1.442695
        %v1966 = vpow.pop %v1965
        %v1967 = vmul.f32 %v1931, 1.442695
        %v1968 = vpow.pop %v1967
        %v1969 = vmul.f32 %v1932, 1.442695
        %v1970 = vpow.pop %v1969
        %v1971 = vmul.f32 %v1933, 1.442695
        %v1972 = vpow.pop %v1971
        %v1973 = vmul.f32 %v1934, 1.442695
        %v1974 = vpow.pop %v1973
        %v1975 = vmul.f32 %v1935, 1.442695
        %v1976 = vpow.pop %v1975
        %v1977 = vmul.f32 %v1936, 1.442695
        %v1978 = vpow.pop %v1977
        %v1979 = vmul.f32 %v1937, 1.442695
        %v1980 = vpow.pop %v1979
        %v1981 = vmul.f32 %v1938, 1.442695
        %v1982 = vpow.pop %v1981
        %v1983 = vmul.f32 %v1939, 1.442695
        %v1984 = vpow.pop %v1983
        %v1985 = vmul.f32 %v1940, 1.442695
        %v1986 = vpow.pop %v1985
        %v1987 = vmul.f32 %v1941, 1.442695
        %v1988 = vpow.pop %v1987
        %v1989 = vmul.f32 %v1942, 1.442695
        %v1990 = vpow.pop %v1989
        %v1991 = vmul.f32 %v1943, 1.442695
        %v1992 = vpow.pop %v1991
        %v1993 = vmul.f32 %v1944, 1.442695
        %v1994 = vpow.pop %v1993
        %v1995 = vmul.f32 %v1945, 1.442695
        %v1996 = vpow.pop %v1995
        %v1997 = vmul.f32 %v1946, 1.442695
        %v1998 = vpow.pop %v1997
        %v1999 = vmul.f32 %v1947, 1.442695
        %v2000 = vpow.pop %v1999
        %v2001 = vmul.f32 %v1948, 1.442695
        %v2002 = vpow.pop %v2001
        %v2003 = vmul.f32 %v1949, 1.442695
        %v2004 = vpow.pop %v2003
        %v2005 = vmul.f32 %v1950, 1.442695
        %v2006 = vpow.pop %v2005
        %v2007 = vmul.f32 %v1951, 1.442695
        %v2008 = vpow.pop %v2007
        %v2009 = vmul.f32 %v1952, 1.442695
        %v2010 = vpow.pop %v2009
        %v2011 = vmul.f32 %v1953, 1.442695
        %v2012 = vpow.pop %v2011
        %v2013 = vmul.f32 %v1954, 1.442695
        %v2014 = vpow.pop %v2013
        %v2015 = vmul.f32 %v1955, 1.442695
        %v2016 = vpow.pop %v2015
        %v2017 = vmul.f32 %v1956, 1.442695
        %v2018 = vpow.pop %v2017
        %v2019 = vmul.f32 %v1957, 1.442695
        %v2020 = vpow.pop %v2019
        %v2021 = vmul.f32 %v1958, 1.442695
        %v2022 = vpow.pop %v2021
        %v2023 = vsel %vm1830, %v1960, 0.0
        %2024 = vadd.xlane.f32.xlu0 %v2023
        %v2025 = vpop.xlane.xlu0 %2024
        %v2026 = vsel %vm1830, %v1962, 0.0
        %2027 = vadd.xlane.f32.xlu0 %v2026
        %v2028 = vpop.xlane.xlu0 %2027
        %v2029 = vsel %vm1830, %v1964, 0.0
        %2030 = vadd.xlane.f32.xlu0 %v2029
        %v2031 = vpop.xlane.xlu0 %2030
        %v2032 = vsel %vm1830, %v1966, 0.0
        %2033 = vadd.xlane.f32.xlu0 %v2032
        %v2034 = vpop.xlane.xlu0 %2033
        %v2035 = vsel %vm1830, %v1968, 0.0
        %2036 = vadd.xlane.f32.xlu0 %v2035
        %v2037 = vpop.xlane.xlu0 %2036
        %v2038 = vsel %vm1830, %v1970, 0.0
        %2039 = vadd.xlane.f32.xlu0 %v2038
        %v2040 = vpop.xlane.xlu0 %2039
        %v2041 = vsel %vm1830, %v1972, 0.0
        %2042 = vadd.xlane.f32.xlu0 %v2041
        %v2043 = vpop.xlane.xlu0 %2042
        %v2044 = vsel %vm1830, %v1974, 0.0
        %2045 = vadd.xlane.f32.xlu0 %v2044
        %v2046 = vpop.xlane.xlu0 %2045
        %v2047 = vsel %vm1830, %v1976, 0.0
        %2048 = vadd.xlane.f32.xlu0 %v2047
        %v2049 = vpop.xlane.xlu0 %2048
        %v2050 = vsel %vm1830, %v1978, 0.0
        %2051 = vadd.xlane.f32.xlu0 %v2050
        %v2052 = vpop.xlane.xlu0 %2051
        %v2053 = vsel %vm1830, %v1980, 0.0
        %2054 = vadd.xlane.f32.xlu0 %v2053
        %v2055 = vpop.xlane.xlu0 %2054
        %v2056 = vsel %vm1830, %v1982, 0.0
        %2057 = vadd.xlane.f32.xlu0 %v2056
        %v2058 = vpop.xlane.xlu0 %2057
        %v2059 = vsel %vm1830, %v1984, 0.0
        %2060 = vadd.xlane.f32.xlu0 %v2059
        %v2061 = vpop.xlane.xlu0 %2060
        %v2062 = vsel %vm1830, %v1986, 0.0
        %2063 = vadd.xlane.f32.xlu0 %v2062
        %v2064 = vpop.xlane.xlu0 %2063
        %v2065 = vsel %vm1830, %v1988, 0.0
        %2066 = vadd.xlane.f32.xlu0 %v2065
        %v2067 = vpop.xlane.xlu0 %2066
        %v2068 = vsel %vm1830, %v1990, 0.0
        %2069 = vadd.xlane.f32.xlu0 %v2068
        %v2070 = vpop.xlane.xlu0 %2069
        %v2071 = vsel %vm1830, %v1992, 0.0
        %2072 = vadd.xlane.f32.xlu0 %v2071
        %v2073 = vpop.xlane.xlu0 %2072
        %v2074 = vsel %vm1830, %v1994, 0.0
        %2075 = vadd.xlane.f32.xlu0 %v2074
        %v2076 = vpop.xlane.xlu0 %2075
        %v2077 = vsel %vm1830, %v1996, 0.0
        %2078 = vadd.xlane.f32.xlu0 %v2077
        %v2079 = vpop.xlane.xlu0 %2078
        %v2080 = vsel %vm1830, %v1998, 0.0
        %2081 = vadd.xlane.f32.xlu0 %v2080
        %v2082 = vpop.xlane.xlu0 %2081
        %v2083 = vsel %vm1830, %v2000, 0.0
        %2084 = vadd.xlane.f32.xlu0 %v2083
        %v2085 = vpop.xlane.xlu0 %2084
        %v2086 = vsel %vm1830, %v2002, 0.0
        %2087 = vadd.xlane.f32.xlu0 %v2086
        %v2088 = vpop.xlane.xlu0 %2087
        %v2089 = vsel %vm1830, %v2004, 0.0
        %2090 = vadd.xlane.f32.xlu0 %v2089
        %v2091 = vpop.xlane.xlu0 %2090
        %v2092 = vsel %vm1830, %v2006, 0.0
        %2093 = vadd.xlane.f32.xlu0 %v2092
        %v2094 = vpop.xlane.xlu0 %2093
        %v2095 = vsel %vm1830, %v2008, 0.0
        %2096 = vadd.xlane.f32.xlu0 %v2095
        %v2097 = vpop.xlane.xlu0 %2096
        %v2098 = vsel %vm1830, %v2010, 0.0
        %2099 = vadd.xlane.f32.xlu0 %v2098
        %v2100 = vpop.xlane.xlu0 %2099
        %v2101 = vsel %vm1830, %v2012, 0.0
        %2102 = vadd.xlane.f32.xlu0 %v2101
        %v2103 = vpop.xlane.xlu0 %2102
        %v2104 = vsel %vm1830, %v2014, 0.0
        %2105 = vadd.xlane.f32.xlu0 %v2104
        %v2106 = vpop.xlane.xlu0 %2105
        %v2107 = vsel %vm1830, %v2016, 0.0
        %2108 = vadd.xlane.f32.xlu0 %v2107
        %v2109 = vpop.xlane.xlu0 %2108
        %v2110 = vsel %vm1830, %v2018, 0.0
        %2111 = vadd.xlane.f32.xlu0 %v2110
        %v2112 = vpop.xlane.xlu0 %2111
        %v2113 = vsel %vm1830, %v2020, 0.0
        %2114 = vadd.xlane.f32.xlu0 %v2113
        %v2115 = vpop.xlane.xlu0 %2114
        %v2116 = vsel %vm1830, %v2022, 0.0
        %2117 = vadd.xlane.f32.xlu0 %v2116
        %v2118 = vpop.xlane.xlu0 %2117
        %v2119 = vrcp.pop %v2025
        %v2120 = vmul.f32 %v1960, %v2119
        %v2121 = vrcp.pop %v2028
        %v2122 = vmul.f32 %v1962, %v2121
        %v2123 = vrcp.pop %v2031
        %v2124 = vmul.f32 %v1964, %v2123
        %v2125 = vrcp.pop %v2034
        %v2126 = vmul.f32 %v1966, %v2125
        %v2127 = vrcp.pop %v2037
        %v2128 = vmul.f32 %v1968, %v2127
        %v2129 = vrcp.pop %v2040
        %v2130 = vmul.f32 %v1970, %v2129
        %v2131 = vrcp.pop %v2043
        %v2132 = vmul.f32 %v1972, %v2131
        %v2133 = vrcp.pop %v2046
        %v2134 = vmul.f32 %v1974, %v2133
        %v2135 = vrcp.pop %v2049
        %v2136 = vmul.f32 %v1976, %v2135
        %v2137 = vrcp.pop %v2052
        %v2138 = vmul.f32 %v1978, %v2137
        %v2139 = vrcp.pop %v2055
        %v2140 = vmul.f32 %v1980, %v2139
        %v2141 = vrcp.pop %v2058
        %v2142 = vmul.f32 %v1982, %v2141
        %v2143 = vrcp.pop %v2061
        %v2144 = vmul.f32 %v1984, %v2143
        %v2145 = vrcp.pop %v2064
        %v2146 = vmul.f32 %v1986, %v2145
        %v2147 = vrcp.pop %v2067
        %v2148 = vmul.f32 %v1988, %v2147
        %v2149 = vrcp.pop %v2070
        %v2150 = vmul.f32 %v1990, %v2149
        %v2151 = vrcp.pop %v2073
        %v2152 = vmul.f32 %v1992, %v2151
        %v2153 = vrcp.pop %v2076
        %v2154 = vmul.f32 %v1994, %v2153
        %v2155 = vrcp.pop %v2079
        %v2156 = vmul.f32 %v1996, %v2155
        %v2157 = vrcp.pop %v2082
        %v2158 = vmul.f32 %v1998, %v2157
        %v2159 = vrcp.pop %v2085
        %v2160 = vmul.f32 %v2000, %v2159
        %v2161 = vrcp.pop %v2088
        %v2162 = vmul.f32 %v2002, %v2161
        %v2163 = vrcp.pop %v2091
        %v2164 = vmul.f32 %v2004, %v2163
        %v2165 = vrcp.pop %v2094
        %v2166 = vmul.f32 %v2006, %v2165
        %v2167 = vrcp.pop %v2097
        %v2168 = vmul.f32 %v2008, %v2167
        %v2169 = vrcp.pop %v2100
        %v2170 = vmul.f32 %v2010, %v2169
        %v2171 = vrcp.pop %v2103
        %v2172 = vmul.f32 %v2012, %v2171
        %v2173 = vrcp.pop %v2106
        %v2174 = vmul.f32 %v2014, %v2173
        %v2175 = vrcp.pop %v2109
        %v2176 = vmul.f32 %v2016, %v2175
        %v2177 = vrcp.pop %v2112
        %v2178 = vmul.f32 %v2018, %v2177
        %v2179 = vrcp.pop %v2115
        %v2180 = vmul.f32 %v2020, %v2179
        %v2181 = vrcp.pop %v2118
        %v2182 = vmul.f32 %v2022, %v2181
        %v2183 = vpack.c.bf16 %v2122, %v2120
        %v2184 = vpack.c.bf16 %v2126, %v2124
        %v2185 = vpack.c.bf16 %v2130, %v2128
        %v2186 = vpack.c.bf16 %v2134, %v2132
        %v2187 = vpack.c.bf16 %v2138, %v2136
        %v2188 = vpack.c.bf16 %v2142, %v2140
        %v2189 = vpack.c.bf16 %v2146, %v2144
        %v2190 = vpack.c.bf16 %v2150, %v2148
        %v2191 = vpack.c.bf16 %v2154, %v2152
        %v2192 = vpack.c.bf16 %v2158, %v2156
        %v2193 = vpack.c.bf16 %v2162, %v2160
        %v2194 = vpack.c.bf16 %v2166, %v2164
        %v2195 = vpack.c.bf16 %v2170, %v2168
        %v2196 = vpack.c.bf16 %v2174, %v2172
        %v2197 = vpack.c.bf16 %v2178, %v2176
        %v2198 = vpack.c.bf16 %v2182, %v2180
        %2200 = vrot.lane.b32.xlu0 %v1585, 96
        %v2201 = vpop.permute.xlu0 %2200
        %v2204 = vsel %vm1830, %v2183, 0
        %v2207 = vsel %vm1830, %v2184, 0
        %v2210 = vsel %vm1830, %v2185, 0
        %v2213 = vsel %vm1830, %v2186, 0
        %v2216 = vsel %vm1830, %v2187, 0
        %v2219 = vsel %vm1830, %v2188, 0
        %v2222 = vsel %vm1830, %v2189, 0
        %v2225 = vsel %vm1830, %v2190, 0
        %v2228 = vsel %vm1830, %v2191, 0
        %v2231 = vsel %vm1830, %v2192, 0
        %v2234 = vsel %vm1830, %v2193, 0
        %v2237 = vsel %vm1830, %v2194, 0
        %v2240 = vsel %vm1830, %v2195, 0
        %v2243 = vsel %vm1830, %v2196, 0
        %v2246 = vsel %vm1830, %v2197, 0
        %v2249 = vsel %vm1830, %v2198, 0
        %2251 = vmatprep.subr.bf16.mxu0 0
        %2252 = vmatpush1.bf16.msra.mxu0 %v2201
        %2253 = vmatprep.subr.bf16.mxu0 0
        %2254 = vmatpush1.bf16.msra.mxu0 0
        %2255 = vmatprep.subr.bf16.mxu0 0
        %2256 = vmatpush1.bf16.msra.mxu0 0
        %2257 = vmatprep.subr.bf16.mxu0 0
        %2258 = vmatpush1.bf16.msra.mxu0 0
        %2259 = vmatprep.subr.bf16.mxu0 0
        %2260 = vmatpush1.bf16.msra.mxu0 0
        %2261 = vmatprep.subr.bf16.mxu0 0
        %2262 = vmatpush1.bf16.msra.mxu0 0
        %2263 = vmatprep.subr.bf16.mxu0 0
        %2264 = vmatpush1.bf16.msra.mxu0 0
        %2265 = vmatprep.subr.bf16.mxu0 0
        %2266 = vmatpush1.bf16.msra.mxu0 0
        %2267 = vmatprep.subr.bf16.mxu0 0
        %2268 = vmatpush1.bf16.msra.mxu0 0
        %2269 = vmatprep.subr.bf16.mxu0 0
        %2270 = vmatpush1.bf16.msra.mxu0 0
        %2271 = vmatprep.subr.bf16.mxu0 0
        %2272 = vmatpush1.bf16.msra.mxu0 0
        %2273 = vmatprep.subr.bf16.mxu0 0
        %2274 = vmatpush1.bf16.msra.mxu0 0
        %2275 = vmatprep.subr.bf16.mxu0 0
        %2276 = vmatpush1.bf16.msra.mxu0 0
        %2277 = vmatprep.subr.bf16.mxu0 0
        %2278 = vmatpush1.bf16.msra.mxu0 0
        %2279 = vmatprep.subr.bf16.mxu0 0
        %2280 = vmatpush1.bf16.msra.mxu0 0
        %2281 = vmatprep.subr.bf16.mxu0 0
        %2282 = vmatpush1.bf16.msra.mxu0 0
        %2283 = vmatprep.mubr.bf16.mxu0 0
        %2284 = vmatmul.mubr.bf16.gmra.mrb[0].mxu0 %v2204
        %v2285 = vpop.f32.mrb[0].mxu0
        %v2286 = vadd.f32 0.0, %v2285
        %v2287 = vpop.f32.mrb[0].mxu0
        %v2288 = vpop.f32.mrb[0].mxu0
        %v2289 = vadd.f32 0.0, %v2288
        %v2290 = vpop.f32.mrb[0].mxu0
        %2291 = vmatprep.mubr.bf16.mxu0 0
        %2292 = vmatmul.mubr.bf16.gmra.mrb[0].mxu0 %v2207
        %v2293 = vpop.f32.mrb[0].mxu0
        %v2294 = vadd.f32 0.0, %v2293
        %v2295 = vpop.f32.mrb[0].mxu0
        %v2296 = vpop.f32.mrb[0].mxu0
        %v2297 = vadd.f32 0.0, %v2296
        %v2298 = vpop.f32.mrb[0].mxu0
        %2299 = vmatprep.mubr.bf16.mxu0 0
        %2300 = vmatmul.mubr.bf16.gmra.mrb[0].mxu0 %v2210
        %v2301 = vpop.f32.mrb[0].mxu0
        %v2302 = vadd.f32 0.0, %v2301
        %v2303 = vpop.f32.mrb[0].mxu0
        %v2304 = vpop.f32.mrb[0].mxu0
        %v2305 = vadd.f32 0.0, %v2304
        %v2306 = vpop.f32.mrb[0].mxu0
        %2307 = vmatprep.mubr.bf16.mxu0 0
        %2308 = vmatmul.mubr.bf16.gmra.mrb[0].mxu0 %v2213
        %v2309 = vpop.f32.mrb[0].mxu0
        %v2310 = vadd.f32 0.0, %v2309
        %v2311 = vpop.f32.mrb[0].mxu0
        %v2312 = vpop.f32.mrb[0].mxu0
        %v2313 = vadd.f32 0.0, %v2312
        %v2314 = vpop.f32.mrb[0].mxu0
        %2315 = vmatprep.mubr.bf16.mxu0 0
        %2316 = vmatmul.mubr.bf16.gmra.mrb[0].mxu0 %v2216
        %v2317 = vpop.f32.mrb[0].mxu0
        %v2318 = vadd.f32 0.0, %v2317
        %v2319 = vpop.f32.mrb[0].mxu0
        %v2320 = vpop.f32.mrb[0].mxu0
        %v2321 = vadd.f32 0.0, %v2320
        %v2322 = vpop.f32.mrb[0].mxu0
        %2323 = vmatprep.mubr.bf16.mxu0 0
        %2324 = vmatmul.mubr.bf16.gmra.mrb[0].mxu0 %v2219
        %v2325 = vpop.f32.mrb[0].mxu0
        %v2326 = vadd.f32 0.0, %v2325
        %v2327 = vpop.f32.mrb[0].mxu0
        %v2328 = vpop.f32.mrb[0].mxu0
        %v2329 = vadd.f32 0.0, %v2328
        %v2330 = vpop.f32.mrb[0].mxu0
        %2331 = vmatprep.mubr.bf16.mxu0 0
        %2332 = vmatmul.mubr.bf16.gmra.mrb[0].mxu0 %v2222
        %v2333 = vpop.f32.mrb[0].mxu0
        %v2334 = vadd.f32 0.0, %v2333
        %v2335 = vpop.f32.mrb[0].mxu0
        %v2336 = vpop.f32.mrb[0].mxu0
        %v2337 = vadd.f32 0.0, %v2336
        %v2338 = vpop.f32.mrb[0].mxu0
        %2339 = vmatprep.mubr.bf16.mxu0 0
        %2340 = vmatmul.mubr.bf16.gmra.mrb[0].mxu0 %v2225
        %v2341 = vpop.f32.mrb[0].mxu0
        %v2342 = vadd.f32 0.0, %v2341
        %v2343 = vpop.f32.mrb[0].mxu0
        %v2344 = vpop.f32.mrb[0].mxu0
        %v2345 = vadd.f32 0.0, %v2344
        %v2346 = vpop.f32.mrb[0].mxu0
        %2347 = vmatprep.mubr.bf16.mxu0 0
        %2348 = vmatmul.mubr.bf16.gmra.mrb[0].mxu0 %v2228
        %v2349 = vpop.f32.mrb[0].mxu0
        %v2350 = vadd.f32 0.0, %v2349
        %v2351 = vpop.f32.mrb[0].mxu0
        %v2352 = vpop.f32.mrb[0].mxu0
        %v2353 = vadd.f32 0.0, %v2352
        %v2354 = vpop.f32.mrb[0].mxu0
        %2355 = vmatprep.mubr.bf16.mxu0 0
        %2356 = vmatmul.mubr.bf16.gmra.mrb[0].mxu0 %v2231
        %v2357 = vpop.f32.mrb[0].mxu0
        %v2358 = vadd.f32 0.0, %v2357
        %v2359 = vpop.f32.mrb[0].mxu0
        %v2360 = vpop.f32.mrb[0].mxu0
        %v2361 = vadd.f32 0.0, %v2360
        %v2362 = vpop.f32.mrb[0].mxu0
        %2363 = vmatprep.mubr.bf16.mxu0 0
        %2364 = vmatmul.mubr.bf16.gmra.mrb[0].mxu0 %v2234
        %v2365 = vpop.f32.mrb[0].mxu0
        %v2366 = vadd.f32 0.0, %v2365
        %v2367 = vpop.f32.mrb[0].mxu0
        %v2368 = vpop.f32.mrb[0].mxu0
        %v2369 = vadd.f32 0.0, %v2368
        %v2370 = vpop.f32.mrb[0].mxu0
        %2371 = vmatprep.mubr.bf16.mxu0 0
        %2372 = vmatmul.mubr.bf16.gmra.mrb[0].mxu0 %v2237
        %v2373 = vpop.f32.mrb[0].mxu0
        %v2374 = vadd.f32 0.0, %v2373
        %v2375 = vpop.f32.mrb[0].mxu0
        %v2376 = vpop.f32.mrb[0].mxu0
        %v2377 = vadd.f32 0.0, %v2376
        %v2378 = vpop.f32.mrb[0].mxu0
        %2379 = vmatprep.mubr.bf16.mxu0 0
        %2380 = vmatmul.mubr.bf16.gmra.mrb[0].mxu0 %v2240
        %v2381 = vpop.f32.mrb[0].mxu0
        %v2382 = vadd.f32 0.0, %v2381
        %v2383 = vpop.f32.mrb[0].mxu0
        %v2384 = vpop.f32.mrb[0].mxu0
        %v2385 = vadd.f32 0.0, %v2384
        %v2386 = vpop.f32.mrb[0].mxu0
        %2387 = vmatprep.mubr.bf16.mxu0 0
        %2388 = vmatmul.mubr.bf16.gmra.mrb[0].mxu0 %v2243
        %v2389 = vpop.f32.mrb[0].mxu0
        %v2390 = vadd.f32 0.0, %v2389
        %v2391 = vpop.f32.mrb[0].mxu0
        %v2392 = vpop.f32.mrb[0].mxu0
        %v2393 = vadd.f32 0.0, %v2392
        %v2394 = vpop.f32.mrb[0].mxu0
        %2395 = vmatprep.mubr.bf16.mxu0 0
        %2396 = vmatmul.mubr.bf16.gmra.mrb[0].mxu0 %v2246
        %v2397 = vpop.f32.mrb[0].mxu0
        %v2398 = vadd.f32 0.0, %v2397
        %v2399 = vpop.f32.mrb[0].mxu0
        %v2400 = vpop.f32.mrb[0].mxu0
        %v2401 = vadd.f32 0.0, %v2400
        %v2402 = vpop.f32.mrb[0].mxu0
        %2403 = vmatprep.mubr.bf16.mxu0 0
        %2404 = vmatmul.mubr.bf16.gmra.mrb[0].mxu0 %v2249
        %v2405 = vpop.f32.mrb[0].mxu0
        %v2406 = vadd.f32 0.0, %v2405
        %v2407 = vpop.f32.mrb[0].mxu0
        %v2408 = vpop.f32.mrb[0].mxu0
        %v2409 = vadd.f32 0.0, %v2408
        %v2410 = vpop.f32.mrb[0].mxu0
        %2411 = vdwg.mxu0
        %v2412 = vadd.f32 %v676, %v2286
        %v2413 = vadd.f32 %v677, %v2289
        %v2414 = vadd.f32 %v678, %v2294
        %v2415 = vadd.f32 %v679, %v2297
        %v2416 = vadd.f32 %v680, %v2302
        %v2417 = vadd.f32 %v681, %v2305
        %v2418 = vadd.f32 %v682, %v2310
        %v2419 = vadd.f32 %v683, %v2313
        %v2420 = vadd.f32 %v684, %v2318
        %v2421 = vadd.f32 %v685, %v2321
        %v2422 = vadd.f32 %v686, %v2326
        %v2423 = vadd.f32 %v687, %v2329
        %v2424 = vadd.f32 %v688, %v2334
        %v2425 = vadd.f32 %v689, %v2337
        %v2426 = vadd.f32 %v690, %v2342
        %v2427 = vadd.f32 %v691, %v2345
        %v2428 = vadd.f32 %v692, %v2350
        %v2429 = vadd.f32 %v693, %v2353
        %v2430 = vadd.f32 %v694, %v2358
        %v2431 = vadd.f32 %v695, %v2361
        %v2432 = vadd.f32 %v696, %v2366
        %v2433 = vadd.f32 %v697, %v2369
        %v2434 = vadd.f32 %v698, %v2374
        %v2435 = vadd.f32 %v699, %v2377
        %v2436 = vadd.f32 %v700, %v2382
        %v2437 = vadd.f32 %v701, %v2385
        %v2438 = vadd.f32 %v702, %v2390
        %v2439 = vadd.f32 %v703, %v2393
        %v2440 = vadd.f32 %v704, %v2398
        %v2441 = vadd.f32 %v705, %v2401
        %v2442 = vadd.f32 %v706, %v2406
        %v2443 = vadd.f32 %v707, %v2409
        %v2444 = vsel %vm791, %v1329, 0.0
        %v2445 = vrot.slane %v2444, 4
        %v2446 = vadd.f32 %v2444, %v2445
        %v2447 = vrot.slane %v2446, 2
        %v2448 = vadd.f32 %v2446, %v2447
        %v2449 = vrot.slane %v2448, 1
        %v2450 = vadd.f32 %v2448, %v2449
        %v2451 = vrcp.pop 8.0
        %v2452 = vmul.f32 %v2450, %v2451
        %v2453 = vld [vmem:[%s14] sm:$0xf]
        %v2454 = vld [vmem:[%s14 + $0x4] sm:$0xf]
        %v2455 = vld [vmem:[%s14 + $0x8] sm:$0xf]
        %v2456 = vld [vmem:[%s14 + $0xc] sm:$0xf]
        %v2457 = vpack.c.bf16 %v2452, %v2452
        %v2458 = vld [vmem:[%s15] sm:$0x1]
        %v2463 = vunpack.c.l.b16 %v2453
        %v2464 = vunpack.c.l.b16 %v2454
        %v2465 = vunpack.c.l.b16 %v2455
        %v2466 = vunpack.c.l.b16 %v2456
        %v2467 = vpack.c.b16 %v2464, %v2463
        %v2468 = vpack.c.b16 %v2466, %v2465
        %v2472 = vsel %vm791, %v2457, 0
        %2474 = vmatprep.subr.bf16.mxu0 0
        %2475 = vmatpush1.bf16.msra.mxu0 %v2467
        %2476 = vmatprep.subr.bf16.mxu0 0
        %2477 = vmatpush1.bf16.msra.mxu0 %v2468
        %2478 = vmatprep.subr.bf16.mxu0 0
        %2479 = vmatpush1.bf16.msra.mxu0 0
        %2480 = vmatprep.subr.bf16.mxu0 0
        %2481 = vmatpush1.bf16.msra.mxu0 0
        %2482 = vmatprep.subr.bf16.mxu0 0
        %2483 = vmatpush1.bf16.msra.mxu0 0
        %2484 = vmatprep.subr.bf16.mxu0 0
        %2485 = vmatpush1.bf16.msra.mxu0 0
        %2486 = vmatprep.subr.bf16.mxu0 0
        %2487 = vmatpush1.bf16.msra.mxu0 0
        %2488 = vmatprep.subr.bf16.mxu0 0
        %2489 = vmatpush1.bf16.msra.mxu0 0
        %2490 = vmatprep.subr.bf16.mxu0 0
        %2491 = vmatpush1.bf16.msra.mxu0 0
        %2492 = vmatprep.subr.bf16.mxu0 0
        %2493 = vmatpush1.bf16.msra.mxu0 0
        %2494 = vmatprep.subr.bf16.mxu0 0
        %2495 = vmatpush1.bf16.msra.mxu0 0
        %2496 = vmatprep.subr.bf16.mxu0 0
        %2497 = vmatpush1.bf16.msra.mxu0 0
        %2498 = vmatprep.subr.bf16.mxu0 0
        %2499 = vmatpush1.bf16.msra.mxu0 0
        %2500 = vmatprep.subr.bf16.mxu0 0
        %2501 = vmatpush1.bf16.msra.mxu0 0
        %2502 = vmatprep.subr.bf16.mxu0 0
        %2503 = vmatpush1.bf16.msra.mxu0 0
        %2504 = vmatprep.subr.bf16.mxu0 0
        %2505 = vmatpush1.bf16.msra.mxu0 0
        %2506 = vmatprep.mubr.bf16.mxu0 0
        %2507 = vmatmul.mubr.bf16.gmra.mrb[0].mxu0 %v2472
        %v2508 = vpop.f32.mrb[0].mxu0
        %v2509 = vadd.f32 %v2458, %v2508
        %v2510 = vpop.f32.mrb[0].mxu0
        %v2511 = vpop.f32.mrb[0].mxu0
        %v2512 = vpop.f32.mrb[0].mxu0
        %2513 = vdwg.mxu0
        %v2514 = vmax.f32 %v2509, 0.0
        %v2515 = vld [vmem:[%s16] sm:$0xf]
        %v2516 = vld [vmem:[%s16 + $0x4] sm:$0xf]
        %v2517 = vld [vmem:[%s16 + $0x8] sm:$0xf]
        %v2518 = vld [vmem:[%s16 + $0xc] sm:$0xf]
        %v2519 = vpack.c.bf16 %v2514, %v2514
        %v2520 = vld [vmem:[%s17] sm:$0x1]
        %v2525 = vunpack.c.l.b16 %v2515
        %v2526 = vunpack.c.l.b16 %v2516
        %v2527 = vunpack.c.l.b16 %v2517
        %v2528 = vunpack.c.l.b16 %v2518
        %v2529 = vpack.c.b16 %v2526, %v2525
        %v2530 = vpack.c.b16 %v2528, %v2527
        %v2534 = vsel %vm791, %v2519, 0
        %2536 = vmatprep.subr.bf16.mxu0 0
        %2537 = vmatpush1.bf16.msra.mxu0 %v2529
        %2538 = vmatprep.subr.bf16.mxu0 0
        %2539 = vmatpush1.bf16.msra.mxu0 %v2530
        %2540 = vmatprep.subr.bf16.mxu0 0
        %2541 = vmatpush1.bf16.msra.mxu0 0
        %2542 = vmatprep.subr.bf16.mxu0 0
        %2543 = vmatpush1.bf16.msra.mxu0 0
        %2544 = vmatprep.subr.bf16.mxu0 0
        %2545 = vmatpush1.bf16.msra.mxu0 0
        %2546 = vmatprep.subr.bf16.mxu0 0
        %2547 = vmatpush1.bf16.msra.mxu0 0
        %2548 = vmatprep.subr.bf16.mxu0 0
        %2549 = vmatpush1.bf16.msra.mxu0 0
        %2550 = vmatprep.subr.bf16.mxu0 0
        %2551 = vmatpush1.bf16.msra.mxu0 0
        %2552 = vmatprep.subr.bf16.mxu0 0
        %2553 = vmatpush1.bf16.msra.mxu0 0
        %2554 = vmatprep.subr.bf16.mxu0 0
        %2555 = vmatpush1.bf16.msra.mxu0 0
        %2556 = vmatprep.subr.bf16.mxu0 0
        %2557 = vmatpush1.bf16.msra.mxu0 0
        %2558 = vmatprep.subr.bf16.mxu0 0
        %2559 = vmatpush1.bf16.msra.mxu0 0
        %2560 = vmatprep.subr.bf16.mxu0 0
        %2561 = vmatpush1.bf16.msra.mxu0 0
        %2562 = vmatprep.subr.bf16.mxu0 0
        %2563 = vmatpush1.bf16.msra.mxu0 0
        %2564 = vmatprep.subr.bf16.mxu0 0
        %2565 = vmatpush1.bf16.msra.mxu0 0
        %2566 = vmatprep.subr.bf16.mxu0 0
        %2567 = vmatpush1.bf16.msra.mxu0 0
        %2568 = vmatprep.mubr.bf16.mxu0 0
        %2569 = vmatmul.mubr.bf16.gmra.mrb[0].mxu0 %v2534
        %v2570 = vpop.f32.mrb[0].mxu0
        %v2571 = vadd.f32 %v2520, %v2570
        %v2572 = vpop.f32.mrb[0].mxu0
        %v2573 = vpop.f32.mrb[0].mxu0
        %v2574 = vpop.f32.mrb[0].mxu0
        %2575 = vdwg.mxu0
        %v2576 = vmax.f32 %v2571, 0.0
        %v2577 = vld [vmem:[%s18] sm:$0xf]
        %v2578 = vld [vmem:[%s18 + $0x4] sm:$0xf]
        %v2579 = vld [vmem:[%s18 + $0x8] sm:$0xf]
        %v2580 = vld [vmem:[%s18 + $0xc] sm:$0xf]
        %v2581 = vpack.c.bf16 %v2576, %v2576
        %v2582 = vld [vmem:[%s19] sm:$0x1]
        %v2587 = vunpack.c.l.b16 %v2577
        %v2588 = vunpack.c.l.b16 %v2578
        %v2589 = vunpack.c.l.b16 %v2579
        %v2590 = vunpack.c.l.b16 %v2580
        %v2591 = vpack.c.b16 %v2588, %v2587
        %v2592 = vpack.c.b16 %v2590, %v2589
        %v2596 = vsel %vm791, %v2581, 0
        %2598 = vmatprep.subr.bf16.mxu0 0
        %2599 = vmatpush1.bf16.msra.mxu0 %v2591
        %2600 = vmatprep.subr.bf16.mxu0 0
        %2601 = vmatpush1.bf16.msra.mxu0 %v2592
        %2602 = vmatprep.subr.bf16.mxu0 0
        %2603 = vmatpush1.bf16.msra.mxu0 0
        %2604 = vmatprep.subr.bf16.mxu0 0
        %2605 = vmatpush1.bf16.msra.mxu0 0
        %2606 = vmatprep.subr.bf16.mxu0 0
        %2607 = vmatpush1.bf16.msra.mxu0 0
        %2608 = vmatprep.subr.bf16.mxu0 0
        %2609 = vmatpush1.bf16.msra.mxu0 0
        %2610 = vmatprep.subr.bf16.mxu0 0
        %2611 = vmatpush1.bf16.msra.mxu0 0
        %2612 = vmatprep.subr.bf16.mxu0 0
        %2613 = vmatpush1.bf16.msra.mxu0 0
        %2614 = vmatprep.subr.bf16.mxu0 0
        %2615 = vmatpush1.bf16.msra.mxu0 0
        %2616 = vmatprep.subr.bf16.mxu0 0
        %2617 = vmatpush1.bf16.msra.mxu0 0
        %2618 = vmatprep.subr.bf16.mxu0 0
        %2619 = vmatpush1.bf16.msra.mxu0 0
        %2620 = vmatprep.subr.bf16.mxu0 0
        %2621 = vmatpush1.bf16.msra.mxu0 0
        %2622 = vmatprep.subr.bf16.mxu0 0
        %2623 = vmatpush1.bf16.msra.mxu0 0
        %2624 = vmatprep.subr.bf16.mxu0 0
        %2625 = vmatpush1.bf16.msra.mxu0 0
        %2626 = vmatprep.subr.bf16.mxu0 0
        %2627 = vmatpush1.bf16.msra.mxu0 0
        %2628 = vmatprep.subr.bf16.mxu0 0
        %2629 = vmatpush1.bf16.msra.mxu0 0
        %2630 = vmatprep.mubr.bf16.mxu0 0
        %2631 = vmatmul.mubr.bf16.gmra.mrb[0].mxu0 %v2596
        %v2632 = vpop.f32.mrb[0].mxu0
        %v2633 = vadd.f32 %v2582, %v2632
        %v2634 = vpop.f32.mrb[0].mxu0
        %v2635 = vpop.f32.mrb[0].mxu0
        %v2636 = vpop.f32.mrb[0].mxu0
        %2637 = vdwg.mxu0
        %v2638 = vld [vmem:[%s7] sm:$0xf]
        %v2639 = vld [vmem:[%s7 + $0x4] sm:$0xf]
        %v2640 = vld [vmem:[%s7 + $0x8] sm:$0xf]
        %v2641 = vld [vmem:[%s7 + $0xc] sm:$0xf]
        %v2642 = vpack.c.bf16 %v2413, %v2412
        %v2643 = vpack.c.bf16 %v2415, %v2414
        %v2644 = vpack.c.bf16 %v2417, %v2416
        %v2645 = vpack.c.bf16 %v2419, %v2418
        %v2646 = vpack.c.bf16 %v2421, %v2420
        %v2647 = vpack.c.bf16 %v2423, %v2422
        %v2648 = vpack.c.bf16 %v2425, %v2424
        %v2649 = vpack.c.bf16 %v2427, %v2426
        %v2650 = vpack.c.bf16 %v2429, %v2428
        %v2651 = vpack.c.bf16 %v2431, %v2430
        %v2652 = vpack.c.bf16 %v2433, %v2432
        %v2653 = vpack.c.bf16 %v2435, %v2434
        %v2654 = vpack.c.bf16 %v2437, %v2436
        %v2655 = vpack.c.bf16 %v2439, %v2438
        %v2656 = vpack.c.bf16 %v2441, %v2440
        %v2657 = vpack.c.bf16 %v2443, %v2442
        %v2658 = vld [vmem:[%s8] sm:$0x1]
        %v2660 = vlaneseq
        %v2661 = vshrl.u32 %v2660, 7
        %v2662 = vsub.s32 0, %v2661
        %v2663 = vrot.slane %v2658, %v2662
        %v2669 = vunpack.c.l.b16 %v2638
        %v2670 = vunpack.c.l.b16 %v2639
        %v2671 = vunpack.c.l.b16 %v2640
        %v2672 = vunpack.c.l.b16 %v2641
        %v2673 = vpack.c.b16 %v2670, %v2669
        %v2674 = vpack.c.b16 %v2672, %v2671
        %v2678 = vsel %vm791, %v2642, 0
        %v2681 = vsel %vm791, %v2643, 0
        %v2684 = vsel %vm791, %v2644, 0
        %v2687 = vsel %vm791, %v2645, 0
        %v2690 = vsel %vm791, %v2646, 0
        %v2693 = vsel %vm791, %v2647, 0
        %v2696 = vsel %vm791, %v2648, 0
        %v2699 = vsel %vm791, %v2649, 0
        %v2702 = vsel %vm791, %v2650, 0
        %v2705 = vsel %vm791, %v2651, 0
        %v2708 = vsel %vm791, %v2652, 0
        %v2711 = vsel %vm791, %v2653, 0
        %v2714 = vsel %vm791, %v2654, 0
        %v2717 = vsel %vm791, %v2655, 0
        %v2720 = vsel %vm791, %v2656, 0
        %v2723 = vsel %vm791, %v2657, 0
        %2725 = vmatprep.subr.bf16.mxu0 0
        %2726 = vmatpush1.bf16.msra.mxu0 %v2673
        %2727 = vmatprep.subr.bf16.mxu0 0
        %2728 = vmatpush1.bf16.msra.mxu0 %v2674
        %2729 = vmatprep.subr.bf16.mxu0 0
        %2730 = vmatpush1.bf16.msra.mxu0 0
        %2731 = vmatprep.subr.bf16.mxu0 0
        %2732 = vmatpush1.bf16.msra.mxu0 0
        %2733 = vmatprep.subr.bf16.mxu0 0
        %2734 = vmatpush1.bf16.msra.mxu0 0
        %2735 = vmatprep.subr.bf16.mxu0 0
        %2736 = vmatpush1.bf16.msra.mxu0 0
        %2737 = vmatprep.subr.bf16.mxu0 0
        %2738 = vmatpush1.bf16.msra.mxu0 0
        %2739 = vmatprep.subr.bf16.mxu0 0
        %2740 = vmatpush1.bf16.msra.mxu0 0
        %2741 = vmatprep.subr.bf16.mxu0 0
        %2742 = vmatpush1.bf16.msra.mxu0 0
        %2743 = vmatprep.subr.bf16.mxu0 0
        %2744 = vmatpush1.bf16.msra.mxu0 0
        %2745 = vmatprep.subr.bf16.mxu0 0
        %2746 = vmatpush1.bf16.msra.mxu0 0
        %2747 = vmatprep.subr.bf16.mxu0 0
        %2748 = vmatpush1.bf16.msra.mxu0 0
        %2749 = vmatprep.subr.bf16.mxu0 0
        %2750 = vmatpush1.bf16.msra.mxu0 0
        %2751 = vmatprep.subr.bf16.mxu0 0
        %2752 = vmatpush1.bf16.msra.mxu0 0
        %2753 = vmatprep.subr.bf16.mxu0 0
        %2754 = vmatpush1.bf16.msra.mxu0 0
        %2755 = vmatprep.subr.bf16.mxu0 0
        %2756 = vmatpush1.bf16.msra.mxu0 0
        %2757 = vmatprep.mubr.bf16.mxu0 0
        %2758 = vmatmul.mubr.bf16.gmra.mrb[0].mxu0 %v2678
        %v2759 = vpop.f32.mrb[0].mxu0
        %v2760 = vadd.f32 %v2663, %v2759
        %v2761 = vpop.f32.mrb[0].mxu0
        %v2762 = vpop.f32.mrb[0].mxu0
        %v2763 = vadd.f32 %v2663, %v2762
        %v2764 = vpop.f32.mrb[0].mxu0
        %2765 = vmatprep.mubr.bf16.mxu0 0
        %2766 = vmatmul.mubr.bf16.gmra.mrb[0].mxu0 %v2681
        %v2767 = vpop.f32.mrb[0].mxu0
        %v2768 = vadd.f32 %v2663, %v2767
        %v2769 = vpop.f32.mrb[0].mxu0
        %v2770 = vpop.f32.mrb[0].mxu0
        %v2771 = vadd.f32 %v2663, %v2770
        %v2772 = vpop.f32.mrb[0].mxu0
        %2773 = vmatprep.mubr.bf16.mxu0 0
        %2774 = vmatmul.mubr.bf16.gmra.mrb[0].mxu0 %v2684
        %v2775 = vpop.f32.mrb[0].mxu0
        %v2776 = vadd.f32 %v2663, %v2775
        %v2777 = vpop.f32.mrb[0].mxu0
        %v2778 = vpop.f32.mrb[0].mxu0
        %v2779 = vadd.f32 %v2663, %v2778
        %v2780 = vpop.f32.mrb[0].mxu0
        %2781 = vmatprep.mubr.bf16.mxu0 0
        %2782 = vmatmul.mubr.bf16.gmra.mrb[0].mxu0 %v2687
        %v2783 = vpop.f32.mrb[0].mxu0
        %v2784 = vadd.f32 %v2663, %v2783
        %v2785 = vpop.f32.mrb[0].mxu0
        %v2786 = vpop.f32.mrb[0].mxu0
        %v2787 = vadd.f32 %v2663, %v2786
        %v2788 = vpop.f32.mrb[0].mxu0
        %2789 = vmatprep.mubr.bf16.mxu0 0
        %2790 = vmatmul.mubr.bf16.gmra.mrb[0].mxu0 %v2690
        %v2791 = vpop.f32.mrb[0].mxu0
        %v2792 = vadd.f32 %v2663, %v2791
        %v2793 = vpop.f32.mrb[0].mxu0
        %v2794 = vpop.f32.mrb[0].mxu0
        %v2795 = vadd.f32 %v2663, %v2794
        %v2796 = vpop.f32.mrb[0].mxu0
        %2797 = vmatprep.mubr.bf16.mxu0 0
        %2798 = vmatmul.mubr.bf16.gmra.mrb[0].mxu0 %v2693
        %v2799 = vpop.f32.mrb[0].mxu0
        %v2800 = vadd.f32 %v2663, %v2799
        %v2801 = vpop.f32.mrb[0].mxu0
        %v2802 = vpop.f32.mrb[0].mxu0
        %v2803 = vadd.f32 %v2663, %v2802
        %v2804 = vpop.f32.mrb[0].mxu0
        %2805 = vmatprep.mubr.bf16.mxu0 0
        %2806 = vmatmul.mubr.bf16.gmra.mrb[0].mxu0 %v2696
        %v2807 = vpop.f32.mrb[0].mxu0
        %v2808 = vadd.f32 %v2663, %v2807
        %v2809 = vpop.f32.mrb[0].mxu0
        %v2810 = vpop.f32.mrb[0].mxu0
        %v2811 = vadd.f32 %v2663, %v2810
        %v2812 = vpop.f32.mrb[0].mxu0
        %2813 = vmatprep.mubr.bf16.mxu0 0
        %2814 = vmatmul.mubr.bf16.gmra.mrb[0].mxu0 %v2699
        %v2815 = vpop.f32.mrb[0].mxu0
        %v2816 = vadd.f32 %v2663, %v2815
        %v2817 = vpop.f32.mrb[0].mxu0
        %v2818 = vpop.f32.mrb[0].mxu0
        %v2819 = vadd.f32 %v2663, %v2818
        %v2820 = vpop.f32.mrb[0].mxu0
        %2821 = vmatprep.mubr.bf16.mxu0 0
        %2822 = vmatmul.mubr.bf16.gmra.mrb[0].mxu0 %v2702
        %v2823 = vpop.f32.mrb[0].mxu0
        %v2824 = vadd.f32 %v2663, %v2823
        %v2825 = vpop.f32.mrb[0].mxu0
        %v2826 = vpop.f32.mrb[0].mxu0
        %v2827 = vadd.f32 %v2663, %v2826
        %v2828 = vpop.f32.mrb[0].mxu0
        %2829 = vmatprep.mubr.bf16.mxu0 0
        %2830 = vmatmul.mubr.bf16.gmra.mrb[0].mxu0 %v2705
        %v2831 = vpop.f32.mrb[0].mxu0
        %v2832 = vadd.f32 %v2663, %v2831
        %v2833 = vpop.f32.mrb[0].mxu0
        %v2834 = vpop.f32.mrb[0].mxu0
        %v2835 = vadd.f32 %v2663, %v2834
        %v2836 = vpop.f32.mrb[0].mxu0
        %2837 = vmatprep.mubr.bf16.mxu0 0
        %2838 = vmatmul.mubr.bf16.gmra.mrb[0].mxu0 %v2708
        %v2839 = vpop.f32.mrb[0].mxu0
        %v2840 = vadd.f32 %v2663, %v2839
        %v2841 = vpop.f32.mrb[0].mxu0
        %v2842 = vpop.f32.mrb[0].mxu0
        %v2843 = vadd.f32 %v2663, %v2842
        %v2844 = vpop.f32.mrb[0].mxu0
        %2845 = vmatprep.mubr.bf16.mxu0 0
        %2846 = vmatmul.mubr.bf16.gmra.mrb[0].mxu0 %v2711
        %v2847 = vpop.f32.mrb[0].mxu0
        %v2848 = vadd.f32 %v2663, %v2847
        %v2849 = vpop.f32.mrb[0].mxu0
        %v2850 = vpop.f32.mrb[0].mxu0
        %v2851 = vadd.f32 %v2663, %v2850
        %v2852 = vpop.f32.mrb[0].mxu0
        %2853 = vmatprep.mubr.bf16.mxu0 0
        %2854 = vmatmul.mubr.bf16.gmra.mrb[0].mxu0 %v2714
        %v2855 = vpop.f32.mrb[0].mxu0
        %v2856 = vadd.f32 %v2663, %v2855
        %v2857 = vpop.f32.mrb[0].mxu0
        %v2858 = vpop.f32.mrb[0].mxu0
        %v2859 = vadd.f32 %v2663, %v2858
        %v2860 = vpop.f32.mrb[0].mxu0
        %2861 = vmatprep.mubr.bf16.mxu0 0
        %2862 = vmatmul.mubr.bf16.gmra.mrb[0].mxu0 %v2717
        %v2863 = vpop.f32.mrb[0].mxu0
        %v2864 = vadd.f32 %v2663, %v2863
        %v2865 = vpop.f32.mrb[0].mxu0
        %v2866 = vpop.f32.mrb[0].mxu0
        %v2867 = vadd.f32 %v2663, %v2866
        %v2868 = vpop.f32.mrb[0].mxu0
        %2869 = vmatprep.mubr.bf16.mxu0 0
        %2870 = vmatmul.mubr.bf16.gmra.mrb[0].mxu0 %v2720
        %v2871 = vpop.f32.mrb[0].mxu0
        %v2872 = vadd.f32 %v2663, %v2871
        %v2873 = vpop.f32.mrb[0].mxu0
        %v2874 = vpop.f32.mrb[0].mxu0
        %v2875 = vadd.f32 %v2663, %v2874
        %v2876 = vpop.f32.mrb[0].mxu0
        %2877 = vmatprep.mubr.bf16.mxu0 0
        %2878 = vmatmul.mubr.bf16.gmra.mrb[0].mxu0 %v2723
        %v2879 = vpop.f32.mrb[0].mxu0
        %v2880 = vadd.f32 %v2663, %v2879
        %v2881 = vpop.f32.mrb[0].mxu0
        %v2882 = vpop.f32.mrb[0].mxu0
        %v2883 = vadd.f32 %v2663, %v2882
        %v2884 = vpop.f32.mrb[0].mxu0
        %2885 = vdwg.mxu0
        %v2886 = vld [vmem:[%s11] sm:$0xff]
        %v2887 = vld [vmem:[%s11 + $0x8] sm:$0xff]
        %v2888 = vld [vmem:[%s11 + $0x10] sm:$0xff]
        %v2889 = vld [vmem:[%s11 + $0x18] sm:$0xff]
        %v2891 = vsel %vm791, %v2760, 0
        %v2894 = vsel %vm791, %v2763, 0
        %v2897 = vsel %vm791, %v2768, 0
        %v2900 = vsel %vm791, %v2771, 0
        %v2903 = vsel %vm791, %v2776, 0
        %v2906 = vsel %vm791, %v2779, 0
        %v2909 = vsel %vm791, %v2784, 0
        %v2912 = vsel %vm791, %v2787, 0
        %v2915 = vsel %vm791, %v2792, 0
        %v2918 = vsel %vm791, %v2795, 0
        %v2921 = vsel %vm791, %v2800, 0
        %v2924 = vsel %vm791, %v2803, 0
        %v2927 = vsel %vm791, %v2808, 0
        %v2930 = vsel %vm791, %v2811, 0
        %v2933 = vsel %vm791, %v2816, 0
        %v2936 = vsel %vm791, %v2819, 0
        %v2939 = vsel %vm791, %v2824, 0
        %v2942 = vsel %vm791, %v2827, 0
        %v2945 = vsel %vm791, %v2832, 0
        %v2948 = vsel %vm791, %v2835, 0
        %v2951 = vsel %vm791, %v2840, 0
        %v2954 = vsel %vm791, %v2843, 0
        %v2957 = vsel %vm791, %v2848, 0
        %v2960 = vsel %vm791, %v2851, 0
        %v2963 = vsel %vm791, %v2856, 0
        %v2966 = vsel %vm791, %v2859, 0
        %v2969 = vsel %vm791, %v2864, 0
        %v2972 = vsel %vm791, %v2867, 0
        %v2975 = vsel %vm791, %v2872, 0
        %v2978 = vsel %vm791, %v2875, 0
        %v2981 = vsel %vm791, %v2880, 0
        %v2984 = vsel %vm791, %v2883, 0
        %2986 = vmatprep.subr.mxu0 0.0
        %v2987 = vand.u32 %v2886, 4294901760
        %2988 = vmatpush1.msra.mxu0 %v2987
        %2989 = vmatprep.subr.mxu0 0.0
        %v2990 = vand.u32 %v2887, 4294901760
        %2991 = vmatpush1.msra.mxu0 %v2990
        %2992 = vmatprep.subr.mxu0 0.0
        %v2993 = vand.u32 %v2888, 4294901760
        %2994 = vmatpush1.msra.mxu0 %v2993
        %2995 = vmatprep.subr.mxu0 0.0
        %v2996 = vand.u32 %v2889, 4294901760
        %2997 = vmatpush1.msra.mxu0 %v2996
        %2998 = vmatprep.subr.mxu0 0.0
        %2999 = vmatpush1.msra.mxu0 0.0
        %3000 = vmatprep.subr.mxu0 0.0
        %3001 = vmatpush1.msra.mxu0 0.0
        %3002 = vmatprep.subr.mxu0 0.0
        %3003 = vmatpush1.msra.mxu0 0.0
        %3004 = vmatprep.subr.mxu0 0.0
        %3005 = vmatpush1.msra.mxu0 0.0
        %3006 = vmatprep.subr.mxu0 0.0
        %3007 = vmatpush1.msra.mxu0 0.0
        %3008 = vmatprep.subr.mxu0 0.0
        %3009 = vmatpush1.msra.mxu0 0.0
        %3010 = vmatprep.subr.mxu0 0.0
        %3011 = vmatpush1.msra.mxu0 0.0
        %3012 = vmatprep.subr.mxu0 0.0
        %3013 = vmatpush1.msra.mxu0 0.0
        %3014 = vmatprep.subr.mxu0 0.0
        %3015 = vmatpush1.msra.mxu0 0.0
        %3016 = vmatprep.subr.mxu0 0.0
        %3017 = vmatpush1.msra.mxu0 0.0
        %3018 = vmatprep.subr.mxu0 0.0
        %3019 = vmatpush1.msra.mxu0 0.0
        %3020 = vmatprep.subr.mxu0 0.0
        %3021 = vmatpush1.msra.mxu0 0.0
        %3022 = vmatprep.subr.mxu0 0.0
        %3023 = vmatpush1.msra.mxu0 0.0
        %3024 = vmatprep.subr.mxu0 0.0
        %3025 = vmatpush1.msra.mxu0 0.0
        %3026 = vmatprep.subr.mxu0 0.0
        %3027 = vmatpush1.msra.mxu0 0.0
        %3028 = vmatprep.subr.mxu0 0.0
        %3029 = vmatpush1.msra.mxu0 0.0
        %3030 = vmatprep.subr.mxu0 0.0
        %3031 = vmatpush1.msra.mxu0 0.0
        %3032 = vmatprep.subr.mxu0 0.0
        %3033 = vmatpush1.msra.mxu0 0.0
        %3034 = vmatprep.subr.mxu0 0.0
        %3035 = vmatpush1.msra.mxu0 0.0
        %3036 = vmatprep.subr.mxu0 0.0
        %3037 = vmatpush1.msra.mxu0 0.0
        %3038 = vmatprep.subr.mxu0 0.0
        %3039 = vmatpush1.msra.mxu0 0.0
        %3040 = vmatprep.subr.mxu0 0.0
        %3041 = vmatpush1.msra.mxu0 0.0
        %3042 = vmatprep.subr.mxu0 0.0
        %3043 = vmatpush1.msra.mxu0 0.0
        %3044 = vmatprep.subr.mxu0 0.0
        %3045 = vmatpush1.msra.mxu0 0.0
        %3046 = vmatprep.subr.mxu0 0.0
        %3047 = vmatpush1.msra.mxu0 0.0
        %3048 = vmatprep.subr.mxu0 0.0
        %3049 = vmatpush1.msra.mxu0 0.0
        %3050 = vmatprep.subr.mxu0 0.0
        %3051 = vmatpush1.msra.mxu0 0.0
        %3052 = vmatprep.subr.mxu0 0.0
        %3053 = vmatpush1.msra.mxu0 0.0
        %3054 = vmatprep.mubr.f32.mxu0 0.0
        %v3055 = vand.u32 %v2891, 4294901760
        %v3056 = vsub.f32 %v2891, %v3055
        %v3057 = vand.u32 %v3056, 4294901760
        %v3058 = vsub.f32 %v3056, %v3057
        %v3059 = vand.u32 %v3058, 4294901760
        %3060 = vmatmul.mubr.f32.gmra.mrb[0].mxu0 %v3059
        %v3061 = vpop.f32.mrb[0].mxu0
        %v3062 = vadd.f32 0.0, %v3061
        %v3063 = vpop.f32.mrb[0].mxu0
        %3064 = vmatprep.mubr.f32.mxu0 0.0
        %v3065 = vand.u32 %v2894, 4294901760
        %v3066 = vsub.f32 %v2894, %v3065
        %v3067 = vand.u32 %v3066, 4294901760
        %v3068 = vsub.f32 %v3066, %v3067
        %v3069 = vand.u32 %v3068, 4294901760
        %3070 = vmatmul.mubr.f32.gmra.mrb[0].mxu0 %v3069
        %v3071 = vpop.f32.mrb[0].mxu0
        %v3072 = vadd.f32 0.0, %v3071
        %v3073 = vpop.f32.mrb[0].mxu0
        %3074 = vmatprep.mubr.f32.mxu0 0.0
        %v3075 = vand.u32 %v2897, 4294901760
        %v3076 = vsub.f32 %v2897, %v3075
        %v3077 = vand.u32 %v3076, 4294901760
        %v3078 = vsub.f32 %v3076, %v3077
        %v3079 = vand.u32 %v3078, 4294901760
        %3080 = vmatmul.mubr.f32.gmra.mrb[0].mxu0 %v3079
        %v3081 = vpop.f32.mrb[0].mxu0
        %v3082 = vadd.f32 0.0, %v3081
        %v3083 = vpop.f32.mrb[0].mxu0
        %3084 = vmatprep.mubr.f32.mxu0 0.0
        %v3085 = vand.u32 %v2900, 4294901760
        %v3086 = vsub.f32 %v2900, %v3085
        %v3087 = vand.u32 %v3086, 4294901760
        %v3088 = vsub.f32 %v3086, %v3087
        %v3089 = vand.u32 %v3088, 4294901760
        %3090 = vmatmul.mubr.f32.gmra.mrb[0].mxu0 %v3089
        %v3091 = vpop.f32.mrb[0].mxu0
        %v3092 = vadd.f32 0.0, %v3091
        %v3093 = vpop.f32.mrb[0].mxu0
        %3094 = vmatprep.mubr.f32.mxu0 0.0
        %v3095 = vand.u32 %v2903, 4294901760
        %v3096 = vsub.f32 %v2903, %v3095
        %v3097 = vand.u32 %v3096, 4294901760
        %v3098 = vsub.f32 %v3096, %v3097
        %v3099 = vand.u32 %v3098, 4294901760
        %3100 = vmatmul.mubr.f32.gmra.mrb[0].mxu0 %v3099
        %v3101 = vpop.f32.mrb[0].mxu0
        %v3102 = vadd.f32 0.0, %v3101
        %v3103 = vpop.f32.mrb[0].mxu0
        %3104 = vmatprep.mubr.f32.mxu0 0.0
        %v3105 = vand.u32 %v2906, 4294901760
        %v3106 = vsub.f32 %v2906, %v3105
        %v3107 = vand.u32 %v3106, 4294901760
        %v3108 = vsub.f32 %v3106, %v3107
        %v3109 = vand.u32 %v3108, 4294901760
        %3110 = vmatmul.mubr.f32.gmra.mrb[0].mxu0 %v3109
        %v3111 = vpop.f32.mrb[0].mxu0
        %v3112 = vadd.f32 0.0, %v3111
        %v3113 = vpop.f32.mrb[0].mxu0
        %3114 = vmatprep.mubr.f32.mxu0 0.0
        %v3115 = vand.u32 %v2909, 4294901760
        %v3116 = vsub.f32 %v2909, %v3115
        %v3117 = vand.u32 %v3116, 4294901760
        %v3118 = vsub.f32 %v3116, %v3117
        %v3119 = vand.u32 %v3118, 4294901760
        %3120 = vmatmul.mubr.f32.gmra.mrb[0].mxu0 %v3119
        %v3121 = vpop.f32.mrb[0].mxu0
        %v3122 = vadd.f32 0.0, %v3121
        %v3123 = vpop.f32.mrb[0].mxu0
        %3124 = vmatprep.mubr.f32.mxu0 0.0
        %v3125 = vand.u32 %v2912, 4294901760
        %v3126 = vsub.f32 %v2912, %v3125
        %v3127 = vand.u32 %v3126, 4294901760
        %v3128 = vsub.f32 %v3126, %v3127
        %v3129 = vand.u32 %v3128, 4294901760
        %3130 = vmatmul.mubr.f32.gmra.mrb[0].mxu0 %v3129
        %v3131 = vpop.f32.mrb[0].mxu0
        %v3132 = vadd.f32 0.0, %v3131
        %v3133 = vpop.f32.mrb[0].mxu0
        %3134 = vmatprep.mubr.f32.mxu0 0.0
        %v3135 = vand.u32 %v2915, 4294901760
        %v3136 = vsub.f32 %v2915, %v3135
        %v3137 = vand.u32 %v3136, 4294901760
        %v3138 = vsub.f32 %v3136, %v3137
        %v3139 = vand.u32 %v3138, 4294901760
        %3140 = vmatmul.mubr.f32.gmra.mrb[0].mxu0 %v3139
        %v3141 = vpop.f32.mrb[0].mxu0
        %v3142 = vadd.f32 0.0, %v3141
        %v3143 = vpop.f32.mrb[0].mxu0
        %3144 = vmatprep.mubr.f32.mxu0 0.0
        %v3145 = vand.u32 %v2918, 4294901760
        %v3146 = vsub.f32 %v2918, %v3145
        %v3147 = vand.u32 %v3146, 4294901760
        %v3148 = vsub.f32 %v3146, %v3147
        %v3149 = vand.u32 %v3148, 4294901760
        %3150 = vmatmul.mubr.f32.gmra.mrb[0].mxu0 %v3149
        %v3151 = vpop.f32.mrb[0].mxu0
        %v3152 = vadd.f32 0.0, %v3151
        %v3153 = vpop.f32.mrb[0].mxu0
        %3154 = vmatprep.mubr.f32.mxu0 0.0
        %v3155 = vand.u32 %v2921, 4294901760
        %v3156 = vsub.f32 %v2921, %v3155
        %v3157 = vand.u32 %v3156, 4294901760
        %v3158 = vsub.f32 %v3156, %v3157
        %v3159 = vand.u32 %v3158, 4294901760
        %3160 = vmatmul.mubr.f32.gmra.mrb[0].mxu0 %v3159
        %v3161 = vpop.f32.mrb[0].mxu0
        %v3162 = vadd.f32 0.0, %v3161
        %v3163 = vpop.f32.mrb[0].mxu0
        %3164 = vmatprep.mubr.f32.mxu0 0.0
        %v3165 = vand.u32 %v2924, 4294901760
        %v3166 = vsub.f32 %v2924, %v3165
        %v3167 = vand.u32 %v3166, 4294901760
        %v3168 = vsub.f32 %v3166, %v3167
        %v3169 = vand.u32 %v3168, 4294901760
        %3170 = vmatmul.mubr.f32.gmra.mrb[0].mxu0 %v3169
        %v3171 = vpop.f32.mrb[0].mxu0
        %v3172 = vadd.f32 0.0, %v3171
        %v3173 = vpop.f32.mrb[0].mxu0
        %3174 = vmatprep.mubr.f32.mxu0 0.0
        %v3175 = vand.u32 %v2927, 4294901760
        %v3176 = vsub.f32 %v2927, %v3175
        %v3177 = vand.u32 %v3176, 4294901760
        %v3178 = vsub.f32 %v3176, %v3177
        %v3179 = vand.u32 %v3178, 4294901760
        %3180 = vmatmul.mubr.f32.gmra.mrb[0].mxu0 %v3179
        %v3181 = vpop.f32.mrb[0].mxu0
        %v3182 = vadd.f32 0.0, %v3181
        %v3183 = vpop.f32.mrb[0].mxu0
        %3184 = vmatprep.mubr.f32.mxu0 0.0
        %v3185 = vand.u32 %v2930, 4294901760
        %v3186 = vsub.f32 %v2930, %v3185
        %v3187 = vand.u32 %v3186, 4294901760
        %v3188 = vsub.f32 %v3186, %v3187
        %v3189 = vand.u32 %v3188, 4294901760
        %3190 = vmatmul.mubr.f32.gmra.mrb[0].mxu0 %v3189
        %v3191 = vpop.f32.mrb[0].mxu0
        %v3192 = vadd.f32 0.0, %v3191
        %v3193 = vpop.f32.mrb[0].mxu0
        %3194 = vmatprep.mubr.f32.mxu0 0.0
        %v3195 = vand.u32 %v2933, 4294901760
        %v3196 = vsub.f32 %v2933, %v3195
        %v3197 = vand.u32 %v3196, 4294901760
        %v3198 = vsub.f32 %v3196, %v3197
        %v3199 = vand.u32 %v3198, 4294901760
        %3200 = vmatmul.mubr.f32.gmra.mrb[0].mxu0 %v3199
        %v3201 = vpop.f32.mrb[0].mxu0
        %v3202 = vadd.f32 0.0, %v3201
        %v3203 = vpop.f32.mrb[0].mxu0
        %3204 = vmatprep.mubr.f32.mxu0 0.0
        %v3205 = vand.u32 %v2936, 4294901760
        %v3206 = vsub.f32 %v2936, %v3205
        %v3207 = vand.u32 %v3206, 4294901760
        %v3208 = vsub.f32 %v3206, %v3207
        %v3209 = vand.u32 %v3208, 4294901760
        %3210 = vmatmul.mubr.f32.gmra.mrb[0].mxu0 %v3209
        %v3211 = vpop.f32.mrb[0].mxu0
        %v3212 = vadd.f32 0.0, %v3211
        %v3213 = vpop.f32.mrb[0].mxu0
        %3214 = vmatprep.mubr.f32.mxu0 0.0
        %v3215 = vand.u32 %v2939, 4294901760
        %v3216 = vsub.f32 %v2939, %v3215
        %v3217 = vand.u32 %v3216, 4294901760
        %v3218 = vsub.f32 %v3216, %v3217
        %v3219 = vand.u32 %v3218, 4294901760
        %3220 = vmatmul.mubr.f32.gmra.mrb[0].mxu0 %v3219
        %v3221 = vpop.f32.mrb[0].mxu0
        %v3222 = vadd.f32 0.0, %v3221
        %v3223 = vpop.f32.mrb[0].mxu0
        %3224 = vmatprep.mubr.f32.mxu0 0.0
        %v3225 = vand.u32 %v2942, 4294901760
        %v3226 = vsub.f32 %v2942, %v3225
        %v3227 = vand.u32 %v3226, 4294901760
        %v3228 = vsub.f32 %v3226, %v3227
        %v3229 = vand.u32 %v3228, 4294901760
        %3230 = vmatmul.mubr.f32.gmra.mrb[0].mxu0 %v3229
        %v3231 = vpop.f32.mrb[0].mxu0
        %v3232 = vadd.f32 0.0, %v3231
        %v3233 = vpop.f32.mrb[0].mxu0
        %3234 = vmatprep.mubr.f32.mxu0 0.0
        %v3235 = vand.u32 %v2945, 4294901760
        %v3236 = vsub.f32 %v2945, %v3235
        %v3237 = vand.u32 %v3236, 4294901760
        %v3238 = vsub.f32 %v3236, %v3237
        %v3239 = vand.u32 %v3238, 4294901760
        %3240 = vmatmul.mubr.f32.gmra.mrb[0].mxu0 %v3239
        %v3241 = vpop.f32.mrb[0].mxu0
        %v3242 = vadd.f32 0.0, %v3241
        %v3243 = vpop.f32.mrb[0].mxu0
        %3244 = vmatprep.mubr.f32.mxu0 0.0
        %v3245 = vand.u32 %v2948, 4294901760
        %v3246 = vsub.f32 %v2948, %v3245
        %v3247 = vand.u32 %v3246, 4294901760
        %v3248 = vsub.f32 %v3246, %v3247
        %v3249 = vand.u32 %v3248, 4294901760
        %3250 = vmatmul.mubr.f32.gmra.mrb[0].mxu0 %v3249
        %v3251 = vpop.f32.mrb[0].mxu0
        %v3252 = vadd.f32 0.0, %v3251
        %v3253 = vpop.f32.mrb[0].mxu0
        %3254 = vmatprep.mubr.f32.mxu0 0.0
        %v3255 = vand.u32 %v2951, 4294901760
        %v3256 = vsub.f32 %v2951, %v3255
        %v3257 = vand.u32 %v3256, 4294901760
        %v3258 = vsub.f32 %v3256, %v3257
        %v3259 = vand.u32 %v3258, 4294901760
        %3260 = vmatmul.mubr.f32.gmra.mrb[0].mxu0 %v3259
        %v3261 = vpop.f32.mrb[0].mxu0
        %v3262 = vadd.f32 0.0, %v3261
        %v3263 = vpop.f32.mrb[0].mxu0
        %3264 = vmatprep.mubr.f32.mxu0 0.0
        %v3265 = vand.u32 %v2954, 4294901760
        %v3266 = vsub.f32 %v2954, %v3265
        %v3267 = vand.u32 %v3266, 4294901760
        %v3268 = vsub.f32 %v3266, %v3267
        %v3269 = vand.u32 %v3268, 4294901760
        %3270 = vmatmul.mubr.f32.gmra.mrb[0].mxu0 %v3269
        %v3271 = vpop.f32.mrb[0].mxu0
        %v3272 = vadd.f32 0.0, %v3271
        %v3273 = vpop.f32.mrb[0].mxu0
        %3274 = vmatprep.mubr.f32.mxu0 0.0
        %v3275 = vand.u32 %v2957, 4294901760
        %v3276 = vsub.f32 %v2957, %v3275
        %v3277 = vand.u32 %v3276, 4294901760
        %v3278 = vsub.f32 %v3276, %v3277
        %v3279 = vand.u32 %v3278, 4294901760
        %3280 = vmatmul.mubr.f32.gmra.mrb[0].mxu0 %v3279
        %v3281 = vpop.f32.mrb[0].mxu0
        %v3282 = vadd.f32 0.0, %v3281
        %v3283 = vpop.f32.mrb[0].mxu0
        %3284 = vmatprep.mubr.f32.mxu0 0.0
        %v3285 = vand.u32 %v2960, 4294901760
        %v3286 = vsub.f32 %v2960, %v3285
        %v3287 = vand.u32 %v3286, 4294901760
        %v3288 = vsub.f32 %v3286, %v3287
        %v3289 = vand.u32 %v3288, 4294901760
        %3290 = vmatmul.mubr.f32.gmra.mrb[0].mxu0 %v3289
        %v3291 = vpop.f32.mrb[0].mxu0
        %v3292 = vadd.f32 0.0, %v3291
        %v3293 = vpop.f32.mrb[0].mxu0
        %3294 = vmatprep.mubr.f32.mxu0 0.0
        %v3295 = vand.u32 %v2963, 4294901760
        %v3296 = vsub.f32 %v2963, %v3295
        %v3297 = vand.u32 %v3296, 4294901760
        %v3298 = vsub.f32 %v3296, %v3297
        %v3299 = vand.u32 %v3298, 4294901760
        %3300 = vmatmul.mubr.f32.gmra.mrb[0].mxu0 %v3299
        %v3301 = vpop.f32.mrb[0].mxu0
        %v3302 = vadd.f32 0.0, %v3301
        %v3303 = vpop.f32.mrb[0].mxu0
        %3304 = vmatprep.mubr.f32.mxu0 0.0
        %v3305 = vand.u32 %v2966, 4294901760
        %v3306 = vsub.f32 %v2966, %v3305
        %v3307 = vand.u32 %v3306, 4294901760
        %v3308 = vsub.f32 %v3306, %v3307
        %v3309 = vand.u32 %v3308, 4294901760
        %3310 = vmatmul.mubr.f32.gmra.mrb[0].mxu0 %v3309
        %v3311 = vpop.f32.mrb[0].mxu0
        %v3312 = vadd.f32 0.0, %v3311
        %v3313 = vpop.f32.mrb[0].mxu0
        %3314 = vmatprep.mubr.f32.mxu0 0.0
        %v3315 = vand.u32 %v2969, 4294901760
        %v3316 = vsub.f32 %v2969, %v3315
        %v3317 = vand.u32 %v3316, 4294901760
        %v3318 = vsub.f32 %v3316, %v3317
        %v3319 = vand.u32 %v3318, 4294901760
        %3320 = vmatmul.mubr.f32.gmra.mrb[0].mxu0 %v3319
        %v3321 = vpop.f32.mrb[0].mxu0
        %v3322 = vadd.f32 0.0, %v3321
        %v3323 = vpop.f32.mrb[0].mxu0
        %3324 = vmatprep.mubr.f32.mxu0 0.0
        %v3325 = vand.u32 %v2972, 4294901760
        %v3326 = vsub.f32 %v2972, %v3325
        %v3327 = vand.u32 %v3326, 4294901760
        %v3328 = vsub.f32 %v3326, %v3327
        %v3329 = vand.u32 %v3328, 4294901760
        %3330 = vmatmul.mubr.f32.gmra.mrb[0].mxu0 %v3329
        %v3331 = vpop.f32.mrb[0].mxu0
        %v3332 = vadd.f32 0.0, %v3331
        %v3333 = vpop.f32.mrb[0].mxu0
        %3334 = vmatprep.mubr.f32.mxu0 0.0
        %v3335 = vand.u32 %v2975, 4294901760
        %v3336 = vsub.f32 %v2975, %v3335
        %v3337 = vand.u32 %v3336, 4294901760
        %v3338 = vsub.f32 %v3336, %v3337
        %v3339 = vand.u32 %v3338, 4294901760
        %3340 = vmatmul.mubr.f32.gmra.mrb[0].mxu0 %v3339
        %v3341 = vpop.f32.mrb[0].mxu0
        %v3342 = vadd.f32 0.0, %v3341
        %v3343 = vpop.f32.mrb[0].mxu0
        %3344 = vmatprep.mubr.f32.mxu0 0.0
        %v3345 = vand.u32 %v2978, 4294901760
        %v3346 = vsub.f32 %v2978, %v3345
        %v3347 = vand.u32 %v3346, 4294901760
        %v3348 = vsub.f32 %v3346, %v3347
        %v3349 = vand.u32 %v3348, 4294901760
        %3350 = vmatmul.mubr.f32.gmra.mrb[0].mxu0 %v3349
        %v3351 = vpop.f32.mrb[0].mxu0
        %v3352 = vadd.f32 0.0, %v3351
        %v3353 = vpop.f32.mrb[0].mxu0
        %3354 = vmatprep.mubr.f32.mxu0 0.0
        %v3355 = vand.u32 %v2981, 4294901760
        %v3356 = vsub.f32 %v2981, %v3355
        %v3357 = vand.u32 %v3356, 4294901760
        %v3358 = vsub.f32 %v3356, %v3357
        %v3359 = vand.u32 %v3358, 4294901760
        %3360 = vmatmul.mubr.f32.gmra.mrb[0].mxu0 %v3359
        %v3361 = vpop.f32.mrb[0].mxu0
        %v3362 = vadd.f32 0.0, %v3361
        %v3363 = vpop.f32.mrb[0].mxu0
        %3364 = vmatprep.mubr.f32.mxu0 0.0
        %v3365 = vand.u32 %v2984, 4294901760
        %v3366 = vsub.f32 %v2984, %v3365
        %v3367 = vand.u32 %v3366, 4294901760
        %v3368 = vsub.f32 %v3366, %v3367
        %v3369 = vand.u32 %v3368, 4294901760
        %3370 = vmatmul.mubr.f32.gmra.mrb[0].mxu0 %v3369
        %v3371 = vpop.f32.mrb[0].mxu0
        %v3372 = vadd.f32 0.0, %v3371
        %v3373 = vpop.f32.mrb[0].mxu0
        %3374 = vdwg.mxu0
        %3375 = vmatprep.subr.mxu0 0.0
        %v3376 = vand.u32 %v2886, 4294901760
        %v3377 = vsub.f32 %v2886, %v3376
        %v3378 = vand.u32 %v3377, 4294901760
        %v3379 = vsub.f32 %v3377, %v3378
        %v3380 = vand.u32 %v3379, 4294901760
        %3381 = vmatpush1.msra.mxu0 %v3380
        %3382 = vmatprep.subr.mxu0 0.0
        %v3383 = vand.u32 %v2887, 4294901760
        %v3384 = vsub.f32 %v2887, %v3383
        %v3385 = vand.u32 %v3384, 4294901760
        %v3386 = vsub.f32 %v3384, %v3385
        %v3387 = vand.u32 %v3386, 4294901760
        %3388 = vmatpush1.msra.mxu0 %v3387
        %3389 = vmatprep.subr.mxu0 0.0
        %v3390 = vand.u32 %v2888, 4294901760
        %v3391 = vsub.f32 %v2888, %v3390
        %v3392 = vand.u32 %v3391, 4294901760
        %v3393 = vsub.f32 %v3391, %v3392
        %v3394 = vand.u32 %v3393, 4294901760
        %3395 = vmatpush1.msra.mxu0 %v3394
        %3396 = vmatprep.subr.mxu0 0.0
        %v3397 = vand.u32 %v2889, 4294901760
        %v3398 = vsub.f32 %v2889, %v3397
        %v3399 = vand.u32 %v3398, 4294901760
        %v3400 = vsub.f32 %v3398, %v3399
        %v3401 = vand.u32 %v3400, 4294901760
        %3402 = vmatpush1.msra.mxu0 %v3401
        %3403 = vmatprep.subr.mxu0 0.0
        %3404 = vmatpush1.msra.mxu0 0.0
        %3405 = vmatprep.subr.mxu0 0.0
        %3406 = vmatpush1.msra.mxu0 0.0
        %3407 = vmatprep.subr.mxu0 0.0
        %3408 = vmatpush1.msra.mxu0 0.0
        %3409 = vmatprep.subr.mxu0 0.0
        %3410 = vmatpush1.msra.mxu0 0.0
        %3411 = vmatprep.subr.mxu0 0.0
        %3412 = vmatpush1.msra.mxu0 0.0
        %3413 = vmatprep.subr.mxu0 0.0
        %3414 = vmatpush1.msra.mxu0 0.0
        %3415 = vmatprep.subr.mxu0 0.0
        %3416 = vmatpush1.msra.mxu0 0.0
        %3417 = vmatprep.subr.mxu0 0.0
        %3418 = vmatpush1.msra.mxu0 0.0
        %3419 = vmatprep.subr.mxu0 0.0
        %3420 = vmatpush1.msra.mxu0 0.0
        %3421 = vmatprep.subr.mxu0 0.0
        %3422 = vmatpush1.msra.mxu0 0.0
        %3423 = vmatprep.subr.mxu0 0.0
        %3424 = vmatpush1.msra.mxu0 0.0
        %3425 = vmatprep.subr.mxu0 0.0
        %3426 = vmatpush1.msra.mxu0 0.0
        %3427 = vmatprep.subr.mxu0 0.0
        %3428 = vmatpush1.msra.mxu0 0.0
        %3429 = vmatprep.subr.mxu0 0.0
        %3430 = vmatpush1.msra.mxu0 0.0
        %3431 = vmatprep.subr.mxu0 0.0
        %3432 = vmatpush1.msra.mxu0 0.0
        %3433 = vmatprep.subr.mxu0 0.0
        %3434 = vmatpush1.msra.mxu0 0.0
        %3435 = vmatprep.subr.mxu0 0.0
        %3436 = vmatpush1.msra.mxu0 0.0
        %3437 = vmatprep.subr.mxu0 0.0
        %3438 = vmatpush1.msra.mxu0 0.0
        %3439 = vmatprep.subr.mxu0 0.0
        %3440 = vmatpush1.msra.mxu0 0.0
        %3441 = vmatprep.subr.mxu0 0.0
        %3442 = vmatpush1.msra.mxu0 0.0
        %3443 = vmatprep.subr.mxu0 0.0
        %3444 = vmatpush1.msra.mxu0 0.0
        %3445 = vmatprep.subr.mxu0 0.0
        %3446 = vmatpush1.msra.mxu0 0.0
        %3447 = vmatprep.subr.mxu0 0.0
        %3448 = vmatpush1.msra.mxu0 0.0
        %3449 = vmatprep.subr.mxu0 0.0
        %3450 = vmatpush1.msra.mxu0 0.0
        %3451 = vmatprep.subr.mxu0 0.0
        %3452 = vmatpush1.msra.mxu0 0.0
        %3453 = vmatprep.subr.mxu0 0.0
        %3454 = vmatpush1.msra.mxu0 0.0
        %3455 = vmatprep.subr.mxu0 0.0
        %3456 = vmatpush1.msra.mxu0 0.0
        %3457 = vmatprep.subr.mxu0 0.0
        %3458 = vmatpush1.msra.mxu0 0.0
        %3459 = vmatprep.mubr.f32.mxu0 0.0
        %v3460 = vand.u32 %v2891, 4294901760
        %3461 = vmatmul.mubr.f32.gmra.mrb[0].mxu0 %v3460
        %v3462 = vpop.f32.mrb[0].mxu0
        %v3463 = vadd.f32 %v3062, %v3462
        %v3464 = vpop.f32.mrb[0].mxu0
        %3465 = vmatprep.mubr.f32.mxu0 0.0
        %v3466 = vand.u32 %v2894, 4294901760
        %3467 = vmatmul.mubr.f32.gmra.mrb[0].mxu0 %v3466
        %v3468 = vpop.f32.mrb[0].mxu0
        %v3469 = vadd.f32 %v3072, %v3468
        %v3470 = vpop.f32.mrb[0].mxu0
        %3471 = vmatprep.mubr.f32.mxu0 0.0
        %v3472 = vand.u32 %v2897, 4294901760
        %3473 = vmatmul.mubr.f32.gmra.mrb[0].mxu0 %v3472
        %v3474 = vpop.f32.mrb[0].mxu0
        %v3475 = vadd.f32 %v3082, %v3474
        %v3476 = vpop.f32.mrb[0].mxu0
        %3477 = vmatprep.mubr.f32.mxu0 0.0
        %v3478 = vand.u32 %v2900, 4294901760
        %3479 = vmatmul.mubr.f32.gmra.mrb[0].mxu0 %v3478
        %v3480 = vpop.f32.mrb[0].mxu0
        %v3481 = vadd.f32 %v3092, %v3480
        %v3482 = vpop.f32.mrb[0].mxu0
        %3483 = vmatprep.mubr.f32.mxu0 0.0
        %v3484 = vand.u32 %v2903, 4294901760
        %3485 = vmatmul.mubr.f32.gmra.mrb[0].mxu0 %v3484
        %v3486 = vpop.f32.mrb[0].mxu0
        %v3487 = vadd.f32 %v3102, %v3486
        %v3488 = vpop.f32.mrb[0].mxu0
        %3489 = vmatprep.mubr.f32.mxu0 0.0
        %v3490 = vand.u32 %v2906, 4294901760
        %3491 = vmatmul.mubr.f32.gmra.mrb[0].mxu0 %v3490
        %v3492 = vpop.f32.mrb[0].mxu0
        %v3493 = vadd.f32 %v3112, %v3492
        %v3494 = vpop.f32.mrb[0].mxu0
        %3495 = vmatprep.mubr.f32.mxu0 0.0
        %v3496 = vand.u32 %v2909, 4294901760
        %3497 = vmatmul.mubr.f32.gmra.mrb[0].mxu0 %v3496
        %v3498 = vpop.f32.mrb[0].mxu0
        %v3499 = vadd.f32 %v3122, %v3498
        %v3500 = vpop.f32.mrb[0].mxu0
        %3501 = vmatprep.mubr.f32.mxu0 0.0
        %v3502 = vand.u32 %v2912, 4294901760
        %3503 = vmatmul.mubr.f32.gmra.mrb[0].mxu0 %v3502
        %v3504 = vpop.f32.mrb[0].mxu0
        %v3505 = vadd.f32 %v3132, %v3504
        %v3506 = vpop.f32.mrb[0].mxu0
        %3507 = vmatprep.mubr.f32.mxu0 0.0
        %v3508 = vand.u32 %v2915, 4294901760
        %3509 = vmatmul.mubr.f32.gmra.mrb[0].mxu0 %v3508
        %v3510 = vpop.f32.mrb[0].mxu0
        %v3511 = vadd.f32 %v3142, %v3510
        %v3512 = vpop.f32.mrb[0].mxu0
        %3513 = vmatprep.mubr.f32.mxu0 0.0
        %v3514 = vand.u32 %v2918, 4294901760
        %3515 = vmatmul.mubr.f32.gmra.mrb[0].mxu0 %v3514
        %v3516 = vpop.f32.mrb[0].mxu0
        %v3517 = vadd.f32 %v3152, %v3516
        %v3518 = vpop.f32.mrb[0].mxu0
        %3519 = vmatprep.mubr.f32.mxu0 0.0
        %v3520 = vand.u32 %v2921, 4294901760
        %3521 = vmatmul.mubr.f32.gmra.mrb[0].mxu0 %v3520
        %v3522 = vpop.f32.mrb[0].mxu0
        %v3523 = vadd.f32 %v3162, %v3522
        %v3524 = vpop.f32.mrb[0].mxu0
        %3525 = vmatprep.mubr.f32.mxu0 0.0
        %v3526 = vand.u32 %v2924, 4294901760
        %3527 = vmatmul.mubr.f32.gmra.mrb[0].mxu0 %v3526
        %v3528 = vpop.f32.mrb[0].mxu0
        %v3529 = vadd.f32 %v3172, %v3528
        %v3530 = vpop.f32.mrb[0].mxu0
        %3531 = vmatprep.mubr.f32.mxu0 0.0
        %v3532 = vand.u32 %v2927, 4294901760
        %3533 = vmatmul.mubr.f32.gmra.mrb[0].mxu0 %v3532
        %v3534 = vpop.f32.mrb[0].mxu0
        %v3535 = vadd.f32 %v3182, %v3534
        %v3536 = vpop.f32.mrb[0].mxu0
        %3537 = vmatprep.mubr.f32.mxu0 0.0
        %v3538 = vand.u32 %v2930, 4294901760
        %3539 = vmatmul.mubr.f32.gmra.mrb[0].mxu0 %v3538
        %v3540 = vpop.f32.mrb[0].mxu0
        %v3541 = vadd.f32 %v3192, %v3540
        %v3542 = vpop.f32.mrb[0].mxu0
        %3543 = vmatprep.mubr.f32.mxu0 0.0
        %v3544 = vand.u32 %v2933, 4294901760
        %3545 = vmatmul.mubr.f32.gmra.mrb[0].mxu0 %v3544
        %v3546 = vpop.f32.mrb[0].mxu0
        %v3547 = vadd.f32 %v3202, %v3546
        %v3548 = vpop.f32.mrb[0].mxu0
        %3549 = vmatprep.mubr.f32.mxu0 0.0
        %v3550 = vand.u32 %v2936, 4294901760
        %3551 = vmatmul.mubr.f32.gmra.mrb[0].mxu0 %v3550
        %v3552 = vpop.f32.mrb[0].mxu0
        %v3553 = vadd.f32 %v3212, %v3552
        %v3554 = vpop.f32.mrb[0].mxu0
        %3555 = vmatprep.mubr.f32.mxu0 0.0
        %v3556 = vand.u32 %v2939, 4294901760
        %3557 = vmatmul.mubr.f32.gmra.mrb[0].mxu0 %v3556
        %v3558 = vpop.f32.mrb[0].mxu0
        %v3559 = vadd.f32 %v3222, %v3558
        %v3560 = vpop.f32.mrb[0].mxu0
        %3561 = vmatprep.mubr.f32.mxu0 0.0
        %v3562 = vand.u32 %v2942, 4294901760
        %3563 = vmatmul.mubr.f32.gmra.mrb[0].mxu0 %v3562
        %v3564 = vpop.f32.mrb[0].mxu0
        %v3565 = vadd.f32 %v3232, %v3564
        %v3566 = vpop.f32.mrb[0].mxu0
        %3567 = vmatprep.mubr.f32.mxu0 0.0
        %v3568 = vand.u32 %v2945, 4294901760
        %3569 = vmatmul.mubr.f32.gmra.mrb[0].mxu0 %v3568
        %v3570 = vpop.f32.mrb[0].mxu0
        %v3571 = vadd.f32 %v3242, %v3570
        %v3572 = vpop.f32.mrb[0].mxu0
        %3573 = vmatprep.mubr.f32.mxu0 0.0
        %v3574 = vand.u32 %v2948, 4294901760
        %3575 = vmatmul.mubr.f32.gmra.mrb[0].mxu0 %v3574
        %v3576 = vpop.f32.mrb[0].mxu0
        %v3577 = vadd.f32 %v3252, %v3576
        %v3578 = vpop.f32.mrb[0].mxu0
        %3579 = vmatprep.mubr.f32.mxu0 0.0
        %v3580 = vand.u32 %v2951, 4294901760
        %3581 = vmatmul.mubr.f32.gmra.mrb[0].mxu0 %v3580
        %v3582 = vpop.f32.mrb[0].mxu0
        %v3583 = vadd.f32 %v3262, %v3582
        %v3584 = vpop.f32.mrb[0].mxu0
        %3585 = vmatprep.mubr.f32.mxu0 0.0
        %v3586 = vand.u32 %v2954, 4294901760
        %3587 = vmatmul.mubr.f32.gmra.mrb[0].mxu0 %v3586
        %v3588 = vpop.f32.mrb[0].mxu0
        %v3589 = vadd.f32 %v3272, %v3588
        %v3590 = vpop.f32.mrb[0].mxu0
        %3591 = vmatprep.mubr.f32.mxu0 0.0
        %v3592 = vand.u32 %v2957, 4294901760
        %3593 = vmatmul.mubr.f32.gmra.mrb[0].mxu0 %v3592
        %v3594 = vpop.f32.mrb[0].mxu0
        %v3595 = vadd.f32 %v3282, %v3594
        %v3596 = vpop.f32.mrb[0].mxu0
        %3597 = vmatprep.mubr.f32.mxu0 0.0
        %v3598 = vand.u32 %v2960, 4294901760
        %3599 = vmatmul.mubr.f32.gmra.mrb[0].mxu0 %v3598
        %v3600 = vpop.f32.mrb[0].mxu0
        %v3601 = vadd.f32 %v3292, %v3600
        %v3602 = vpop.f32.mrb[0].mxu0
        %3603 = vmatprep.mubr.f32.mxu0 0.0
        %v3604 = vand.u32 %v2963, 4294901760
        %3605 = vmatmul.mubr.f32.gmra.mrb[0].mxu0 %v3604
        %v3606 = vpop.f32.mrb[0].mxu0
        %v3607 = vadd.f32 %v3302, %v3606
        %v3608 = vpop.f32.mrb[0].mxu0
        %3609 = vmatprep.mubr.f32.mxu0 0.0
        %v3610 = vand.u32 %v2966, 4294901760
        %3611 = vmatmul.mubr.f32.gmra.mrb[0].mxu0 %v3610
        %v3612 = vpop.f32.mrb[0].mxu0
        %v3613 = vadd.f32 %v3312, %v3612
        %v3614 = vpop.f32.mrb[0].mxu0
        %3615 = vmatprep.mubr.f32.mxu0 0.0
        %v3616 = vand.u32 %v2969, 4294901760
        %3617 = vmatmul.mubr.f32.gmra.mrb[0].mxu0 %v3616
        %v3618 = vpop.f32.mrb[0].mxu0
        %v3619 = vadd.f32 %v3322, %v3618
        %v3620 = vpop.f32.mrb[0].mxu0
        %3621 = vmatprep.mubr.f32.mxu0 0.0
        %v3622 = vand.u32 %v2972, 4294901760
        %3623 = vmatmul.mubr.f32.gmra.mrb[0].mxu0 %v3622
        %v3624 = vpop.f32.mrb[0].mxu0
        %v3625 = vadd.f32 %v3332, %v3624
        %v3626 = vpop.f32.mrb[0].mxu0
        %3627 = vmatprep.mubr.f32.mxu0 0.0
        %v3628 = vand.u32 %v2975, 4294901760
        %3629 = vmatmul.mubr.f32.gmra.mrb[0].mxu0 %v3628
        %v3630 = vpop.f32.mrb[0].mxu0
        %v3631 = vadd.f32 %v3342, %v3630
        %v3632 = vpop.f32.mrb[0].mxu0
        %3633 = vmatprep.mubr.f32.mxu0 0.0
        %v3634 = vand.u32 %v2978, 4294901760
        %3635 = vmatmul.mubr.f32.gmra.mrb[0].mxu0 %v3634
        %v3636 = vpop.f32.mrb[0].mxu0
        %v3637 = vadd.f32 %v3352, %v3636
        %v3638 = vpop.f32.mrb[0].mxu0
        %3639 = vmatprep.mubr.f32.mxu0 0.0
        %v3640 = vand.u32 %v2981, 4294901760
        %3641 = vmatmul.mubr.f32.gmra.mrb[0].mxu0 %v3640
        %v3642 = vpop.f32.mrb[0].mxu0
        %v3643 = vadd.f32 %v3362, %v3642
        %v3644 = vpop.f32.mrb[0].mxu0
        %3645 = vmatprep.mubr.f32.mxu0 0.0
        %v3646 = vand.u32 %v2984, 4294901760
        %3647 = vmatmul.mubr.f32.gmra.mrb[0].mxu0 %v3646
        %v3648 = vpop.f32.mrb[0].mxu0
        %v3649 = vadd.f32 %v3372, %v3648
        %v3650 = vpop.f32.mrb[0].mxu0
        %3651 = vdwg.mxu0
        %3652 = vmatprep.subr.mxu0 0.0
        %v3653 = vand.u32 %v2886, 4294901760
        %v3654 = vsub.f32 %v2886, %v3653
        %3655 = vmatpush1.msra.mxu0 %v3654
        %3656 = vmatprep.subr.mxu0 0.0
        %v3657 = vand.u32 %v2887, 4294901760
        %v3658 = vsub.f32 %v2887, %v3657
        %3659 = vmatpush1.msra.mxu0 %v3658
        %3660 = vmatprep.subr.mxu0 0.0
        %v3661 = vand.u32 %v2888, 4294901760
        %v3662 = vsub.f32 %v2888, %v3661
        %3663 = vmatpush1.msra.mxu0 %v3662
        %3664 = vmatprep.subr.mxu0 0.0
        %v3665 = vand.u32 %v2889, 4294901760
        %v3666 = vsub.f32 %v2889, %v3665
        %3667 = vmatpush1.msra.mxu0 %v3666
        %3668 = vmatprep.subr.mxu0 0.0
        %3669 = vmatpush1.msra.mxu0 0.0
        %3670 = vmatprep.subr.mxu0 0.0
        %3671 = vmatpush1.msra.mxu0 0.0
        %3672 = vmatprep.subr.mxu0 0.0
        %3673 = vmatpush1.msra.mxu0 0.0
        %3674 = vmatprep.subr.mxu0 0.0
        %3675 = vmatpush1.msra.mxu0 0.0
        %3676 = vmatprep.subr.mxu0 0.0
        %3677 = vmatpush1.msra.mxu0 0.0
        %3678 = vmatprep.subr.mxu0 0.0
        %3679 = vmatpush1.msra.mxu0 0.0
        %3680 = vmatprep.subr.mxu0 0.0
        %3681 = vmatpush1.msra.mxu0 0.0
        %3682 = vmatprep.subr.mxu0 0.0
        %3683 = vmatpush1.msra.mxu0 0.0
        %3684 = vmatprep.subr.mxu0 0.0
        %3685 = vmatpush1.msra.mxu0 0.0
        %3686 = vmatprep.subr.mxu0 0.0
        %3687 = vmatpush1.msra.mxu0 0.0
        %3688 = vmatprep.subr.mxu0 0.0
        %3689 = vmatpush1.msra.mxu0 0.0
        %3690 = vmatprep.subr.mxu0 0.0
        %3691 = vmatpush1.msra.mxu0 0.0
        %3692 = vmatprep.subr.mxu0 0.0
        %3693 = vmatpush1.msra.mxu0 0.0
        %3694 = vmatprep.subr.mxu0 0.0
        %3695 = vmatpush1.msra.mxu0 0.0
        %3696 = vmatprep.subr.mxu0 0.0
        %3697 = vmatpush1.msra.mxu0 0.0
        %3698 = vmatprep.subr.mxu0 0.0
        %3699 = vmatpush1.msra.mxu0 0.0
        %3700 = vmatprep.subr.mxu0 0.0
        %3701 = vmatpush1.msra.mxu0 0.0
        %3702 = vmatprep.subr.mxu0 0.0
        %3703 = vmatpush1.msra.mxu0 0.0
        %3704 = vmatprep.subr.mxu0 0.0
        %3705 = vmatpush1.msra.mxu0 0.0
        %3706 = vmatprep.subr.mxu0 0.0
        %3707 = vmatpush1.msra.mxu0 0.0
        %3708 = vmatprep.subr.mxu0 0.0
        %3709 = vmatpush1.msra.mxu0 0.0
        %3710 = vmatprep.subr.mxu0 0.0
        %3711 = vmatpush1.msra.mxu0 0.0
        %3712 = vmatprep.subr.mxu0 0.0
        %3713 = vmatpush1.msra.mxu0 0.0
        %3714 = vmatprep.subr.mxu0 0.0
        %3715 = vmatpush1.msra.mxu0 0.0
        %3716 = vmatprep.subr.mxu0 0.0
        %3717 = vmatpush1.msra.mxu0 0.0
        %3718 = vmatprep.subr.mxu0 0.0
        %3719 = vmatpush1.msra.mxu0 0.0
        %3720 = vmatprep.subr.mxu0 0.0
        %3721 = vmatpush1.msra.mxu0 0.0
        %3722 = vmatprep.subr.mxu0 0.0
        %3723 = vmatpush1.msra.mxu0 0.0
        %3724 = vmatprep.mubr.f32.mxu0 0.0
        %v3725 = vand.u32 %v2891, 4294901760
        %v3726 = vsub.f32 %v2891, %v3725
        %3727 = vmatmul.mubr.f32.gmra.mrb[0].mxu0 %v3726
        %v3728 = vpop.f32.mrb[0].mxu0
        %v3729 = vadd.f32 %v3463, %v3728
        %v3730 = vpop.f32.mrb[0].mxu0
        %3731 = vmatprep.mubr.f32.mxu0 0.0
        %v3732 = vand.u32 %v2894, 4294901760
        %v3733 = vsub.f32 %v2894, %v3732
        %3734 = vmatmul.mubr.f32.gmra.mrb[0].mxu0 %v3733
        %v3735 = vpop.f32.mrb[0].mxu0
        %v3736 = vadd.f32 %v3469, %v3735
        %v3737 = vpop.f32.mrb[0].mxu0
        %3738 = vmatprep.mubr.f32.mxu0 0.0
        %v3739 = vand.u32 %v2897, 4294901760
        %v3740 = vsub.f32 %v2897, %v3739
        %3741 = vmatmul.mubr.f32.gmra.mrb[0].mxu0 %v3740
        %v3742 = vpop.f32.mrb[0].mxu0
        %v3743 = vadd.f32 %v3475, %v3742
        %v3744 = vpop.f32.mrb[0].mxu0
        %3745 = vmatprep.mubr.f32.mxu0 0.0
        %v3746 = vand.u32 %v2900, 4294901760
        %v3747 = vsub.f32 %v2900, %v3746
        %3748 = vmatmul.mubr.f32.gmra.mrb[0].mxu0 %v3747
        %v3749 = vpop.f32.mrb[0].mxu0
        %v3750 = vadd.f32 %v3481, %v3749
        %v3751 = vpop.f32.mrb[0].mxu0
        %3752 = vmatprep.mubr.f32.mxu0 0.0
        %v3753 = vand.u32 %v2903, 4294901760
        %v3754 = vsub.f32 %v2903, %v3753
        %3755 = vmatmul.mubr.f32.gmra.mrb[0].mxu0 %v3754
        %v3756 = vpop.f32.mrb[0].mxu0
        %v3757 = vadd.f32 %v3487, %v3756
        %v3758 = vpop.f32.mrb[0].mxu0
        %3759 = vmatprep.mubr.f32.mxu0 0.0
        %v3760 = vand.u32 %v2906, 4294901760
        %v3761 = vsub.f32 %v2906, %v3760
        %3762 = vmatmul.mubr.f32.gmra.mrb[0].mxu0 %v3761
        %v3763 = vpop.f32.mrb[0].mxu0
        %v3764 = vadd.f32 %v3493, %v3763
        %v3765 = vpop.f32.mrb[0].mxu0
        %3766 = vmatprep.mubr.f32.mxu0 0.0
        %v3767 = vand.u32 %v2909, 4294901760
        %v3768 = vsub.f32 %v2909, %v3767
        %3769 = vmatmul.mubr.f32.gmra.mrb[0].mxu0 %v3768
        %v3770 = vpop.f32.mrb[0].mxu0
        %v3771 = vadd.f32 %v3499, %v3770
        %v3772 = vpop.f32.mrb[0].mxu0
        %3773 = vmatprep.mubr.f32.mxu0 0.0
        %v3774 = vand.u32 %v2912, 4294901760
        %v3775 = vsub.f32 %v2912, %v3774
        %3776 = vmatmul.mubr.f32.gmra.mrb[0].mxu0 %v3775
        %v3777 = vpop.f32.mrb[0].mxu0
        %v3778 = vadd.f32 %v3505, %v3777
        %v3779 = vpop.f32.mrb[0].mxu0
        %3780 = vmatprep.mubr.f32.mxu0 0.0
        %v3781 = vand.u32 %v2915, 4294901760
        %v3782 = vsub.f32 %v2915, %v3781
        %3783 = vmatmul.mubr.f32.gmra.mrb[0].mxu0 %v3782
        %v3784 = vpop.f32.mrb[0].mxu0
        %v3785 = vadd.f32 %v3511, %v3784
        %v3786 = vpop.f32.mrb[0].mxu0
        %3787 = vmatprep.mubr.f32.mxu0 0.0
        %v3788 = vand.u32 %v2918, 4294901760
        %v3789 = vsub.f32 %v2918, %v3788
        %3790 = vmatmul.mubr.f32.gmra.mrb[0].mxu0 %v3789
        %v3791 = vpop.f32.mrb[0].mxu0
        %v3792 = vadd.f32 %v3517, %v3791
        %v3793 = vpop.f32.mrb[0].mxu0
        %3794 = vmatprep.mubr.f32.mxu0 0.0
        %v3795 = vand.u32 %v2921, 4294901760
        %v3796 = vsub.f32 %v2921, %v3795
        %3797 = vmatmul.mubr.f32.gmra.mrb[0].mxu0 %v3796
        %v3798 = vpop.f32.mrb[0].mxu0
        %v3799 = vadd.f32 %v3523, %v3798
        %v3800 = vpop.f32.mrb[0].mxu0
        %3801 = vmatprep.mubr.f32.mxu0 0.0
        %v3802 = vand.u32 %v2924, 4294901760
        %v3803 = vsub.f32 %v2924, %v3802
        %3804 = vmatmul.mubr.f32.gmra.mrb[0].mxu0 %v3803
        %v3805 = vpop.f32.mrb[0].mxu0
        %v3806 = vadd.f32 %v3529, %v3805
        %v3807 = vpop.f32.mrb[0].mxu0
        %3808 = vmatprep.mubr.f32.mxu0 0.0
        %v3809 = vand.u32 %v2927, 4294901760
        %v3810 = vsub.f32 %v2927, %v3809
        %3811 = vmatmul.mubr.f32.gmra.mrb[0].mxu0 %v3810
        %v3812 = vpop.f32.mrb[0].mxu0
        %v3813 = vadd.f32 %v3535, %v3812
        %v3814 = vpop.f32.mrb[0].mxu0
        %3815 = vmatprep.mubr.f32.mxu0 0.0
        %v3816 = vand.u32 %v2930, 4294901760
        %v3817 = vsub.f32 %v2930, %v3816
        %3818 = vmatmul.mubr.f32.gmra.mrb[0].mxu0 %v3817
        %v3819 = vpop.f32.mrb[0].mxu0
        %v3820 = vadd.f32 %v3541, %v3819
        %v3821 = vpop.f32.mrb[0].mxu0
        %3822 = vmatprep.mubr.f32.mxu0 0.0
        %v3823 = vand.u32 %v2933, 4294901760
        %v3824 = vsub.f32 %v2933, %v3823
        %3825 = vmatmul.mubr.f32.gmra.mrb[0].mxu0 %v3824
        %v3826 = vpop.f32.mrb[0].mxu0
        %v3827 = vadd.f32 %v3547, %v3826
        %v3828 = vpop.f32.mrb[0].mxu0
        %3829 = vmatprep.mubr.f32.mxu0 0.0
        %v3830 = vand.u32 %v2936, 4294901760
        %v3831 = vsub.f32 %v2936, %v3830
        %3832 = vmatmul.mubr.f32.gmra.mrb[0].mxu0 %v3831
        %v3833 = vpop.f32.mrb[0].mxu0
        %v3834 = vadd.f32 %v3553, %v3833
        %v3835 = vpop.f32.mrb[0].mxu0
        %3836 = vmatprep.mubr.f32.mxu0 0.0
        %v3837 = vand.u32 %v2939, 4294901760
        %v3838 = vsub.f32 %v2939, %v3837
        %3839 = vmatmul.mubr.f32.gmra.mrb[0].mxu0 %v3838
        %v3840 = vpop.f32.mrb[0].mxu0
        %v3841 = vadd.f32 %v3559, %v3840
        %v3842 = vpop.f32.mrb[0].mxu0
        %3843 = vmatprep.mubr.f32.mxu0 0.0
        %v3844 = vand.u32 %v2942, 4294901760
        %v3845 = vsub.f32 %v2942, %v3844
        %3846 = vmatmul.mubr.f32.gmra.mrb[0].mxu0 %v3845
        %v3847 = vpop.f32.mrb[0].mxu0
        %v3848 = vadd.f32 %v3565, %v3847
        %v3849 = vpop.f32.mrb[0].mxu0
        %3850 = vmatprep.mubr.f32.mxu0 0.0
        %v3851 = vand.u32 %v2945, 4294901760
        %v3852 = vsub.f32 %v2945, %v3851
        %3853 = vmatmul.mubr.f32.gmra.mrb[0].mxu0 %v3852
        %v3854 = vpop.f32.mrb[0].mxu0
        %v3855 = vadd.f32 %v3571, %v3854
        %v3856 = vpop.f32.mrb[0].mxu0
        %3857 = vmatprep.mubr.f32.mxu0 0.0
        %v3858 = vand.u32 %v2948, 4294901760
        %v3859 = vsub.f32 %v2948, %v3858
        %3860 = vmatmul.mubr.f32.gmra.mrb[0].mxu0 %v3859
        %v3861 = vpop.f32.mrb[0].mxu0
        %v3862 = vadd.f32 %v3577, %v3861
        %v3863 = vpop.f32.mrb[0].mxu0
        %3864 = vmatprep.mubr.f32.mxu0 0.0
        %v3865 = vand.u32 %v2951, 4294901760
        %v3866 = vsub.f32 %v2951, %v3865
        %3867 = vmatmul.mubr.f32.gmra.mrb[0].mxu0 %v3866
        %v3868 = vpop.f32.mrb[0].mxu0
        %v3869 = vadd.f32 %v3583, %v3868
        %v3870 = vpop.f32.mrb[0].mxu0
        %3871 = vmatprep.mubr.f32.mxu0 0.0
        %v3872 = vand.u32 %v2954, 4294901760
        %v3873 = vsub.f32 %v2954, %v3872
        %3874 = vmatmul.mubr.f32.gmra.mrb[0].mxu0 %v3873
        %v3875 = vpop.f32.mrb[0].mxu0
        %v3876 = vadd.f32 %v3589, %v3875
        %v3877 = vpop.f32.mrb[0].mxu0
        %3878 = vmatprep.mubr.f32.mxu0 0.0
        %v3879 = vand.u32 %v2957, 4294901760
        %v3880 = vsub.f32 %v2957, %v3879
        %3881 = vmatmul.mubr.f32.gmra.mrb[0].mxu0 %v3880
        %v3882 = vpop.f32.mrb[0].mxu0
        %v3883 = vadd.f32 %v3595, %v3882
        %v3884 = vpop.f32.mrb[0].mxu0
        %3885 = vmatprep.mubr.f32.mxu0 0.0
        %v3886 = vand.u32 %v2960, 4294901760
        %v3887 = vsub.f32 %v2960, %v3886
        %3888 = vmatmul.mubr.f32.gmra.mrb[0].mxu0 %v3887
        %v3889 = vpop.f32.mrb[0].mxu0
        %v3890 = vadd.f32 %v3601, %v3889
        %v3891 = vpop.f32.mrb[0].mxu0
        %3892 = vmatprep.mubr.f32.mxu0 0.0
        %v3893 = vand.u32 %v2963, 4294901760
        %v3894 = vsub.f32 %v2963, %v3893
        %3895 = vmatmul.mubr.f32.gmra.mrb[0].mxu0 %v3894
        %v3896 = vpop.f32.mrb[0].mxu0
        %v3897 = vadd.f32 %v3607, %v3896
        %v3898 = vpop.f32.mrb[0].mxu0
        %3899 = vmatprep.mubr.f32.mxu0 0.0
        %v3900 = vand.u32 %v2966, 4294901760
        %v3901 = vsub.f32 %v2966, %v3900
        %3902 = vmatmul.mubr.f32.gmra.mrb[0].mxu0 %v3901
        %v3903 = vpop.f32.mrb[0].mxu0
        %v3904 = vadd.f32 %v3613, %v3903
        %v3905 = vpop.f32.mrb[0].mxu0
        %3906 = vmatprep.mubr.f32.mxu0 0.0
        %v3907 = vand.u32 %v2969, 4294901760
        %v3908 = vsub.f32 %v2969, %v3907
        %3909 = vmatmul.mubr.f32.gmra.mrb[0].mxu0 %v3908
        %v3910 = vpop.f32.mrb[0].mxu0
        %v3911 = vadd.f32 %v3619, %v3910
        %v3912 = vpop.f32.mrb[0].mxu0
        %3913 = vmatprep.mubr.f32.mxu0 0.0
        %v3914 = vand.u32 %v2972, 4294901760
        %v3915 = vsub.f32 %v2972, %v3914
        %3916 = vmatmul.mubr.f32.gmra.mrb[0].mxu0 %v3915
        %v3917 = vpop.f32.mrb[0].mxu0
        %v3918 = vadd.f32 %v3625, %v3917
        %v3919 = vpop.f32.mrb[0].mxu0
        %3920 = vmatprep.mubr.f32.mxu0 0.0
        %v3921 = vand.u32 %v2975, 4294901760
        %v3922 = vsub.f32 %v2975, %v3921
        %3923 = vmatmul.mubr.f32.gmra.mrb[0].mxu0 %v3922
        %v3924 = vpop.f32.mrb[0].mxu0
        %v3925 = vadd.f32 %v3631, %v3924
        %v3926 = vpop.f32.mrb[0].mxu0
        %3927 = vmatprep.mubr.f32.mxu0 0.0
        %v3928 = vand.u32 %v2978, 4294901760
        %v3929 = vsub.f32 %v2978, %v3928
        %3930 = vmatmul.mubr.f32.gmra.mrb[0].mxu0 %v3929
        %v3931 = vpop.f32.mrb[0].mxu0
        %v3932 = vadd.f32 %v3637, %v3931
        %v3933 = vpop.f32.mrb[0].mxu0
        %3934 = vmatprep.mubr.f32.mxu0 0.0
        %v3935 = vand.u32 %v2981, 4294901760
        %v3936 = vsub.f32 %v2981, %v3935
        %3937 = vmatmul.mubr.f32.gmra.mrb[0].mxu0 %v3936
        %v3938 = vpop.f32.mrb[0].mxu0
        %v3939 = vadd.f32 %v3643, %v3938
        %v3940 = vpop.f32.mrb[0].mxu0
        %3941 = vmatprep.mubr.f32.mxu0 0.0
        %v3942 = vand.u32 %v2984, 4294901760
        %v3943 = vsub.f32 %v2984, %v3942
        %3944 = vmatmul.mubr.f32.gmra.mrb[0].mxu0 %v3943
        %v3945 = vpop.f32.mrb[0].mxu0
        %v3946 = vadd.f32 %v3649, %v3945
        %v3947 = vpop.f32.mrb[0].mxu0
        %3948 = vdwg.mxu0
        %3949 = vmatprep.subr.mxu0 0.0
        %v3950 = vand.u32 %v2886, 4294901760
        %3951 = vmatpush1.msra.mxu0 %v3950
        %3952 = vmatprep.subr.mxu0 0.0
        %v3953 = vand.u32 %v2887, 4294901760
        %3954 = vmatpush1.msra.mxu0 %v3953
        %3955 = vmatprep.subr.mxu0 0.0
        %v3956 = vand.u32 %v2888, 4294901760
        %3957 = vmatpush1.msra.mxu0 %v3956
        %3958 = vmatprep.subr.mxu0 0.0
        %v3959 = vand.u32 %v2889, 4294901760
        %3960 = vmatpush1.msra.mxu0 %v3959
        %3961 = vmatprep.subr.mxu0 0.0
        %3962 = vmatpush1.msra.mxu0 0.0
        %3963 = vmatprep.subr.mxu0 0.0
        %3964 = vmatpush1.msra.mxu0 0.0
        %3965 = vmatprep.subr.mxu0 0.0
        %3966 = vmatpush1.msra.mxu0 0.0
        %3967 = vmatprep.subr.mxu0 0.0
        %3968 = vmatpush1.msra.mxu0 0.0
        %3969 = vmatprep.subr.mxu0 0.0
        %3970 = vmatpush1.msra.mxu0 0.0
        %3971 = vmatprep.subr.mxu0 0.0
        %3972 = vmatpush1.msra.mxu0 0.0
        %3973 = vmatprep.subr.mxu0 0.0
        %3974 = vmatpush1.msra.mxu0 0.0
        %3975 = vmatprep.subr.mxu0 0.0
        %3976 = vmatpush1.msra.mxu0 0.0
        %3977 = vmatprep.subr.mxu0 0.0
        %3978 = vmatpush1.msra.mxu0 0.0
        %3979 = vmatprep.subr.mxu0 0.0
        %3980 = vmatpush1.msra.mxu0 0.0
        %3981 = vmatprep.subr.mxu0 0.0
        %3982 = vmatpush1.msra.mxu0 0.0
        %3983 = vmatprep.subr.mxu0 0.0
        %3984 = vmatpush1.msra.mxu0 0.0
        %3985 = vmatprep.subr.mxu0 0.0
        %3986 = vmatpush1.msra.mxu0 0.0
        %3987 = vmatprep.subr.mxu0 0.0
        %3988 = vmatpush1.msra.mxu0 0.0
        %3989 = vmatprep.subr.mxu0 0.0
        %3990 = vmatpush1.msra.mxu0 0.0
        %3991 = vmatprep.subr.mxu0 0.0
        %3992 = vmatpush1.msra.mxu0 0.0
        %3993 = vmatprep.subr.mxu0 0.0
        %3994 = vmatpush1.msra.mxu0 0.0
        %3995 = vmatprep.subr.mxu0 0.0
        %3996 = vmatpush1.msra.mxu0 0.0
        %3997 = vmatprep.subr.mxu0 0.0
        %3998 = vmatpush1.msra.mxu0 0.0
        %3999 = vmatprep.subr.mxu0 0.0
        %4000 = vmatpush1.msra.mxu0 0.0
        %4001 = vmatprep.subr.mxu0 0.0
        %4002 = vmatpush1.msra.mxu0 0.0
        %4003 = vmatprep.subr.mxu0 0.0
        %4004 = vmatpush1.msra.mxu0 0.0
        %4005 = vmatprep.subr.mxu0 0.0
        %4006 = vmatpush1.msra.mxu0 0.0
        %4007 = vmatprep.subr.mxu0 0.0
        %4008 = vmatpush1.msra.mxu0 0.0
        %4009 = vmatprep.subr.mxu0 0.0
        %4010 = vmatpush1.msra.mxu0 0.0
        %4011 = vmatprep.subr.mxu0 0.0
        %4012 = vmatpush1.msra.mxu0 0.0
        %4013 = vmatprep.subr.mxu0 0.0
        %4014 = vmatpush1.msra.mxu0 0.0
        %4015 = vmatprep.subr.mxu0 0.0
        %4016 = vmatpush1.msra.mxu0 0.0
        %4017 = vmatprep.mubr.f32.mxu0 0.0
        %v4018 = vand.u32 %v2891, 4294901760
        %v4019 = vsub.f32 %v2891, %v4018
        %v4020 = vand.u32 %v4019, 4294901760
        %4021 = vmatmul.mubr.f32.gmra.mrb[0].mxu0 %v4020
        %v4022 = vpop.f32.mrb[0].mxu0
        %v4023 = vadd.f32 %v3729, %v4022
        %v4024 = vpop.f32.mrb[0].mxu0
        %4025 = vmatprep.mubr.f32.mxu0 0.0
        %v4026 = vand.u32 %v2894, 4294901760
        %v4027 = vsub.f32 %v2894, %v4026
        %v4028 = vand.u32 %v4027, 4294901760
        %4029 = vmatmul.mubr.f32.gmra.mrb[0].mxu0 %v4028
        %v4030 = vpop.f32.mrb[0].mxu0
        %v4031 = vadd.f32 %v3736, %v4030
        %v4032 = vpop.f32.mrb[0].mxu0
        %4033 = vmatprep.mubr.f32.mxu0 0.0
        %v4034 = vand.u32 %v2897, 4294901760
        %v4035 = vsub.f32 %v2897, %v4034
        %v4036 = vand.u32 %v4035, 4294901760
        %4037 = vmatmul.mubr.f32.gmra.mrb[0].mxu0 %v4036
        %v4038 = vpop.f32.mrb[0].mxu0
        %v4039 = vadd.f32 %v3743, %v4038
        %v4040 = vpop.f32.mrb[0].mxu0
        %4041 = vmatprep.mubr.f32.mxu0 0.0
        %v4042 = vand.u32 %v2900, 4294901760
        %v4043 = vsub.f32 %v2900, %v4042
        %v4044 = vand.u32 %v4043, 4294901760
        %4045 = vmatmul.mubr.f32.gmra.mrb[0].mxu0 %v4044
        %v4046 = vpop.f32.mrb[0].mxu0
        %v4047 = vadd.f32 %v3750, %v4046
        %v4048 = vpop.f32.mrb[0].mxu0
        %4049 = vmatprep.mubr.f32.mxu0 0.0
        %v4050 = vand.u32 %v2903, 4294901760
        %v4051 = vsub.f32 %v2903, %v4050
        %v4052 = vand.u32 %v4051, 4294901760
        %4053 = vmatmul.mubr.f32.gmra.mrb[0].mxu0 %v4052
        %v4054 = vpop.f32.mrb[0].mxu0
        %v4055 = vadd.f32 %v3757, %v4054
        %v4056 = vpop.f32.mrb[0].mxu0
        %4057 = vmatprep.mubr.f32.mxu0 0.0
        %v4058 = vand.u32 %v2906, 4294901760
        %v4059 = vsub.f32 %v2906, %v4058
        %v4060 = vand.u32 %v4059, 4294901760
        %4061 = vmatmul.mubr.f32.gmra.mrb[0].mxu0 %v4060
        %v4062 = vpop.f32.mrb[0].mxu0
        %v4063 = vadd.f32 %v3764, %v4062
        %v4064 = vpop.f32.mrb[0].mxu0
        %4065 = vmatprep.mubr.f32.mxu0 0.0
        %v4066 = vand.u32 %v2909, 4294901760
        %v4067 = vsub.f32 %v2909, %v4066
        %v4068 = vand.u32 %v4067, 4294901760
        %4069 = vmatmul.mubr.f32.gmra.mrb[0].mxu0 %v4068
        %v4070 = vpop.f32.mrb[0].mxu0
        %v4071 = vadd.f32 %v3771, %v4070
        %v4072 = vpop.f32.mrb[0].mxu0
        %4073 = vmatprep.mubr.f32.mxu0 0.0
        %v4074 = vand.u32 %v2912, 4294901760
        %v4075 = vsub.f32 %v2912, %v4074
        %v4076 = vand.u32 %v4075, 4294901760
        %4077 = vmatmul.mubr.f32.gmra.mrb[0].mxu0 %v4076
        %v4078 = vpop.f32.mrb[0].mxu0
        %v4079 = vadd.f32 %v3778, %v4078
        %v4080 = vpop.f32.mrb[0].mxu0
        %4081 = vmatprep.mubr.f32.mxu0 0.0
        %v4082 = vand.u32 %v2915, 4294901760
        %v4083 = vsub.f32 %v2915, %v4082
        %v4084 = vand.u32 %v4083, 4294901760
        %4085 = vmatmul.mubr.f32.gmra.mrb[0].mxu0 %v4084
        %v4086 = vpop.f32.mrb[0].mxu0
        %v4087 = vadd.f32 %v3785, %v4086
        %v4088 = vpop.f32.mrb[0].mxu0
        %4089 = vmatprep.mubr.f32.mxu0 0.0
        %v4090 = vand.u32 %v2918, 4294901760
        %v4091 = vsub.f32 %v2918, %v4090
        %v4092 = vand.u32 %v4091, 4294901760
        %4093 = vmatmul.mubr.f32.gmra.mrb[0].mxu0 %v4092
        %v4094 = vpop.f32.mrb[0].mxu0
        %v4095 = vadd.f32 %v3792, %v4094
        %v4096 = vpop.f32.mrb[0].mxu0
        %4097 = vmatprep.mubr.f32.mxu0 0.0
        %v4098 = vand.u32 %v2921, 4294901760
        %v4099 = vsub.f32 %v2921, %v4098
        %v4100 = vand.u32 %v4099, 4294901760
        %4101 = vmatmul.mubr.f32.gmra.mrb[0].mxu0 %v4100
        %v4102 = vpop.f32.mrb[0].mxu0
        %v4103 = vadd.f32 %v3799, %v4102
        %v4104 = vpop.f32.mrb[0].mxu0
        %4105 = vmatprep.mubr.f32.mxu0 0.0
        %v4106 = vand.u32 %v2924, 4294901760
        %v4107 = vsub.f32 %v2924, %v4106
        %v4108 = vand.u32 %v4107, 4294901760
        %4109 = vmatmul.mubr.f32.gmra.mrb[0].mxu0 %v4108
        %v4110 = vpop.f32.mrb[0].mxu0
        %v4111 = vadd.f32 %v3806, %v4110
        %v4112 = vpop.f32.mrb[0].mxu0
        %4113 = vmatprep.mubr.f32.mxu0 0.0
        %v4114 = vand.u32 %v2927, 4294901760
        %v4115 = vsub.f32 %v2927, %v4114
        %v4116 = vand.u32 %v4115, 4294901760
        %4117 = vmatmul.mubr.f32.gmra.mrb[0].mxu0 %v4116
        %v4118 = vpop.f32.mrb[0].mxu0
        %v4119 = vadd.f32 %v3813, %v4118
        %v4120 = vpop.f32.mrb[0].mxu0
        %4121 = vmatprep.mubr.f32.mxu0 0.0
        %v4122 = vand.u32 %v2930, 4294901760
        %v4123 = vsub.f32 %v2930, %v4122
        %v4124 = vand.u32 %v4123, 4294901760
        %4125 = vmatmul.mubr.f32.gmra.mrb[0].mxu0 %v4124
        %v4126 = vpop.f32.mrb[0].mxu0
        %v4127 = vadd.f32 %v3820, %v4126
        %v4128 = vpop.f32.mrb[0].mxu0
        %4129 = vmatprep.mubr.f32.mxu0 0.0
        %v4130 = vand.u32 %v2933, 4294901760
        %v4131 = vsub.f32 %v2933, %v4130
        %v4132 = vand.u32 %v4131, 4294901760
        %4133 = vmatmul.mubr.f32.gmra.mrb[0].mxu0 %v4132
        %v4134 = vpop.f32.mrb[0].mxu0
        %v4135 = vadd.f32 %v3827, %v4134
        %v4136 = vpop.f32.mrb[0].mxu0
        %4137 = vmatprep.mubr.f32.mxu0 0.0
        %v4138 = vand.u32 %v2936, 4294901760
        %v4139 = vsub.f32 %v2936, %v4138
        %v4140 = vand.u32 %v4139, 4294901760
        %4141 = vmatmul.mubr.f32.gmra.mrb[0].mxu0 %v4140
        %v4142 = vpop.f32.mrb[0].mxu0
        %v4143 = vadd.f32 %v3834, %v4142
        %v4144 = vpop.f32.mrb[0].mxu0
        %4145 = vmatprep.mubr.f32.mxu0 0.0
        %v4146 = vand.u32 %v2939, 4294901760
        %v4147 = vsub.f32 %v2939, %v4146
        %v4148 = vand.u32 %v4147, 4294901760
        %4149 = vmatmul.mubr.f32.gmra.mrb[0].mxu0 %v4148
        %v4150 = vpop.f32.mrb[0].mxu0
        %v4151 = vadd.f32 %v3841, %v4150
        %v4152 = vpop.f32.mrb[0].mxu0
        %4153 = vmatprep.mubr.f32.mxu0 0.0
        %v4154 = vand.u32 %v2942, 4294901760
        %v4155 = vsub.f32 %v2942, %v4154
        %v4156 = vand.u32 %v4155, 4294901760
        %4157 = vmatmul.mubr.f32.gmra.mrb[0].mxu0 %v4156
        %v4158 = vpop.f32.mrb[0].mxu0
        %v4159 = vadd.f32 %v3848, %v4158
        %v4160 = vpop.f32.mrb[0].mxu0
        %4161 = vmatprep.mubr.f32.mxu0 0.0
        %v4162 = vand.u32 %v2945, 4294901760
        %v4163 = vsub.f32 %v2945, %v4162
        %v4164 = vand.u32 %v4163, 4294901760
        %4165 = vmatmul.mubr.f32.gmra.mrb[0].mxu0 %v4164
        %v4166 = vpop.f32.mrb[0].mxu0
        %v4167 = vadd.f32 %v3855, %v4166
        %v4168 = vpop.f32.mrb[0].mxu0
        %4169 = vmatprep.mubr.f32.mxu0 0.0
        %v4170 = vand.u32 %v2948, 4294901760
        %v4171 = vsub.f32 %v2948, %v4170
        %v4172 = vand.u32 %v4171, 4294901760
        %4173 = vmatmul.mubr.f32.gmra.mrb[0].mxu0 %v4172
        %v4174 = vpop.f32.mrb[0].mxu0
        %v4175 = vadd.f32 %v3862, %v4174
        %v4176 = vpop.f32.mrb[0].mxu0
        %4177 = vmatprep.mubr.f32.mxu0 0.0
        %v4178 = vand.u32 %v2951, 4294901760
        %v4179 = vsub.f32 %v2951, %v4178
        %v4180 = vand.u32 %v4179, 4294901760
        %4181 = vmatmul.mubr.f32.gmra.mrb[0].mxu0 %v4180
        %v4182 = vpop.f32.mrb[0].mxu0
        %v4183 = vadd.f32 %v3869, %v4182
        %v4184 = vpop.f32.mrb[0].mxu0
        %4185 = vmatprep.mubr.f32.mxu0 0.0
        %v4186 = vand.u32 %v2954, 4294901760
        %v4187 = vsub.f32 %v2954, %v4186
        %v4188 = vand.u32 %v4187, 4294901760
        %4189 = vmatmul.mubr.f32.gmra.mrb[0].mxu0 %v4188
        %v4190 = vpop.f32.mrb[0].mxu0
        %v4191 = vadd.f32 %v3876, %v4190
        %v4192 = vpop.f32.mrb[0].mxu0
        %4193 = vmatprep.mubr.f32.mxu0 0.0
        %v4194 = vand.u32 %v2957, 4294901760
        %v4195 = vsub.f32 %v2957, %v4194
        %v4196 = vand.u32 %v4195, 4294901760
        %4197 = vmatmul.mubr.f32.gmra.mrb[0].mxu0 %v4196
        %v4198 = vpop.f32.mrb[0].mxu0
        %v4199 = vadd.f32 %v3883, %v4198
        %v4200 = vpop.f32.mrb[0].mxu0
        %4201 = vmatprep.mubr.f32.mxu0 0.0
        %v4202 = vand.u32 %v2960, 4294901760
        %v4203 = vsub.f32 %v2960, %v4202
        %v4204 = vand.u32 %v4203, 4294901760
        %4205 = vmatmul.mubr.f32.gmra.mrb[0].mxu0 %v4204
        %v4206 = vpop.f32.mrb[0].mxu0
        %v4207 = vadd.f32 %v3890, %v4206
        %v4208 = vpop.f32.mrb[0].mxu0
        %4209 = vmatprep.mubr.f32.mxu0 0.0
        %v4210 = vand.u32 %v2963, 4294901760
        %v4211 = vsub.f32 %v2963, %v4210
        %v4212 = vand.u32 %v4211, 4294901760
        %4213 = vmatmul.mubr.f32.gmra.mrb[0].mxu0 %v4212
        %v4214 = vpop.f32.mrb[0].mxu0
        %v4215 = vadd.f32 %v3897, %v4214
        %v4216 = vpop.f32.mrb[0].mxu0
        %4217 = vmatprep.mubr.f32.mxu0 0.0
        %v4218 = vand.u32 %v2966, 4294901760
        %v4219 = vsub.f32 %v2966, %v4218
        %v4220 = vand.u32 %v4219, 4294901760
        %4221 = vmatmul.mubr.f32.gmra.mrb[0].mxu0 %v4220
        %v4222 = vpop.f32.mrb[0].mxu0
        %v4223 = vadd.f32 %v3904, %v4222
        %v4224 = vpop.f32.mrb[0].mxu0
        %4225 = vmatprep.mubr.f32.mxu0 0.0
        %v4226 = vand.u32 %v2969, 4294901760
        %v4227 = vsub.f32 %v2969, %v4226
        %v4228 = vand.u32 %v4227, 4294901760
        %4229 = vmatmul.mubr.f32.gmra.mrb[0].mxu0 %v4228
        %v4230 = vpop.f32.mrb[0].mxu0
        %v4231 = vadd.f32 %v3911, %v4230
        %v4232 = vpop.f32.mrb[0].mxu0
        %4233 = vmatprep.mubr.f32.mxu0 0.0
        %v4234 = vand.u32 %v2972, 4294901760
        %v4235 = vsub.f32 %v2972, %v4234
        %v4236 = vand.u32 %v4235, 4294901760
        %4237 = vmatmul.mubr.f32.gmra.mrb[0].mxu0 %v4236
        %v4238 = vpop.f32.mrb[0].mxu0
        %v4239 = vadd.f32 %v3918, %v4238
        %v4240 = vpop.f32.mrb[0].mxu0
        %4241 = vmatprep.mubr.f32.mxu0 0.0
        %v4242 = vand.u32 %v2975, 4294901760
        %v4243 = vsub.f32 %v2975, %v4242
        %v4244 = vand.u32 %v4243, 4294901760
        %4245 = vmatmul.mubr.f32.gmra.mrb[0].mxu0 %v4244
        %v4246 = vpop.f32.mrb[0].mxu0
        %v4247 = vadd.f32 %v3925, %v4246
        %v4248 = vpop.f32.mrb[0].mxu0
        %4249 = vmatprep.mubr.f32.mxu0 0.0
        %v4250 = vand.u32 %v2978, 4294901760
        %v4251 = vsub.f32 %v2978, %v4250
        %v4252 = vand.u32 %v4251, 4294901760
        %4253 = vmatmul.mubr.f32.gmra.mrb[0].mxu0 %v4252
        %v4254 = vpop.f32.mrb[0].mxu0
        %v4255 = vadd.f32 %v3932, %v4254
        %v4256 = vpop.f32.mrb[0].mxu0
        %4257 = vmatprep.mubr.f32.mxu0 0.0
        %v4258 = vand.u32 %v2981, 4294901760
        %v4259 = vsub.f32 %v2981, %v4258
        %v4260 = vand.u32 %v4259, 4294901760
        %4261 = vmatmul.mubr.f32.gmra.mrb[0].mxu0 %v4260
        %v4262 = vpop.f32.mrb[0].mxu0
        %v4263 = vadd.f32 %v3939, %v4262
        %v4264 = vpop.f32.mrb[0].mxu0
        %4265 = vmatprep.mubr.f32.mxu0 0.0
        %v4266 = vand.u32 %v2984, 4294901760
        %v4267 = vsub.f32 %v2984, %v4266
        %v4268 = vand.u32 %v4267, 4294901760
        %4269 = vmatmul.mubr.f32.gmra.mrb[0].mxu0 %v4268
        %v4270 = vpop.f32.mrb[0].mxu0
        %v4271 = vadd.f32 %v3946, %v4270
        %v4272 = vpop.f32.mrb[0].mxu0
        %4273 = vdwg.mxu0
        %4274 = vmatprep.subr.mxu0 0.0
        %v4275 = vand.u32 %v2886, 4294901760
        %v4276 = vsub.f32 %v2886, %v4275
        %v4277 = vand.u32 %v4276, 4294901760
        %4278 = vmatpush1.msra.mxu0 %v4277
        %4279 = vmatprep.subr.mxu0 0.0
        %v4280 = vand.u32 %v2887, 4294901760
        %v4281 = vsub.f32 %v2887, %v4280
        %v4282 = vand.u32 %v4281, 4294901760
        %4283 = vmatpush1.msra.mxu0 %v4282
        %4284 = vmatprep.subr.mxu0 0.0
        %v4285 = vand.u32 %v2888, 4294901760
        %v4286 = vsub.f32 %v2888, %v4285
        %v4287 = vand.u32 %v4286, 4294901760
        %4288 = vmatpush1.msra.mxu0 %v4287
        %4289 = vmatprep.subr.mxu0 0.0
        %v4290 = vand.u32 %v2889, 4294901760
        %v4291 = vsub.f32 %v2889, %v4290
        %v4292 = vand.u32 %v4291, 4294901760
        %4293 = vmatpush1.msra.mxu0 %v4292
        %4294 = vmatprep.subr.mxu0 0.0
        %4295 = vmatpush1.msra.mxu0 0.0
        %4296 = vmatprep.subr.mxu0 0.0
        %4297 = vmatpush1.msra.mxu0 0.0
        %4298 = vmatprep.subr.mxu0 0.0
        %4299 = vmatpush1.msra.mxu0 0.0
        %4300 = vmatprep.subr.mxu0 0.0
        %4301 = vmatpush1.msra.mxu0 0.0
        %4302 = vmatprep.subr.mxu0 0.0
        %4303 = vmatpush1.msra.mxu0 0.0
        %4304 = vmatprep.subr.mxu0 0.0
        %4305 = vmatpush1.msra.mxu0 0.0
        %4306 = vmatprep.subr.mxu0 0.0
        %4307 = vmatpush1.msra.mxu0 0.0
        %4308 = vmatprep.subr.mxu0 0.0
        %4309 = vmatpush1.msra.mxu0 0.0
        %4310 = vmatprep.subr.mxu0 0.0
        %4311 = vmatpush1.msra.mxu0 0.0
        %4312 = vmatprep.subr.mxu0 0.0
        %4313 = vmatpush1.msra.mxu0 0.0
        %4314 = vmatprep.subr.mxu0 0.0
        %4315 = vmatpush1.msra.mxu0 0.0
        %4316 = vmatprep.subr.mxu0 0.0
        %4317 = vmatpush1.msra.mxu0 0.0
        %4318 = vmatprep.subr.mxu0 0.0
        %4319 = vmatpush1.msra.mxu0 0.0
        %4320 = vmatprep.subr.mxu0 0.0
        %4321 = vmatpush1.msra.mxu0 0.0
        %4322 = vmatprep.subr.mxu0 0.0
        %4323 = vmatpush1.msra.mxu0 0.0
        %4324 = vmatprep.subr.mxu0 0.0
        %4325 = vmatpush1.msra.mxu0 0.0
        %4326 = vmatprep.subr.mxu0 0.0
        %4327 = vmatpush1.msra.mxu0 0.0
        %4328 = vmatprep.subr.mxu0 0.0
        %4329 = vmatpush1.msra.mxu0 0.0
        %4330 = vmatprep.subr.mxu0 0.0
        %4331 = vmatpush1.msra.mxu0 0.0
        %4332 = vmatprep.subr.mxu0 0.0
        %4333 = vmatpush1.msra.mxu0 0.0
        %4334 = vmatprep.subr.mxu0 0.0
        %4335 = vmatpush1.msra.mxu0 0.0
        %4336 = vmatprep.subr.mxu0 0.0
        %4337 = vmatpush1.msra.mxu0 0.0
        %4338 = vmatprep.subr.mxu0 0.0
        %4339 = vmatpush1.msra.mxu0 0.0
        %4340 = vmatprep.subr.mxu0 0.0
        %4341 = vmatpush1.msra.mxu0 0.0
        %4342 = vmatprep.subr.mxu0 0.0
        %4343 = vmatpush1.msra.mxu0 0.0
        %4344 = vmatprep.subr.mxu0 0.0
        %4345 = vmatpush1.msra.mxu0 0.0
        %4346 = vmatprep.subr.mxu0 0.0
        %4347 = vmatpush1.msra.mxu0 0.0
        %4348 = vmatprep.subr.mxu0 0.0
        %4349 = vmatpush1.msra.mxu0 0.0
        %4350 = vmatprep.mubr.f32.mxu0 0.0
        %v4351 = vand.u32 %v2891, 4294901760
        %4352 = vmatmul.mubr.f32.gmra.mrb[0].mxu0 %v4351
        %v4353 = vpop.f32.mrb[0].mxu0
        %v4354 = vadd.f32 %v4023, %v4353
        %v4355 = vpop.f32.mrb[0].mxu0
        %4356 = vmatprep.mubr.f32.mxu0 0.0
        %v4357 = vand.u32 %v2894, 4294901760
        %4358 = vmatmul.mubr.f32.gmra.mrb[0].mxu0 %v4357
        %v4359 = vpop.f32.mrb[0].mxu0
        %v4360 = vadd.f32 %v4031, %v4359
        %v4361 = vpop.f32.mrb[0].mxu0
        %4362 = vmatprep.mubr.f32.mxu0 0.0
        %v4363 = vand.u32 %v2897, 4294901760
        %4364 = vmatmul.mubr.f32.gmra.mrb[0].mxu0 %v4363
        %v4365 = vpop.f32.mrb[0].mxu0
        %v4366 = vadd.f32 %v4039, %v4365
        %v4367 = vpop.f32.mrb[0].mxu0
        %4368 = vmatprep.mubr.f32.mxu0 0.0
        %v4369 = vand.u32 %v2900, 4294901760
        %4370 = vmatmul.mubr.f32.gmra.mrb[0].mxu0 %v4369
        %v4371 = vpop.f32.mrb[0].mxu0
        %v4372 = vadd.f32 %v4047, %v4371
        %v4373 = vpop.f32.mrb[0].mxu0
        %4374 = vmatprep.mubr.f32.mxu0 0.0
        %v4375 = vand.u32 %v2903, 4294901760
        %4376 = vmatmul.mubr.f32.gmra.mrb[0].mxu0 %v4375
        %v4377 = vpop.f32.mrb[0].mxu0
        %v4378 = vadd.f32 %v4055, %v4377
        %v4379 = vpop.f32.mrb[0].mxu0
        %4380 = vmatprep.mubr.f32.mxu0 0.0
        %v4381 = vand.u32 %v2906, 4294901760
        %4382 = vmatmul.mubr.f32.gmra.mrb[0].mxu0 %v4381
        %v4383 = vpop.f32.mrb[0].mxu0
        %v4384 = vadd.f32 %v4063, %v4383
        %v4385 = vpop.f32.mrb[0].mxu0
        %4386 = vmatprep.mubr.f32.mxu0 0.0
        %v4387 = vand.u32 %v2909, 4294901760
        %4388 = vmatmul.mubr.f32.gmra.mrb[0].mxu0 %v4387
        %v4389 = vpop.f32.mrb[0].mxu0
        %v4390 = vadd.f32 %v4071, %v4389
        %v4391 = vpop.f32.mrb[0].mxu0
        %4392 = vmatprep.mubr.f32.mxu0 0.0
        %v4393 = vand.u32 %v2912, 4294901760
        %4394 = vmatmul.mubr.f32.gmra.mrb[0].mxu0 %v4393
        %v4395 = vpop.f32.mrb[0].mxu0
        %v4396 = vadd.f32 %v4079, %v4395
        %v4397 = vpop.f32.mrb[0].mxu0
        %4398 = vmatprep.mubr.f32.mxu0 0.0
        %v4399 = vand.u32 %v2915, 4294901760
        %4400 = vmatmul.mubr.f32.gmra.mrb[0].mxu0 %v4399
        %v4401 = vpop.f32.mrb[0].mxu0
        %v4402 = vadd.f32 %v4087, %v4401
        %v4403 = vpop.f32.mrb[0].mxu0
        %4404 = vmatprep.mubr.f32.mxu0 0.0
        %v4405 = vand.u32 %v2918, 4294901760
        %4406 = vmatmul.mubr.f32.gmra.mrb[0].mxu0 %v4405
        %v4407 = vpop.f32.mrb[0].mxu0
        %v4408 = vadd.f32 %v4095, %v4407
        %v4409 = vpop.f32.mrb[0].mxu0
        %4410 = vmatprep.mubr.f32.mxu0 0.0
        %v4411 = vand.u32 %v2921, 4294901760
        %4412 = vmatmul.mubr.f32.gmra.mrb[0].mxu0 %v4411
        %v4413 = vpop.f32.mrb[0].mxu0
        %v4414 = vadd.f32 %v4103, %v4413
        %v4415 = vpop.f32.mrb[0].mxu0
        %4416 = vmatprep.mubr.f32.mxu0 0.0
        %v4417 = vand.u32 %v2924, 4294901760
        %4418 = vmatmul.mubr.f32.gmra.mrb[0].mxu0 %v4417
        %v4419 = vpop.f32.mrb[0].mxu0
        %v4420 = vadd.f32 %v4111, %v4419
        %v4421 = vpop.f32.mrb[0].mxu0
        %4422 = vmatprep.mubr.f32.mxu0 0.0
        %v4423 = vand.u32 %v2927, 4294901760
        %4424 = vmatmul.mubr.f32.gmra.mrb[0].mxu0 %v4423
        %v4425 = vpop.f32.mrb[0].mxu0
        %v4426 = vadd.f32 %v4119, %v4425
        %v4427 = vpop.f32.mrb[0].mxu0
        %4428 = vmatprep.mubr.f32.mxu0 0.0
        %v4429 = vand.u32 %v2930, 4294901760
        %4430 = vmatmul.mubr.f32.gmra.mrb[0].mxu0 %v4429
        %v4431 = vpop.f32.mrb[0].mxu0
        %v4432 = vadd.f32 %v4127, %v4431
        %v4433 = vpop.f32.mrb[0].mxu0
        %4434 = vmatprep.mubr.f32.mxu0 0.0
        %v4435 = vand.u32 %v2933, 4294901760
        %4436 = vmatmul.mubr.f32.gmra.mrb[0].mxu0 %v4435
        %v4437 = vpop.f32.mrb[0].mxu0
        %v4438 = vadd.f32 %v4135, %v4437
        %v4439 = vpop.f32.mrb[0].mxu0
        %4440 = vmatprep.mubr.f32.mxu0 0.0
        %v4441 = vand.u32 %v2936, 4294901760
        %4442 = vmatmul.mubr.f32.gmra.mrb[0].mxu0 %v4441
        %v4443 = vpop.f32.mrb[0].mxu0
        %v4444 = vadd.f32 %v4143, %v4443
        %v4445 = vpop.f32.mrb[0].mxu0
        %4446 = vmatprep.mubr.f32.mxu0 0.0
        %v4447 = vand.u32 %v2939, 4294901760
        %4448 = vmatmul.mubr.f32.gmra.mrb[0].mxu0 %v4447
        %v4449 = vpop.f32.mrb[0].mxu0
        %v4450 = vadd.f32 %v4151, %v4449
        %v4451 = vpop.f32.mrb[0].mxu0
        %4452 = vmatprep.mubr.f32.mxu0 0.0
        %v4453 = vand.u32 %v2942, 4294901760
        %4454 = vmatmul.mubr.f32.gmra.mrb[0].mxu0 %v4453
        %v4455 = vpop.f32.mrb[0].mxu0
        %v4456 = vadd.f32 %v4159, %v4455
        %v4457 = vpop.f32.mrb[0].mxu0
        %4458 = vmatprep.mubr.f32.mxu0 0.0
        %v4459 = vand.u32 %v2945, 4294901760
        %4460 = vmatmul.mubr.f32.gmra.mrb[0].mxu0 %v4459
        %v4461 = vpop.f32.mrb[0].mxu0
        %v4462 = vadd.f32 %v4167, %v4461
        %v4463 = vpop.f32.mrb[0].mxu0
        %4464 = vmatprep.mubr.f32.mxu0 0.0
        %v4465 = vand.u32 %v2948, 4294901760
        %4466 = vmatmul.mubr.f32.gmra.mrb[0].mxu0 %v4465
        %v4467 = vpop.f32.mrb[0].mxu0
        %v4468 = vadd.f32 %v4175, %v4467
        %v4469 = vpop.f32.mrb[0].mxu0
        %4470 = vmatprep.mubr.f32.mxu0 0.0
        %v4471 = vand.u32 %v2951, 4294901760
        %4472 = vmatmul.mubr.f32.gmra.mrb[0].mxu0 %v4471
        %v4473 = vpop.f32.mrb[0].mxu0
        %v4474 = vadd.f32 %v4183, %v4473
        %v4475 = vpop.f32.mrb[0].mxu0
        %4476 = vmatprep.mubr.f32.mxu0 0.0
        %v4477 = vand.u32 %v2954, 4294901760
        %4478 = vmatmul.mubr.f32.gmra.mrb[0].mxu0 %v4477
        %v4479 = vpop.f32.mrb[0].mxu0
        %v4480 = vadd.f32 %v4191, %v4479
        %v4481 = vpop.f32.mrb[0].mxu0
        %4482 = vmatprep.mubr.f32.mxu0 0.0
        %v4483 = vand.u32 %v2957, 4294901760
        %4484 = vmatmul.mubr.f32.gmra.mrb[0].mxu0 %v4483
        %v4485 = vpop.f32.mrb[0].mxu0
        %v4486 = vadd.f32 %v4199, %v4485
        %v4487 = vpop.f32.mrb[0].mxu0
        %4488 = vmatprep.mubr.f32.mxu0 0.0
        %v4489 = vand.u32 %v2960, 4294901760
        %4490 = vmatmul.mubr.f32.gmra.mrb[0].mxu0 %v4489
        %v4491 = vpop.f32.mrb[0].mxu0
        %v4492 = vadd.f32 %v4207, %v4491
        %v4493 = vpop.f32.mrb[0].mxu0
        %4494 = vmatprep.mubr.f32.mxu0 0.0
        %v4495 = vand.u32 %v2963, 4294901760
        %4496 = vmatmul.mubr.f32.gmra.mrb[0].mxu0 %v4495
        %v4497 = vpop.f32.mrb[0].mxu0
        %v4498 = vadd.f32 %v4215, %v4497
        %v4499 = vpop.f32.mrb[0].mxu0
        %4500 = vmatprep.mubr.f32.mxu0 0.0
        %v4501 = vand.u32 %v2966, 4294901760
        %4502 = vmatmul.mubr.f32.gmra.mrb[0].mxu0 %v4501
        %v4503 = vpop.f32.mrb[0].mxu0
        %v4504 = vadd.f32 %v4223, %v4503
        %v4505 = vpop.f32.mrb[0].mxu0
        %4506 = vmatprep.mubr.f32.mxu0 0.0
        %v4507 = vand.u32 %v2969, 4294901760
        %4508 = vmatmul.mubr.f32.gmra.mrb[0].mxu0 %v4507
        %v4509 = vpop.f32.mrb[0].mxu0
        %v4510 = vadd.f32 %v4231, %v4509
        %v4511 = vpop.f32.mrb[0].mxu0
        %4512 = vmatprep.mubr.f32.mxu0 0.0
        %v4513 = vand.u32 %v2972, 4294901760
        %4514 = vmatmul.mubr.f32.gmra.mrb[0].mxu0 %v4513
        %v4515 = vpop.f32.mrb[0].mxu0
        %v4516 = vadd.f32 %v4239, %v4515
        %v4517 = vpop.f32.mrb[0].mxu0
        %4518 = vmatprep.mubr.f32.mxu0 0.0
        %v4519 = vand.u32 %v2975, 4294901760
        %4520 = vmatmul.mubr.f32.gmra.mrb[0].mxu0 %v4519
        %v4521 = vpop.f32.mrb[0].mxu0
        %v4522 = vadd.f32 %v4247, %v4521
        %v4523 = vpop.f32.mrb[0].mxu0
        %4524 = vmatprep.mubr.f32.mxu0 0.0
        %v4525 = vand.u32 %v2978, 4294901760
        %4526 = vmatmul.mubr.f32.gmra.mrb[0].mxu0 %v4525
        %v4527 = vpop.f32.mrb[0].mxu0
        %v4528 = vadd.f32 %v4255, %v4527
        %v4529 = vpop.f32.mrb[0].mxu0
        %4530 = vmatprep.mubr.f32.mxu0 0.0
        %v4531 = vand.u32 %v2981, 4294901760
        %4532 = vmatmul.mubr.f32.gmra.mrb[0].mxu0 %v4531
        %v4533 = vpop.f32.mrb[0].mxu0
        %v4534 = vadd.f32 %v4263, %v4533
        %v4535 = vpop.f32.mrb[0].mxu0
        %4536 = vmatprep.mubr.f32.mxu0 0.0
        %v4537 = vand.u32 %v2984, 4294901760
        %4538 = vmatmul.mubr.f32.gmra.mrb[0].mxu0 %v4537
        %v4539 = vpop.f32.mrb[0].mxu0
        %v4540 = vadd.f32 %v4271, %v4539
        %v4541 = vpop.f32.mrb[0].mxu0
        %4542 = vdwg.mxu0
        %4543 = vmatprep.subr.mxu0 0.0
        %v4544 = vand.u32 %v2886, 4294901760
        %4545 = vmatpush1.msra.mxu0 %v4544
        %4546 = vmatprep.subr.mxu0 0.0
        %v4547 = vand.u32 %v2887, 4294901760
        %4548 = vmatpush1.msra.mxu0 %v4547
        %4549 = vmatprep.subr.mxu0 0.0
        %v4550 = vand.u32 %v2888, 4294901760
        %4551 = vmatpush1.msra.mxu0 %v4550
        %4552 = vmatprep.subr.mxu0 0.0
        %v4553 = vand.u32 %v2889, 4294901760
        %4554 = vmatpush1.msra.mxu0 %v4553
        %4555 = vmatprep.subr.mxu0 0.0
        %4556 = vmatpush1.msra.mxu0 0.0
        %4557 = vmatprep.subr.mxu0 0.0
        %4558 = vmatpush1.msra.mxu0 0.0
        %4559 = vmatprep.subr.mxu0 0.0
        %4560 = vmatpush1.msra.mxu0 0.0
        %4561 = vmatprep.subr.mxu0 0.0
        %4562 = vmatpush1.msra.mxu0 0.0
        %4563 = vmatprep.subr.mxu0 0.0
        %4564 = vmatpush1.msra.mxu0 0.0
        %4565 = vmatprep.subr.mxu0 0.0
        %4566 = vmatpush1.msra.mxu0 0.0
        %4567 = vmatprep.subr.mxu0 0.0
        %4568 = vmatpush1.msra.mxu0 0.0
        %4569 = vmatprep.subr.mxu0 0.0
        %4570 = vmatpush1.msra.mxu0 0.0
        %4571 = vmatprep.subr.mxu0 0.0
        %4572 = vmatpush1.msra.mxu0 0.0
        %4573 = vmatprep.subr.mxu0 0.0
        %4574 = vmatpush1.msra.mxu0 0.0
        %4575 = vmatprep.subr.mxu0 0.0
        %4576 = vmatpush1.msra.mxu0 0.0
        %4577 = vmatprep.subr.mxu0 0.0
        %4578 = vmatpush1.msra.mxu0 0.0
        %4579 = vmatprep.subr.mxu0 0.0
        %4580 = vmatpush1.msra.mxu0 0.0
        %4581 = vmatprep.subr.mxu0 0.0
        %4582 = vmatpush1.msra.mxu0 0.0
        %4583 = vmatprep.subr.mxu0 0.0
        %4584 = vmatpush1.msra.mxu0 0.0
        %4585 = vmatprep.subr.mxu0 0.0
        %4586 = vmatpush1.msra.mxu0 0.0
        %4587 = vmatprep.subr.mxu0 0.0
        %4588 = vmatpush1.msra.mxu0 0.0
        %4589 = vmatprep.subr.mxu0 0.0
        %4590 = vmatpush1.msra.mxu0 0.0
        %4591 = vmatprep.subr.mxu0 0.0
        %4592 = vmatpush1.msra.mxu0 0.0
        %4593 = vmatprep.subr.mxu0 0.0
        %4594 = vmatpush1.msra.mxu0 0.0
        %4595 = vmatprep.subr.mxu0 0.0
        %4596 = vmatpush1.msra.mxu0 0.0
        %4597 = vmatprep.subr.mxu0 0.0
        %4598 = vmatpush1.msra.mxu0 0.0
        %4599 = vmatprep.subr.mxu0 0.0
        %4600 = vmatpush1.msra.mxu0 0.0
        %4601 = vmatprep.subr.mxu0 0.0
        %4602 = vmatpush1.msra.mxu0 0.0
        %4603 = vmatprep.subr.mxu0 0.0
        %4604 = vmatpush1.msra.mxu0 0.0
        %4605 = vmatprep.subr.mxu0 0.0
        %4606 = vmatpush1.msra.mxu0 0.0
        %4607 = vmatprep.subr.mxu0 0.0
        %4608 = vmatpush1.msra.mxu0 0.0
        %4609 = vmatprep.subr.mxu0 0.0
        %4610 = vmatpush1.msra.mxu0 0.0
        %4611 = vmatprep.mubr.f32.mxu0 0.0
        %v4612 = vand.u32 %v2891, 4294901760
        %4613 = vmatmul.mubr.f32.gmra.mrb[0].mxu0 %v4612
        %v4614 = vpop.f32.mrb[0].mxu0
        %v4615 = vadd.f32 %v4354, %v4614
        %v4616 = vpop.f32.mrb[0].mxu0
        %4617 = vmatprep.mubr.f32.mxu0 0.0
        %v4618 = vand.u32 %v2894, 4294901760
        %4619 = vmatmul.mubr.f32.gmra.mrb[0].mxu0 %v4618
        %v4620 = vpop.f32.mrb[0].mxu0
        %v4621 = vadd.f32 %v4360, %v4620
        %v4622 = vpop.f32.mrb[0].mxu0
        %4623 = vmatprep.mubr.f32.mxu0 0.0
        %v4624 = vand.u32 %v2897, 4294901760
        %4625 = vmatmul.mubr.f32.gmra.mrb[0].mxu0 %v4624
        %v4626 = vpop.f32.mrb[0].mxu0
        %v4627 = vadd.f32 %v4366, %v4626
        %v4628 = vpop.f32.mrb[0].mxu0
        %4629 = vmatprep.mubr.f32.mxu0 0.0
        %v4630 = vand.u32 %v2900, 4294901760
        %4631 = vmatmul.mubr.f32.gmra.mrb[0].mxu0 %v4630
        %v4632 = vpop.f32.mrb[0].mxu0
        %v4633 = vadd.f32 %v4372, %v4632
        %v4634 = vpop.f32.mrb[0].mxu0
        %4635 = vmatprep.mubr.f32.mxu0 0.0
        %v4636 = vand.u32 %v2903, 4294901760
        %4637 = vmatmul.mubr.f32.gmra.mrb[0].mxu0 %v4636
        %v4638 = vpop.f32.mrb[0].mxu0
        %v4639 = vadd.f32 %v4378, %v4638
        %v4640 = vpop.f32.mrb[0].mxu0
        %4641 = vmatprep.mubr.f32.mxu0 0.0
        %v4642 = vand.u32 %v2906, 4294901760
        %4643 = vmatmul.mubr.f32.gmra.mrb[0].mxu0 %v4642
        %v4644 = vpop.f32.mrb[0].mxu0
        %v4645 = vadd.f32 %v4384, %v4644
        %v4646 = vpop.f32.mrb[0].mxu0
        %4647 = vmatprep.mubr.f32.mxu0 0.0
        %v4648 = vand.u32 %v2909, 4294901760
        %4649 = vmatmul.mubr.f32.gmra.mrb[0].mxu0 %v4648
        %v4650 = vpop.f32.mrb[0].mxu0
        %v4651 = vadd.f32 %v4390, %v4650
        %v4652 = vpop.f32.mrb[0].mxu0
        %4653 = vmatprep.mubr.f32.mxu0 0.0
        %v4654 = vand.u32 %v2912, 4294901760
        %4655 = vmatmul.mubr.f32.gmra.mrb[0].mxu0 %v4654
        %v4656 = vpop.f32.mrb[0].mxu0
        %v4657 = vadd.f32 %v4396, %v4656
        %v4658 = vpop.f32.mrb[0].mxu0
        %4659 = vmatprep.mubr.f32.mxu0 0.0
        %v4660 = vand.u32 %v2915, 4294901760
        %4661 = vmatmul.mubr.f32.gmra.mrb[0].mxu0 %v4660
        %v4662 = vpop.f32.mrb[0].mxu0
        %v4663 = vadd.f32 %v4402, %v4662
        %v4664 = vpop.f32.mrb[0].mxu0
        %4665 = vmatprep.mubr.f32.mxu0 0.0
        %v4666 = vand.u32 %v2918, 4294901760
        %4667 = vmatmul.mubr.f32.gmra.mrb[0].mxu0 %v4666
        %v4668 = vpop.f32.mrb[0].mxu0
        %v4669 = vadd.f32 %v4408, %v4668
        %v4670 = vpop.f32.mrb[0].mxu0
        %4671 = vmatprep.mubr.f32.mxu0 0.0
        %v4672 = vand.u32 %v2921, 4294901760
        %4673 = vmatmul.mubr.f32.gmra.mrb[0].mxu0 %v4672
        %v4674 = vpop.f32.mrb[0].mxu0
        %v4675 = vadd.f32 %v4414, %v4674
        %v4676 = vpop.f32.mrb[0].mxu0
        %4677 = vmatprep.mubr.f32.mxu0 0.0
        %v4678 = vand.u32 %v2924, 4294901760
        %4679 = vmatmul.mubr.f32.gmra.mrb[0].mxu0 %v4678
        %v4680 = vpop.f32.mrb[0].mxu0
        %v4681 = vadd.f32 %v4420, %v4680
        %v4682 = vpop.f32.mrb[0].mxu0
        %4683 = vmatprep.mubr.f32.mxu0 0.0
        %v4684 = vand.u32 %v2927, 4294901760
        %4685 = vmatmul.mubr.f32.gmra.mrb[0].mxu0 %v4684
        %v4686 = vpop.f32.mrb[0].mxu0
        %v4687 = vadd.f32 %v4426, %v4686
        %v4688 = vpop.f32.mrb[0].mxu0
        %4689 = vmatprep.mubr.f32.mxu0 0.0
        %v4690 = vand.u32 %v2930, 4294901760
        %4691 = vmatmul.mubr.f32.gmra.mrb[0].mxu0 %v4690
        %v4692 = vpop.f32.mrb[0].mxu0
        %v4693 = vadd.f32 %v4432, %v4692
        %v4694 = vpop.f32.mrb[0].mxu0
        %4695 = vmatprep.mubr.f32.mxu0 0.0
        %v4696 = vand.u32 %v2933, 4294901760
        %4697 = vmatmul.mubr.f32.gmra.mrb[0].mxu0 %v4696
        %v4698 = vpop.f32.mrb[0].mxu0
        %v4699 = vadd.f32 %v4438, %v4698
        %v4700 = vpop.f32.mrb[0].mxu0
        %4701 = vmatprep.mubr.f32.mxu0 0.0
        %v4702 = vand.u32 %v2936, 4294901760
        %4703 = vmatmul.mubr.f32.gmra.mrb[0].mxu0 %v4702
        %v4704 = vpop.f32.mrb[0].mxu0
        %v4705 = vadd.f32 %v4444, %v4704
        %v4706 = vpop.f32.mrb[0].mxu0
        %4707 = vmatprep.mubr.f32.mxu0 0.0
        %v4708 = vand.u32 %v2939, 4294901760
        %4709 = vmatmul.mubr.f32.gmra.mrb[0].mxu0 %v4708
        %v4710 = vpop.f32.mrb[0].mxu0
        %v4711 = vadd.f32 %v4450, %v4710
        %v4712 = vpop.f32.mrb[0].mxu0
        %4713 = vmatprep.mubr.f32.mxu0 0.0
        %v4714 = vand.u32 %v2942, 4294901760
        %4715 = vmatmul.mubr.f32.gmra.mrb[0].mxu0 %v4714
        %v4716 = vpop.f32.mrb[0].mxu0
        %v4717 = vadd.f32 %v4456, %v4716
        %v4718 = vpop.f32.mrb[0].mxu0
        %4719 = vmatprep.mubr.f32.mxu0 0.0
        %v4720 = vand.u32 %v2945, 4294901760
        %4721 = vmatmul.mubr.f32.gmra.mrb[0].mxu0 %v4720
        %v4722 = vpop.f32.mrb[0].mxu0
        %v4723 = vadd.f32 %v4462, %v4722
        %v4724 = vpop.f32.mrb[0].mxu0
        %4725 = vmatprep.mubr.f32.mxu0 0.0
        %v4726 = vand.u32 %v2948, 4294901760
        %4727 = vmatmul.mubr.f32.gmra.mrb[0].mxu0 %v4726
        %v4728 = vpop.f32.mrb[0].mxu0
        %v4729 = vadd.f32 %v4468, %v4728
        %v4730 = vpop.f32.mrb[0].mxu0
        %4731 = vmatprep.mubr.f32.mxu0 0.0
        %v4732 = vand.u32 %v2951, 4294901760
        %4733 = vmatmul.mubr.f32.gmra.mrb[0].mxu0 %v4732
        %v4734 = vpop.f32.mrb[0].mxu0
        %v4735 = vadd.f32 %v4474, %v4734
        %v4736 = vpop.f32.mrb[0].mxu0
        %4737 = vmatprep.mubr.f32.mxu0 0.0
        %v4738 = vand.u32 %v2954, 4294901760
        %4739 = vmatmul.mubr.f32.gmra.mrb[0].mxu0 %v4738
        %v4740 = vpop.f32.mrb[0].mxu0
        %v4741 = vadd.f32 %v4480, %v4740
        %v4742 = vpop.f32.mrb[0].mxu0
        %4743 = vmatprep.mubr.f32.mxu0 0.0
        %v4744 = vand.u32 %v2957, 4294901760
        %4745 = vmatmul.mubr.f32.gmra.mrb[0].mxu0 %v4744
        %v4746 = vpop.f32.mrb[0].mxu0
        %v4747 = vadd.f32 %v4486, %v4746
        %v4748 = vpop.f32.mrb[0].mxu0
        %4749 = vmatprep.mubr.f32.mxu0 0.0
        %v4750 = vand.u32 %v2960, 4294901760
        %4751 = vmatmul.mubr.f32.gmra.mrb[0].mxu0 %v4750
        %v4752 = vpop.f32.mrb[0].mxu0
        %v4753 = vadd.f32 %v4492, %v4752
        %v4754 = vpop.f32.mrb[0].mxu0
        %4755 = vmatprep.mubr.f32.mxu0 0.0
        %v4756 = vand.u32 %v2963, 4294901760
        %4757 = vmatmul.mubr.f32.gmra.mrb[0].mxu0 %v4756
        %v4758 = vpop.f32.mrb[0].mxu0
        %v4759 = vadd.f32 %v4498, %v4758
        %v4760 = vpop.f32.mrb[0].mxu0
        %4761 = vmatprep.mubr.f32.mxu0 0.0
        %v4762 = vand.u32 %v2966, 4294901760
        %4763 = vmatmul.mubr.f32.gmra.mrb[0].mxu0 %v4762
        %v4764 = vpop.f32.mrb[0].mxu0
        %v4765 = vadd.f32 %v4504, %v4764
        %v4766 = vpop.f32.mrb[0].mxu0
        %4767 = vmatprep.mubr.f32.mxu0 0.0
        %v4768 = vand.u32 %v2969, 4294901760
        %4769 = vmatmul.mubr.f32.gmra.mrb[0].mxu0 %v4768
        %v4770 = vpop.f32.mrb[0].mxu0
        %v4771 = vadd.f32 %v4510, %v4770
        %v4772 = vpop.f32.mrb[0].mxu0
        %4773 = vmatprep.mubr.f32.mxu0 0.0
        %v4774 = vand.u32 %v2972, 4294901760
        %4775 = vmatmul.mubr.f32.gmra.mrb[0].mxu0 %v4774
        %v4776 = vpop.f32.mrb[0].mxu0
        %v4777 = vadd.f32 %v4516, %v4776
        %v4778 = vpop.f32.mrb[0].mxu0
        %4779 = vmatprep.mubr.f32.mxu0 0.0
        %v4780 = vand.u32 %v2975, 4294901760
        %4781 = vmatmul.mubr.f32.gmra.mrb[0].mxu0 %v4780
        %v4782 = vpop.f32.mrb[0].mxu0
        %v4783 = vadd.f32 %v4522, %v4782
        %v4784 = vpop.f32.mrb[0].mxu0
        %4785 = vmatprep.mubr.f32.mxu0 0.0
        %v4786 = vand.u32 %v2978, 4294901760
        %4787 = vmatmul.mubr.f32.gmra.mrb[0].mxu0 %v4786
        %v4788 = vpop.f32.mrb[0].mxu0
        %v4789 = vadd.f32 %v4528, %v4788
        %v4790 = vpop.f32.mrb[0].mxu0
        %4791 = vmatprep.mubr.f32.mxu0 0.0
        %v4792 = vand.u32 %v2981, 4294901760
        %4793 = vmatmul.mubr.f32.gmra.mrb[0].mxu0 %v4792
        %v4794 = vpop.f32.mrb[0].mxu0
        %v4795 = vadd.f32 %v4534, %v4794
        %v4796 = vpop.f32.mrb[0].mxu0
        %4797 = vmatprep.mubr.f32.mxu0 0.0
        %v4798 = vand.u32 %v2984, 4294901760
        %4799 = vmatmul.mubr.f32.gmra.mrb[0].mxu0 %v4798
        %v4800 = vpop.f32.mrb[0].mxu0
        %v4801 = vadd.f32 %v4540, %v4800
        %v4802 = vpop.f32.mrb[0].mxu0
        %4803 = vdwg.mxu0
        %v4804 = vsub.f32 %v2760, %v4615
        %v4805 = vsub.f32 %v2763, %v4621
        %v4806 = vsub.f32 %v2768, %v4627
        %v4807 = vsub.f32 %v2771, %v4633
        %v4808 = vsub.f32 %v2776, %v4639
        %v4809 = vsub.f32 %v2779, %v4645
        %v4810 = vsub.f32 %v2784, %v4651
        %v4811 = vsub.f32 %v2787, %v4657
        %v4812 = vsub.f32 %v2792, %v4663
        %v4813 = vsub.f32 %v2795, %v4669
        %v4814 = vsub.f32 %v2800, %v4675
        %v4815 = vsub.f32 %v2803, %v4681
        %v4816 = vsub.f32 %v2808, %v4687
        %v4817 = vsub.f32 %v2811, %v4693
        %v4818 = vsub.f32 %v2816, %v4699
        %v4819 = vsub.f32 %v2819, %v4705
        %v4820 = vsub.f32 %v2824, %v4711
        %v4821 = vsub.f32 %v2827, %v4717
        %v4822 = vsub.f32 %v2832, %v4723
        %v4823 = vsub.f32 %v2835, %v4729
        %v4824 = vsub.f32 %v2840, %v4735
        %v4825 = vsub.f32 %v2843, %v4741
        %v4826 = vsub.f32 %v2848, %v4747
        %v4827 = vsub.f32 %v2851, %v4753
        %v4828 = vsub.f32 %v2856, %v4759
        %v4829 = vsub.f32 %v2859, %v4765
        %v4830 = vsub.f32 %v2864, %v4771
        %v4831 = vsub.f32 %v2867, %v4777
        %v4832 = vsub.f32 %v2872, %v4783
        %v4833 = vsub.f32 %v2875, %v4789
        %v4834 = vsub.f32 %v2880, %v4795
        %v4835 = vsub.f32 %v2883, %v4801
        %v4836 = vmul.f32 %v4804, %v4804
        %v4837 = vmul.f32 %v4805, %v4805
        %v4838 = vmul.f32 %v4806, %v4806
        %v4839 = vmul.f32 %v4807, %v4807
        %v4840 = vmul.f32 %v4808, %v4808
        %v4841 = vmul.f32 %v4809, %v4809
        %v4842 = vmul.f32 %v4810, %v4810
        %v4843 = vmul.f32 %v4811, %v4811
        %v4844 = vmul.f32 %v4812, %v4812
        %v4845 = vmul.f32 %v4813, %v4813
        %v4846 = vmul.f32 %v4814, %v4814
        %v4847 = vmul.f32 %v4815, %v4815
        %v4848 = vmul.f32 %v4816, %v4816
        %v4849 = vmul.f32 %v4817, %v4817
        %v4850 = vmul.f32 %v4818, %v4818
        %v4851 = vmul.f32 %v4819, %v4819
        %v4852 = vmul.f32 %v4820, %v4820
        %v4853 = vmul.f32 %v4821, %v4821
        %v4854 = vmul.f32 %v4822, %v4822
        %v4855 = vmul.f32 %v4823, %v4823
        %v4856 = vmul.f32 %v4824, %v4824
        %v4857 = vmul.f32 %v4825, %v4825
        %v4858 = vmul.f32 %v4826, %v4826
        %v4859 = vmul.f32 %v4827, %v4827
        %v4860 = vmul.f32 %v4828, %v4828
        %v4861 = vmul.f32 %v4829, %v4829
        %v4862 = vmul.f32 %v4830, %v4830
        %v4863 = vmul.f32 %v4831, %v4831
        %v4864 = vmul.f32 %v4832, %v4832
        %v4865 = vmul.f32 %v4833, %v4833
        %v4866 = vmul.f32 %v4834, %v4834
        %v4867 = vmul.f32 %v4835, %v4835
        %v4869 = vsel %vm791, %v4836, 0
        %v4872 = vsel %vm791, %v4837, 0
        %v4875 = vsel %vm791, %v4838, 0
        %v4878 = vsel %vm791, %v4839, 0
        %v4881 = vsel %vm791, %v4840, 0
        %v4884 = vsel %vm791, %v4841, 0
        %v4887 = vsel %vm791, %v4842, 0
        %v4890 = vsel %vm791, %v4843, 0
        %v4893 = vsel %vm791, %v4844, 0
        %v4896 = vsel %vm791, %v4845, 0
        %v4899 = vsel %vm791, %v4846, 0
        %v4902 = vsel %vm791, %v4847, 0
        %v4905 = vsel %vm791, %v4848, 0
        %v4908 = vsel %vm791, %v4849, 0
        %v4911 = vsel %vm791, %v4850, 0
        %v4914 = vsel %vm791, %v4851, 0
        %v4917 = vsel %vm791, %v4852, 0
        %v4920 = vsel %vm791, %v4853, 0
        %v4923 = vsel %vm791, %v4854, 0
        %v4926 = vsel %vm791, %v4855, 0
        %v4929 = vsel %vm791, %v4856, 0
        %v4932 = vsel %vm791, %v4857, 0
        %v4935 = vsel %vm791, %v4858, 0
        %v4938 = vsel %vm791, %v4859, 0
        %v4941 = vsel %vm791, %v4860, 0
        %v4944 = vsel %vm791, %v4861, 0
        %v4947 = vsel %vm791, %v4862, 0
        %v4950 = vsel %vm791, %v4863, 0
        %v4953 = vsel %vm791, %v4864, 0
        %v4956 = vsel %vm791, %v4865, 0
        %v4959 = vsel %vm791, %v4866, 0
        %v4962 = vsel %vm791, %v4867, 0
        %4964 = vmatprep.subr.mxu0 0.0
        %v4965 = vand.u32 %v2886, 4294901760
        %4966 = vmatpush1.msra.mxu0 %v4965
        %4967 = vmatprep.subr.mxu0 0.0
        %v4968 = vand.u32 %v2887, 4294901760
        %4969 = vmatpush1.msra.mxu0 %v4968
        %4970 = vmatprep.subr.mxu0 0.0
        %v4971 = vand.u32 %v2888, 4294901760
        %4972 = vmatpush1.msra.mxu0 %v4971
        %4973 = vmatprep.subr.mxu0 0.0
        %v4974 = vand.u32 %v2889, 4294901760
        %4975 = vmatpush1.msra.mxu0 %v4974
        %4976 = vmatprep.subr.mxu0 0.0
        %4977 = vmatpush1.msra.mxu0 0.0
        %4978 = vmatprep.subr.mxu0 0.0
        %4979 = vmatpush1.msra.mxu0 0.0
        %4980 = vmatprep.subr.mxu0 0.0
        %4981 = vmatpush1.msra.mxu0 0.0
        %4982 = vmatprep.subr.mxu0 0.0
        %4983 = vmatpush1.msra.mxu0 0.0
        %4984 = vmatprep.subr.mxu0 0.0
        %4985 = vmatpush1.msra.mxu0 0.0
        %4986 = vmatprep.subr.mxu0 0.0
        %4987 = vmatpush1.msra.mxu0 0.0
        %4988 = vmatprep.subr.mxu0 0.0
        %4989 = vmatpush1.msra.mxu0 0.0
        %4990 = vmatprep.subr.mxu0 0.0
        %4991 = vmatpush1.msra.mxu0 0.0
        %4992 = vmatprep.subr.mxu0 0.0
        %4993 = vmatpush1.msra.mxu0 0.0
        %4994 = vmatprep.subr.mxu0 0.0
        %4995 = vmatpush1.msra.mxu0 0.0
        %4996 = vmatprep.subr.mxu0 0.0
        %4997 = vmatpush1.msra.mxu0 0.0
        %4998 = vmatprep.subr.mxu0 0.0
        %4999 = vmatpush1.msra.mxu0 0.0
        %5000 = vmatprep.subr.mxu0 0.0
        %5001 = vmatpush1.msra.mxu0 0.0
        %5002 = vmatprep.subr.mxu0 0.0
        %5003 = vmatpush1.msra.mxu0 0.0
        %5004 = vmatprep.subr.mxu0 0.0
        %5005 = vmatpush1.msra.mxu0 0.0
        %5006 = vmatprep.subr.mxu0 0.0
        %5007 = vmatpush1.msra.mxu0 0.0
        %5008 = vmatprep.subr.mxu0 0.0
        %5009 = vmatpush1.msra.mxu0 0.0
        %5010 = vmatprep.subr.mxu0 0.0
        %5011 = vmatpush1.msra.mxu0 0.0
        %5012 = vmatprep.subr.mxu0 0.0
        %5013 = vmatpush1.msra.mxu0 0.0
        %5014 = vmatprep.subr.mxu0 0.0
        %5015 = vmatpush1.msra.mxu0 0.0
        %5016 = vmatprep.subr.mxu0 0.0
        %5017 = vmatpush1.msra.mxu0 0.0
        %5018 = vmatprep.subr.mxu0 0.0
        %5019 = vmatpush1.msra.mxu0 0.0
        %5020 = vmatprep.subr.mxu0 0.0
        %5021 = vmatpush1.msra.mxu0 0.0
        %5022 = vmatprep.subr.mxu0 0.0
        %5023 = vmatpush1.msra.mxu0 0.0
        %5024 = vmatprep.subr.mxu0 0.0
        %5025 = vmatpush1.msra.mxu0 0.0
        %5026 = vmatprep.subr.mxu0 0.0
        %5027 = vmatpush1.msra.mxu0 0.0
        %5028 = vmatprep.subr.mxu0 0.0
        %5029 = vmatpush1.msra.mxu0 0.0
        %5030 = vmatprep.subr.mxu0 0.0
        %5031 = vmatpush1.msra.mxu0 0.0
        %5032 = vmatprep.mubr.f32.mxu0 0.0
        %v5033 = vand.u32 %v4869, 4294901760
        %v5034 = vsub.f32 %v4869, %v5033
        %v5035 = vand.u32 %v5034, 4294901760
        %v5036 = vsub.f32 %v5034, %v5035
        %v5037 = vand.u32 %v5036, 4294901760
        %5038 = vmatmul.mubr.f32.gmra.mrb[0].mxu0 %v5037
        %v5039 = vpop.f32.mrb[0].mxu0
        %v5040 = vadd.f32 1e-06, %v5039
        %v5041 = vpop.f32.mrb[0].mxu0
        %5042 = vmatprep.mubr.f32.mxu0 0.0
        %v5043 = vand.u32 %v4872, 4294901760
        %v5044 = vsub.f32 %v4872, %v5043
        %v5045 = vand.u32 %v5044, 4294901760
        %v5046 = vsub.f32 %v5044, %v5045
        %v5047 = vand.u32 %v5046, 4294901760
        %5048 = vmatmul.mubr.f32.gmra.mrb[0].mxu0 %v5047
        %v5049 = vpop.f32.mrb[0].mxu0
        %v5050 = vadd.f32 1e-06, %v5049
        %v5051 = vpop.f32.mrb[0].mxu0
        %5052 = vmatprep.mubr.f32.mxu0 0.0
        %v5053 = vand.u32 %v4875, 4294901760
        %v5054 = vsub.f32 %v4875, %v5053
        %v5055 = vand.u32 %v5054, 4294901760
        %v5056 = vsub.f32 %v5054, %v5055
        %v5057 = vand.u32 %v5056, 4294901760
        %5058 = vmatmul.mubr.f32.gmra.mrb[0].mxu0 %v5057
        %v5059 = vpop.f32.mrb[0].mxu0
        %v5060 = vadd.f32 1e-06, %v5059
        %v5061 = vpop.f32.mrb[0].mxu0
        %5062 = vmatprep.mubr.f32.mxu0 0.0
        %v5063 = vand.u32 %v4878, 4294901760
        %v5064 = vsub.f32 %v4878, %v5063
        %v5065 = vand.u32 %v5064, 4294901760
        %v5066 = vsub.f32 %v5064, %v5065
        %v5067 = vand.u32 %v5066, 4294901760
        %5068 = vmatmul.mubr.f32.gmra.mrb[0].mxu0 %v5067
        %v5069 = vpop.f32.mrb[0].mxu0
        %v5070 = vadd.f32 1e-06, %v5069
        %v5071 = vpop.f32.mrb[0].mxu0
        %5072 = vmatprep.mubr.f32.mxu0 0.0
        %v5073 = vand.u32 %v4881, 4294901760
        %v5074 = vsub.f32 %v4881, %v5073
        %v5075 = vand.u32 %v5074, 4294901760
        %v5076 = vsub.f32 %v5074, %v5075
        %v5077 = vand.u32 %v5076, 4294901760
        %5078 = vmatmul.mubr.f32.gmra.mrb[0].mxu0 %v5077
        %v5079 = vpop.f32.mrb[0].mxu0
        %v5080 = vadd.f32 1e-06, %v5079
        %v5081 = vpop.f32.mrb[0].mxu0
        %5082 = vmatprep.mubr.f32.mxu0 0.0
        %v5083 = vand.u32 %v4884, 4294901760
        %v5084 = vsub.f32 %v4884, %v5083
        %v5085 = vand.u32 %v5084, 4294901760
        %v5086 = vsub.f32 %v5084, %v5085
        %v5087 = vand.u32 %v5086, 4294901760
        %5088 = vmatmul.mubr.f32.gmra.mrb[0].mxu0 %v5087
        %v5089 = vpop.f32.mrb[0].mxu0
        %v5090 = vadd.f32 1e-06, %v5089
        %v5091 = vpop.f32.mrb[0].mxu0
        %5092 = vmatprep.mubr.f32.mxu0 0.0
        %v5093 = vand.u32 %v4887, 4294901760
        %v5094 = vsub.f32 %v4887, %v5093
        %v5095 = vand.u32 %v5094, 4294901760
        %v5096 = vsub.f32 %v5094, %v5095
        %v5097 = vand.u32 %v5096, 4294901760
        %5098 = vmatmul.mubr.f32.gmra.mrb[0].mxu0 %v5097
        %v5099 = vpop.f32.mrb[0].mxu0
        %v5100 = vadd.f32 1e-06, %v5099
        %v5101 = vpop.f32.mrb[0].mxu0
        %5102 = vmatprep.mubr.f32.mxu0 0.0
        %v5103 = vand.u32 %v4890, 4294901760
        %v5104 = vsub.f32 %v4890, %v5103
        %v5105 = vand.u32 %v5104, 4294901760
        %v5106 = vsub.f32 %v5104, %v5105
        %v5107 = vand.u32 %v5106, 4294901760
        %5108 = vmatmul.mubr.f32.gmra.mrb[0].mxu0 %v5107
        %v5109 = vpop.f32.mrb[0].mxu0
        %v5110 = vadd.f32 1e-06, %v5109
        %v5111 = vpop.f32.mrb[0].mxu0
        %5112 = vmatprep.mubr.f32.mxu0 0.0
        %v5113 = vand.u32 %v4893, 4294901760
        %v5114 = vsub.f32 %v4893, %v5113
        %v5115 = vand.u32 %v5114, 4294901760
        %v5116 = vsub.f32 %v5114, %v5115
        %v5117 = vand.u32 %v5116, 4294901760
        %5118 = vmatmul.mubr.f32.gmra.mrb[0].mxu0 %v5117
        %v5119 = vpop.f32.mrb[0].mxu0
        %v5120 = vadd.f32 1e-06, %v5119
        %v5121 = vpop.f32.mrb[0].mxu0
        %5122 = vmatprep.mubr.f32.mxu0 0.0
        %v5123 = vand.u32 %v4896, 4294901760
        %v5124 = vsub.f32 %v4896, %v5123
        %v5125 = vand.u32 %v5124, 4294901760
        %v5126 = vsub.f32 %v5124, %v5125
        %v5127 = vand.u32 %v5126, 4294901760
        %5128 = vmatmul.mubr.f32.gmra.mrb[0].mxu0 %v5127
        %v5129 = vpop.f32.mrb[0].mxu0
        %v5130 = vadd.f32 1e-06, %v5129
        %v5131 = vpop.f32.mrb[0].mxu0
        %5132 = vmatprep.mubr.f32.mxu0 0.0
        %v5133 = vand.u32 %v4899, 4294901760
        %v5134 = vsub.f32 %v4899, %v5133
        %v5135 = vand.u32 %v5134, 4294901760
        %v5136 = vsub.f32 %v5134, %v5135
        %v5137 = vand.u32 %v5136, 4294901760
        %5138 = vmatmul.mubr.f32.gmra.mrb[0].mxu0 %v5137
        %v5139 = vpop.f32.mrb[0].mxu0
        %v5140 = vadd.f32 1e-06, %v5139
        %v5141 = vpop.f32.mrb[0].mxu0
        %5142 = vmatprep.mubr.f32.mxu0 0.0
        %v5143 = vand.u32 %v4902, 4294901760
        %v5144 = vsub.f32 %v4902, %v5143
        %v5145 = vand.u32 %v5144, 4294901760
        %v5146 = vsub.f32 %v5144, %v5145
        %v5147 = vand.u32 %v5146, 4294901760
        %5148 = vmatmul.mubr.f32.gmra.mrb[0].mxu0 %v5147
        %v5149 = vpop.f32.mrb[0].mxu0
        %v5150 = vadd.f32 1e-06, %v5149
        %v5151 = vpop.f32.mrb[0].mxu0
        %5152 = vmatprep.mubr.f32.mxu0 0.0
        %v5153 = vand.u32 %v4905, 4294901760
        %v5154 = vsub.f32 %v4905, %v5153
        %v5155 = vand.u32 %v5154, 4294901760
        %v5156 = vsub.f32 %v5154, %v5155
        %v5157 = vand.u32 %v5156, 4294901760
        %5158 = vmatmul.mubr.f32.gmra.mrb[0].mxu0 %v5157
        %v5159 = vpop.f32.mrb[0].mxu0
        %v5160 = vadd.f32 1e-06, %v5159
        %v5161 = vpop.f32.mrb[0].mxu0
        %5162 = vmatprep.mubr.f32.mxu0 0.0
        %v5163 = vand.u32 %v4908, 4294901760
        %v5164 = vsub.f32 %v4908, %v5163
        %v5165 = vand.u32 %v5164, 4294901760
        %v5166 = vsub.f32 %v5164, %v5165
        %v5167 = vand.u32 %v5166, 4294901760
        %5168 = vmatmul.mubr.f32.gmra.mrb[0].mxu0 %v5167
        %v5169 = vpop.f32.mrb[0].mxu0
        %v5170 = vadd.f32 1e-06, %v5169
        %v5171 = vpop.f32.mrb[0].mxu0
        %5172 = vmatprep.mubr.f32.mxu0 0.0
        %v5173 = vand.u32 %v4911, 4294901760
        %v5174 = vsub.f32 %v4911, %v5173
        %v5175 = vand.u32 %v5174, 4294901760
        %v5176 = vsub.f32 %v5174, %v5175
        %v5177 = vand.u32 %v5176, 4294901760
        %5178 = vmatmul.mubr.f32.gmra.mrb[0].mxu0 %v5177
        %v5179 = vpop.f32.mrb[0].mxu0
        %v5180 = vadd.f32 1e-06, %v5179
        %v5181 = vpop.f32.mrb[0].mxu0
        %5182 = vmatprep.mubr.f32.mxu0 0.0
        %v5183 = vand.u32 %v4914, 4294901760
        %v5184 = vsub.f32 %v4914, %v5183
        %v5185 = vand.u32 %v5184, 4294901760
        %v5186 = vsub.f32 %v5184, %v5185
        %v5187 = vand.u32 %v5186, 4294901760
        %5188 = vmatmul.mubr.f32.gmra.mrb[0].mxu0 %v5187
        %v5189 = vpop.f32.mrb[0].mxu0
        %v5190 = vadd.f32 1e-06, %v5189
        %v5191 = vpop.f32.mrb[0].mxu0
        %5192 = vmatprep.mubr.f32.mxu0 0.0
        %v5193 = vand.u32 %v4917, 4294901760
        %v5194 = vsub.f32 %v4917, %v5193
        %v5195 = vand.u32 %v5194, 4294901760
        %v5196 = vsub.f32 %v5194, %v5195
        %v5197 = vand.u32 %v5196, 4294901760
        %5198 = vmatmul.mubr.f32.gmra.mrb[0].mxu0 %v5197
        %v5199 = vpop.f32.mrb[0].mxu0
        %v5200 = vadd.f32 1e-06, %v5199
        %v5201 = vpop.f32.mrb[0].mxu0
        %5202 = vmatprep.mubr.f32.mxu0 0.0
        %v5203 = vand.u32 %v4920, 4294901760
        %v5204 = vsub.f32 %v4920, %v5203
        %v5205 = vand.u32 %v5204, 4294901760
        %v5206 = vsub.f32 %v5204, %v5205
        %v5207 = vand.u32 %v5206, 4294901760
        %5208 = vmatmul.mubr.f32.gmra.mrb[0].mxu0 %v5207
        %v5209 = vpop.f32.mrb[0].mxu0
        %v5210 = vadd.f32 1e-06, %v5209
        %v5211 = vpop.f32.mrb[0].mxu0
        %5212 = vmatprep.mubr.f32.mxu0 0.0
        %v5213 = vand.u32 %v4923, 4294901760
        %v5214 = vsub.f32 %v4923, %v5213
        %v5215 = vand.u32 %v5214, 4294901760
        %v5216 = vsub.f32 %v5214, %v5215
        %v5217 = vand.u32 %v5216, 4294901760
        %5218 = vmatmul.mubr.f32.gmra.mrb[0].mxu0 %v5217
        %v5219 = vpop.f32.mrb[0].mxu0
        %v5220 = vadd.f32 1e-06, %v5219
        %v5221 = vpop.f32.mrb[0].mxu0
        %5222 = vmatprep.mubr.f32.mxu0 0.0
        %v5223 = vand.u32 %v4926, 4294901760
        %v5224 = vsub.f32 %v4926, %v5223
        %v5225 = vand.u32 %v5224, 4294901760
        %v5226 = vsub.f32 %v5224, %v5225
        %v5227 = vand.u32 %v5226, 4294901760
        %5228 = vmatmul.mubr.f32.gmra.mrb[0].mxu0 %v5227
        %v5229 = vpop.f32.mrb[0].mxu0
        %v5230 = vadd.f32 1e-06, %v5229
        %v5231 = vpop.f32.mrb[0].mxu0
        %5232 = vmatprep.mubr.f32.mxu0 0.0
        %v5233 = vand.u32 %v4929, 4294901760
        %v5234 = vsub.f32 %v4929, %v5233
        %v5235 = vand.u32 %v5234, 4294901760
        %v5236 = vsub.f32 %v5234, %v5235
        %v5237 = vand.u32 %v5236, 4294901760
        %5238 = vmatmul.mubr.f32.gmra.mrb[0].mxu0 %v5237
        %v5239 = vpop.f32.mrb[0].mxu0
        %v5240 = vadd.f32 1e-06, %v5239
        %v5241 = vpop.f32.mrb[0].mxu0
        %5242 = vmatprep.mubr.f32.mxu0 0.0
        %v5243 = vand.u32 %v4932, 4294901760
        %v5244 = vsub.f32 %v4932, %v5243
        %v5245 = vand.u32 %v5244, 4294901760
        %v5246 = vsub.f32 %v5244, %v5245
        %v5247 = vand.u32 %v5246, 4294901760
        %5248 = vmatmul.mubr.f32.gmra.mrb[0].mxu0 %v5247
        %v5249 = vpop.f32.mrb[0].mxu0
        %v5250 = vadd.f32 1e-06, %v5249
        %v5251 = vpop.f32.mrb[0].mxu0
        %5252 = vmatprep.mubr.f32.mxu0 0.0
        %v5253 = vand.u32 %v4935, 4294901760
        %v5254 = vsub.f32 %v4935, %v5253
        %v5255 = vand.u32 %v5254, 4294901760
        %v5256 = vsub.f32 %v5254, %v5255
        %v5257 = vand.u32 %v5256, 4294901760
        %5258 = vmatmul.mubr.f32.gmra.mrb[0].mxu0 %v5257
        %v5259 = vpop.f32.mrb[0].mxu0
        %v5260 = vadd.f32 1e-06, %v5259
        %v5261 = vpop.f32.mrb[0].mxu0
        %5262 = vmatprep.mubr.f32.mxu0 0.0
        %v5263 = vand.u32 %v4938, 4294901760
        %v5264 = vsub.f32 %v4938, %v5263
        %v5265 = vand.u32 %v5264, 4294901760
        %v5266 = vsub.f32 %v5264, %v5265
        %v5267 = vand.u32 %v5266, 4294901760
        %5268 = vmatmul.mubr.f32.gmra.mrb[0].mxu0 %v5267
        %v5269 = vpop.f32.mrb[0].mxu0
        %v5270 = vadd.f32 1e-06, %v5269
        %v5271 = vpop.f32.mrb[0].mxu0
        %5272 = vmatprep.mubr.f32.mxu0 0.0
        %v5273 = vand.u32 %v4941, 4294901760
        %v5274 = vsub.f32 %v4941, %v5273
        %v5275 = vand.u32 %v5274, 4294901760
        %v5276 = vsub.f32 %v5274, %v5275
        %v5277 = vand.u32 %v5276, 4294901760
        %5278 = vmatmul.mubr.f32.gmra.mrb[0].mxu0 %v5277
        %v5279 = vpop.f32.mrb[0].mxu0
        %v5280 = vadd.f32 1e-06, %v5279
        %v5281 = vpop.f32.mrb[0].mxu0
        %5282 = vmatprep.mubr.f32.mxu0 0.0
        %v5283 = vand.u32 %v4944, 4294901760
        %v5284 = vsub.f32 %v4944, %v5283
        %v5285 = vand.u32 %v5284, 4294901760
        %v5286 = vsub.f32 %v5284, %v5285
        %v5287 = vand.u32 %v5286, 4294901760
        %5288 = vmatmul.mubr.f32.gmra.mrb[0].mxu0 %v5287
        %v5289 = vpop.f32.mrb[0].mxu0
        %v5290 = vadd.f32 1e-06, %v5289
        %v5291 = vpop.f32.mrb[0].mxu0
        %5292 = vmatprep.mubr.f32.mxu0 0.0
        %v5293 = vand.u32 %v4947, 4294901760
        %v5294 = vsub.f32 %v4947, %v5293
        %v5295 = vand.u32 %v5294, 4294901760
        %v5296 = vsub.f32 %v5294, %v5295
        %v5297 = vand.u32 %v5296, 4294901760
        %5298 = vmatmul.mubr.f32.gmra.mrb[0].mxu0 %v5297
        %v5299 = vpop.f32.mrb[0].mxu0
        %v5300 = vadd.f32 1e-06, %v5299
        %v5301 = vpop.f32.mrb[0].mxu0
        %5302 = vmatprep.mubr.f32.mxu0 0.0
        %v5303 = vand.u32 %v4950, 4294901760
        %v5304 = vsub.f32 %v4950, %v5303
        %v5305 = vand.u32 %v5304, 4294901760
        %v5306 = vsub.f32 %v5304, %v5305
        %v5307 = vand.u32 %v5306, 4294901760
        %5308 = vmatmul.mubr.f32.gmra.mrb[0].mxu0 %v5307
        %v5309 = vpop.f32.mrb[0].mxu0
        %v5310 = vadd.f32 1e-06, %v5309
        %v5311 = vpop.f32.mrb[0].mxu0
        %5312 = vmatprep.mubr.f32.mxu0 0.0
        %v5313 = vand.u32 %v4953, 4294901760
        %v5314 = vsub.f32 %v4953, %v5313
        %v5315 = vand.u32 %v5314, 4294901760
        %v5316 = vsub.f32 %v5314, %v5315
        %v5317 = vand.u32 %v5316, 4294901760
        %5318 = vmatmul.mubr.f32.gmra.mrb[0].mxu0 %v5317
        %v5319 = vpop.f32.mrb[0].mxu0
        %v5320 = vadd.f32 1e-06, %v5319
        %v5321 = vpop.f32.mrb[0].mxu0
        %5322 = vmatprep.mubr.f32.mxu0 0.0
        %v5323 = vand.u32 %v4956, 4294901760
        %v5324 = vsub.f32 %v4956, %v5323
        %v5325 = vand.u32 %v5324, 4294901760
        %v5326 = vsub.f32 %v5324, %v5325
        %v5327 = vand.u32 %v5326, 4294901760
        %5328 = vmatmul.mubr.f32.gmra.mrb[0].mxu0 %v5327
        %v5329 = vpop.f32.mrb[0].mxu0
        %v5330 = vadd.f32 1e-06, %v5329
        %v5331 = vpop.f32.mrb[0].mxu0
        %5332 = vmatprep.mubr.f32.mxu0 0.0
        %v5333 = vand.u32 %v4959, 4294901760
        %v5334 = vsub.f32 %v4959, %v5333
        %v5335 = vand.u32 %v5334, 4294901760
        %v5336 = vsub.f32 %v5334, %v5335
        %v5337 = vand.u32 %v5336, 4294901760
        %5338 = vmatmul.mubr.f32.gmra.mrb[0].mxu0 %v5337
        %v5339 = vpop.f32.mrb[0].mxu0
        %v5340 = vadd.f32 1e-06, %v5339
        %v5341 = vpop.f32.mrb[0].mxu0
        %5342 = vmatprep.mubr.f32.mxu0 0.0
        %v5343 = vand.u32 %v4962, 4294901760
        %v5344 = vsub.f32 %v4962, %v5343
        %v5345 = vand.u32 %v5344, 4294901760
        %v5346 = vsub.f32 %v5344, %v5345
        %v5347 = vand.u32 %v5346, 4294901760
        %5348 = vmatmul.mubr.f32.gmra.mrb[0].mxu0 %v5347
        %v5349 = vpop.f32.mrb[0].mxu0
        %v5350 = vadd.f32 1e-06, %v5349
        %v5351 = vpop.f32.mrb[0].mxu0
        %5352 = vdwg.mxu0
        %5353 = vmatprep.subr.mxu0 0.0
        %v5354 = vand.u32 %v2886, 4294901760
        %v5355 = vsub.f32 %v2886, %v5354
        %v5356 = vand.u32 %v5355, 4294901760
        %v5357 = vsub.f32 %v5355, %v5356
        %v5358 = vand.u32 %v5357, 4294901760
        %5359 = vmatpush1.msra.mxu0 %v5358
        %5360 = vmatprep.subr.mxu0 0.0
        %v5361 = vand.u32 %v2887, 4294901760
        %v5362 = vsub.f32 %v2887, %v5361
        %v5363 = vand.u32 %v5362, 4294901760
        %v5364 = vsub.f32 %v5362, %v5363
        %v5365 = vand.u32 %v5364, 4294901760
        %5366 = vmatpush1.msra.mxu0 %v5365
        %5367 = vmatprep.subr.mxu0 0.0
        %v5368 = vand.u32 %v2888, 4294901760
        %v5369 = vsub.f32 %v2888, %v5368
        %v5370 = vand.u32 %v5369, 4294901760
        %v5371 = vsub.f32 %v5369, %v5370
        %v5372 = vand.u32 %v5371, 4294901760
        %5373 = vmatpush1.msra.mxu0 %v5372
        %5374 = vmatprep.subr.mxu0 0.0
        %v5375 = vand.u32 %v2889, 4294901760
        %v5376 = vsub.f32 %v2889, %v5375
        %v5377 = vand.u32 %v5376, 4294901760
        %v5378 = vsub.f32 %v5376, %v5377
        %v5379 = vand.u32 %v5378, 4294901760
        %5380 = vmatpush1.msra.mxu0 %v5379
        %5381 = vmatprep.subr.mxu0 0.0
        %5382 = vmatpush1.msra.mxu0 0.0
        %5383 = vmatprep.subr.mxu0 0.0
        %5384 = vmatpush1.msra.mxu0 0.0
        %5385 = vmatprep.subr.mxu0 0.0
        %5386 = vmatpush1.msra.mxu0 0.0
        %5387 = vmatprep.subr.mxu0 0.0
        %5388 = vmatpush1.msra.mxu0 0.0
        %5389 = vmatprep.subr.mxu0 0.0
        %5390 = vmatpush1.msra.mxu0 0.0
        %5391 = vmatprep.subr.mxu0 0.0
        %5392 = vmatpush1.msra.mxu0 0.0
        %5393 = vmatprep.subr.mxu0 0.0
        %5394 = vmatpush1.msra.mxu0 0.0
        %5395 = vmatprep.subr.mxu0 0.0
        %5396 = vmatpush1.msra.mxu0 0.0
        %5397 = vmatprep.subr.mxu0 0.0
        %5398 = vmatpush1.msra.mxu0 0.0
        %5399 = vmatprep.subr.mxu0 0.0
        %5400 = vmatpush1.msra.mxu0 0.0
        %5401 = vmatprep.subr.mxu0 0.0
        %5402 = vmatpush1.msra.mxu0 0.0
        %5403 = vmatprep.subr.mxu0 0.0
        %5404 = vmatpush1.msra.mxu0 0.0
        %5405 = vmatprep.subr.mxu0 0.0
        %5406 = vmatpush1.msra.mxu0 0.0
        %5407 = vmatprep.subr.mxu0 0.0
        %5408 = vmatpush1.msra.mxu0 0.0
        %5409 = vmatprep.subr.mxu0 0.0
        %5410 = vmatpush1.msra.mxu0 0.0
        %5411 = vmatprep.subr.mxu0 0.0
        %5412 = vmatpush1.msra.mxu0 0.0
        %5413 = vmatprep.subr.mxu0 0.0
        %5414 = vmatpush1.msra.mxu0 0.0
        %5415 = vmatprep.subr.mxu0 0.0
        %5416 = vmatpush1.msra.mxu0 0.0
        %5417 = vmatprep.subr.mxu0 0.0
        %5418 = vmatpush1.msra.mxu0 0.0
        %5419 = vmatprep.subr.mxu0 0.0
        %5420 = vmatpush1.msra.mxu0 0.0
        %5421 = vmatprep.subr.mxu0 0.0
        %5422 = vmatpush1.msra.mxu0 0.0
        %5423 = vmatprep.subr.mxu0 0.0
        %5424 = vmatpush1.msra.mxu0 0.0
        %5425 = vmatprep.subr.mxu0 0.0
        %5426 = vmatpush1.msra.mxu0 0.0
        %5427 = vmatprep.subr.mxu0 0.0
        %5428 = vmatpush1.msra.mxu0 0.0
        %5429 = vmatprep.subr.mxu0 0.0
        %5430 = vmatpush1.msra.mxu0 0.0
        %5431 = vmatprep.subr.mxu0 0.0
        %5432 = vmatpush1.msra.mxu0 0.0
        %5433 = vmatprep.subr.mxu0 0.0
        %5434 = vmatpush1.msra.mxu0 0.0
        %5435 = vmatprep.subr.mxu0 0.0
        %5436 = vmatpush1.msra.mxu0 0.0
        %5437 = vmatprep.mubr.f32.mxu0 0.0
        %v5438 = vand.u32 %v4869, 4294901760
        %5439 = vmatmul.mubr.f32.gmra.mrb[0].mxu0 %v5438
        %v5440 = vpop.f32.mrb[0].mxu0
        %v5441 = vadd.f32 %v5040, %v5440
        %v5442 = vpop.f32.mrb[0].mxu0
        %5443 = vmatprep.mubr.f32.mxu0 0.0
        %v5444 = vand.u32 %v4872, 4294901760
        %5445 = vmatmul.mubr.f32.gmra.mrb[0].mxu0 %v5444
        %v5446 = vpop.f32.mrb[0].mxu0
        %v5447 = vadd.f32 %v5050, %v5446
        %v5448 = vpop.f32.mrb[0].mxu0
        %5449 = vmatprep.mubr.f32.mxu0 0.0
        %v5450 = vand.u32 %v4875, 4294901760
        %5451 = vmatmul.mubr.f32.gmra.mrb[0].mxu0 %v5450
        %v5452 = vpop.f32.mrb[0].mxu0
        %v5453 = vadd.f32 %v5060, %v5452
        %v5454 = vpop.f32.mrb[0].mxu0
        %5455 = vmatprep.mubr.f32.mxu0 0.0
        %v5456 = vand.u32 %v4878, 4294901760
        %5457 = vmatmul.mubr.f32.gmra.mrb[0].mxu0 %v5456
        %v5458 = vpop.f32.mrb[0].mxu0
        %v5459 = vadd.f32 %v5070, %v5458
        %v5460 = vpop.f32.mrb[0].mxu0
        %5461 = vmatprep.mubr.f32.mxu0 0.0
        %v5462 = vand.u32 %v4881, 4294901760
        %5463 = vmatmul.mubr.f32.gmra.mrb[0].mxu0 %v5462
        %v5464 = vpop.f32.mrb[0].mxu0
        %v5465 = vadd.f32 %v5080, %v5464
        %v5466 = vpop.f32.mrb[0].mxu0
        %5467 = vmatprep.mubr.f32.mxu0 0.0
        %v5468 = vand.u32 %v4884, 4294901760
        %5469 = vmatmul.mubr.f32.gmra.mrb[0].mxu0 %v5468
        %v5470 = vpop.f32.mrb[0].mxu0
        %v5471 = vadd.f32 %v5090, %v5470
        %v5472 = vpop.f32.mrb[0].mxu0
        %5473 = vmatprep.mubr.f32.mxu0 0.0
        %v5474 = vand.u32 %v4887, 4294901760
        %5475 = vmatmul.mubr.f32.gmra.mrb[0].mxu0 %v5474
        %v5476 = vpop.f32.mrb[0].mxu0
        %v5477 = vadd.f32 %v5100, %v5476
        %v5478 = vpop.f32.mrb[0].mxu0
        %5479 = vmatprep.mubr.f32.mxu0 0.0
        %v5480 = vand.u32 %v4890, 4294901760
        %5481 = vmatmul.mubr.f32.gmra.mrb[0].mxu0 %v5480
        %v5482 = vpop.f32.mrb[0].mxu0
        %v5483 = vadd.f32 %v5110, %v5482
        %v5484 = vpop.f32.mrb[0].mxu0
        %5485 = vmatprep.mubr.f32.mxu0 0.0
        %v5486 = vand.u32 %v4893, 4294901760
        %5487 = vmatmul.mubr.f32.gmra.mrb[0].mxu0 %v5486
        %v5488 = vpop.f32.mrb[0].mxu0
        %v5489 = vadd.f32 %v5120, %v5488
        %v5490 = vpop.f32.mrb[0].mxu0
        %5491 = vmatprep.mubr.f32.mxu0 0.0
        %v5492 = vand.u32 %v4896, 4294901760
        %5493 = vmatmul.mubr.f32.gmra.mrb[0].mxu0 %v5492
        %v5494 = vpop.f32.mrb[0].mxu0
        %v5495 = vadd.f32 %v5130, %v5494
        %v5496 = vpop.f32.mrb[0].mxu0
        %5497 = vmatprep.mubr.f32.mxu0 0.0
        %v5498 = vand.u32 %v4899, 4294901760
        %5499 = vmatmul.mubr.f32.gmra.mrb[0].mxu0 %v5498
        %v5500 = vpop.f32.mrb[0].mxu0
        %v5501 = vadd.f32 %v5140, %v5500
        %v5502 = vpop.f32.mrb[0].mxu0
        %5503 = vmatprep.mubr.f32.mxu0 0.0
        %v5504 = vand.u32 %v4902, 4294901760
        %5505 = vmatmul.mubr.f32.gmra.mrb[0].mxu0 %v5504
        %v5506 = vpop.f32.mrb[0].mxu0
        %v5507 = vadd.f32 %v5150, %v5506
        %v5508 = vpop.f32.mrb[0].mxu0
        %5509 = vmatprep.mubr.f32.mxu0 0.0
        %v5510 = vand.u32 %v4905, 4294901760
        %5511 = vmatmul.mubr.f32.gmra.mrb[0].mxu0 %v5510
        %v5512 = vpop.f32.mrb[0].mxu0
        %v5513 = vadd.f32 %v5160, %v5512
        %v5514 = vpop.f32.mrb[0].mxu0
        %5515 = vmatprep.mubr.f32.mxu0 0.0
        %v5516 = vand.u32 %v4908, 4294901760
        %5517 = vmatmul.mubr.f32.gmra.mrb[0].mxu0 %v5516
        %v5518 = vpop.f32.mrb[0].mxu0
        %v5519 = vadd.f32 %v5170, %v5518
        %v5520 = vpop.f32.mrb[0].mxu0
        %5521 = vmatprep.mubr.f32.mxu0 0.0
        %v5522 = vand.u32 %v4911, 4294901760
        %5523 = vmatmul.mubr.f32.gmra.mrb[0].mxu0 %v5522
        %v5524 = vpop.f32.mrb[0].mxu0
        %v5525 = vadd.f32 %v5180, %v5524
        %v5526 = vpop.f32.mrb[0].mxu0
        %5527 = vmatprep.mubr.f32.mxu0 0.0
        %v5528 = vand.u32 %v4914, 4294901760
        %5529 = vmatmul.mubr.f32.gmra.mrb[0].mxu0 %v5528
        %v5530 = vpop.f32.mrb[0].mxu0
        %v5531 = vadd.f32 %v5190, %v5530
        %v5532 = vpop.f32.mrb[0].mxu0
        %5533 = vmatprep.mubr.f32.mxu0 0.0
        %v5534 = vand.u32 %v4917, 4294901760
        %5535 = vmatmul.mubr.f32.gmra.mrb[0].mxu0 %v5534
        %v5536 = vpop.f32.mrb[0].mxu0
        %v5537 = vadd.f32 %v5200, %v5536
        %v5538 = vpop.f32.mrb[0].mxu0
        %5539 = vmatprep.mubr.f32.mxu0 0.0
        %v5540 = vand.u32 %v4920, 4294901760
        %5541 = vmatmul.mubr.f32.gmra.mrb[0].mxu0 %v5540
        %v5542 = vpop.f32.mrb[0].mxu0
        %v5543 = vadd.f32 %v5210, %v5542
        %v5544 = vpop.f32.mrb[0].mxu0
        %5545 = vmatprep.mubr.f32.mxu0 0.0
        %v5546 = vand.u32 %v4923, 4294901760
        %5547 = vmatmul.mubr.f32.gmra.mrb[0].mxu0 %v5546
        %v5548 = vpop.f32.mrb[0].mxu0
        %v5549 = vadd.f32 %v5220, %v5548
        %v5550 = vpop.f32.mrb[0].mxu0
        %5551 = vmatprep.mubr.f32.mxu0 0.0
        %v5552 = vand.u32 %v4926, 4294901760
        %5553 = vmatmul.mubr.f32.gmra.mrb[0].mxu0 %v5552
        %v5554 = vpop.f32.mrb[0].mxu0
        %v5555 = vadd.f32 %v5230, %v5554
        %v5556 = vpop.f32.mrb[0].mxu0
        %5557 = vmatprep.mubr.f32.mxu0 0.0
        %v5558 = vand.u32 %v4929, 4294901760
        %5559 = vmatmul.mubr.f32.gmra.mrb[0].mxu0 %v5558
        %v5560 = vpop.f32.mrb[0].mxu0
        %v5561 = vadd.f32 %v5240, %v5560
        %v5562 = vpop.f32.mrb[0].mxu0
        %5563 = vmatprep.mubr.f32.mxu0 0.0
        %v5564 = vand.u32 %v4932, 4294901760
        %5565 = vmatmul.mubr.f32.gmra.mrb[0].mxu0 %v5564
        %v5566 = vpop.f32.mrb[0].mxu0
        %v5567 = vadd.f32 %v5250, %v5566
        %v5568 = vpop.f32.mrb[0].mxu0
        %5569 = vmatprep.mubr.f32.mxu0 0.0
        %v5570 = vand.u32 %v4935, 4294901760
        %5571 = vmatmul.mubr.f32.gmra.mrb[0].mxu0 %v5570
        %v5572 = vpop.f32.mrb[0].mxu0
        %v5573 = vadd.f32 %v5260, %v5572
        %v5574 = vpop.f32.mrb[0].mxu0
        %5575 = vmatprep.mubr.f32.mxu0 0.0
        %v5576 = vand.u32 %v4938, 4294901760
        %5577 = vmatmul.mubr.f32.gmra.mrb[0].mxu0 %v5576
        %v5578 = vpop.f32.mrb[0].mxu0
        %v5579 = vadd.f32 %v5270, %v5578
        %v5580 = vpop.f32.mrb[0].mxu0
        %5581 = vmatprep.mubr.f32.mxu0 0.0
        %v5582 = vand.u32 %v4941, 4294901760
        %5583 = vmatmul.mubr.f32.gmra.mrb[0].mxu0 %v5582
        %v5584 = vpop.f32.mrb[0].mxu0
        %v5585 = vadd.f32 %v5280, %v5584
        %v5586 = vpop.f32.mrb[0].mxu0
        %5587 = vmatprep.mubr.f32.mxu0 0.0
        %v5588 = vand.u32 %v4944, 4294901760
        %5589 = vmatmul.mubr.f32.gmra.mrb[0].mxu0 %v5588
        %v5590 = vpop.f32.mrb[0].mxu0
        %v5591 = vadd.f32 %v5290, %v5590
        %v5592 = vpop.f32.mrb[0].mxu0
        %5593 = vmatprep.mubr.f32.mxu0 0.0
        %v5594 = vand.u32 %v4947, 4294901760
        %5595 = vmatmul.mubr.f32.gmra.mrb[0].mxu0 %v5594
        %v5596 = vpop.f32.mrb[0].mxu0
        %v5597 = vadd.f32 %v5300, %v5596
        %v5598 = vpop.f32.mrb[0].mxu0
        %5599 = vmatprep.mubr.f32.mxu0 0.0
        %v5600 = vand.u32 %v4950, 4294901760
        %5601 = vmatmul.mubr.f32.gmra.mrb[0].mxu0 %v5600
        %v5602 = vpop.f32.mrb[0].mxu0
        %v5603 = vadd.f32 %v5310, %v5602
        %v5604 = vpop.f32.mrb[0].mxu0
        %5605 = vmatprep.mubr.f32.mxu0 0.0
        %v5606 = vand.u32 %v4953, 4294901760
        %5607 = vmatmul.mubr.f32.gmra.mrb[0].mxu0 %v5606
        %v5608 = vpop.f32.mrb[0].mxu0
        %v5609 = vadd.f32 %v5320, %v5608
        %v5610 = vpop.f32.mrb[0].mxu0
        %5611 = vmatprep.mubr.f32.mxu0 0.0
        %v5612 = vand.u32 %v4956, 4294901760
        %5613 = vmatmul.mubr.f32.gmra.mrb[0].mxu0 %v5612
        %v5614 = vpop.f32.mrb[0].mxu0
        %v5615 = vadd.f32 %v5330, %v5614
        %v5616 = vpop.f32.mrb[0].mxu0
        %5617 = vmatprep.mubr.f32.mxu0 0.0
        %v5618 = vand.u32 %v4959, 4294901760
        %5619 = vmatmul.mubr.f32.gmra.mrb[0].mxu0 %v5618
        %v5620 = vpop.f32.mrb[0].mxu0
        %v5621 = vadd.f32 %v5340, %v5620
        %v5622 = vpop.f32.mrb[0].mxu0
        %5623 = vmatprep.mubr.f32.mxu0 0.0
        %v5624 = vand.u32 %v4962, 4294901760
        %5625 = vmatmul.mubr.f32.gmra.mrb[0].mxu0 %v5624
        %v5626 = vpop.f32.mrb[0].mxu0
        %v5627 = vadd.f32 %v5350, %v5626
        %v5628 = vpop.f32.mrb[0].mxu0
        %5629 = vdwg.mxu0
        %5630 = vmatprep.subr.mxu0 0.0
        %v5631 = vand.u32 %v2886, 4294901760
        %v5632 = vsub.f32 %v2886, %v5631
        %5633 = vmatpush1.msra.mxu0 %v5632
        %5634 = vmatprep.subr.mxu0 0.0
        %v5635 = vand.u32 %v2887, 4294901760
        %v5636 = vsub.f32 %v2887, %v5635
        %5637 = vmatpush1.msra.mxu0 %v5636
        %5638 = vmatprep.subr.mxu0 0.0
        %v5639 = vand.u32 %v2888, 4294901760
        %v5640 = vsub.f32 %v2888, %v5639
        %5641 = vmatpush1.msra.mxu0 %v5640
        %5642 = vmatprep.subr.mxu0 0.0
        %v5643 = vand.u32 %v2889, 4294901760
        %v5644 = vsub.f32 %v2889, %v5643
        %5645 = vmatpush1.msra.mxu0 %v5644
        %5646 = vmatprep.subr.mxu0 0.0
        %5647 = vmatpush1.msra.mxu0 0.0
        %5648 = vmatprep.subr.mxu0 0.0
        %5649 = vmatpush1.msra.mxu0 0.0
        %5650 = vmatprep.subr.mxu0 0.0
        %5651 = vmatpush1.msra.mxu0 0.0
        %5652 = vmatprep.subr.mxu0 0.0
        %5653 = vmatpush1.msra.mxu0 0.0
        %5654 = vmatprep.subr.mxu0 0.0
        %5655 = vmatpush1.msra.mxu0 0.0
        %5656 = vmatprep.subr.mxu0 0.0
        %5657 = vmatpush1.msra.mxu0 0.0
        %5658 = vmatprep.subr.mxu0 0.0
        %5659 = vmatpush1.msra.mxu0 0.0
        %5660 = vmatprep.subr.mxu0 0.0
        %5661 = vmatpush1.msra.mxu0 0.0
        %5662 = vmatprep.subr.mxu0 0.0
        %5663 = vmatpush1.msra.mxu0 0.0
        %5664 = vmatprep.subr.mxu0 0.0
        %5665 = vmatpush1.msra.mxu0 0.0
        %5666 = vmatprep.subr.mxu0 0.0
        %5667 = vmatpush1.msra.mxu0 0.0
        %5668 = vmatprep.subr.mxu0 0.0
        %5669 = vmatpush1.msra.mxu0 0.0
        %5670 = vmatprep.subr.mxu0 0.0
        %5671 = vmatpush1.msra.mxu0 0.0
        %5672 = vmatprep.subr.mxu0 0.0
        %5673 = vmatpush1.msra.mxu0 0.0
        %5674 = vmatprep.subr.mxu0 0.0
        %5675 = vmatpush1.msra.mxu0 0.0
        %5676 = vmatprep.subr.mxu0 0.0
        %5677 = vmatpush1.msra.mxu0 0.0
        %5678 = vmatprep.subr.mxu0 0.0
        %5679 = vmatpush1.msra.mxu0 0.0
        %5680 = vmatprep.subr.mxu0 0.0
        %5681 = vmatpush1.msra.mxu0 0.0
        %5682 = vmatprep.subr.mxu0 0.0
        %5683 = vmatpush1.msra.mxu0 0.0
        %5684 = vmatprep.subr.mxu0 0.0
        %5685 = vmatpush1.msra.mxu0 0.0
        %5686 = vmatprep.subr.mxu0 0.0
        %5687 = vmatpush1.msra.mxu0 0.0
        %5688 = vmatprep.subr.mxu0 0.0
        %5689 = vmatpush1.msra.mxu0 0.0
        %5690 = vmatprep.subr.mxu0 0.0
        %5691 = vmatpush1.msra.mxu0 0.0
        %5692 = vmatprep.subr.mxu0 0.0
        %5693 = vmatpush1.msra.mxu0 0.0
        %5694 = vmatprep.subr.mxu0 0.0
        %5695 = vmatpush1.msra.mxu0 0.0
        %5696 = vmatprep.subr.mxu0 0.0
        %5697 = vmatpush1.msra.mxu0 0.0
        %5698 = vmatprep.subr.mxu0 0.0
        %5699 = vmatpush1.msra.mxu0 0.0
        %5700 = vmatprep.subr.mxu0 0.0
        %5701 = vmatpush1.msra.mxu0 0.0
        %5702 = vmatprep.mubr.f32.mxu0 0.0
        %v5703 = vand.u32 %v4869, 4294901760
        %v5704 = vsub.f32 %v4869, %v5703
        %5705 = vmatmul.mubr.f32.gmra.mrb[0].mxu0 %v5704
        %v5706 = vpop.f32.mrb[0].mxu0
        %v5707 = vadd.f32 %v5441, %v5706
        %v5708 = vpop.f32.mrb[0].mxu0
        %5709 = vmatprep.mubr.f32.mxu0 0.0
        %v5710 = vand.u32 %v4872, 4294901760
        %v5711 = vsub.f32 %v4872, %v5710
        %5712 = vmatmul.mubr.f32.gmra.mrb[0].mxu0 %v5711
        %v5713 = vpop.f32.mrb[0].mxu0
        %v5714 = vadd.f32 %v5447, %v5713
        %v5715 = vpop.f32.mrb[0].mxu0
        %5716 = vmatprep.mubr.f32.mxu0 0.0
        %v5717 = vand.u32 %v4875, 4294901760
        %v5718 = vsub.f32 %v4875, %v5717
        %5719 = vmatmul.mubr.f32.gmra.mrb[0].mxu0 %v5718
        %v5720 = vpop.f32.mrb[0].mxu0
        %v5721 = vadd.f32 %v5453, %v5720
        %v5722 = vpop.f32.mrb[0].mxu0
        %5723 = vmatprep.mubr.f32.mxu0 0.0
        %v5724 = vand.u32 %v4878, 4294901760
        %v5725 = vsub.f32 %v4878, %v5724
        %5726 = vmatmul.mubr.f32.gmra.mrb[0].mxu0 %v5725
        %v5727 = vpop.f32.mrb[0].mxu0
        %v5728 = vadd.f32 %v5459, %v5727
        %v5729 = vpop.f32.mrb[0].mxu0
        %5730 = vmatprep.mubr.f32.mxu0 0.0
        %v5731 = vand.u32 %v4881, 4294901760
        %v5732 = vsub.f32 %v4881, %v5731
        %5733 = vmatmul.mubr.f32.gmra.mrb[0].mxu0 %v5732
        %v5734 = vpop.f32.mrb[0].mxu0
        %v5735 = vadd.f32 %v5465, %v5734
        %v5736 = vpop.f32.mrb[0].mxu0
        %5737 = vmatprep.mubr.f32.mxu0 0.0
        %v5738 = vand.u32 %v4884, 4294901760
        %v5739 = vsub.f32 %v4884, %v5738
        %5740 = vmatmul.mubr.f32.gmra.mrb[0].mxu0 %v5739
        %v5741 = vpop.f32.mrb[0].mxu0
        %v5742 = vadd.f32 %v5471, %v5741
        %v5743 = vpop.f32.mrb[0].mxu0
        %5744 = vmatprep.mubr.f32.mxu0 0.0
        %v5745 = vand.u32 %v4887, 4294901760
        %v5746 = vsub.f32 %v4887, %v5745
        %5747 = vmatmul.mubr.f32.gmra.mrb[0].mxu0 %v5746
        %v5748 = vpop.f32.mrb[0].mxu0
        %v5749 = vadd.f32 %v5477, %v5748
        %v5750 = vpop.f32.mrb[0].mxu0
        %5751 = vmatprep.mubr.f32.mxu0 0.0
        %v5752 = vand.u32 %v4890, 4294901760
        %v5753 = vsub.f32 %v4890, %v5752
        %5754 = vmatmul.mubr.f32.gmra.mrb[0].mxu0 %v5753
        %v5755 = vpop.f32.mrb[0].mxu0
        %v5756 = vadd.f32 %v5483, %v5755
        %v5757 = vpop.f32.mrb[0].mxu0
        %5758 = vmatprep.mubr.f32.mxu0 0.0
        %v5759 = vand.u32 %v4893, 4294901760
        %v5760 = vsub.f32 %v4893, %v5759
        %5761 = vmatmul.mubr.f32.gmra.mrb[0].mxu0 %v5760
        %v5762 = vpop.f32.mrb[0].mxu0
        %v5763 = vadd.f32 %v5489, %v5762
        %v5764 = vpop.f32.mrb[0].mxu0
        %5765 = vmatprep.mubr.f32.mxu0 0.0
        %v5766 = vand.u32 %v4896, 4294901760
        %v5767 = vsub.f32 %v4896, %v5766
        %5768 = vmatmul.mubr.f32.gmra.mrb[0].mxu0 %v5767
        %v5769 = vpop.f32.mrb[0].mxu0
        %v5770 = vadd.f32 %v5495, %v5769
        %v5771 = vpop.f32.mrb[0].mxu0
        %5772 = vmatprep.mubr.f32.mxu0 0.0
        %v5773 = vand.u32 %v4899, 4294901760
        %v5774 = vsub.f32 %v4899, %v5773
        %5775 = vmatmul.mubr.f32.gmra.mrb[0].mxu0 %v5774
        %v5776 = vpop.f32.mrb[0].mxu0
        %v5777 = vadd.f32 %v5501, %v5776
        %v5778 = vpop.f32.mrb[0].mxu0
        %5779 = vmatprep.mubr.f32.mxu0 0.0
        %v5780 = vand.u32 %v4902, 4294901760
        %v5781 = vsub.f32 %v4902, %v5780
        %5782 = vmatmul.mubr.f32.gmra.mrb[0].mxu0 %v5781
        %v5783 = vpop.f32.mrb[0].mxu0
        %v5784 = vadd.f32 %v5507, %v5783
        %v5785 = vpop.f32.mrb[0].mxu0
        %5786 = vmatprep.mubr.f32.mxu0 0.0
        %v5787 = vand.u32 %v4905, 4294901760
        %v5788 = vsub.f32 %v4905, %v5787
        %5789 = vmatmul.mubr.f32.gmra.mrb[0].mxu0 %v5788
        %v5790 = vpop.f32.mrb[0].mxu0
        %v5791 = vadd.f32 %v5513, %v5790
        %v5792 = vpop.f32.mrb[0].mxu0
        %5793 = vmatprep.mubr.f32.mxu0 0.0
        %v5794 = vand.u32 %v4908, 4294901760
        %v5795 = vsub.f32 %v4908, %v5794
        %5796 = vmatmul.mubr.f32.gmra.mrb[0].mxu0 %v5795
        %v5797 = vpop.f32.mrb[0].mxu0
        %v5798 = vadd.f32 %v5519, %v5797
        %v5799 = vpop.f32.mrb[0].mxu0
        %5800 = vmatprep.mubr.f32.mxu0 0.0
        %v5801 = vand.u32 %v4911, 4294901760
        %v5802 = vsub.f32 %v4911, %v5801
        %5803 = vmatmul.mubr.f32.gmra.mrb[0].mxu0 %v5802
        %v5804 = vpop.f32.mrb[0].mxu0
        %v5805 = vadd.f32 %v5525, %v5804
        %v5806 = vpop.f32.mrb[0].mxu0
        %5807 = vmatprep.mubr.f32.mxu0 0.0
        %v5808 = vand.u32 %v4914, 4294901760
        %v5809 = vsub.f32 %v4914, %v5808
        %5810 = vmatmul.mubr.f32.gmra.mrb[0].mxu0 %v5809
        %v5811 = vpop.f32.mrb[0].mxu0
        %v5812 = vadd.f32 %v5531, %v5811
        %v5813 = vpop.f32.mrb[0].mxu0
        %5814 = vmatprep.mubr.f32.mxu0 0.0
        %v5815 = vand.u32 %v4917, 4294901760
        %v5816 = vsub.f32 %v4917, %v5815
        %5817 = vmatmul.mubr.f32.gmra.mrb[0].mxu0 %v5816
        %v5818 = vpop.f32.mrb[0].mxu0
        %v5819 = vadd.f32 %v5537, %v5818
        %v5820 = vpop.f32.mrb[0].mxu0
        %5821 = vmatprep.mubr.f32.mxu0 0.0
        %v5822 = vand.u32 %v4920, 4294901760
        %v5823 = vsub.f32 %v4920, %v5822
        %5824 = vmatmul.mubr.f32.gmra.mrb[0].mxu0 %v5823
        %v5825 = vpop.f32.mrb[0].mxu0
        %v5826 = vadd.f32 %v5543, %v5825
        %v5827 = vpop.f32.mrb[0].mxu0
        %5828 = vmatprep.mubr.f32.mxu0 0.0
        %v5829 = vand.u32 %v4923, 4294901760
        %v5830 = vsub.f32 %v4923, %v5829
        %5831 = vmatmul.mubr.f32.gmra.mrb[0].mxu0 %v5830
        %v5832 = vpop.f32.mrb[0].mxu0
        %v5833 = vadd.f32 %v5549, %v5832
        %v5834 = vpop.f32.mrb[0].mxu0
        %5835 = vmatprep.mubr.f32.mxu0 0.0
        %v5836 = vand.u32 %v4926, 4294901760
        %v5837 = vsub.f32 %v4926, %v5836
        %5838 = vmatmul.mubr.f32.gmra.mrb[0].mxu0 %v5837
        %v5839 = vpop.f32.mrb[0].mxu0
        %v5840 = vadd.f32 %v5555, %v5839
        %v5841 = vpop.f32.mrb[0].mxu0
        %5842 = vmatprep.mubr.f32.mxu0 0.0
        %v5843 = vand.u32 %v4929, 4294901760
        %v5844 = vsub.f32 %v4929, %v5843
        %5845 = vmatmul.mubr.f32.gmra.mrb[0].mxu0 %v5844
        %v5846 = vpop.f32.mrb[0].mxu0
        %v5847 = vadd.f32 %v5561, %v5846
        %v5848 = vpop.f32.mrb[0].mxu0
        %5849 = vmatprep.mubr.f32.mxu0 0.0
        %v5850 = vand.u32 %v4932, 4294901760
        %v5851 = vsub.f32 %v4932, %v5850
        %5852 = vmatmul.mubr.f32.gmra.mrb[0].mxu0 %v5851
        %v5853 = vpop.f32.mrb[0].mxu0
        %v5854 = vadd.f32 %v5567, %v5853
        %v5855 = vpop.f32.mrb[0].mxu0
        %5856 = vmatprep.mubr.f32.mxu0 0.0
        %v5857 = vand.u32 %v4935, 4294901760
        %v5858 = vsub.f32 %v4935, %v5857
        %5859 = vmatmul.mubr.f32.gmra.mrb[0].mxu0 %v5858
        %v5860 = vpop.f32.mrb[0].mxu0
        %v5861 = vadd.f32 %v5573, %v5860
        %v5862 = vpop.f32.mrb[0].mxu0
        %5863 = vmatprep.mubr.f32.mxu0 0.0
        %v5864 = vand.u32 %v4938, 4294901760
        %v5865 = vsub.f32 %v4938, %v5864
        %5866 = vmatmul.mubr.f32.gmra.mrb[0].mxu0 %v5865
        %v5867 = vpop.f32.mrb[0].mxu0
        %v5868 = vadd.f32 %v5579, %v5867
        %v5869 = vpop.f32.mrb[0].mxu0
        %5870 = vmatprep.mubr.f32.mxu0 0.0
        %v5871 = vand.u32 %v4941, 4294901760
        %v5872 = vsub.f32 %v4941, %v5871
        %5873 = vmatmul.mubr.f32.gmra.mrb[0].mxu0 %v5872
        %v5874 = vpop.f32.mrb[0].mxu0
        %v5875 = vadd.f32 %v5585, %v5874
        %v5876 = vpop.f32.mrb[0].mxu0
        %5877 = vmatprep.mubr.f32.mxu0 0.0
        %v5878 = vand.u32 %v4944, 4294901760
        %v5879 = vsub.f32 %v4944, %v5878
        %5880 = vmatmul.mubr.f32.gmra.mrb[0].mxu0 %v5879
        %v5881 = vpop.f32.mrb[0].mxu0
        %v5882 = vadd.f32 %v5591, %v5881
        %v5883 = vpop.f32.mrb[0].mxu0
        %5884 = vmatprep.mubr.f32.mxu0 0.0
        %v5885 = vand.u32 %v4947, 4294901760
        %v5886 = vsub.f32 %v4947, %v5885
        %5887 = vmatmul.mubr.f32.gmra.mrb[0].mxu0 %v5886
        %v5888 = vpop.f32.mrb[0].mxu0
        %v5889 = vadd.f32 %v5597, %v5888
        %v5890 = vpop.f32.mrb[0].mxu0
        %5891 = vmatprep.mubr.f32.mxu0 0.0
        %v5892 = vand.u32 %v4950, 4294901760
        %v5893 = vsub.f32 %v4950, %v5892
        %5894 = vmatmul.mubr.f32.gmra.mrb[0].mxu0 %v5893
        %v5895 = vpop.f32.mrb[0].mxu0
        %v5896 = vadd.f32 %v5603, %v5895
        %v5897 = vpop.f32.mrb[0].mxu0
        %5898 = vmatprep.mubr.f32.mxu0 0.0
        %v5899 = vand.u32 %v4953, 4294901760
        %v5900 = vsub.f32 %v4953, %v5899
        %5901 = vmatmul.mubr.f32.gmra.mrb[0].mxu0 %v5900
        %v5902 = vpop.f32.mrb[0].mxu0
        %v5903 = vadd.f32 %v5609, %v5902
        %v5904 = vpop.f32.mrb[0].mxu0
        %5905 = vmatprep.mubr.f32.mxu0 0.0
        %v5906 = vand.u32 %v4956, 4294901760
        %v5907 = vsub.f32 %v4956, %v5906
        %5908 = vmatmul.mubr.f32.gmra.mrb[0].mxu0 %v5907
        %v5909 = vpop.f32.mrb[0].mxu0
        %v5910 = vadd.f32 %v5615, %v5909
        %v5911 = vpop.f32.mrb[0].mxu0
        %5912 = vmatprep.mubr.f32.mxu0 0.0
        %v5913 = vand.u32 %v4959, 4294901760
        %v5914 = vsub.f32 %v4959, %v5913
        %5915 = vmatmul.mubr.f32.gmra.mrb[0].mxu0 %v5914
        %v5916 = vpop.f32.mrb[0].mxu0
        %v5917 = vadd.f32 %v5621, %v5916
        %v5918 = vpop.f32.mrb[0].mxu0
        %5919 = vmatprep.mubr.f32.mxu0 0.0
        %v5920 = vand.u32 %v4962, 4294901760
        %v5921 = vsub.f32 %v4962, %v5920
        %5922 = vmatmul.mubr.f32.gmra.mrb[0].mxu0 %v5921
        %v5923 = vpop.f32.mrb[0].mxu0
        %v5924 = vadd.f32 %v5627, %v5923
        %v5925 = vpop.f32.mrb[0].mxu0
        %5926 = vdwg.mxu0
        %5927 = vmatprep.subr.mxu0 0.0
        %v5928 = vand.u32 %v2886, 4294901760
        %5929 = vmatpush1.msra.mxu0 %v5928
        %5930 = vmatprep.subr.mxu0 0.0
        %v5931 = vand.u32 %v2887, 4294901760
        %5932 = vmatpush1.msra.mxu0 %v5931
        %5933 = vmatprep.subr.mxu0 0.0
        %v5934 = vand.u32 %v2888, 4294901760
        %5935 = vmatpush1.msra.mxu0 %v5934
        %5936 = vmatprep.subr.mxu0 0.0
        %v5937 = vand.u32 %v2889, 4294901760
        %5938 = vmatpush1.msra.mxu0 %v5937
        %5939 = vmatprep.subr.mxu0 0.0
        %5940 = vmatpush1.msra.mxu0 0.0
        %5941 = vmatprep.subr.mxu0 0.0
        %5942 = vmatpush1.msra.mxu0 0.0
        %5943 = vmatprep.subr.mxu0 0.0
        %5944 = vmatpush1.msra.mxu0 0.0
        %5945 = vmatprep.subr.mxu0 0.0
        %5946 = vmatpush1.msra.mxu0 0.0
        %5947 = vmatprep.subr.mxu0 0.0
        %5948 = vmatpush1.msra.mxu0 0.0
        %5949 = vmatprep.subr.mxu0 0.0
        %5950 = vmatpush1.msra.mxu0 0.0
        %5951 = vmatprep.subr.mxu0 0.0
        %5952 = vmatpush1.msra.mxu0 0.0
        %5953 = vmatprep.subr.mxu0 0.0
        %5954 = vmatpush1.msra.mxu0 0.0
        %5955 = vmatprep.subr.mxu0 0.0
        %5956 = vmatpush1.msra.mxu0 0.0
        %5957 = vmatprep.subr.mxu0 0.0
        %5958 = vmatpush1.msra.mxu0 0.0
        %5959 = vmatprep.subr.mxu0 0.0
        %5960 = vmatpush1.msra.mxu0 0.0
        %5961 = vmatprep.subr.mxu0 0.0
        %5962 = vmatpush1.msra.mxu0 0.0
        %5963 = vmatprep.subr.mxu0 0.0
        %5964 = vmatpush1.msra.mxu0 0.0
        %5965 = vmatprep.subr.mxu0 0.0
        %5966 = vmatpush1.msra.mxu0 0.0
        %5967 = vmatprep.subr.mxu0 0.0
        %5968 = vmatpush1.msra.mxu0 0.0
        %5969 = vmatprep.subr.mxu0 0.0
        %5970 = vmatpush1.msra.mxu0 0.0
        %5971 = vmatprep.subr.mxu0 0.0
        %5972 = vmatpush1.msra.mxu0 0.0
        %5973 = vmatprep.subr.mxu0 0.0
        %5974 = vmatpush1.msra.mxu0 0.0
        %5975 = vmatprep.subr.mxu0 0.0
        %5976 = vmatpush1.msra.mxu0 0.0
        %5977 = vmatprep.subr.mxu0 0.0
        %5978 = vmatpush1.msra.mxu0 0.0
        %5979 = vmatprep.subr.mxu0 0.0
        %5980 = vmatpush1.msra.mxu0 0.0
        %5981 = vmatprep.subr.mxu0 0.0
        %5982 = vmatpush1.msra.mxu0 0.0
        %5983 = vmatprep.subr.mxu0 0.0
        %5984 = vmatpush1.msra.mxu0 0.0
        %5985 = vmatprep.subr.mxu0 0.0
        %5986 = vmatpush1.msra.mxu0 0.0
        %5987 = vmatprep.subr.mxu0 0.0
        %5988 = vmatpush1.msra.mxu0 0.0
        %5989 = vmatprep.subr.mxu0 0.0
        %5990 = vmatpush1.msra.mxu0 0.0
        %5991 = vmatprep.subr.mxu0 0.0
        %5992 = vmatpush1.msra.mxu0 0.0
        %5993 = vmatprep.subr.mxu0 0.0
        %5994 = vmatpush1.msra.mxu0 0.0
        %5995 = vmatprep.mubr.f32.mxu0 0.0
        %v5996 = vand.u32 %v4869, 4294901760
        %v5997 = vsub.f32 %v4869, %v5996
        %v5998 = vand.u32 %v5997, 4294901760
        %5999 = vmatmul.mubr.f32.gmra.mrb[0].mxu0 %v5998
        %v6000 = vpop.f32.mrb[0].mxu0
        %v6001 = vadd.f32 %v5707, %v6000
        %v6002 = vpop.f32.mrb[0].mxu0
        %6003 = vmatprep.mubr.f32.mxu0 0.0
        %v6004 = vand.u32 %v4872, 4294901760
        %v6005 = vsub.f32 %v4872, %v6004
        %v6006 = vand.u32 %v6005, 4294901760
        %6007 = vmatmul.mubr.f32.gmra.mrb[0].mxu0 %v6006
        %v6008 = vpop.f32.mrb[0].mxu0
        %v6009 = vadd.f32 %v5714, %v6008
        %v6010 = vpop.f32.mrb[0].mxu0
        %6011 = vmatprep.mubr.f32.mxu0 0.0
        %v6012 = vand.u32 %v4875, 4294901760
        %v6013 = vsub.f32 %v4875, %v6012
        %v6014 = vand.u32 %v6013, 4294901760
        %6015 = vmatmul.mubr.f32.gmra.mrb[0].mxu0 %v6014
        %v6016 = vpop.f32.mrb[0].mxu0
        %v6017 = vadd.f32 %v5721, %v6016
        %v6018 = vpop.f32.mrb[0].mxu0
        %6019 = vmatprep.mubr.f32.mxu0 0.0
        %v6020 = vand.u32 %v4878, 4294901760
        %v6021 = vsub.f32 %v4878, %v6020
        %v6022 = vand.u32 %v6021, 4294901760
        %6023 = vmatmul.mubr.f32.gmra.mrb[0].mxu0 %v6022
        %v6024 = vpop.f32.mrb[0].mxu0
        %v6025 = vadd.f32 %v5728, %v6024
        %v6026 = vpop.f32.mrb[0].mxu0
        %6027 = vmatprep.mubr.f32.mxu0 0.0
        %v6028 = vand.u32 %v4881, 4294901760
        %v6029 = vsub.f32 %v4881, %v6028
        %v6030 = vand.u32 %v6029, 4294901760
        %6031 = vmatmul.mubr.f32.gmra.mrb[0].mxu0 %v6030
        %v6032 = vpop.f32.mrb[0].mxu0
        %v6033 = vadd.f32 %v5735, %v6032
        %v6034 = vpop.f32.mrb[0].mxu0
        %6035 = vmatprep.mubr.f32.mxu0 0.0
        %v6036 = vand.u32 %v4884, 4294901760
        %v6037 = vsub.f32 %v4884, %v6036
        %v6038 = vand.u32 %v6037, 4294901760
        %6039 = vmatmul.mubr.f32.gmra.mrb[0].mxu0 %v6038
        %v6040 = vpop.f32.mrb[0].mxu0
        %v6041 = vadd.f32 %v5742, %v6040
        %v6042 = vpop.f32.mrb[0].mxu0
        %6043 = vmatprep.mubr.f32.mxu0 0.0
        %v6044 = vand.u32 %v4887, 4294901760
        %v6045 = vsub.f32 %v4887, %v6044
        %v6046 = vand.u32 %v6045, 4294901760
        %6047 = vmatmul.mubr.f32.gmra.mrb[0].mxu0 %v6046
        %v6048 = vpop.f32.mrb[0].mxu0
        %v6049 = vadd.f32 %v5749, %v6048
        %v6050 = vpop.f32.mrb[0].mxu0
        %6051 = vmatprep.mubr.f32.mxu0 0.0
        %v6052 = vand.u32 %v4890, 4294901760
        %v6053 = vsub.f32 %v4890, %v6052
        %v6054 = vand.u32 %v6053, 4294901760
        %6055 = vmatmul.mubr.f32.gmra.mrb[0].mxu0 %v6054
        %v6056 = vpop.f32.mrb[0].mxu0
        %v6057 = vadd.f32 %v5756, %v6056
        %v6058 = vpop.f32.mrb[0].mxu0
        %6059 = vmatprep.mubr.f32.mxu0 0.0
        %v6060 = vand.u32 %v4893, 4294901760
        %v6061 = vsub.f32 %v4893, %v6060
        %v6062 = vand.u32 %v6061, 4294901760
        %6063 = vmatmul.mubr.f32.gmra.mrb[0].mxu0 %v6062
        %v6064 = vpop.f32.mrb[0].mxu0
        %v6065 = vadd.f32 %v5763, %v6064
        %v6066 = vpop.f32.mrb[0].mxu0
        %6067 = vmatprep.mubr.f32.mxu0 0.0
        %v6068 = vand.u32 %v4896, 4294901760
        %v6069 = vsub.f32 %v4896, %v6068
        %v6070 = vand.u32 %v6069, 4294901760
        %6071 = vmatmul.mubr.f32.gmra.mrb[0].mxu0 %v6070
        %v6072 = vpop.f32.mrb[0].mxu0
        %v6073 = vadd.f32 %v5770, %v6072
        %v6074 = vpop.f32.mrb[0].mxu0
        %6075 = vmatprep.mubr.f32.mxu0 0.0
        %v6076 = vand.u32 %v4899, 4294901760
        %v6077 = vsub.f32 %v4899, %v6076
        %v6078 = vand.u32 %v6077, 4294901760
        %6079 = vmatmul.mubr.f32.gmra.mrb[0].mxu0 %v6078
        %v6080 = vpop.f32.mrb[0].mxu0
        %v6081 = vadd.f32 %v5777, %v6080
        %v6082 = vpop.f32.mrb[0].mxu0
        %6083 = vmatprep.mubr.f32.mxu0 0.0
        %v6084 = vand.u32 %v4902, 4294901760
        %v6085 = vsub.f32 %v4902, %v6084
        %v6086 = vand.u32 %v6085, 4294901760
        %6087 = vmatmul.mubr.f32.gmra.mrb[0].mxu0 %v6086
        %v6088 = vpop.f32.mrb[0].mxu0
        %v6089 = vadd.f32 %v5784, %v6088
        %v6090 = vpop.f32.mrb[0].mxu0
        %6091 = vmatprep.mubr.f32.mxu0 0.0
        %v6092 = vand.u32 %v4905, 4294901760
        %v6093 = vsub.f32 %v4905, %v6092
        %v6094 = vand.u32 %v6093, 4294901760
        %6095 = vmatmul.mubr.f32.gmra.mrb[0].mxu0 %v6094
        %v6096 = vpop.f32.mrb[0].mxu0
        %v6097 = vadd.f32 %v5791, %v6096
        %v6098 = vpop.f32.mrb[0].mxu0
        %6099 = vmatprep.mubr.f32.mxu0 0.0
        %v6100 = vand.u32 %v4908, 4294901760
        %v6101 = vsub.f32 %v4908, %v6100
        %v6102 = vand.u32 %v6101, 4294901760
        %6103 = vmatmul.mubr.f32.gmra.mrb[0].mxu0 %v6102
        %v6104 = vpop.f32.mrb[0].mxu0
        %v6105 = vadd.f32 %v5798, %v6104
        %v6106 = vpop.f32.mrb[0].mxu0
        %6107 = vmatprep.mubr.f32.mxu0 0.0
        %v6108 = vand.u32 %v4911, 4294901760
        %v6109 = vsub.f32 %v4911, %v6108
        %v6110 = vand.u32 %v6109, 4294901760
        %6111 = vmatmul.mubr.f32.gmra.mrb[0].mxu0 %v6110
        %v6112 = vpop.f32.mrb[0].mxu0
        %v6113 = vadd.f32 %v5805, %v6112
        %v6114 = vpop.f32.mrb[0].mxu0
        %6115 = vmatprep.mubr.f32.mxu0 0.0
        %v6116 = vand.u32 %v4914, 4294901760
        %v6117 = vsub.f32 %v4914, %v6116
        %v6118 = vand.u32 %v6117, 4294901760
        %6119 = vmatmul.mubr.f32.gmra.mrb[0].mxu0 %v6118
        %v6120 = vpop.f32.mrb[0].mxu0
        %v6121 = vadd.f32 %v5812, %v6120
        %v6122 = vpop.f32.mrb[0].mxu0
        %6123 = vmatprep.mubr.f32.mxu0 0.0
        %v6124 = vand.u32 %v4917, 4294901760
        %v6125 = vsub.f32 %v4917, %v6124
        %v6126 = vand.u32 %v6125, 4294901760
        %6127 = vmatmul.mubr.f32.gmra.mrb[0].mxu0 %v6126
        %v6128 = vpop.f32.mrb[0].mxu0
        %v6129 = vadd.f32 %v5819, %v6128
        %v6130 = vpop.f32.mrb[0].mxu0
        %6131 = vmatprep.mubr.f32.mxu0 0.0
        %v6132 = vand.u32 %v4920, 4294901760
        %v6133 = vsub.f32 %v4920, %v6132
        %v6134 = vand.u32 %v6133, 4294901760
        %6135 = vmatmul.mubr.f32.gmra.mrb[0].mxu0 %v6134
        %v6136 = vpop.f32.mrb[0].mxu0
        %v6137 = vadd.f32 %v5826, %v6136
        %v6138 = vpop.f32.mrb[0].mxu0
        %6139 = vmatprep.mubr.f32.mxu0 0.0
        %v6140 = vand.u32 %v4923, 4294901760
        %v6141 = vsub.f32 %v4923, %v6140
        %v6142 = vand.u32 %v6141, 4294901760
        %6143 = vmatmul.mubr.f32.gmra.mrb[0].mxu0 %v6142
        %v6144 = vpop.f32.mrb[0].mxu0
        %v6145 = vadd.f32 %v5833, %v6144
        %v6146 = vpop.f32.mrb[0].mxu0
        %6147 = vmatprep.mubr.f32.mxu0 0.0
        %v6148 = vand.u32 %v4926, 4294901760
        %v6149 = vsub.f32 %v4926, %v6148
        %v6150 = vand.u32 %v6149, 4294901760
        %6151 = vmatmul.mubr.f32.gmra.mrb[0].mxu0 %v6150
        %v6152 = vpop.f32.mrb[0].mxu0
        %v6153 = vadd.f32 %v5840, %v6152
        %v6154 = vpop.f32.mrb[0].mxu0
        %6155 = vmatprep.mubr.f32.mxu0 0.0
        %v6156 = vand.u32 %v4929, 4294901760
        %v6157 = vsub.f32 %v4929, %v6156
        %v6158 = vand.u32 %v6157, 4294901760
        %6159 = vmatmul.mubr.f32.gmra.mrb[0].mxu0 %v6158
        %v6160 = vpop.f32.mrb[0].mxu0
        %v6161 = vadd.f32 %v5847, %v6160
        %v6162 = vpop.f32.mrb[0].mxu0
        %6163 = vmatprep.mubr.f32.mxu0 0.0
        %v6164 = vand.u32 %v4932, 4294901760
        %v6165 = vsub.f32 %v4932, %v6164
        %v6166 = vand.u32 %v6165, 4294901760
        %6167 = vmatmul.mubr.f32.gmra.mrb[0].mxu0 %v6166
        %v6168 = vpop.f32.mrb[0].mxu0
        %v6169 = vadd.f32 %v5854, %v6168
        %v6170 = vpop.f32.mrb[0].mxu0
        %6171 = vmatprep.mubr.f32.mxu0 0.0
        %v6172 = vand.u32 %v4935, 4294901760
        %v6173 = vsub.f32 %v4935, %v6172
        %v6174 = vand.u32 %v6173, 4294901760
        %6175 = vmatmul.mubr.f32.gmra.mrb[0].mxu0 %v6174
        %v6176 = vpop.f32.mrb[0].mxu0
        %v6177 = vadd.f32 %v5861, %v6176
        %v6178 = vpop.f32.mrb[0].mxu0
        %6179 = vmatprep.mubr.f32.mxu0 0.0
        %v6180 = vand.u32 %v4938, 4294901760
        %v6181 = vsub.f32 %v4938, %v6180
        %v6182 = vand.u32 %v6181, 4294901760
        %6183 = vmatmul.mubr.f32.gmra.mrb[0].mxu0 %v6182
        %v6184 = vpop.f32.mrb[0].mxu0
        %v6185 = vadd.f32 %v5868, %v6184
        %v6186 = vpop.f32.mrb[0].mxu0
        %6187 = vmatprep.mubr.f32.mxu0 0.0
        %v6188 = vand.u32 %v4941, 4294901760
        %v6189 = vsub.f32 %v4941, %v6188
        %v6190 = vand.u32 %v6189, 4294901760
        %6191 = vmatmul.mubr.f32.gmra.mrb[0].mxu0 %v6190
        %v6192 = vpop.f32.mrb[0].mxu0
        %v6193 = vadd.f32 %v5875, %v6192
        %v6194 = vpop.f32.mrb[0].mxu0
        %6195 = vmatprep.mubr.f32.mxu0 0.0
        %v6196 = vand.u32 %v4944, 4294901760
        %v6197 = vsub.f32 %v4944, %v6196
        %v6198 = vand.u32 %v6197, 4294901760
        %6199 = vmatmul.mubr.f32.gmra.mrb[0].mxu0 %v6198
        %v6200 = vpop.f32.mrb[0].mxu0
        %v6201 = vadd.f32 %v5882, %v6200
        %v6202 = vpop.f32.mrb[0].mxu0
        %6203 = vmatprep.mubr.f32.mxu0 0.0
        %v6204 = vand.u32 %v4947, 4294901760
        %v6205 = vsub.f32 %v4947, %v6204
        %v6206 = vand.u32 %v6205, 4294901760
        %6207 = vmatmul.mubr.f32.gmra.mrb[0].mxu0 %v6206
        %v6208 = vpop.f32.mrb[0].mxu0
        %v6209 = vadd.f32 %v5889, %v6208
        %v6210 = vpop.f32.mrb[0].mxu0
        %6211 = vmatprep.mubr.f32.mxu0 0.0
        %v6212 = vand.u32 %v4950, 4294901760
        %v6213 = vsub.f32 %v4950, %v6212
        %v6214 = vand.u32 %v6213, 4294901760
        %6215 = vmatmul.mubr.f32.gmra.mrb[0].mxu0 %v6214
        %v6216 = vpop.f32.mrb[0].mxu0
        %v6217 = vadd.f32 %v5896, %v6216
        %v6218 = vpop.f32.mrb[0].mxu0
        %6219 = vmatprep.mubr.f32.mxu0 0.0
        %v6220 = vand.u32 %v4953, 4294901760
        %v6221 = vsub.f32 %v4953, %v6220
        %v6222 = vand.u32 %v6221, 4294901760
        %6223 = vmatmul.mubr.f32.gmra.mrb[0].mxu0 %v6222
        %v6224 = vpop.f32.mrb[0].mxu0
        %v6225 = vadd.f32 %v5903, %v6224
        %v6226 = vpop.f32.mrb[0].mxu0
        %6227 = vmatprep.mubr.f32.mxu0 0.0
        %v6228 = vand.u32 %v4956, 4294901760
        %v6229 = vsub.f32 %v4956, %v6228
        %v6230 = vand.u32 %v6229, 4294901760
        %6231 = vmatmul.mubr.f32.gmra.mrb[0].mxu0 %v6230
        %v6232 = vpop.f32.mrb[0].mxu0
        %v6233 = vadd.f32 %v5910, %v6232
        %v6234 = vpop.f32.mrb[0].mxu0
        %6235 = vmatprep.mubr.f32.mxu0 0.0
        %v6236 = vand.u32 %v4959, 4294901760
        %v6237 = vsub.f32 %v4959, %v6236
        %v6238 = vand.u32 %v6237, 4294901760
        %6239 = vmatmul.mubr.f32.gmra.mrb[0].mxu0 %v6238
        %v6240 = vpop.f32.mrb[0].mxu0
        %v6241 = vadd.f32 %v5917, %v6240
        %v6242 = vpop.f32.mrb[0].mxu0
        %6243 = vmatprep.mubr.f32.mxu0 0.0
        %v6244 = vand.u32 %v4962, 4294901760
        %v6245 = vsub.f32 %v4962, %v6244
        %v6246 = vand.u32 %v6245, 4294901760
        %6247 = vmatmul.mubr.f32.gmra.mrb[0].mxu0 %v6246
        %v6248 = vpop.f32.mrb[0].mxu0
        %v6249 = vadd.f32 %v5924, %v6248
        %v6250 = vpop.f32.mrb[0].mxu0
        %6251 = vdwg.mxu0
        %6252 = vmatprep.subr.mxu0 0.0
        %v6253 = vand.u32 %v2886, 4294901760
        %v6254 = vsub.f32 %v2886, %v6253
        %v6255 = vand.u32 %v6254, 4294901760
        %6256 = vmatpush1.msra.mxu0 %v6255
        %6257 = vmatprep.subr.mxu0 0.0
        %v6258 = vand.u32 %v2887, 4294901760
        %v6259 = vsub.f32 %v2887, %v6258
        %v6260 = vand.u32 %v6259, 4294901760
        %6261 = vmatpush1.msra.mxu0 %v6260
        %6262 = vmatprep.subr.mxu0 0.0
        %v6263 = vand.u32 %v2888, 4294901760
        %v6264 = vsub.f32 %v2888, %v6263
        %v6265 = vand.u32 %v6264, 4294901760
        %6266 = vmatpush1.msra.mxu0 %v6265
        %6267 = vmatprep.subr.mxu0 0.0
        %v6268 = vand.u32 %v2889, 4294901760
        %v6269 = vsub.f32 %v2889, %v6268
        %v6270 = vand.u32 %v6269, 4294901760
        %6271 = vmatpush1.msra.mxu0 %v6270
        %6272 = vmatprep.subr.mxu0 0.0
        %6273 = vmatpush1.msra.mxu0 0.0
        %6274 = vmatprep.subr.mxu0 0.0
        %6275 = vmatpush1.msra.mxu0 0.0
        %6276 = vmatprep.subr.mxu0 0.0
        %6277 = vmatpush1.msra.mxu0 0.0
        %6278 = vmatprep.subr.mxu0 0.0
        %6279 = vmatpush1.msra.mxu0 0.0
        %6280 = vmatprep.subr.mxu0 0.0
        %6281 = vmatpush1.msra.mxu0 0.0
        %6282 = vmatprep.subr.mxu0 0.0
        %6283 = vmatpush1.msra.mxu0 0.0
        %6284 = vmatprep.subr.mxu0 0.0
        %6285 = vmatpush1.msra.mxu0 0.0
        %6286 = vmatprep.subr.mxu0 0.0
        %6287 = vmatpush1.msra.mxu0 0.0
        %6288 = vmatprep.subr.mxu0 0.0
        %6289 = vmatpush1.msra.mxu0 0.0
        %6290 = vmatprep.subr.mxu0 0.0
        %6291 = vmatpush1.msra.mxu0 0.0
        %6292 = vmatprep.subr.mxu0 0.0
        %6293 = vmatpush1.msra.mxu0 0.0
        %6294 = vmatprep.subr.mxu0 0.0
        %6295 = vmatpush1.msra.mxu0 0.0
        %6296 = vmatprep.subr.mxu0 0.0
        %6297 = vmatpush1.msra.mxu0 0.0
        %6298 = vmatprep.subr.mxu0 0.0
        %6299 = vmatpush1.msra.mxu0 0.0
        %6300 = vmatprep.subr.mxu0 0.0
        %6301 = vmatpush1.msra.mxu0 0.0
        %6302 = vmatprep.subr.mxu0 0.0
        %6303 = vmatpush1.msra.mxu0 0.0
        %6304 = vmatprep.subr.mxu0 0.0
        %6305 = vmatpush1.msra.mxu0 0.0
        %6306 = vmatprep.subr.mxu0 0.0
        %6307 = vmatpush1.msra.mxu0 0.0
        %6308 = vmatprep.subr.mxu0 0.0
        %6309 = vmatpush1.msra.mxu0 0.0
        %6310 = vmatprep.subr.mxu0 0.0
        %6311 = vmatpush1.msra.mxu0 0.0
        %6312 = vmatprep.subr.mxu0 0.0
        %6313 = vmatpush1.msra.mxu0 0.0
        %6314 = vmatprep.subr.mxu0 0.0
        %6315 = vmatpush1.msra.mxu0 0.0
        %6316 = vmatprep.subr.mxu0 0.0
        %6317 = vmatpush1.msra.mxu0 0.0
        %6318 = vmatprep.subr.mxu0 0.0
        %6319 = vmatpush1.msra.mxu0 0.0
        %6320 = vmatprep.subr.mxu0 0.0
        %6321 = vmatpush1.msra.mxu0 0.0
        %6322 = vmatprep.subr.mxu0 0.0
        %6323 = vmatpush1.msra.mxu0 0.0
        %6324 = vmatprep.subr.mxu0 0.0
        %6325 = vmatpush1.msra.mxu0 0.0
        %6326 = vmatprep.subr.mxu0 0.0
        %6327 = vmatpush1.msra.mxu0 0.0
        %6328 = vmatprep.mubr.f32.mxu0 0.0
        %v6329 = vand.u32 %v4869, 4294901760
        %6330 = vmatmul.mubr.f32.gmra.mrb[0].mxu0 %v6329
        %v6331 = vpop.f32.mrb[0].mxu0
        %v6332 = vadd.f32 %v6001, %v6331
        %v6333 = vpop.f32.mrb[0].mxu0
        %6334 = vmatprep.mubr.f32.mxu0 0.0
        %v6335 = vand.u32 %v4872, 4294901760
        %6336 = vmatmul.mubr.f32.gmra.mrb[0].mxu0 %v6335
        %v6337 = vpop.f32.mrb[0].mxu0
        %v6338 = vadd.f32 %v6009, %v6337
        %v6339 = vpop.f32.mrb[0].mxu0
        %6340 = vmatprep.mubr.f32.mxu0 0.0
        %v6341 = vand.u32 %v4875, 4294901760
        %6342 = vmatmul.mubr.f32.gmra.mrb[0].mxu0 %v6341
        %v6343 = vpop.f32.mrb[0].mxu0
        %v6344 = vadd.f32 %v6017, %v6343
        %v6345 = vpop.f32.mrb[0].mxu0
        %6346 = vmatprep.mubr.f32.mxu0 0.0
        %v6347 = vand.u32 %v4878, 4294901760
        %6348 = vmatmul.mubr.f32.gmra.mrb[0].mxu0 %v6347
        %v6349 = vpop.f32.mrb[0].mxu0
        %v6350 = vadd.f32 %v6025, %v6349
        %v6351 = vpop.f32.mrb[0].mxu0
        %6352 = vmatprep.mubr.f32.mxu0 0.0
        %v6353 = vand.u32 %v4881, 4294901760
        %6354 = vmatmul.mubr.f32.gmra.mrb[0].mxu0 %v6353
        %v6355 = vpop.f32.mrb[0].mxu0
        %v6356 = vadd.f32 %v6033, %v6355
        %v6357 = vpop.f32.mrb[0].mxu0
        %6358 = vmatprep.mubr.f32.mxu0 0.0
        %v6359 = vand.u32 %v4884, 4294901760
        %6360 = vmatmul.mubr.f32.gmra.mrb[0].mxu0 %v6359
        %v6361 = vpop.f32.mrb[0].mxu0
        %v6362 = vadd.f32 %v6041, %v6361
        %v6363 = vpop.f32.mrb[0].mxu0
        %6364 = vmatprep.mubr.f32.mxu0 0.0
        %v6365 = vand.u32 %v4887, 4294901760
        %6366 = vmatmul.mubr.f32.gmra.mrb[0].mxu0 %v6365
        %v6367 = vpop.f32.mrb[0].mxu0
        %v6368 = vadd.f32 %v6049, %v6367
        %v6369 = vpop.f32.mrb[0].mxu0
        %6370 = vmatprep.mubr.f32.mxu0 0.0
        %v6371 = vand.u32 %v4890, 4294901760
        %6372 = vmatmul.mubr.f32.gmra.mrb[0].mxu0 %v6371
        %v6373 = vpop.f32.mrb[0].mxu0
        %v6374 = vadd.f32 %v6057, %v6373
        %v6375 = vpop.f32.mrb[0].mxu0
        %6376 = vmatprep.mubr.f32.mxu0 0.0
        %v6377 = vand.u32 %v4893, 4294901760
        %6378 = vmatmul.mubr.f32.gmra.mrb[0].mxu0 %v6377
        %v6379 = vpop.f32.mrb[0].mxu0
        %v6380 = vadd.f32 %v6065, %v6379
        %v6381 = vpop.f32.mrb[0].mxu0
        %6382 = vmatprep.mubr.f32.mxu0 0.0
        %v6383 = vand.u32 %v4896, 4294901760
        %6384 = vmatmul.mubr.f32.gmra.mrb[0].mxu0 %v6383
        %v6385 = vpop.f32.mrb[0].mxu0
        %v6386 = vadd.f32 %v6073, %v6385
        %v6387 = vpop.f32.mrb[0].mxu0
        %6388 = vmatprep.mubr.f32.mxu0 0.0
        %v6389 = vand.u32 %v4899, 4294901760
        %6390 = vmatmul.mubr.f32.gmra.mrb[0].mxu0 %v6389
        %v6391 = vpop.f32.mrb[0].mxu0
        %v6392 = vadd.f32 %v6081, %v6391
        %v6393 = vpop.f32.mrb[0].mxu0
        %6394 = vmatprep.mubr.f32.mxu0 0.0
        %v6395 = vand.u32 %v4902, 4294901760
        %6396 = vmatmul.mubr.f32.gmra.mrb[0].mxu0 %v6395
        %v6397 = vpop.f32.mrb[0].mxu0
        %v6398 = vadd.f32 %v6089, %v6397
        %v6399 = vpop.f32.mrb[0].mxu0
        %6400 = vmatprep.mubr.f32.mxu0 0.0
        %v6401 = vand.u32 %v4905, 4294901760
        %6402 = vmatmul.mubr.f32.gmra.mrb[0].mxu0 %v6401
        %v6403 = vpop.f32.mrb[0].mxu0
        %v6404 = vadd.f32 %v6097, %v6403
        %v6405 = vpop.f32.mrb[0].mxu0
        %6406 = vmatprep.mubr.f32.mxu0 0.0
        %v6407 = vand.u32 %v4908, 4294901760
        %6408 = vmatmul.mubr.f32.gmra.mrb[0].mxu0 %v6407
        %v6409 = vpop.f32.mrb[0].mxu0
        %v6410 = vadd.f32 %v6105, %v6409
        %v6411 = vpop.f32.mrb[0].mxu0
        %6412 = vmatprep.mubr.f32.mxu0 0.0
        %v6413 = vand.u32 %v4911, 4294901760
        %6414 = vmatmul.mubr.f32.gmra.mrb[0].mxu0 %v6413
        %v6415 = vpop.f32.mrb[0].mxu0
        %v6416 = vadd.f32 %v6113, %v6415
        %v6417 = vpop.f32.mrb[0].mxu0
        %6418 = vmatprep.mubr.f32.mxu0 0.0
        %v6419 = vand.u32 %v4914, 4294901760
        %6420 = vmatmul.mubr.f32.gmra.mrb[0].mxu0 %v6419
        %v6421 = vpop.f32.mrb[0].mxu0
        %v6422 = vadd.f32 %v6121, %v6421
        %v6423 = vpop.f32.mrb[0].mxu0
        %6424 = vmatprep.mubr.f32.mxu0 0.0
        %v6425 = vand.u32 %v4917, 4294901760
        %6426 = vmatmul.mubr.f32.gmra.mrb[0].mxu0 %v6425
        %v6427 = vpop.f32.mrb[0].mxu0
        %v6428 = vadd.f32 %v6129, %v6427
        %v6429 = vpop.f32.mrb[0].mxu0
        %6430 = vmatprep.mubr.f32.mxu0 0.0
        %v6431 = vand.u32 %v4920, 4294901760
        %6432 = vmatmul.mubr.f32.gmra.mrb[0].mxu0 %v6431
        %v6433 = vpop.f32.mrb[0].mxu0
        %v6434 = vadd.f32 %v6137, %v6433
        %v6435 = vpop.f32.mrb[0].mxu0
        %6436 = vmatprep.mubr.f32.mxu0 0.0
        %v6437 = vand.u32 %v4923, 4294901760
        %6438 = vmatmul.mubr.f32.gmra.mrb[0].mxu0 %v6437
        %v6439 = vpop.f32.mrb[0].mxu0
        %v6440 = vadd.f32 %v6145, %v6439
        %v6441 = vpop.f32.mrb[0].mxu0
        %6442 = vmatprep.mubr.f32.mxu0 0.0
        %v6443 = vand.u32 %v4926, 4294901760
        %6444 = vmatmul.mubr.f32.gmra.mrb[0].mxu0 %v6443
        %v6445 = vpop.f32.mrb[0].mxu0
        %v6446 = vadd.f32 %v6153, %v6445
        %v6447 = vpop.f32.mrb[0].mxu0
        %6448 = vmatprep.mubr.f32.mxu0 0.0
        %v6449 = vand.u32 %v4929, 4294901760
        %6450 = vmatmul.mubr.f32.gmra.mrb[0].mxu0 %v6449
        %v6451 = vpop.f32.mrb[0].mxu0
        %v6452 = vadd.f32 %v6161, %v6451
        %v6453 = vpop.f32.mrb[0].mxu0
        %6454 = vmatprep.mubr.f32.mxu0 0.0
        %v6455 = vand.u32 %v4932, 4294901760
        %6456 = vmatmul.mubr.f32.gmra.mrb[0].mxu0 %v6455
        %v6457 = vpop.f32.mrb[0].mxu0
        %v6458 = vadd.f32 %v6169, %v6457
        %v6459 = vpop.f32.mrb[0].mxu0
        %6460 = vmatprep.mubr.f32.mxu0 0.0
        %v6461 = vand.u32 %v4935, 4294901760
        %6462 = vmatmul.mubr.f32.gmra.mrb[0].mxu0 %v6461
        %v6463 = vpop.f32.mrb[0].mxu0
        %v6464 = vadd.f32 %v6177, %v6463
        %v6465 = vpop.f32.mrb[0].mxu0
        %6466 = vmatprep.mubr.f32.mxu0 0.0
        %v6467 = vand.u32 %v4938, 4294901760
        %6468 = vmatmul.mubr.f32.gmra.mrb[0].mxu0 %v6467
        %v6469 = vpop.f32.mrb[0].mxu0
        %v6470 = vadd.f32 %v6185, %v6469
        %v6471 = vpop.f32.mrb[0].mxu0
        %6472 = vmatprep.mubr.f32.mxu0 0.0
        %v6473 = vand.u32 %v4941, 4294901760
        %6474 = vmatmul.mubr.f32.gmra.mrb[0].mxu0 %v6473
        %v6475 = vpop.f32.mrb[0].mxu0
        %v6476 = vadd.f32 %v6193, %v6475
        %v6477 = vpop.f32.mrb[0].mxu0
        %6478 = vmatprep.mubr.f32.mxu0 0.0
        %v6479 = vand.u32 %v4944, 4294901760
        %6480 = vmatmul.mubr.f32.gmra.mrb[0].mxu0 %v6479
        %v6481 = vpop.f32.mrb[0].mxu0
        %v6482 = vadd.f32 %v6201, %v6481
        %v6483 = vpop.f32.mrb[0].mxu0
        %6484 = vmatprep.mubr.f32.mxu0 0.0
        %v6485 = vand.u32 %v4947, 4294901760
        %6486 = vmatmul.mubr.f32.gmra.mrb[0].mxu0 %v6485
        %v6487 = vpop.f32.mrb[0].mxu0
        %v6488 = vadd.f32 %v6209, %v6487
        %v6489 = vpop.f32.mrb[0].mxu0
        %6490 = vmatprep.mubr.f32.mxu0 0.0
        %v6491 = vand.u32 %v4950, 4294901760
        %6492 = vmatmul.mubr.f32.gmra.mrb[0].mxu0 %v6491
        %v6493 = vpop.f32.mrb[0].mxu0
        %v6494 = vadd.f32 %v6217, %v6493
        %v6495 = vpop.f32.mrb[0].mxu0
        %6496 = vmatprep.mubr.f32.mxu0 0.0
        %v6497 = vand.u32 %v4953, 4294901760
        %6498 = vmatmul.mubr.f32.gmra.mrb[0].mxu0 %v6497
        %v6499 = vpop.f32.mrb[0].mxu0
        %v6500 = vadd.f32 %v6225, %v6499
        %v6501 = vpop.f32.mrb[0].mxu0
        %6502 = vmatprep.mubr.f32.mxu0 0.0
        %v6503 = vand.u32 %v4956, 4294901760
        %6504 = vmatmul.mubr.f32.gmra.mrb[0].mxu0 %v6503
        %v6505 = vpop.f32.mrb[0].mxu0
        %v6506 = vadd.f32 %v6233, %v6505
        %v6507 = vpop.f32.mrb[0].mxu0
        %6508 = vmatprep.mubr.f32.mxu0 0.0
        %v6509 = vand.u32 %v4959, 4294901760
        %6510 = vmatmul.mubr.f32.gmra.mrb[0].mxu0 %v6509
        %v6511 = vpop.f32.mrb[0].mxu0
        %v6512 = vadd.f32 %v6241, %v6511
        %v6513 = vpop.f32.mrb[0].mxu0
        %6514 = vmatprep.mubr.f32.mxu0 0.0
        %v6515 = vand.u32 %v4962, 4294901760
        %6516 = vmatmul.mubr.f32.gmra.mrb[0].mxu0 %v6515
        %v6517 = vpop.f32.mrb[0].mxu0
        %v6518 = vadd.f32 %v6249, %v6517
        %v6519 = vpop.f32.mrb[0].mxu0
        %6520 = vdwg.mxu0
        %6521 = vmatprep.subr.mxu0 0.0
        %v6522 = vand.u32 %v2886, 4294901760
        %6523 = vmatpush1.msra.mxu0 %v6522
        %6524 = vmatprep.subr.mxu0 0.0
        %v6525 = vand.u32 %v2887, 4294901760
        %6526 = vmatpush1.msra.mxu0 %v6525
        %6527 = vmatprep.subr.mxu0 0.0
        %v6528 = vand.u32 %v2888, 4294901760
        %6529 = vmatpush1.msra.mxu0 %v6528
        %6530 = vmatprep.subr.mxu0 0.0
        %v6531 = vand.u32 %v2889, 4294901760
        %6532 = vmatpush1.msra.mxu0 %v6531
        %6533 = vmatprep.subr.mxu0 0.0
        %6534 = vmatpush1.msra.mxu0 0.0
        %6535 = vmatprep.subr.mxu0 0.0
        %6536 = vmatpush1.msra.mxu0 0.0
        %6537 = vmatprep.subr.mxu0 0.0
        %6538 = vmatpush1.msra.mxu0 0.0
        %6539 = vmatprep.subr.mxu0 0.0
        %6540 = vmatpush1.msra.mxu0 0.0
        %6541 = vmatprep.subr.mxu0 0.0
        %6542 = vmatpush1.msra.mxu0 0.0
        %6543 = vmatprep.subr.mxu0 0.0
        %6544 = vmatpush1.msra.mxu0 0.0
        %6545 = vmatprep.subr.mxu0 0.0
        %6546 = vmatpush1.msra.mxu0 0.0
        %6547 = vmatprep.subr.mxu0 0.0
        %6548 = vmatpush1.msra.mxu0 0.0
        %6549 = vmatprep.subr.mxu0 0.0
        %6550 = vmatpush1.msra.mxu0 0.0
        %6551 = vmatprep.subr.mxu0 0.0
        %6552 = vmatpush1.msra.mxu0 0.0
        %6553 = vmatprep.subr.mxu0 0.0
        %6554 = vmatpush1.msra.mxu0 0.0
        %6555 = vmatprep.subr.mxu0 0.0
        %6556 = vmatpush1.msra.mxu0 0.0
        %6557 = vmatprep.subr.mxu0 0.0
        %6558 = vmatpush1.msra.mxu0 0.0
        %6559 = vmatprep.subr.mxu0 0.0
        %6560 = vmatpush1.msra.mxu0 0.0
        %6561 = vmatprep.subr.mxu0 0.0
        %6562 = vmatpush1.msra.mxu0 0.0
        %6563 = vmatprep.subr.mxu0 0.0
        %6564 = vmatpush1.msra.mxu0 0.0
        %6565 = vmatprep.subr.mxu0 0.0
        %6566 = vmatpush1.msra.mxu0 0.0
        %6567 = vmatprep.subr.mxu0 0.0
        %6568 = vmatpush1.msra.mxu0 0.0
        %6569 = vmatprep.subr.mxu0 0.0
        %6570 = vmatpush1.msra.mxu0 0.0
        %6571 = vmatprep.subr.mxu0 0.0
        %6572 = vmatpush1.msra.mxu0 0.0
        %6573 = vmatprep.subr.mxu0 0.0
        %6574 = vmatpush1.msra.mxu0 0.0
        %6575 = vmatprep.subr.mxu0 0.0
        %6576 = vmatpush1.msra.mxu0 0.0
        %6577 = vmatprep.subr.mxu0 0.0
        %6578 = vmatpush1.msra.mxu0 0.0
        %6579 = vmatprep.subr.mxu0 0.0
        %6580 = vmatpush1.msra.mxu0 0.0
        %6581 = vmatprep.subr.mxu0 0.0
        %6582 = vmatpush1.msra.mxu0 0.0
        %6583 = vmatprep.subr.mxu0 0.0
        %6584 = vmatpush1.msra.mxu0 0.0
        %6585 = vmatprep.subr.mxu0 0.0
        %6586 = vmatpush1.msra.mxu0 0.0
        %6587 = vmatprep.subr.mxu0 0.0
        %6588 = vmatpush1.msra.mxu0 0.0
        %6589 = vmatprep.mubr.f32.mxu0 0.0
        %v6590 = vand.u32 %v4869, 4294901760
        %6591 = vmatmul.mubr.f32.gmra.mrb[0].mxu0 %v6590
        %v6592 = vpop.f32.mrb[0].mxu0
        %v6593 = vadd.f32 %v6332, %v6592
        %v6594 = vpop.f32.mrb[0].mxu0
        %6595 = vmatprep.mubr.f32.mxu0 0.0
        %v6596 = vand.u32 %v4872, 4294901760
        %6597 = vmatmul.mubr.f32.gmra.mrb[0].mxu0 %v6596
        %v6598 = vpop.f32.mrb[0].mxu0
        %v6599 = vadd.f32 %v6338, %v6598
        %v6600 = vpop.f32.mrb[0].mxu0
        %6601 = vmatprep.mubr.f32.mxu0 0.0
        %v6602 = vand.u32 %v4875, 4294901760
        %6603 = vmatmul.mubr.f32.gmra.mrb[0].mxu0 %v6602
        %v6604 = vpop.f32.mrb[0].mxu0
        %v6605 = vadd.f32 %v6344, %v6604
        %v6606 = vpop.f32.mrb[0].mxu0
        %6607 = vmatprep.mubr.f32.mxu0 0.0
        %v6608 = vand.u32 %v4878, 4294901760
        %6609 = vmatmul.mubr.f32.gmra.mrb[0].mxu0 %v6608
        %v6610 = vpop.f32.mrb[0].mxu0
        %v6611 = vadd.f32 %v6350, %v6610
        %v6612 = vpop.f32.mrb[0].mxu0
        %6613 = vmatprep.mubr.f32.mxu0 0.0
        %v6614 = vand.u32 %v4881, 4294901760
        %6615 = vmatmul.mubr.f32.gmra.mrb[0].mxu0 %v6614
        %v6616 = vpop.f32.mrb[0].mxu0
        %v6617 = vadd.f32 %v6356, %v6616
        %v6618 = vpop.f32.mrb[0].mxu0
        %6619 = vmatprep.mubr.f32.mxu0 0.0
        %v6620 = vand.u32 %v4884, 4294901760
        %6621 = vmatmul.mubr.f32.gmra.mrb[0].mxu0 %v6620
        %v6622 = vpop.f32.mrb[0].mxu0
        %v6623 = vadd.f32 %v6362, %v6622
        %v6624 = vpop.f32.mrb[0].mxu0
        %6625 = vmatprep.mubr.f32.mxu0 0.0
        %v6626 = vand.u32 %v4887, 4294901760
        %6627 = vmatmul.mubr.f32.gmra.mrb[0].mxu0 %v6626
        %v6628 = vpop.f32.mrb[0].mxu0
        %v6629 = vadd.f32 %v6368, %v6628
        %v6630 = vpop.f32.mrb[0].mxu0
        %6631 = vmatprep.mubr.f32.mxu0 0.0
        %v6632 = vand.u32 %v4890, 4294901760
        %6633 = vmatmul.mubr.f32.gmra.mrb[0].mxu0 %v6632
        %v6634 = vpop.f32.mrb[0].mxu0
        %v6635 = vadd.f32 %v6374, %v6634
        %v6636 = vpop.f32.mrb[0].mxu0
        %6637 = vmatprep.mubr.f32.mxu0 0.0
        %v6638 = vand.u32 %v4893, 4294901760
        %6639 = vmatmul.mubr.f32.gmra.mrb[0].mxu0 %v6638
        %v6640 = vpop.f32.mrb[0].mxu0
        %v6641 = vadd.f32 %v6380, %v6640
        %v6642 = vpop.f32.mrb[0].mxu0
        %6643 = vmatprep.mubr.f32.mxu0 0.0
        %v6644 = vand.u32 %v4896, 4294901760
        %6645 = vmatmul.mubr.f32.gmra.mrb[0].mxu0 %v6644
        %v6646 = vpop.f32.mrb[0].mxu0
        %v6647 = vadd.f32 %v6386, %v6646
        %v6648 = vpop.f32.mrb[0].mxu0
        %6649 = vmatprep.mubr.f32.mxu0 0.0
        %v6650 = vand.u32 %v4899, 4294901760
        %6651 = vmatmul.mubr.f32.gmra.mrb[0].mxu0 %v6650
        %v6652 = vpop.f32.mrb[0].mxu0
        %v6653 = vadd.f32 %v6392, %v6652
        %v6654 = vpop.f32.mrb[0].mxu0
        %6655 = vmatprep.mubr.f32.mxu0 0.0
        %v6656 = vand.u32 %v4902, 4294901760
        %6657 = vmatmul.mubr.f32.gmra.mrb[0].mxu0 %v6656
        %v6658 = vpop.f32.mrb[0].mxu0
        %v6659 = vadd.f32 %v6398, %v6658
        %v6660 = vpop.f32.mrb[0].mxu0
        %6661 = vmatprep.mubr.f32.mxu0 0.0
        %v6662 = vand.u32 %v4905, 4294901760
        %6663 = vmatmul.mubr.f32.gmra.mrb[0].mxu0 %v6662
        %v6664 = vpop.f32.mrb[0].mxu0
        %v6665 = vadd.f32 %v6404, %v6664
        %v6666 = vpop.f32.mrb[0].mxu0
        %6667 = vmatprep.mubr.f32.mxu0 0.0
        %v6668 = vand.u32 %v4908, 4294901760
        %6669 = vmatmul.mubr.f32.gmra.mrb[0].mxu0 %v6668
        %v6670 = vpop.f32.mrb[0].mxu0
        %v6671 = vadd.f32 %v6410, %v6670
        %v6672 = vpop.f32.mrb[0].mxu0
        %6673 = vmatprep.mubr.f32.mxu0 0.0
        %v6674 = vand.u32 %v4911, 4294901760
        %6675 = vmatmul.mubr.f32.gmra.mrb[0].mxu0 %v6674
        %v6676 = vpop.f32.mrb[0].mxu0
        %v6677 = vadd.f32 %v6416, %v6676
        %v6678 = vpop.f32.mrb[0].mxu0
        %6679 = vmatprep.mubr.f32.mxu0 0.0
        %v6680 = vand.u32 %v4914, 4294901760
        %6681 = vmatmul.mubr.f32.gmra.mrb[0].mxu0 %v6680
        %v6682 = vpop.f32.mrb[0].mxu0
        %v6683 = vadd.f32 %v6422, %v6682
        %v6684 = vpop.f32.mrb[0].mxu0
        %6685 = vmatprep.mubr.f32.mxu0 0.0
        %v6686 = vand.u32 %v4917, 4294901760
        %6687 = vmatmul.mubr.f32.gmra.mrb[0].mxu0 %v6686
        %v6688 = vpop.f32.mrb[0].mxu0
        %v6689 = vadd.f32 %v6428, %v6688
        %v6690 = vpop.f32.mrb[0].mxu0
        %6691 = vmatprep.mubr.f32.mxu0 0.0
        %v6692 = vand.u32 %v4920, 4294901760
        %6693 = vmatmul.mubr.f32.gmra.mrb[0].mxu0 %v6692
        %v6694 = vpop.f32.mrb[0].mxu0
        %v6695 = vadd.f32 %v6434, %v6694
        %v6696 = vpop.f32.mrb[0].mxu0
        %6697 = vmatprep.mubr.f32.mxu0 0.0
        %v6698 = vand.u32 %v4923, 4294901760
        %6699 = vmatmul.mubr.f32.gmra.mrb[0].mxu0 %v6698
        %v6700 = vpop.f32.mrb[0].mxu0
        %v6701 = vadd.f32 %v6440, %v6700
        %v6702 = vpop.f32.mrb[0].mxu0
        %6703 = vmatprep.mubr.f32.mxu0 0.0
        %v6704 = vand.u32 %v4926, 4294901760
        %6705 = vmatmul.mubr.f32.gmra.mrb[0].mxu0 %v6704
        %v6706 = vpop.f32.mrb[0].mxu0
        %v6707 = vadd.f32 %v6446, %v6706
        %v6708 = vpop.f32.mrb[0].mxu0
        %6709 = vmatprep.mubr.f32.mxu0 0.0
        %v6710 = vand.u32 %v4929, 4294901760
        %6711 = vmatmul.mubr.f32.gmra.mrb[0].mxu0 %v6710
        %v6712 = vpop.f32.mrb[0].mxu0
        %v6713 = vadd.f32 %v6452, %v6712
        %v6714 = vpop.f32.mrb[0].mxu0
        %6715 = vmatprep.mubr.f32.mxu0 0.0
        %v6716 = vand.u32 %v4932, 4294901760
        %6717 = vmatmul.mubr.f32.gmra.mrb[0].mxu0 %v6716
        %v6718 = vpop.f32.mrb[0].mxu0
        %v6719 = vadd.f32 %v6458, %v6718
        %v6720 = vpop.f32.mrb[0].mxu0
        %6721 = vmatprep.mubr.f32.mxu0 0.0
        %v6722 = vand.u32 %v4935, 4294901760
        %6723 = vmatmul.mubr.f32.gmra.mrb[0].mxu0 %v6722
        %v6724 = vpop.f32.mrb[0].mxu0
        %v6725 = vadd.f32 %v6464, %v6724
        %v6726 = vpop.f32.mrb[0].mxu0
        %6727 = vmatprep.mubr.f32.mxu0 0.0
        %v6728 = vand.u32 %v4938, 4294901760
        %6729 = vmatmul.mubr.f32.gmra.mrb[0].mxu0 %v6728
        %v6730 = vpop.f32.mrb[0].mxu0
        %v6731 = vadd.f32 %v6470, %v6730
        %v6732 = vpop.f32.mrb[0].mxu0
        %6733 = vmatprep.mubr.f32.mxu0 0.0
        %v6734 = vand.u32 %v4941, 4294901760
        %6735 = vmatmul.mubr.f32.gmra.mrb[0].mxu0 %v6734
        %v6736 = vpop.f32.mrb[0].mxu0
        %v6737 = vadd.f32 %v6476, %v6736
        %v6738 = vpop.f32.mrb[0].mxu0
        %6739 = vmatprep.mubr.f32.mxu0 0.0
        %v6740 = vand.u32 %v4944, 4294901760
        %6741 = vmatmul.mubr.f32.gmra.mrb[0].mxu0 %v6740
        %v6742 = vpop.f32.mrb[0].mxu0
        %v6743 = vadd.f32 %v6482, %v6742
        %v6744 = vpop.f32.mrb[0].mxu0
        %6745 = vmatprep.mubr.f32.mxu0 0.0
        %v6746 = vand.u32 %v4947, 4294901760
        %6747 = vmatmul.mubr.f32.gmra.mrb[0].mxu0 %v6746
        %v6748 = vpop.f32.mrb[0].mxu0
        %v6749 = vadd.f32 %v6488, %v6748
        %v6750 = vpop.f32.mrb[0].mxu0
        %6751 = vmatprep.mubr.f32.mxu0 0.0
        %v6752 = vand.u32 %v4950, 4294901760
        %6753 = vmatmul.mubr.f32.gmra.mrb[0].mxu0 %v6752
        %v6754 = vpop.f32.mrb[0].mxu0
        %v6755 = vadd.f32 %v6494, %v6754
        %v6756 = vpop.f32.mrb[0].mxu0
        %6757 = vmatprep.mubr.f32.mxu0 0.0
        %v6758 = vand.u32 %v4953, 4294901760
        %6759 = vmatmul.mubr.f32.gmra.mrb[0].mxu0 %v6758
        %v6760 = vpop.f32.mrb[0].mxu0
        %v6761 = vadd.f32 %v6500, %v6760
        %v6762 = vpop.f32.mrb[0].mxu0
        %6763 = vmatprep.mubr.f32.mxu0 0.0
        %v6764 = vand.u32 %v4956, 4294901760
        %6765 = vmatmul.mubr.f32.gmra.mrb[0].mxu0 %v6764
        %v6766 = vpop.f32.mrb[0].mxu0
        %v6767 = vadd.f32 %v6506, %v6766
        %v6768 = vpop.f32.mrb[0].mxu0
        %6769 = vmatprep.mubr.f32.mxu0 0.0
        %v6770 = vand.u32 %v4959, 4294901760
        %6771 = vmatmul.mubr.f32.gmra.mrb[0].mxu0 %v6770
        %v6772 = vpop.f32.mrb[0].mxu0
        %v6773 = vadd.f32 %v6512, %v6772
        %v6774 = vpop.f32.mrb[0].mxu0
        %6775 = vmatprep.mubr.f32.mxu0 0.0
        %v6776 = vand.u32 %v4962, 4294901760
        %6777 = vmatmul.mubr.f32.gmra.mrb[0].mxu0 %v6776
        %v6778 = vpop.f32.mrb[0].mxu0
        %v6779 = vadd.f32 %v6518, %v6778
        %v6780 = vpop.f32.mrb[0].mxu0
        %6781 = vdwg.mxu0
        %v6782 = vrsqrt.pop %v6593
        %v6783 = vrsqrt.pop %v6599
        %v6784 = vrsqrt.pop %v6605
        %v6785 = vrsqrt.pop %v6611
        %v6786 = vrsqrt.pop %v6617
        %v6787 = vrsqrt.pop %v6623
        %v6788 = vrsqrt.pop %v6629
        %v6789 = vrsqrt.pop %v6635
        %v6790 = vrsqrt.pop %v6641
        %v6791 = vrsqrt.pop %v6647
        %v6792 = vrsqrt.pop %v6653
        %v6793 = vrsqrt.pop %v6659
        %v6794 = vrsqrt.pop %v6665
        %v6795 = vrsqrt.pop %v6671
        %v6796 = vrsqrt.pop %v6677
        %v6797 = vrsqrt.pop %v6683
        %v6798 = vrsqrt.pop %v6689
        %v6799 = vrsqrt.pop %v6695
        %v6800 = vrsqrt.pop %v6701
        %v6801 = vrsqrt.pop %v6707
        %v6802 = vrsqrt.pop %v6713
        %v6803 = vrsqrt.pop %v6719
        %v6804 = vrsqrt.pop %v6725
        %v6805 = vrsqrt.pop %v6731
        %v6806 = vrsqrt.pop %v6737
        %v6807 = vrsqrt.pop %v6743
        %v6808 = vrsqrt.pop %v6749
        %v6809 = vrsqrt.pop %v6755
        %v6810 = vrsqrt.pop %v6761
        %v6811 = vrsqrt.pop %v6767
        %v6812 = vrsqrt.pop %v6773
        %v6813 = vrsqrt.pop %v6779
        %v6814 = vmul.f32 %v4804, %v6782
        %v6815 = vmul.f32 %v4805, %v6783
        %v6816 = vmul.f32 %v4806, %v6784
        %v6817 = vmul.f32 %v4807, %v6785
        %v6818 = vmul.f32 %v4808, %v6786
        %v6819 = vmul.f32 %v4809, %v6787
        %v6820 = vmul.f32 %v4810, %v6788
        %v6821 = vmul.f32 %v4811, %v6789
        %v6822 = vmul.f32 %v4812, %v6790
        %v6823 = vmul.f32 %v4813, %v6791
        %v6824 = vmul.f32 %v4814, %v6792
        %v6825 = vmul.f32 %v4815, %v6793
        %v6826 = vmul.f32 %v4816, %v6794
        %v6827 = vmul.f32 %v4817, %v6795
        %v6828 = vmul.f32 %v4818, %v6796
        %v6829 = vmul.f32 %v4819, %v6797
        %v6830 = vmul.f32 %v4820, %v6798
        %v6831 = vmul.f32 %v4821, %v6799
        %v6832 = vmul.f32 %v4822, %v6800
        %v6833 = vmul.f32 %v4823, %v6801
        %v6834 = vmul.f32 %v4824, %v6802
        %v6835 = vmul.f32 %v4825, %v6803
        %v6836 = vmul.f32 %v4826, %v6804
        %v6837 = vmul.f32 %v4827, %v6805
        %v6838 = vmul.f32 %v4828, %v6806
        %v6839 = vmul.f32 %v4829, %v6807
        %v6840 = vmul.f32 %v4830, %v6808
        %v6841 = vmul.f32 %v4831, %v6809
        %v6842 = vmul.f32 %v4832, %v6810
        %v6843 = vmul.f32 %v4833, %v6811
        %v6844 = vmul.f32 %v4834, %v6812
        %v6845 = vmul.f32 %v4835, %v6813
        %v6846 = vld [vmem:[%s9] sm:$0x1]
        %v6848 = vlaneseq
        %v6849 = vshrl.u32 %v6848, 7
        %v6850 = vsub.s32 0, %v6849
        %v6851 = vrot.slane %v6846, %v6850
        %v6853 = vmul.f32 %v6814, %v6851
        %v6854 = vmul.f32 %v6815, %v6851
        %v6855 = vmul.f32 %v6816, %v6851
        %v6856 = vmul.f32 %v6817, %v6851
        %v6857 = vmul.f32 %v6818, %v6851
        %v6858 = vmul.f32 %v6819, %v6851
        %v6859 = vmul.f32 %v6820, %v6851
        %v6860 = vmul.f32 %v6821, %v6851
        %v6861 = vmul.f32 %v6822, %v6851
        %v6862 = vmul.f32 %v6823, %v6851
        %v6863 = vmul.f32 %v6824, %v6851
        %v6864 = vmul.f32 %v6825, %v6851
        %v6865 = vmul.f32 %v6826, %v6851
        %v6866 = vmul.f32 %v6827, %v6851
        %v6867 = vmul.f32 %v6828, %v6851
        %v6868 = vmul.f32 %v6829, %v6851
        %v6869 = vmul.f32 %v6830, %v6851
        %v6870 = vmul.f32 %v6831, %v6851
        %v6871 = vmul.f32 %v6832, %v6851
        %v6872 = vmul.f32 %v6833, %v6851
        %v6873 = vmul.f32 %v6834, %v6851
        %v6874 = vmul.f32 %v6835, %v6851
        %v6875 = vmul.f32 %v6836, %v6851
        %v6876 = vmul.f32 %v6837, %v6851
        %v6877 = vmul.f32 %v6838, %v6851
        %v6878 = vmul.f32 %v6839, %v6851
        %v6879 = vmul.f32 %v6840, %v6851
        %v6880 = vmul.f32 %v6841, %v6851
        %v6881 = vmul.f32 %v6842, %v6851
        %v6882 = vmul.f32 %v6843, %v6851
        %v6883 = vmul.f32 %v6844, %v6851
        %v6884 = vmul.f32 %v6845, %v6851
        %v6885 = vld [vmem:[%s10] sm:$0x1]
        %v6887 = vlaneseq
        %v6888 = vshrl.u32 %v6887, 7
        %v6889 = vsub.s32 0, %v6888
        %v6890 = vrot.slane %v6885, %v6889
        %v6892 = vadd.f32 %v6853, %v6890
        %v6893 = vadd.f32 %v6854, %v6890
        %v6894 = vadd.f32 %v6855, %v6890
        %v6895 = vadd.f32 %v6856, %v6890
        %v6896 = vadd.f32 %v6857, %v6890
        %v6897 = vadd.f32 %v6858, %v6890
        %v6898 = vadd.f32 %v6859, %v6890
        %v6899 = vadd.f32 %v6860, %v6890
        %v6900 = vadd.f32 %v6861, %v6890
        %v6901 = vadd.f32 %v6862, %v6890
        %v6902 = vadd.f32 %v6863, %v6890
        %v6903 = vadd.f32 %v6864, %v6890
        %v6904 = vadd.f32 %v6865, %v6890
        %v6905 = vadd.f32 %v6866, %v6890
        %v6906 = vadd.f32 %v6867, %v6890
        %v6907 = vadd.f32 %v6868, %v6890
        %v6908 = vadd.f32 %v6869, %v6890
        %v6909 = vadd.f32 %v6870, %v6890
        %v6910 = vadd.f32 %v6871, %v6890
        %v6911 = vadd.f32 %v6872, %v6890
        %v6912 = vadd.f32 %v6873, %v6890
        %v6913 = vadd.f32 %v6874, %v6890
        %v6914 = vadd.f32 %v6875, %v6890
        %v6915 = vadd.f32 %v6876, %v6890
        %v6916 = vadd.f32 %v6877, %v6890
        %v6917 = vadd.f32 %v6878, %v6890
        %v6918 = vadd.f32 %v6879, %v6890
        %v6919 = vadd.f32 %v6880, %v6890
        %v6920 = vadd.f32 %v6881, %v6890
        %v6921 = vadd.f32 %v6882, %v6890
        %v6922 = vadd.f32 %v6883, %v6890
        %v6923 = vadd.f32 %v6884, %v6890
        %v6924 = vmul.f32 %v6892, %v6892
        %v6925 = vmul.f32 %v6893, %v6893
        %v6926 = vmul.f32 %v6894, %v6894
        %v6927 = vmul.f32 %v6895, %v6895
        %v6928 = vmul.f32 %v6896, %v6896
        %v6929 = vmul.f32 %v6897, %v6897
        %v6930 = vmul.f32 %v6898, %v6898
        %v6931 = vmul.f32 %v6899, %v6899
        %v6932 = vmul.f32 %v6900, %v6900
        %v6933 = vmul.f32 %v6901, %v6901
        %v6934 = vmul.f32 %v6902, %v6902
        %v6935 = vmul.f32 %v6903, %v6903
        %v6936 = vmul.f32 %v6904, %v6904
        %v6937 = vmul.f32 %v6905, %v6905
        %v6938 = vmul.f32 %v6906, %v6906
        %v6939 = vmul.f32 %v6907, %v6907
        %v6940 = vmul.f32 %v6908, %v6908
        %v6941 = vmul.f32 %v6909, %v6909
        %v6942 = vmul.f32 %v6910, %v6910
        %v6943 = vmul.f32 %v6911, %v6911
        %v6944 = vmul.f32 %v6912, %v6912
        %v6945 = vmul.f32 %v6913, %v6913
        %v6946 = vmul.f32 %v6914, %v6914
        %v6947 = vmul.f32 %v6915, %v6915
        %v6948 = vmul.f32 %v6916, %v6916
        %v6949 = vmul.f32 %v6917, %v6917
        %v6950 = vmul.f32 %v6918, %v6918
        %v6951 = vmul.f32 %v6919, %v6919
        %v6952 = vmul.f32 %v6920, %v6920
        %v6953 = vmul.f32 %v6921, %v6921
        %v6954 = vmul.f32 %v6922, %v6922
        %v6955 = vmul.f32 %v6923, %v6923
        %v6956 = vmul.f32 %v6892, %v6924
        %v6957 = vmul.f32 %v6893, %v6925
        %v6958 = vmul.f32 %v6894, %v6926
        %v6959 = vmul.f32 %v6895, %v6927
        %v6960 = vmul.f32 %v6896, %v6928
        %v6961 = vmul.f32 %v6897, %v6929
        %v6962 = vmul.f32 %v6898, %v6930
        %v6963 = vmul.f32 %v6899, %v6931
        %v6964 = vmul.f32 %v6900, %v6932
        %v6965 = vmul.f32 %v6901, %v6933
        %v6966 = vmul.f32 %v6902, %v6934
        %v6967 = vmul.f32 %v6903, %v6935
        %v6968 = vmul.f32 %v6904, %v6936
        %v6969 = vmul.f32 %v6905, %v6937
        %v6970 = vmul.f32 %v6906, %v6938
        %v6971 = vmul.f32 %v6907, %v6939
        %v6972 = vmul.f32 %v6908, %v6940
        %v6973 = vmul.f32 %v6909, %v6941
        %v6974 = vmul.f32 %v6910, %v6942
        %v6975 = vmul.f32 %v6911, %v6943
        %v6976 = vmul.f32 %v6912, %v6944
        %v6977 = vmul.f32 %v6913, %v6945
        %v6978 = vmul.f32 %v6914, %v6946
        %v6979 = vmul.f32 %v6915, %v6947
        %v6980 = vmul.f32 %v6916, %v6948
        %v6981 = vmul.f32 %v6917, %v6949
        %v6982 = vmul.f32 %v6918, %v6950
        %v6983 = vmul.f32 %v6919, %v6951
        %v6984 = vmul.f32 %v6920, %v6952
        %v6985 = vmul.f32 %v6921, %v6953
        %v6986 = vmul.f32 %v6922, %v6954
        %v6987 = vmul.f32 %v6923, %v6955
        %v6988 = vmul.f32 %v6956, 0.044715
        %v6989 = vmul.f32 %v6957, 0.044715
        %v6990 = vmul.f32 %v6958, 0.044715
        %v6991 = vmul.f32 %v6959, 0.044715
        %v6992 = vmul.f32 %v6960, 0.044715
        %v6993 = vmul.f32 %v6961, 0.044715
        %v6994 = vmul.f32 %v6962, 0.044715
        %v6995 = vmul.f32 %v6963, 0.044715
        %v6996 = vmul.f32 %v6964, 0.044715
        %v6997 = vmul.f32 %v6965, 0.044715
        %v6998 = vmul.f32 %v6966, 0.044715
        %v6999 = vmul.f32 %v6967, 0.044715
        %v7000 = vmul.f32 %v6968, 0.044715
        %v7001 = vmul.f32 %v6969, 0.044715
        %v7002 = vmul.f32 %v6970, 0.044715
        %v7003 = vmul.f32 %v6971, 0.044715
        %v7004 = vmul.f32 %v6972, 0.044715
        %v7005 = vmul.f32 %v6973, 0.044715
        %v7006 = vmul.f32 %v6974, 0.044715
        %v7007 = vmul.f32 %v6975, 0.044715
        %v7008 = vmul.f32 %v6976, 0.044715
        %v7009 = vmul.f32 %v6977, 0.044715
        %v7010 = vmul.f32 %v6978, 0.044715
        %v7011 = vmul.f32 %v6979, 0.044715
        %v7012 = vmul.f32 %v6980, 0.044715
        %v7013 = vmul.f32 %v6981, 0.044715
        %v7014 = vmul.f32 %v6982, 0.044715
        %v7015 = vmul.f32 %v6983, 0.044715
        %v7016 = vmul.f32 %v6984, 0.044715
        %v7017 = vmul.f32 %v6985, 0.044715
        %v7018 = vmul.f32 %v6986, 0.044715
        %v7019 = vmul.f32 %v6987, 0.044715
        %v7020 = vadd.f32 %v6892, %v6988
        %v7021 = vadd.f32 %v6893, %v6989
        %v7022 = vadd.f32 %v6894, %v6990
        %v7023 = vadd.f32 %v6895, %v6991
        %v7024 = vadd.f32 %v6896, %v6992
        %v7025 = vadd.f32 %v6897, %v6993
        %v7026 = vadd.f32 %v6898, %v6994
        %v7027 = vadd.f32 %v6899, %v6995
        %v7028 = vadd.f32 %v6900, %v6996
        %v7029 = vadd.f32 %v6901, %v6997
        %v7030 = vadd.f32 %v6902, %v6998
        %v7031 = vadd.f32 %v6903, %v6999
        %v7032 = vadd.f32 %v6904, %v7000
        %v7033 = vadd.f32 %v6905, %v7001
        %v7034 = vadd.f32 %v6906, %v7002
        %v7035 = vadd.f32 %v6907, %v7003
        %v7036 = vadd.f32 %v6908, %v7004
        %v7037 = vadd.f32 %v6909, %v7005
        %v7038 = vadd.f32 %v6910, %v7006
        %v7039 = vadd.f32 %v6911, %v7007
        %v7040 = vadd.f32 %v6912, %v7008
        %v7041 = vadd.f32 %v6913, %v7009
        %v7042 = vadd.f32 %v6914, %v7010
        %v7043 = vadd.f32 %v6915, %v7011
        %v7044 = vadd.f32 %v6916, %v7012
        %v7045 = vadd.f32 %v6917, %v7013
        %v7046 = vadd.f32 %v6918, %v7014
        %v7047 = vadd.f32 %v6919, %v7015
        %v7048 = vadd.f32 %v6920, %v7016
        %v7049 = vadd.f32 %v6921, %v7017
        %v7050 = vadd.f32 %v6922, %v7018
        %v7051 = vadd.f32 %v6923, %v7019
        %v7052 = vmul.f32 %v7020, 0.7978846
        %v7053 = vmul.f32 %v7021, 0.7978846
        %v7054 = vmul.f32 %v7022, 0.7978846
        %v7055 = vmul.f32 %v7023, 0.7978846
        %v7056 = vmul.f32 %v7024, 0.7978846
        %v7057 = vmul.f32 %v7025, 0.7978846
        %v7058 = vmul.f32 %v7026, 0.7978846
        %v7059 = vmul.f32 %v7027, 0.7978846
        %v7060 = vmul.f32 %v7028, 0.7978846
        %v7061 = vmul.f32 %v7029, 0.7978846
        %v7062 = vmul.f32 %v7030, 0.7978846
        %v7063 = vmul.f32 %v7031, 0.7978846
        %v7064 = vmul.f32 %v7032, 0.7978846
        %v7065 = vmul.f32 %v7033, 0.7978846
        %v7066 = vmul.f32 %v7034, 0.7978846
        %v7067 = vmul.f32 %v7035, 0.7978846
        %v7068 = vmul.f32 %v7036, 0.7978846
        %v7069 = vmul.f32 %v7037, 0.7978846
        %v7070 = vmul.f32 %v7038, 0.7978846
        %v7071 = vmul.f32 %v7039, 0.7978846
        %v7072 = vmul.f32 %v7040, 0.7978846
        %v7073 = vmul.f32 %v7041, 0.7978846
        %v7074 = vmul.f32 %v7042, 0.7978846
        %v7075 = vmul.f32 %v7043, 0.7978846
        %v7076 = vmul.f32 %v7044, 0.7978846
        %v7077 = vmul.f32 %v7045, 0.7978846
        %v7078 = vmul.f32 %v7046, 0.7978846
        %v7079 = vmul.f32 %v7047, 0.7978846
        %v7080 = vmul.f32 %v7048, 0.7978846
        %v7081 = vmul.f32 %v7049, 0.7978846
        %v7082 = vmul.f32 %v7050, 0.7978846
        %v7083 = vmul.f32 %v7051, 0.7978846
        %v7084 = vtanh.pop %v7052
        %v7085 = vtanh.pop %v7053
        %v7086 = vtanh.pop %v7054
        %v7087 = vtanh.pop %v7055
        %v7088 = vtanh.pop %v7056
        %v7089 = vtanh.pop %v7057
        %v7090 = vtanh.pop %v7058
        %v7091 = vtanh.pop %v7059
        %v7092 = vtanh.pop %v7060
        %v7093 = vtanh.pop %v7061
        %v7094 = vtanh.pop %v7062
        %v7095 = vtanh.pop %v7063
        %v7096 = vtanh.pop %v7064
        %v7097 = vtanh.pop %v7065
        %v7098 = vtanh.pop %v7066
        %v7099 = vtanh.pop %v7067
        %v7100 = vtanh.pop %v7068
        %v7101 = vtanh.pop %v7069
        %v7102 = vtanh.pop %v7070
        %v7103 = vtanh.pop %v7071
        %v7104 = vtanh.pop %v7072
        %v7105 = vtanh.pop %v7073
        %v7106 = vtanh.pop %v7074
        %v7107 = vtanh.pop %v7075
        %v7108 = vtanh.pop %v7076
        %v7109 = vtanh.pop %v7077
        %v7110 = vtanh.pop %v7078
        %v7111 = vtanh.pop %v7079
        %v7112 = vtanh.pop %v7080
        %v7113 = vtanh.pop %v7081
        %v7114 = vtanh.pop %v7082
        %v7115 = vtanh.pop %v7083
        %v7116 = vadd.f32 %v7084, 1.0
        %v7117 = vadd.f32 %v7085, 1.0
        %v7118 = vadd.f32 %v7086, 1.0
        %v7119 = vadd.f32 %v7087, 1.0
        %v7120 = vadd.f32 %v7088, 1.0
        %v7121 = vadd.f32 %v7089, 1.0
        %v7122 = vadd.f32 %v7090, 1.0
        %v7123 = vadd.f32 %v7091, 1.0
        %v7124 = vadd.f32 %v7092, 1.0
        %v7125 = vadd.f32 %v7093, 1.0
        %v7126 = vadd.f32 %v7094, 1.0
        %v7127 = vadd.f32 %v7095, 1.0
        %v7128 = vadd.f32 %v7096, 1.0
        %v7129 = vadd.f32 %v7097, 1.0
        %v7130 = vadd.f32 %v7098, 1.0
        %v7131 = vadd.f32 %v7099, 1.0
        %v7132 = vadd.f32 %v7100, 1.0
        %v7133 = vadd.f32 %v7101, 1.0
        %v7134 = vadd.f32 %v7102, 1.0
        %v7135 = vadd.f32 %v7103, 1.0
        %v7136 = vadd.f32 %v7104, 1.0
        %v7137 = vadd.f32 %v7105, 1.0
        %v7138 = vadd.f32 %v7106, 1.0
        %v7139 = vadd.f32 %v7107, 1.0
        %v7140 = vadd.f32 %v7108, 1.0
        %v7141 = vadd.f32 %v7109, 1.0
        %v7142 = vadd.f32 %v7110, 1.0
        %v7143 = vadd.f32 %v7111, 1.0
        %v7144 = vadd.f32 %v7112, 1.0
        %v7145 = vadd.f32 %v7113, 1.0
        %v7146 = vadd.f32 %v7114, 1.0
        %v7147 = vadd.f32 %v7115, 1.0
        %v7148 = vmul.f32 %v7116, 0.5
        %v7149 = vmul.f32 %v7117, 0.5
        %v7150 = vmul.f32 %v7118, 0.5
        %v7151 = vmul.f32 %v7119, 0.5
        %v7152 = vmul.f32 %v7120, 0.5
        %v7153 = vmul.f32 %v7121, 0.5
        %v7154 = vmul.f32 %v7122, 0.5
        %v7155 = vmul.f32 %v7123, 0.5
        %v7156 = vmul.f32 %v7124, 0.5
        %v7157 = vmul.f32 %v7125, 0.5
        %v7158 = vmul.f32 %v7126, 0.5
        %v7159 = vmul.f32 %v7127, 0.5
        %v7160 = vmul.f32 %v7128, 0.5
        %v7161 = vmul.f32 %v7129, 0.5
        %v7162 = vmul.f32 %v7130, 0.5
        %v7163 = vmul.f32 %v7131, 0.5
        %v7164 = vmul.f32 %v7132, 0.5
        %v7165 = vmul.f32 %v7133, 0.5
        %v7166 = vmul.f32 %v7134, 0.5
        %v7167 = vmul.f32 %v7135, 0.5
        %v7168 = vmul.f32 %v7136, 0.5
        %v7169 = vmul.f32 %v7137, 0.5
        %v7170 = vmul.f32 %v7138, 0.5
        %v7171 = vmul.f32 %v7139, 0.5
        %v7172 = vmul.f32 %v7140, 0.5
        %v7173 = vmul.f32 %v7141, 0.5
        %v7174 = vmul.f32 %v7142, 0.5
        %v7175 = vmul.f32 %v7143, 0.5
        %v7176 = vmul.f32 %v7144, 0.5
        %v7177 = vmul.f32 %v7145, 0.5
        %v7178 = vmul.f32 %v7146, 0.5
        %v7179 = vmul.f32 %v7147, 0.5
        %v7180 = vmul.f32 %v6892, %v7148
        %v7181 = vmul.f32 %v6893, %v7149
        %v7182 = vmul.f32 %v6894, %v7150
        %v7183 = vmul.f32 %v6895, %v7151
        %v7184 = vmul.f32 %v6896, %v7152
        %v7185 = vmul.f32 %v6897, %v7153
        %v7186 = vmul.f32 %v6898, %v7154
        %v7187 = vmul.f32 %v6899, %v7155
        %v7188 = vmul.f32 %v6900, %v7156
        %v7189 = vmul.f32 %v6901, %v7157
        %v7190 = vmul.f32 %v6902, %v7158
        %v7191 = vmul.f32 %v6903, %v7159
        %v7192 = vmul.f32 %v6904, %v7160
        %v7193 = vmul.f32 %v6905, %v7161
        %v7194 = vmul.f32 %v6906, %v7162
        %v7195 = vmul.f32 %v6907, %v7163
        %v7196 = vmul.f32 %v6908, %v7164
        %v7197 = vmul.f32 %v6909, %v7165
        %v7198 = vmul.f32 %v6910, %v7166
        %v7199 = vmul.f32 %v6911, %v7167
        %v7200 = vmul.f32 %v6912, %v7168
        %v7201 = vmul.f32 %v6913, %v7169
        %v7202 = vmul.f32 %v6914, %v7170
        %v7203 = vmul.f32 %v6915, %v7171
        %v7204 = vmul.f32 %v6916, %v7172
        %v7205 = vmul.f32 %v6917, %v7173
        %v7206 = vmul.f32 %v6918, %v7174
        %v7207 = vmul.f32 %v6919, %v7175
        %v7208 = vmul.f32 %v6920, %v7176
        %v7209 = vmul.f32 %v6921, %v7177
        %v7210 = vmul.f32 %v6922, %v7178
        %v7211 = vmul.f32 %v6923, %v7179
        %v7212 = vld [vmem:[%s12] sm:$0xf]
        %v7213 = vld [vmem:[%s12 + $0x4] sm:$0xf]
        %v7214 = vld [vmem:[%s12 + $0x8] sm:$0xf]
        %v7215 = vld [vmem:[%s12 + $0xc] sm:$0xf]
        %v7216 = vpack.c.bf16 %v7181, %v7180
        %v7217 = vpack.c.bf16 %v7183, %v7182
        %v7218 = vpack.c.bf16 %v7185, %v7184
        %v7219 = vpack.c.bf16 %v7187, %v7186
        %v7220 = vpack.c.bf16 %v7189, %v7188
        %v7221 = vpack.c.bf16 %v7191, %v7190
        %v7222 = vpack.c.bf16 %v7193, %v7192
        %v7223 = vpack.c.bf16 %v7195, %v7194
        %v7224 = vpack.c.bf16 %v7197, %v7196
        %v7225 = vpack.c.bf16 %v7199, %v7198
        %v7226 = vpack.c.bf16 %v7201, %v7200
        %v7227 = vpack.c.bf16 %v7203, %v7202
        %v7228 = vpack.c.bf16 %v7205, %v7204
        %v7229 = vpack.c.bf16 %v7207, %v7206
        %v7230 = vpack.c.bf16 %v7209, %v7208
        %v7231 = vpack.c.bf16 %v7211, %v7210
        %v7232 = vld [vmem:[%s13] sm:$0x1]
        %v7234 = vlaneseq
        %v7235 = vshrl.u32 %v7234, 7
        %v7236 = vsub.s32 0, %v7235
        %v7237 = vrot.slane %v7232, %v7236
        %v7243 = vunpack.c.l.b16 %v7212
        %v7244 = vunpack.c.l.b16 %v7213
        %v7245 = vunpack.c.l.b16 %v7214
        %v7246 = vunpack.c.l.b16 %v7215
        %v7247 = vpack.c.b16 %v7244, %v7243
        %v7248 = vpack.c.b16 %v7246, %v7245
        %v7252 = vsel %vm791, %v7216, 0
        %v7255 = vsel %vm791, %v7217, 0
        %v7258 = vsel %vm791, %v7218, 0
        %v7261 = vsel %vm791, %v7219, 0
        %v7264 = vsel %vm791, %v7220, 0
        %v7267 = vsel %vm791, %v7221, 0
        %v7270 = vsel %vm791, %v7222, 0
        %v7273 = vsel %vm791, %v7223, 0
        %v7276 = vsel %vm791, %v7224, 0
        %v7279 = vsel %vm791, %v7225, 0
        %v7282 = vsel %vm791, %v7226, 0
        %v7285 = vsel %vm791, %v7227, 0
        %v7288 = vsel %vm791, %v7228, 0
        %v7291 = vsel %vm791, %v7229, 0
        %v7294 = vsel %vm791, %v7230, 0
        %v7297 = vsel %vm791, %v7231, 0
        %7299 = vmatprep.subr.bf16.mxu0 0
        %7300 = vmatpush1.bf16.msra.mxu0 %v7247
        %7301 = vmatprep.subr.bf16.mxu0 0
        %7302 = vmatpush1.bf16.msra.mxu0 %v7248
        %7303 = vmatprep.subr.bf16.mxu0 0
        %7304 = vmatpush1.bf16.msra.mxu0 0
        %7305 = vmatprep.subr.bf16.mxu0 0
        %7306 = vmatpush1.bf16.msra.mxu0 0
        %7307 = vmatprep.subr.bf16.mxu0 0
        %7308 = vmatpush1.bf16.msra.mxu0 0
        %7309 = vmatprep.subr.bf16.mxu0 0
        %7310 = vmatpush1.bf16.msra.mxu0 0
        %7311 = vmatprep.subr.bf16.mxu0 0
        %7312 = vmatpush1.bf16.msra.mxu0 0
        %7313 = vmatprep.subr.bf16.mxu0 0
        %7314 = vmatpush1.bf16.msra.mxu0 0
        %7315 = vmatprep.subr.bf16.mxu0 0
        %7316 = vmatpush1.bf16.msra.mxu0 0
        %7317 = vmatprep.subr.bf16.mxu0 0
        %7318 = vmatpush1.bf16.msra.mxu0 0
        %7319 = vmatprep.subr.bf16.mxu0 0
        %7320 = vmatpush1.bf16.msra.mxu0 0
        %7321 = vmatprep.subr.bf16.mxu0 0
        %7322 = vmatpush1.bf16.msra.mxu0 0
        %7323 = vmatprep.subr.bf16.mxu0 0
        %7324 = vmatpush1.bf16.msra.mxu0 0
        %7325 = vmatprep.subr.bf16.mxu0 0
        %7326 = vmatpush1.bf16.msra.mxu0 0
        %7327 = vmatprep.subr.bf16.mxu0 0
        %7328 = vmatpush1.bf16.msra.mxu0 0
        %7329 = vmatprep.subr.bf16.mxu0 0
        %7330 = vmatpush1.bf16.msra.mxu0 0
        %7331 = vmatprep.mubr.bf16.mxu0 0
        %7332 = vmatmul.mubr.bf16.gmra.mrb[0].mxu0 %v7252
        %v7333 = vpop.f32.mrb[0].mxu0
        %v7334 = vadd.f32 %v7237, %v7333
        %v7335 = vpop.f32.mrb[0].mxu0
        %v7336 = vpop.f32.mrb[0].mxu0
        %v7337 = vadd.f32 %v7237, %v7336
        %v7338 = vpop.f32.mrb[0].mxu0
        %7339 = vmatprep.mubr.bf16.mxu0 0
        %7340 = vmatmul.mubr.bf16.gmra.mrb[0].mxu0 %v7255
        %v7341 = vpop.f32.mrb[0].mxu0
        %v7342 = vadd.f32 %v7237, %v7341
        %v7343 = vpop.f32.mrb[0].mxu0
        %v7344 = vpop.f32.mrb[0].mxu0
        %v7345 = vadd.f32 %v7237, %v7344
        %v7346 = vpop.f32.mrb[0].mxu0
        %7347 = vmatprep.mubr.bf16.mxu0 0
        %7348 = vmatmul.mubr.bf16.gmra.mrb[0].mxu0 %v7258
        %v7349 = vpop.f32.mrb[0].mxu0
        %v7350 = vadd.f32 %v7237, %v7349
        %v7351 = vpop.f32.mrb[0].mxu0
        %v7352 = vpop.f32.mrb[0].mxu0
        %v7353 = vadd.f32 %v7237, %v7352
        %v7354 = vpop.f32.mrb[0].mxu0
        %7355 = vmatprep.mubr.bf16.mxu0 0
        %7356 = vmatmul.mubr.bf16.gmra.mrb[0].mxu0 %v7261
        %v7357 = vpop.f32.mrb[0].mxu0
        %v7358 = vadd.f32 %v7237, %v7357
        %v7359 = vpop.f32.mrb[0].mxu0
        %v7360 = vpop.f32.mrb[0].mxu0
        %v7361 = vadd.f32 %v7237, %v7360
        %v7362 = vpop.f32.mrb[0].mxu0
        %7363 = vmatprep.mubr.bf16.mxu0 0
        %7364 = vmatmul.mubr.bf16.gmra.mrb[0].mxu0 %v7264
        %v7365 = vpop.f32.mrb[0].mxu0
        %v7366 = vadd.f32 %v7237, %v7365
        %v7367 = vpop.f32.mrb[0].mxu0
        %v7368 = vpop.f32.mrb[0].mxu0
        %v7369 = vadd.f32 %v7237, %v7368
        %v7370 = vpop.f32.mrb[0].mxu0
        %7371 = vmatprep.mubr.bf16.mxu0 0
        %7372 = vmatmul.mubr.bf16.gmra.mrb[0].mxu0 %v7267
        %v7373 = vpop.f32.mrb[0].mxu0
        %v7374 = vadd.f32 %v7237, %v7373
        %v7375 = vpop.f32.mrb[0].mxu0
        %v7376 = vpop.f32.mrb[0].mxu0
        %v7377 = vadd.f32 %v7237, %v7376
        %v7378 = vpop.f32.mrb[0].mxu0
        %7379 = vmatprep.mubr.bf16.mxu0 0
        %7380 = vmatmul.mubr.bf16.gmra.mrb[0].mxu0 %v7270
        %v7381 = vpop.f32.mrb[0].mxu0
        %v7382 = vadd.f32 %v7237, %v7381
        %v7383 = vpop.f32.mrb[0].mxu0
        %v7384 = vpop.f32.mrb[0].mxu0
        %v7385 = vadd.f32 %v7237, %v7384
        %v7386 = vpop.f32.mrb[0].mxu0
        %7387 = vmatprep.mubr.bf16.mxu0 0
        %7388 = vmatmul.mubr.bf16.gmra.mrb[0].mxu0 %v7273
        %v7389 = vpop.f32.mrb[0].mxu0
        %v7390 = vadd.f32 %v7237, %v7389
        %v7391 = vpop.f32.mrb[0].mxu0
        %v7392 = vpop.f32.mrb[0].mxu0
        %v7393 = vadd.f32 %v7237, %v7392
        %v7394 = vpop.f32.mrb[0].mxu0
        %7395 = vmatprep.mubr.bf16.mxu0 0
        %7396 = vmatmul.mubr.bf16.gmra.mrb[0].mxu0 %v7276
        %v7397 = vpop.f32.mrb[0].mxu0
        %v7398 = vadd.f32 %v7237, %v7397
        %v7399 = vpop.f32.mrb[0].mxu0
        %v7400 = vpop.f32.mrb[0].mxu0
        %v7401 = vadd.f32 %v7237, %v7400
        %v7402 = vpop.f32.mrb[0].mxu0
        %7403 = vmatprep.mubr.bf16.mxu0 0
        %7404 = vmatmul.mubr.bf16.gmra.mrb[0].mxu0 %v7279
        %v7405 = vpop.f32.mrb[0].mxu0
        %v7406 = vadd.f32 %v7237, %v7405
        %v7407 = vpop.f32.mrb[0].mxu0
        %v7408 = vpop.f32.mrb[0].mxu0
        %v7409 = vadd.f32 %v7237, %v7408
        %v7410 = vpop.f32.mrb[0].mxu0
        %7411 = vmatprep.mubr.bf16.mxu0 0
        %7412 = vmatmul.mubr.bf16.gmra.mrb[0].mxu0 %v7282
        %v7413 = vpop.f32.mrb[0].mxu0
        %v7414 = vadd.f32 %v7237, %v7413
        %v7415 = vpop.f32.mrb[0].mxu0
        %v7416 = vpop.f32.mrb[0].mxu0
        %v7417 = vadd.f32 %v7237, %v7416
        %v7418 = vpop.f32.mrb[0].mxu0
        %7419 = vmatprep.mubr.bf16.mxu0 0
        %7420 = vmatmul.mubr.bf16.gmra.mrb[0].mxu0 %v7285
        %v7421 = vpop.f32.mrb[0].mxu0
        %v7422 = vadd.f32 %v7237, %v7421
        %v7423 = vpop.f32.mrb[0].mxu0
        %v7424 = vpop.f32.mrb[0].mxu0
        %v7425 = vadd.f32 %v7237, %v7424
        %v7426 = vpop.f32.mrb[0].mxu0
        %7427 = vmatprep.mubr.bf16.mxu0 0
        %7428 = vmatmul.mubr.bf16.gmra.mrb[0].mxu0 %v7288
        %v7429 = vpop.f32.mrb[0].mxu0
        %v7430 = vadd.f32 %v7237, %v7429
        %v7431 = vpop.f32.mrb[0].mxu0
        %v7432 = vpop.f32.mrb[0].mxu0
        %v7433 = vadd.f32 %v7237, %v7432
        %v7434 = vpop.f32.mrb[0].mxu0
        %7435 = vmatprep.mubr.bf16.mxu0 0
        %7436 = vmatmul.mubr.bf16.gmra.mrb[0].mxu0 %v7291
        %v7437 = vpop.f32.mrb[0].mxu0
        %v7438 = vadd.f32 %v7237, %v7437
        %v7439 = vpop.f32.mrb[0].mxu0
        %v7440 = vpop.f32.mrb[0].mxu0
        %v7441 = vadd.f32 %v7237, %v7440
        %v7442 = vpop.f32.mrb[0].mxu0
        %7443 = vmatprep.mubr.bf16.mxu0 0
        %7444 = vmatmul.mubr.bf16.gmra.mrb[0].mxu0 %v7294
        %v7445 = vpop.f32.mrb[0].mxu0
        %v7446 = vadd.f32 %v7237, %v7445
        %v7447 = vpop.f32.mrb[0].mxu0
        %v7448 = vpop.f32.mrb[0].mxu0
        %v7449 = vadd.f32 %v7237, %v7448
        %v7450 = vpop.f32.mrb[0].mxu0
        %7451 = vmatprep.mubr.bf16.mxu0 0
        %7452 = vmatmul.mubr.bf16.gmra.mrb[0].mxu0 %v7297
        %v7453 = vpop.f32.mrb[0].mxu0
        %v7454 = vadd.f32 %v7237, %v7453
        %v7455 = vpop.f32.mrb[0].mxu0
        %v7456 = vpop.f32.mrb[0].mxu0
        %v7457 = vadd.f32 %v7237, %v7456
        %v7458 = vpop.f32.mrb[0].mxu0
        %7459 = vdwg.mxu0
        %v7460 = vmul.f32 %v7334, %v7334
        %v7461 = vmul.f32 %v7337, %v7337
        %v7462 = vmul.f32 %v7342, %v7342
        %v7463 = vmul.f32 %v7345, %v7345
        %v7464 = vmul.f32 %v7350, %v7350
        %v7465 = vmul.f32 %v7353, %v7353
        %v7466 = vmul.f32 %v7358, %v7358
        %v7467 = vmul.f32 %v7361, %v7361
        %v7468 = vmul.f32 %v7366, %v7366
        %v7469 = vmul.f32 %v7369, %v7369
        %v7470 = vmul.f32 %v7374, %v7374
        %v7471 = vmul.f32 %v7377, %v7377
        %v7472 = vmul.f32 %v7382, %v7382
        %v7473 = vmul.f32 %v7385, %v7385
        %v7474 = vmul.f32 %v7390, %v7390
        %v7475 = vmul.f32 %v7393, %v7393
        %v7476 = vmul.f32 %v7398, %v7398
        %v7477 = vmul.f32 %v7401, %v7401
        %v7478 = vmul.f32 %v7406, %v7406
        %v7479 = vmul.f32 %v7409, %v7409
        %v7480 = vmul.f32 %v7414, %v7414
        %v7481 = vmul.f32 %v7417, %v7417
        %v7482 = vmul.f32 %v7422, %v7422
        %v7483 = vmul.f32 %v7425, %v7425
        %v7484 = vmul.f32 %v7430, %v7430
        %v7485 = vmul.f32 %v7433, %v7433
        %v7486 = vmul.f32 %v7438, %v7438
        %v7487 = vmul.f32 %v7441, %v7441
        %v7488 = vmul.f32 %v7446, %v7446
        %v7489 = vmul.f32 %v7449, %v7449
        %v7490 = vmul.f32 %v7454, %v7454
        %v7491 = vmul.f32 %v7457, %v7457
        %v7492 = vmul.f32 %v7334, %v7460
        %v7493 = vmul.f32 %v7337, %v7461
        %v7494 = vmul.f32 %v7342, %v7462
        %v7495 = vmul.f32 %v7345, %v7463
        %v7496 = vmul.f32 %v7350, %v7464
        %v7497 = vmul.f32 %v7353, %v7465
        %v7498 = vmul.f32 %v7358, %v7466
        %v7499 = vmul.f32 %v7361, %v7467
        %v7500 = vmul.f32 %v7366, %v7468
        %v7501 = vmul.f32 %v7369, %v7469
        %v7502 = vmul.f32 %v7374, %v7470
        %v7503 = vmul.f32 %v7377, %v7471
        %v7504 = vmul.f32 %v7382, %v7472
        %v7505 = vmul.f32 %v7385, %v7473
        %v7506 = vmul.f32 %v7390, %v7474
        %v7507 = vmul.f32 %v7393, %v7475
        %v7508 = vmul.f32 %v7398, %v7476
        %v7509 = vmul.f32 %v7401, %v7477
        %v7510 = vmul.f32 %v7406, %v7478
        %v7511 = vmul.f32 %v7409, %v7479
        %v7512 = vmul.f32 %v7414, %v7480
        %v7513 = vmul.f32 %v7417, %v7481
        %v7514 = vmul.f32 %v7422, %v7482
        %v7515 = vmul.f32 %v7425, %v7483
        %v7516 = vmul.f32 %v7430, %v7484
        %v7517 = vmul.f32 %v7433, %v7485
        %v7518 = vmul.f32 %v7438, %v7486
        %v7519 = vmul.f32 %v7441, %v7487
        %v7520 = vmul.f32 %v7446, %v7488
        %v7521 = vmul.f32 %v7449, %v7489
        %v7522 = vmul.f32 %v7454, %v7490
        %v7523 = vmul.f32 %v7457, %v7491
        %v7524 = vmul.f32 %v7492, 0.044715
        %v7525 = vmul.f32 %v7493, 0.044715
        %v7526 = vmul.f32 %v7494, 0.044715
        %v7527 = vmul.f32 %v7495, 0.044715
        %v7528 = vmul.f32 %v7496, 0.044715
        %v7529 = vmul.f32 %v7497, 0.044715
        %v7530 = vmul.f32 %v7498, 0.044715
        %v7531 = vmul.f32 %v7499, 0.044715
        %v7532 = vmul.f32 %v7500, 0.044715
        %v7533 = vmul.f32 %v7501, 0.044715
        %v7534 = vmul.f32 %v7502, 0.044715
        %v7535 = vmul.f32 %v7503, 0.044715
        %v7536 = vmul.f32 %v7504, 0.044715
        %v7537 = vmul.f32 %v7505, 0.044715
        %v7538 = vmul.f32 %v7506, 0.044715
        %v7539 = vmul.f32 %v7507, 0.044715
        %v7540 = vmul.f32 %v7508, 0.044715
        %v7541 = vmul.f32 %v7509, 0.044715
        %v7542 = vmul.f32 %v7510, 0.044715
        %v7543 = vmul.f32 %v7511, 0.044715
        %v7544 = vmul.f32 %v7512, 0.044715
        %v7545 = vmul.f32 %v7513, 0.044715
        %v7546 = vmul.f32 %v7514, 0.044715
        %v7547 = vmul.f32 %v7515, 0.044715
        %v7548 = vmul.f32 %v7516, 0.044715
        %v7549 = vmul.f32 %v7517, 0.044715
        %v7550 = vmul.f32 %v7518, 0.044715
        %v7551 = vmul.f32 %v7519, 0.044715
        %v7552 = vmul.f32 %v7520, 0.044715
        %v7553 = vmul.f32 %v7521, 0.044715
        %v7554 = vmul.f32 %v7522, 0.044715
        %v7555 = vmul.f32 %v7523, 0.044715
        %v7556 = vadd.f32 %v7334, %v7524
        %v7557 = vadd.f32 %v7337, %v7525
        %v7558 = vadd.f32 %v7342, %v7526
        %v7559 = vadd.f32 %v7345, %v7527
        %v7560 = vadd.f32 %v7350, %v7528
        %v7561 = vadd.f32 %v7353, %v7529
        %v7562 = vadd.f32 %v7358, %v7530
        %v7563 = vadd.f32 %v7361, %v7531
        %v7564 = vadd.f32 %v7366, %v7532
        %v7565 = vadd.f32 %v7369, %v7533
        %v7566 = vadd.f32 %v7374, %v7534
        %v7567 = vadd.f32 %v7377, %v7535
        %v7568 = vadd.f32 %v7382, %v7536
        %v7569 = vadd.f32 %v7385, %v7537
        %v7570 = vadd.f32 %v7390, %v7538
        %v7571 = vadd.f32 %v7393, %v7539
        %v7572 = vadd.f32 %v7398, %v7540
        %v7573 = vadd.f32 %v7401, %v7541
        %v7574 = vadd.f32 %v7406, %v7542
        %v7575 = vadd.f32 %v7409, %v7543
        %v7576 = vadd.f32 %v7414, %v7544
        %v7577 = vadd.f32 %v7417, %v7545
        %v7578 = vadd.f32 %v7422, %v7546
        %v7579 = vadd.f32 %v7425, %v7547
        %v7580 = vadd.f32 %v7430, %v7548
        %v7581 = vadd.f32 %v7433, %v7549
        %v7582 = vadd.f32 %v7438, %v7550
        %v7583 = vadd.f32 %v7441, %v7551
        %v7584 = vadd.f32 %v7446, %v7552
        %v7585 = vadd.f32 %v7449, %v7553
        %v7586 = vadd.f32 %v7454, %v7554
        %v7587 = vadd.f32 %v7457, %v7555
        %v7588 = vmul.f32 %v7556, 0.7978846
        %v7589 = vmul.f32 %v7557, 0.7978846
        %v7590 = vmul.f32 %v7558, 0.7978846
        %v7591 = vmul.f32 %v7559, 0.7978846
        %v7592 = vmul.f32 %v7560, 0.7978846
        %v7593 = vmul.f32 %v7561, 0.7978846
        %v7594 = vmul.f32 %v7562, 0.7978846
        %v7595 = vmul.f32 %v7563, 0.7978846
        %v7596 = vmul.f32 %v7564, 0.7978846
        %v7597 = vmul.f32 %v7565, 0.7978846
        %v7598 = vmul.f32 %v7566, 0.7978846
        %v7599 = vmul.f32 %v7567, 0.7978846
        %v7600 = vmul.f32 %v7568, 0.7978846
        %v7601 = vmul.f32 %v7569, 0.7978846
        %v7602 = vmul.f32 %v7570, 0.7978846
        %v7603 = vmul.f32 %v7571, 0.7978846
        %v7604 = vmul.f32 %v7572, 0.7978846
        %v7605 = vmul.f32 %v7573, 0.7978846
        %v7606 = vmul.f32 %v7574, 0.7978846
        %v7607 = vmul.f32 %v7575, 0.7978846
        %v7608 = vmul.f32 %v7576, 0.7978846
        %v7609 = vmul.f32 %v7577, 0.7978846
        %v7610 = vmul.f32 %v7578, 0.7978846
        %v7611 = vmul.f32 %v7579, 0.7978846
        %v7612 = vmul.f32 %v7580, 0.7978846
        %v7613 = vmul.f32 %v7581, 0.7978846
        %v7614 = vmul.f32 %v7582, 0.7978846
        %v7615 = vmul.f32 %v7583, 0.7978846
        %v7616 = vmul.f32 %v7584, 0.7978846
        %v7617 = vmul.f32 %v7585, 0.7978846
        %v7618 = vmul.f32 %v7586, 0.7978846
        %v7619 = vmul.f32 %v7587, 0.7978846
        %v7620 = vtanh.pop %v7588
        %v7621 = vtanh.pop %v7589
        %v7622 = vtanh.pop %v7590
        %v7623 = vtanh.pop %v7591
        %v7624 = vtanh.pop %v7592
        %v7625 = vtanh.pop %v7593
        %v7626 = vtanh.pop %v7594
        %v7627 = vtanh.pop %v7595
        %v7628 = vtanh.pop %v7596
        %v7629 = vtanh.pop %v7597
        %v7630 = vtanh.pop %v7598
        %v7631 = vtanh.pop %v7599
        %v7632 = vtanh.pop %v7600
        %v7633 = vtanh.pop %v7601
        %v7634 = vtanh.pop %v7602
        %v7635 = vtanh.pop %v7603
        %v7636 = vtanh.pop %v7604
        %v7637 = vtanh.pop %v7605
        %v7638 = vtanh.pop %v7606
        %v7639 = vtanh.pop %v7607
        %v7640 = vtanh.pop %v7608
        %v7641 = vtanh.pop %v7609
        %v7642 = vtanh.pop %v7610
        %v7643 = vtanh.pop %v7611
        %v7644 = vtanh.pop %v7612
        %v7645 = vtanh.pop %v7613
        %v7646 = vtanh.pop %v7614
        %v7647 = vtanh.pop %v7615
        %v7648 = vtanh.pop %v7616
        %v7649 = vtanh.pop %v7617
        %v7650 = vtanh.pop %v7618
        %v7651 = vtanh.pop %v7619
        %v7652 = vadd.f32 %v7620, 1.0
        %v7653 = vadd.f32 %v7621, 1.0
        %v7654 = vadd.f32 %v7622, 1.0
        %v7655 = vadd.f32 %v7623, 1.0
        %v7656 = vadd.f32 %v7624, 1.0
        %v7657 = vadd.f32 %v7625, 1.0
        %v7658 = vadd.f32 %v7626, 1.0
        %v7659 = vadd.f32 %v7627, 1.0
        %v7660 = vadd.f32 %v7628, 1.0
        %v7661 = vadd.f32 %v7629, 1.0
        %v7662 = vadd.f32 %v7630, 1.0
        %v7663 = vadd.f32 %v7631, 1.0
        %v7664 = vadd.f32 %v7632, 1.0
        %v7665 = vadd.f32 %v7633, 1.0
        %v7666 = vadd.f32 %v7634, 1.0
        %v7667 = vadd.f32 %v7635, 1.0
        %v7668 = vadd.f32 %v7636, 1.0
        %v7669 = vadd.f32 %v7637, 1.0
        %v7670 = vadd.f32 %v7638, 1.0
        %v7671 = vadd.f32 %v7639, 1.0
        %v7672 = vadd.f32 %v7640, 1.0
        %v7673 = vadd.f32 %v7641, 1.0
        %v7674 = vadd.f32 %v7642, 1.0
        %v7675 = vadd.f32 %v7643, 1.0
        %v7676 = vadd.f32 %v7644, 1.0
        %v7677 = vadd.f32 %v7645, 1.0
        %v7678 = vadd.f32 %v7646, 1.0
        %v7679 = vadd.f32 %v7647, 1.0
        %v7680 = vadd.f32 %v7648, 1.0
        %v7681 = vadd.f32 %v7649, 1.0
        %v7682 = vadd.f32 %v7650, 1.0
        %v7683 = vadd.f32 %v7651, 1.0
        %v7684 = vmul.f32 %v7652, 0.5
        %v7685 = vmul.f32 %v7653, 0.5
        %v7686 = vmul.f32 %v7654, 0.5
        %v7687 = vmul.f32 %v7655, 0.5
        %v7688 = vmul.f32 %v7656, 0.5
        %v7689 = vmul.f32 %v7657, 0.5
        %v7690 = vmul.f32 %v7658, 0.5
        %v7691 = vmul.f32 %v7659, 0.5
        %v7692 = vmul.f32 %v7660, 0.5
        %v7693 = vmul.f32 %v7661, 0.5
        %v7694 = vmul.f32 %v7662, 0.5
        %v7695 = vmul.f32 %v7663, 0.5
        %v7696 = vmul.f32 %v7664, 0.5
        %v7697 = vmul.f32 %v7665, 0.5
        %v7698 = vmul.f32 %v7666, 0.5
        %v7699 = vmul.f32 %v7667, 0.5
        %v7700 = vmul.f32 %v7668, 0.5
        %v7701 = vmul.f32 %v7669, 0.5
        %v7702 = vmul.f32 %v7670, 0.5
        %v7703 = vmul.f32 %v7671, 0.5
        %v7704 = vmul.f32 %v7672, 0.5
        %v7705 = vmul.f32 %v7673, 0.5
        %v7706 = vmul.f32 %v7674, 0.5
        %v7707 = vmul.f32 %v7675, 0.5
        %v7708 = vmul.f32 %v7676, 0.5
        %v7709 = vmul.f32 %v7677, 0.5
        %v7710 = vmul.f32 %v7678, 0.5
        %v7711 = vmul.f32 %v7679, 0.5
        %v7712 = vmul.f32 %v7680, 0.5
        %v7713 = vmul.f32 %v7681, 0.5
        %v7714 = vmul.f32 %v7682, 0.5
        %v7715 = vmul.f32 %v7683, 0.5
        %v7716 = vmul.f32 %v7334, %v7684
        %v7717 = vmul.f32 %v7337, %v7685
        %v7718 = vmul.f32 %v7342, %v7686
        %v7719 = vmul.f32 %v7345, %v7687
        %v7720 = vmul.f32 %v7350, %v7688
        %v7721 = vmul.f32 %v7353, %v7689
        %v7722 = vmul.f32 %v7358, %v7690
        %v7723 = vmul.f32 %v7361, %v7691
        %v7724 = vmul.f32 %v7366, %v7692
        %v7725 = vmul.f32 %v7369, %v7693
        %v7726 = vmul.f32 %v7374, %v7694
        %v7727 = vmul.f32 %v7377, %v7695
        %v7728 = vmul.f32 %v7382, %v7696
        %v7729 = vmul.f32 %v7385, %v7697
        %v7730 = vmul.f32 %v7390, %v7698
        %v7731 = vmul.f32 %v7393, %v7699
        %v7732 = vmul.f32 %v7398, %v7700
        %v7733 = vmul.f32 %v7401, %v7701
        %v7734 = vmul.f32 %v7406, %v7702
        %v7735 = vmul.f32 %v7409, %v7703
        %v7736 = vmul.f32 %v7414, %v7704
        %v7737 = vmul.f32 %v7417, %v7705
        %v7738 = vmul.f32 %v7422, %v7706
        %v7739 = vmul.f32 %v7425, %v7707
        %v7740 = vmul.f32 %v7430, %v7708
        %v7741 = vmul.f32 %v7433, %v7709
        %v7742 = vmul.f32 %v7438, %v7710
        %v7743 = vmul.f32 %v7441, %v7711
        %v7744 = vmul.f32 %v7446, %v7712
        %v7745 = vmul.f32 %v7449, %v7713
        %v7746 = vmul.f32 %v7454, %v7714
        %v7747 = vmul.f32 %v7457, %v7715
        %v7748 = vld [vmem:[%s20] sm:$0xff]
        %v7749 = vld [vmem:[%s20 + $0x8] sm:$0xff]
        %v7750 = vlaneseq
        %v7751 = vshrl.u32 %v7750, 7
        %v7752 = vsub.s32 0, %v7751
        %v7753 = vrot.slane %v2633, %v7752
        %v7754 = vmul.f32 %v7748, %v7753
        %v7755 = vmul.f32 %v7749, %v7753
        %v7756 = vpack.c.bf16 %v7755, %v7754
        %v7757 = vpack.c.bf16 %v7717, %v7716
        %v7758 = vpack.c.bf16 %v7719, %v7718
        %v7759 = vpack.c.bf16 %v7721, %v7720
        %v7760 = vpack.c.bf16 %v7723, %v7722
        %v7761 = vpack.c.bf16 %v7725, %v7724
        %v7762 = vpack.c.bf16 %v7727, %v7726
        %v7763 = vpack.c.bf16 %v7729, %v7728
        %v7764 = vpack.c.bf16 %v7731, %v7730
        %v7765 = vpack.c.bf16 %v7733, %v7732
        %v7766 = vpack.c.bf16 %v7735, %v7734
        %v7767 = vpack.c.bf16 %v7737, %v7736
        %v7768 = vpack.c.bf16 %v7739, %v7738
        %v7769 = vpack.c.bf16 %v7741, %v7740
        %v7770 = vpack.c.bf16 %v7743, %v7742
        %v7771 = vpack.c.bf16 %v7745, %v7744
        %v7772 = vpack.c.bf16 %v7747, %v7746
        %vm7773 = vcmask 523264
        %v7775 = vsel %vm7773, %v7756, 0
        %v7778 = vsel %vm7773, %v7757, 0
        %v7781 = vsel %vm7773, %v7758, 0
        %v7784 = vsel %vm7773, %v7759, 0
        %v7787 = vsel %vm7773, %v7760, 0
        %v7790 = vsel %vm7773, %v7761, 0
        %v7793 = vsel %vm7773, %v7762, 0
        %v7796 = vsel %vm7773, %v7763, 0
        %v7799 = vsel %vm7773, %v7764, 0
        %v7802 = vsel %vm7773, %v7765, 0
        %v7805 = vsel %vm7773, %v7766, 0
        %v7808 = vsel %vm7773, %v7767, 0
        %v7811 = vsel %vm7773, %v7768, 0
        %v7814 = vsel %vm7773, %v7769, 0
        %v7817 = vsel %vm7773, %v7770, 0
        %v7820 = vsel %vm7773, %v7771, 0
        %v7823 = vsel %vm7773, %v7772, 0
        %7825 = vmatprep.subr.bf16.mxu0 0
        %7826 = vmatpush1.bf16.xpose.msra.mxu0 %v7778
        %7827 = vmatprep.subr.bf16.mxu0 0
        %7828 = vmatpush1.bf16.xpose.msra.mxu0 %v7781
        %7829 = vmatprep.subr.bf16.mxu0 0
        %7830 = vmatpush1.bf16.xpose.msra.mxu0 %v7784
        %7831 = vmatprep.subr.bf16.mxu0 0
        %7832 = vmatpush1.bf16.xpose.msra.mxu0 %v7787
        %7833 = vmatprep.subr.bf16.mxu0 0
        %7834 = vmatpush1.bf16.xpose.msra.mxu0 %v7790
        %7835 = vmatprep.subr.bf16.mxu0 0
        %7836 = vmatpush1.bf16.xpose.msra.mxu0 %v7793
        %7837 = vmatprep.subr.bf16.mxu0 0
        %7838 = vmatpush1.bf16.xpose.msra.mxu0 %v7796
        %7839 = vmatprep.subr.bf16.mxu0 0
        %7840 = vmatpush1.bf16.xpose.msra.mxu0 %v7799
        %7841 = vmatprep.subr.bf16.mxu0 0
        %7842 = vmatpush1.bf16.xpose.msra.mxu0 %v7802
        %7843 = vmatprep.subr.bf16.mxu0 0
        %7844 = vmatpush1.bf16.xpose.msra.mxu0 %v7805
        %7845 = vmatprep.subr.bf16.mxu0 0
        %7846 = vmatpush1.bf16.xpose.msra.mxu0 %v7808
        %7847 = vmatprep.subr.bf16.mxu0 0
        %7848 = vmatpush1.bf16.xpose.msra.mxu0 %v7811
        %7849 = vmatprep.subr.bf16.mxu0 0
        %7850 = vmatpush1.bf16.xpose.msra.mxu0 %v7814
        %7851 = vmatprep.subr.bf16.mxu0 0
        %7852 = vmatpush1.bf16.xpose.msra.mxu0 %v7817
        %7853 = vmatprep.subr.bf16.mxu0 0
        %7854 = vmatpush1.bf16.xpose.msra.mxu0 %v7820
        %7855 = vmatprep.subr.bf16.mxu0 0
        %7856 = vmatpush1.bf16.xpose.msra.mxu0 %v7823
        %7857 = vmatprep.mubr.bf16.mxu0 0
        %7858 = vmatmul.mubr.bf16.gmra.mrb[0].mxu0 %v7775
        %v7859 = vpop.f32.mrb[0].mxu0
        %v7860 = vadd.f32 0.0, %v7859
        %v7861 = vpop.f32.mrb[0].mxu0
        %v7862 = vadd.f32 0.0, %v7861
        %v7863 = vpop.f32.mrb[0].mxu0
        %v7864 = vadd.f32 0.0, %v7863
        %v7865 = vpop.f32.mrb[0].mxu0
        %v7866 = vadd.f32 0.0, %v7865
        %7867 = vdwg.mxu0
        %7868 = vst [vmem:[%s664] sm:$0xff] %v7860
        %7869 = vst [vmem:[%s664 + $0x8] sm:$0xff] %v7862
        %7870 = vst [vmem:[%s664 + $0x10] sm:$0xff] %v7864
        %7871 = vst [vmem:[%s664 + $0x18] sm:$0xff] %v7866
        %s7872 = sand.u32 %s494, 1
        %s7873 = scalar_lea.sflag [#allocation3], %s7872
        %s7874 = sand.u32 %s494, 1
        %s7875 = smul.addr %s7874, 32
        %s7876 = scalar_lea.vmem [#allocation2], %s7875
        // Predicated region
        $region105: #{tpu_custom_call.1} parent=103 // pred_check
          %p7877 = pneg %p504
        $region106: #{tpu_custom_call.1} parent=103 // pred_check_branch
          %7879 = sbr.rel (%p7877) target = $region108
        $region107: #{tpu_custom_call.1} parent=103 // pred_region
          %s7881 = ssub.s32 512, 512
          %7882 = vsyncadd %s7873, %s7881
          %s7883 = smul.addr %s35, 4
          %s7884 = smul.addr %s7883, 128
          %s7885 = scalar_lea.hbm %s21, %s7884
          %s7886 = sshll.u32 %s7876, 4
          %s7887 = int_to_ptr.vmem [resolvable:$true] %s7886
          %7892 = dma.vmem_to_hbm [thread:$0]  %s7887, 512, %s7885, %s7873, 256, 256, 16
        $region108: #{tpu_custom_call.1} parent=103 // pred_fallthru
          _
      $region104: #{tpu_custom_call.1} parent=5 // pred_fallthru
        _
      %p7893 = scmp.le.s32.totalorder 2, %s30
      // Predicated region
      $region109: #{tpu_custom_call.1} parent=5 // pred_check
        %p7894 = pneg %p7893
      $region110: #{tpu_custom_call.1} parent=5 // pred_check_branch
        %7896 = sbr.rel (%p7894) target = $region112
      $region111: #{tpu_custom_call.1} parent=5 // pred_region
        %s7897 = ssub.s32 %s30, 2
        // Predicated region
        $region113: #{tpu_custom_call.1} parent=111 // pred_check
          %p7898 = pneg %p510
        $region114: #{tpu_custom_call.1} parent=111 // pred_check_branch
          %7900 = sbr.rel (%p7898) target = $region116
        $region115: #{tpu_custom_call.1} parent=111 // pred_region
          %s7901 = sand.u32 %s495, 1
          %s7902 = scalar_lea.sflag [#allocation3], %s7901
          %s7903 = sand.u32 %s495, 1
          %s7904 = smul.addr %s7903, 32
          %s7905 = scalar_lea.vmem [#allocation2], %s7904
          %7906 = dma.done %s7902, 512
        $region116: #{tpu_custom_call.1} parent=111 // pred_fallthru
          _
      $region112: #{tpu_custom_call.1} parent=5 // pred_fallthru
        _
    $region6: #{tpu_custom_call.1} parent=1 // loop_footer
      %s34 = sadd.s32 1, %s30
    $region7: #{tpu_custom_call.1} parent=1 // loop_footer_branch
      %29 = sbr.rel target = $region3
    $region8: #{tpu_custom_call.1} parent=1 // loop_exit
      _
    %7907 = vsyncpa [#allocation3], 1
    %s7908 = scalar_lea.sflag [#allocation3], 1
    %7909 = vsyncpa %s7908, 1

</llo_original>
